<compile_context>
chip_gen: v7x
topology: tpu7x:2x2x1
jax: 0.10.0
libtpu: 0.0.40
codegen_flags: <defaults>
</compile_context>

<pallas_src>
import functools
import math

import jax
import jax.numpy as jnp
from jax.experimental import pallas as pl
from jax.experimental.pallas import tpu as pltpu

BN_EPS = 1e-5
_MM_DTYPE = jnp.bfloat16   # storage / MXU-operand dtype of wbig & wtcn
_AB_PAD = 128              # lane-aligned width of each conv_a / conv_b block

# order of the per-block VMEM weight tensors handed to the kernel
_WNAMES = ('wbig', 'bbig', 'pgb', 'pa_big', 'ksa', 'kta', 'mavg_c',
           'wfc1', 'bfc1', 'wfc2', 'bfc2', 'tile_c', 'wtcn', 'btcn')


# ----------------------------------------------------------------------------
# Fused whole-model kernel (grid-less, everything resident in VMEM)
# ----------------------------------------------------------------------------
def _mmgcn_kernel(*refs, N, V, T, cfg1, cfg2):
    f32 = jnp.float32
    NV = N * V
    nw = len(_WNAMES)

    x_ref, blkmask_ref, sash_ref = refs[0:3]
    pos = 3
    w1 = refs[pos:pos + nw]; pos += nw
    s1_ref = refs[pos]; pos += 1
    w2 = refs[pos:pos + nw]; pos += nw
    s2_ref = refs[pos]; pos += 1
    mreg_ref = refs[pos]; pos += 1
    cls_ref, reg_ref = refs[pos:pos + 2]

    blkmask = blkmask_ref[...]                       # (NV, NV) block-diag ones

    def pool_rows(v):
        """Per-batch mean over the V joint rows: (N*V, L) -> (N, L) (XLU)."""
        return jnp.concatenate(
            [jnp.mean(v[n * V:(n + 1) * V, :], axis=0, keepdims=True)
             for n in range(N)], axis=0)

    def expand_rows(g):
        """Per-batch row broadcast: (N, L) -> (N*V, L) (sublane broadcast)."""
        return jnp.concatenate(
            [jnp.broadcast_to(g[n:n + 1, :], (V, g.shape[-1]))
             for n in range(N)], axis=0)

    def aagcn_block(x2, w, s_ref, cfg):
        (wbig_ref, bbig_ref, pgb_ref, pab_ref, ksa_ref, kta_ref, mavg_ref,
         wfc1_ref, bfc1_ref, wfc2_ref, bfc2_ref, tilec_ref, wtcn_ref,
         btcn_ref) = w
        Cout, ker, IT = cfg['Cout'], cfg['ker'], cfg['IT']
        OT = Cout * T

        alpha = s_ref[0]

        # every 1x1 conv of the block (conv_a/b/d x3, unit_gcn down, block
        # residual) + folded BN affines as ONE un-broadcast matmul (bf16 MXU
        # operands, f32 accumulation).
        emb = jnp.dot(x2.astype(_MM_DTYPE), wbig_ref[...],
                      preferred_element_type=f32) + bbig_ref[...]

        d_off, dn_off, rs_off = 0, 3 * OT, 4 * OT
        a_off = 5 * OT
        b_off = a_off + 3 * _AB_PAD

        # adaptive graph aggregation: block-diagonal (N*V, N*V) adjacency,
        # all batches in one lane-dense matmul per branch.  Stays f32.
        ygcn = jnp.zeros((NV, OT), f32)
        for i in range(3):
            a2 = emb[:, a_off + i * _AB_PAD: a_off + (i + 1) * _AB_PAD]
            b2 = emb[:, b_off + i * _AB_PAD: b_off + (i + 1) * _AB_PAD]
            st = jnp.einsum('rl,sl->rs', b2, a2,
                            preferred_element_type=f32) * (1.0 / IT)
            adj = pab_ref[i] + blkmask * (jnp.tanh(st) * alpha)
            d2 = emb[:, d_off + i * OT: d_off + (i + 1) * OT]
            ygcn = ygcn + jnp.dot(adj, d2, preferred_element_type=f32)

        down = emb[:, dn_off:dn_off + OT]
        y = jnp.maximum(ygcn + pgb_ref[...] + down, 0.0)          # (NV, OT)

        # --- spatial attention: gate per (batch, joint) row ---
        u = jnp.dot(y, ksa_ref[...], preferred_element_type=f32)  # (NV, ker)
        gate = jnp.zeros((NV, 1), f32)
        for dv in range(ker):                                     # ker tiny pushes
            gate = gate + jnp.dot(sash_ref[dv], u[:, dv:dv + 1],
                                  preferred_element_type=f32)
        y = y * (1.0 + jax.nn.sigmoid(gate + s_ref[1]))

        # --- temporal attention: gate per (batch, t); channel tiling on VPU ---
        ut = pool_rows(jnp.dot(y, kta_ref[...], preferred_element_type=f32))
        gt = jax.nn.sigmoid(ut + s_ref[2])                        # (N, T)
        y = y * (1.0 + expand_rows(jnp.concatenate([gt] * Cout, axis=-1)))

        # --- channel attention: gate per (batch, channel) ---
        se = pool_rows(jnp.dot(y, mavg_ref[...], preferred_element_type=f32))
        h = jnp.maximum(jnp.dot(se, wfc1_ref[...],
                                preferred_element_type=f32) + bfc1_ref[...], 0.0)
        g = jax.nn.sigmoid(jnp.dot(h, wfc2_ref[...],
                                   preferred_element_type=f32) + bfc2_ref[...])
        # lane-repeat of the channel gate (element repeat) kept as a tiny
        # 2-row constant matmul (a minor-dim reshape would need a relayout).
        gc = jnp.dot(g, tilec_ref[...], preferred_element_type=f32)   # (N, OT)
        y = y * (1.0 + expand_rows(gc))

        # --- unit_tcn (temporal conv as lane->lane matmul) + block residual ---
        t = jnp.dot(y.astype(_MM_DTYPE), wtcn_ref[...],
                    preferred_element_type=f32) + btcn_ref[...]
        res = emb[:, rs_off:rs_off + OT]
        return jnp.maximum(t + res, 0.0)                          # (NV, OT)

    x2 = x_ref[...]
    y1 = aagcn_block(x2, w1, s1_ref, cfg1)
    # nn.Dropout(0.5) between blocks is identity in eval mode.
    # TODO(synk): train-mode dropout masking.
    y2 = aagcn_block(y1, w2, s2_ref, cfg2)

    # heads: x_class = mean over (T, V); x_reg = mean over channels
    mavg2_ref = w2[_WNAMES.index('mavg_c')]
    cls_ref[...] = pool_rows(jnp.dot(y2, mavg2_ref[...],
                                     preferred_element_type=f32))     # (N, Cout2)
    reg = jnp.dot(y2, mreg_ref[...], preferred_element_type=f32)      # (NV, T)
    for n in range(N):
        reg_ref[n, :, :] = reg[n * V:(n + 1) * V, :]


def _mmgcn_pallas_call(packed, x2):
    pk1, pk2 = packed['agcn1'], packed['agcn2']
    N, V, T = pk1['N'], pk1['V'], pk1['T']

    vmem = pl.BlockSpec(memory_space=pltpu.MemorySpace.VMEM)
    smem = pl.BlockSpec(memory_space=pltpu.MemorySpace.SMEM)

    inputs = [x2, packed['blkmask'], packed['sa_shift_big']]
    in_specs = [vmem, vmem, vmem]
    for pk in (pk1, pk2):
        for name in _WNAMES:
            inputs.append(pk[name]); in_specs.append(vmem)
        inputs.append(pk['scalars']); in_specs.append(smem)
    inputs.append(pk2['mreg']); in_specs.append(vmem)

    Cout2 = pk2['Cout']
    out_shape = (jax.ShapeDtypeStruct((N, Cout2), jnp.float32),
                 jax.ShapeDtypeStruct((N, V, T), jnp.float32))
    out_specs = (vmem, vmem)

    cfg1 = dict(Cout=pk1['Cout'], ker=pk1['ker'], IT=(pk1['Cout'] // 4) * T)
    cfg2 = dict(Cout=pk2['Cout'], ker=pk2['ker'], IT=(pk2['Cout'] // 4) * T)

    # advisory cost estimate (rough, true unpadded work)
    NV = N * V
    flops = 0
    for pk in (pk1, pk2):
        OT = pk['Cout'] * T
        flops += 2 * NV * pk['wbig'].shape[0] * pk['wbig'].shape[1]
        flops += 3 * 2 * NV * NV * (_AB_PAD + OT)
        flops += 2 * NV * OT * (pk['ker'] + T + pk['Cout'] + OT)
    transcend = 2 * 3 * NV * NV + 2 * (NV + N * T + N * Cout2)
    nbytes = (4 * NV * x2.shape[1]
              + sum(int(a.size) * a.dtype.itemsize for a in inputs[1:])
              + 4 * (N * Cout2 + N * V * T))

    kernel = functools.partial(_mmgcn_kernel, N=N, V=V, T=T,
                               cfg1=cfg1, cfg2=cfg2)
    return pl.pallas_call(
        kernel,
        out_shape=out_shape,
        in_specs=in_specs,
        out_specs=out_specs,
        cost_estimate=pl.CostEstimate(flops=int(flops),
                                      transcendentals=int(transcend),
                                      bytes_accessed=int(nbytes)),
    )(*inputs)


# ----------------------------------------------------------------------------
# Forward pass
# ----------------------------------------------------------------------------
def mmgcn_joints_forward(packed, joints_input):
    N, C, T, V = joints_input.shape
    # NCTV -> flattened graph layout (N*V, C*T); lane index = c*T + t (tiny,
    # one fused XLA relayout op feeding the single pallas_call).
    x2 = jnp.transpose(joints_input, (0, 3, 1, 2)).reshape(N * V, C * T)
    x_class, reg = _mmgcn_pallas_call(packed, x2)
    x_reg = jnp.transpose(reg, (0, 2, 1))            # (N, V, T) -> (N, T, V)
    return x_class, x_reg


# ----------------------------------------------------------------------------
# Parameter packing: fold convs / BN / pooling into lane->lane matrices.
# ----------------------------------------------------------------------------
def _bn_affine(bn):
    scale = bn['gamma'] / jnp.sqrt(bn['var'] + BN_EPS)   # eval-mode running stats
    shift = bn['beta'] - bn['mean'] * scale
    return scale, shift


def pack_aagcn(p, in_c, out_c, V, T, N):
    assert in_c != out_c, "this script packs the conv residual path (in_c != out_c)"
    gcn, tcn, res = p['gcn1'], p['tcn1'], p['res']
    f32 = jnp.float32
    eye_t = jnp.eye(T, dtype=f32)
    inter = out_c // 4
    IT = inter * T
    OT = out_c * T
    assert IT <= _AB_PAD

    def conv_cols(w):                     # (O, C) 1x1 conv -> (C*T, O*T)
        return jnp.kron(w.T.astype(f32), eye_t)

    gcn_s, gcn_b = _bn_affine(gcn['bn'])
    dn_s, dn_b = _bn_affine(gcn['down']['bn'])
    rs_s, rs_b = _bn_affine(res['bn'])
    tc_s, tc_b = _bn_affine(tcn['bn'])

    cols, biases = [], []
    # wide, 128-lane-aligned blocks first: conv_d x3 (gcn-BN scale folded),
    # unit_gcn 'down' (BN folded), block residual (BN folded)
    bd_sum = jnp.zeros((out_c,), f32)
    for i in range(3):
        cols.append(conv_cols(gcn['conv_d'][i]['w'] * gcn_s[:, None]))
        biases.append(jnp.zeros((OT,), f32))        # bias added after graph matmul
        bd_sum = bd_sum + gcn['conv_d'][i]['b']
    cols.append(conv_cols(gcn['down']['w'] * dn_s[:, None]))
    biases.append(jnp.repeat(gcn['down']['b'] * dn_s + dn_b, T))
    cols.append(conv_cols(res['w'][:, :, 0] * rs_s[:, None]))
    biases.append(jnp.repeat(res['b'] * rs_s + rs_b, T))
    # narrow conv_a / conv_b branch blocks, zero padded to 128 lanes each
    for key in ('conv_a', 'conv_b'):
        for i in range(3):
            c = conv_cols(gcn[key][i]['w'])
            cols.append(jnp.pad(c, ((0, 0), (0, _AB_PAD - IT))))
            biases.append(jnp.pad(jnp.repeat(gcn[key][i]['b'], T),
                                  (0, _AB_PAD - IT)))

    wbig = jnp.concatenate(cols, axis=1).astype(_MM_DTYPE)
    bbig = jnp.concatenate(biases)[None, :]
    pgb = jnp.repeat(gcn_b + gcn_s * bd_sum, T)[None, :]

    # block-diagonal transposed learned adjacency PA^T over the N batches
    eye_n = jnp.eye(N, dtype=f32)
    pa_big = jnp.stack([jnp.kron(eye_n, gcn['PA'][i].T.astype(f32))
                        for i in range(3)])

    # unit_tcn temporal conv as a banded lane->lane matrix (BN folded)
    # TODO(synk): assumes stride-1 temporal conv (matches the reference module).
    K = tcn['w'].shape[-1]
    padt = (K - 1) // 2
    wtcn = jnp.zeros((OT, OT), f32)
    for kk in range(K):
        wtcn = wtcn + jnp.kron((tcn['w'][:, :, kk] * tc_s[:, None]).T,
                               jnp.eye(T, k=padt - kk, dtype=f32))
    btcn = jnp.repeat(tcn['b'] * tc_s + tc_b, T)[None, :]

    # attention packs
    ker = V if V % 2 == 1 else V - 1
    ksa = jnp.kron(gcn['conv_sa_w'][0].astype(f32), jnp.ones((T, 1), f32)) / T
    kta_len = gcn['conv_ta_w'].shape[-1]
    padta = (kta_len - 1) // 2
    kta = jnp.zeros((OT, T), f32)
    for kk in range(kta_len):
        kta = kta + jnp.kron(gcn['conv_ta_w'][0][:, kk:kk + 1].astype(f32),
                             jnp.eye(T, k=padta - kk, dtype=f32))
    mavg_c = jnp.kron(jnp.eye(out_c, dtype=f32), jnp.ones((T, 1), f32)) / T
    tile_c = jnp.repeat(jnp.eye(out_c, dtype=f32), T, axis=1)
    mreg = jnp.tile(eye_t, (out_c, 1)) / out_c

    scalars = jnp.stack([gcn['alpha'][0], gcn['conv_sa_b'][0],
                         gcn['conv_ta_b'][0]]).astype(f32)

    return dict(
        N=N, V=V, T=T, Cin=in_c, Cout=out_c, ker=ker,
        wbig=wbig, bbig=bbig, pgb=pgb, pa_big=pa_big,
        ksa=ksa, kta=kta, mavg_c=mavg_c,
        wfc1=gcn['fc1c_w'].T.astype(f32), bfc1=gcn['fc1c_b'][None, :].astype(f32),
        wfc2=gcn['fc2c_w'].T.astype(f32), bfc2=gcn['fc2c_b'][None, :].astype(f32),
        tile_c=tile_c, wtcn=wtcn.astype(_MM_DTYPE), btcn=btcn,
        mreg=mreg, scalars=scalars,
    )


def pack_model(params, hidden, V, T, N):
    packed = {
        'agcn1': pack_aagcn(params['agcn1'], 3, hidden[0], V, T, N),
        'agcn2': pack_aagcn(params['agcn2'], hidden[0], hidden[1], V, T, N),
    }
    ker = V if V % 2 == 1 else V - 1
    padj = (ker - 1) // 2
    eye_n = jnp.eye(N, dtype=jnp.float32)
    packed['blkmask'] = jnp.kron(eye_n, jnp.ones((V, V), jnp.float32))
    packed['sa_shift_big'] = jnp.stack(
        [jnp.kron(eye_n, jnp.eye(V, k=dv - padj, dtype=jnp.float32))
         for dv in range(ker)])
    return packed


# ----------------------------------------------------------------------------
# Deterministic parameter construction
# ----------------------------------------------------------------------------
class KeyGen:
    def __init__(self, seed):
        self.key = jax.random.PRNGKey(seed)

    def __call__(self):
        self.key, sub = jax.random.split(self.key)
        return sub


def _rand(kg, shape, scale=0.1):
    return scale * jax.random.normal(kg(), shape, dtype=jnp.float32)


def build_graph_A(edge_index, V):
    adj = jnp.zeros((V, V), jnp.float32).at[edge_index[0], edge_index[1]].add(1.0)

    def l1_cols(m):
        s = jnp.sum(jnp.abs(m), axis=0, keepdims=True)
        return m / jnp.maximum(s, 1e-12)

    return jnp.stack([jnp.eye(V, dtype=jnp.float32), l1_cols(adj), l1_cols(adj.T)])


def init_bn(kg, c):
    return {'gamma': 1.0 + _rand(kg, (c,), 0.05),
            'beta': _rand(kg, (c,), 0.02),
            'mean': jnp.zeros((c,), jnp.float32),
            'var': jnp.ones((c,), jnp.float32)}


def init_unit_gcn(kg, in_c, out_c, V, A):
    inter_c = out_c // 4
    p = {
        'PA': jnp.array(A),
        'alpha': jnp.array([0.5], jnp.float32),
        'conv_a': [{'w': _rand(kg, (inter_c, in_c)), 'b': _rand(kg, (inter_c,), 0.02)} for _ in range(3)],
        'conv_b': [{'w': _rand(kg, (inter_c, in_c)), 'b': _rand(kg, (inter_c,), 0.02)} for _ in range(3)],
        'conv_d': [{'w': _rand(kg, (out_c, in_c)), 'b': _rand(kg, (out_c,), 0.02)} for _ in range(3)],
        'bn': init_bn(kg, out_c),
        'down': {'w': _rand(kg, (out_c, in_c)), 'b': _rand(kg, (out_c,), 0.02),
                 'bn': init_bn(kg, out_c)},
    }
    ker_jpt = V - 1 if V % 2 == 0 else V
    p['conv_sa_w'] = _rand(kg, (1, out_c, ker_jpt))
    p['conv_sa_b'] = _rand(kg, (1,), 0.02)
    p['conv_ta_w'] = _rand(kg, (1, out_c, 9))
    p['conv_ta_b'] = _rand(kg, (1,), 0.02)
    p['fc1c_w'] = _rand(kg, (out_c // 2, out_c))
    p['fc1c_b'] = _rand(kg, (out_c // 2,), 0.02)
    p['fc2c_w'] = _rand(kg, (out_c, out_c // 2))
    p['fc2c_b'] = _rand(kg, (out_c,), 0.02)
    return p


def init_unit_tcn(kg, in_c, out_c, K):
    return {'w': _rand(kg, (out_c, in_c, K)), 'b': _rand(kg, (out_c,), 0.02),
            'bn': init_bn(kg, out_c), 'K': K}


def init_aagcn(kg, in_c, out_c, V, A, kernel_size):
    return {'gcn1': init_unit_gcn(kg, in_c, out_c, V, A),
            'tcn1': init_unit_tcn(kg, out_c, out_c, kernel_size),
            'res': init_unit_tcn(kg, in_c, out_c, 1)}   # in_c != out_c residual


# ----------------------------------------------------------------------------
if __name__ == "__main__":
    V = 7
    edge_index = jnp.array([[0, 1, 2, 1, 4, 5],
                            [1, 2, 3, 4, 5, 6]], dtype=jnp.int32)
    hidden = [16, 32]
    kernel_size = 5
    N, T = 2, 8

    A = build_graph_A(edge_index, V)
    kg = KeyGen(1)
    params = {
        'agcn1': init_aagcn(kg, 3, hidden[0], V, A, kernel_size),
        'agcn2': init_aagcn(kg, hidden[0], hidden[1], V, A, kernel_size),
    }
    packed = pack_model(params, hidden, V, T, N)

    joints_input = jax.random.normal(jax.random.PRNGKey(0), (N, 3, T, V),
                                     dtype=jnp.float32)

    fwd = jax.jit(lambda inp: mmgcn_joints_forward(packed, inp))
    x_class, x_reg = fwd(joints_input)
    jax.block_until_ready((x_class, x_reg))

    assert x_class.shape == (N, hidden[1]), x_class.shape
    assert x_reg.shape == (N, T, V), x_reg.shape
    assert bool(jnp.all(jnp.isfinite(x_class))) and bool(jnp.all(jnp.isfinite(x_reg)))
    print("KERNEL_OK")
</pallas_src>

<mosaic_0001>
module attributes {stable_mosaic.version = 11 : i64} {
  func.func @_mmgcn_kernel(%arg0: memref<14x24xf32, #tpu.memory_space<vmem>>, %arg1: memref<14x14xf32, #tpu.memory_space<vmem>>, %arg2: memref<7x14x14xf32, #tpu.memory_space<vmem>>, %arg3: memref<24x1408xbf16, #tpu.memory_space<vmem>>, %arg4: memref<1x1408xf32, #tpu.memory_space<vmem>>, %arg5: memref<1x128xf32, #tpu.memory_space<vmem>>, %arg6: memref<3x14x14xf32, #tpu.memory_space<vmem>>, %arg7: memref<128x7xf32, #tpu.memory_space<vmem>>, %arg8: memref<128x8xf32, #tpu.memory_space<vmem>>, %arg9: memref<128x16xf32, #tpu.memory_space<vmem>>, %arg10: memref<16x8xf32, #tpu.memory_space<vmem>>, %arg11: memref<1x8xf32, #tpu.memory_space<vmem>>, %arg12: memref<8x16xf32, #tpu.memory_space<vmem>>, %arg13: memref<1x16xf32, #tpu.memory_space<vmem>>, %arg14: memref<16x128xf32, #tpu.memory_space<vmem>>, %arg15: memref<128x128xbf16, #tpu.memory_space<vmem>>, %arg16: memref<1x128xf32, #tpu.memory_space<vmem>>, %arg17: memref<3xf32, #tpu.memory_space<smem>>, %arg18: memref<128x2048xbf16, #tpu.memory_space<vmem>>, %arg19: memref<1x2048xf32, #tpu.memory_space<vmem>>, %arg20: memref<1x256xf32, #tpu.memory_space<vmem>>, %arg21: memref<3x14x14xf32, #tpu.memory_space<vmem>>, %arg22: memref<256x7xf32, #tpu.memory_space<vmem>>, %arg23: memref<256x8xf32, #tpu.memory_space<vmem>>, %arg24: memref<256x32xf32, #tpu.memory_space<vmem>>, %arg25: memref<32x16xf32, #tpu.memory_space<vmem>>, %arg26: memref<1x16xf32, #tpu.memory_space<vmem>>, %arg27: memref<16x32xf32, #tpu.memory_space<vmem>>, %arg28: memref<1x32xf32, #tpu.memory_space<vmem>>, %arg29: memref<32x256xf32, #tpu.memory_space<vmem>>, %arg30: memref<256x256xbf16, #tpu.memory_space<vmem>>, %arg31: memref<1x256xf32, #tpu.memory_space<vmem>>, %arg32: memref<3xf32, #tpu.memory_space<smem>>, %arg33: memref<256x8xf32, #tpu.memory_space<vmem>>, %arg34: memref<2x32xf32, #tpu.memory_space<vmem>>, %arg35: memref<2x7x8xf32, #tpu.memory_space<vmem>>) attributes {dimension_semantics = [], scalar_prefetch = 0 : i64, scratch_operands = 0 : i64, tpu.core_type = #tpu.core_type<tc>} {
    %c0 = arith.constant 0 : index
    %c0_0 = arith.constant 0 : index
    %0 = vector.load %arg1[%c0, %c0_0] : memref<14x14xf32, #tpu.memory_space<vmem>>, vector<14x14xf32>
    %c0_1 = arith.constant 0 : index
    %c0_2 = arith.constant 0 : index
    %1 = vector.load %arg0[%c0_1, %c0_2] : memref<14x24xf32, #tpu.memory_space<vmem>>, vector<14x24xf32>
    %c0_3 = arith.constant 0 : index
    %2 = memref.load %arg17[%c0_3] : memref<3xf32, #tpu.memory_space<smem>>
    %3 = arith.truncf %1 : vector<14x24xf32> to vector<14x24xbf16>
    %c0_4 = arith.constant 0 : index
    %c0_5 = arith.constant 0 : index
    %4 = vector.load %arg3[%c0_4, %c0_5] : memref<24x1408xbf16, #tpu.memory_space<vmem>>, vector<24x1408xbf16>
    %cst = arith.constant dense<0.000000e+00> : vector<14x1408xf32>
    %5 = tpu.matmul %3, %4, %cst {dimension_numbers = #tpu.dot_dimension_numbers<[1], [0], [0], [1], [0, 0, 1, 1], [], []>} : vector<14x24xbf16>, vector<24x1408xbf16>, vector<14x1408xf32> -> vector<14x1408xf32>
    %c0_6 = arith.constant 0 : index
    %c0_7 = arith.constant 0 : index
    %6 = vector.load %arg4[%c0_6, %c0_7] : memref<1x1408xf32, #tpu.memory_space<vmem>>, vector<1x1408xf32>
    %7 = vector.broadcast %6 : vector<1x1408xf32> to vector<14x1408xf32>
    %8 = arith.addf %5, %7 : vector<14x1408xf32>
    %cst_8 = arith.constant 0.000000e+00 : f32
    %9 = vector.broadcast %cst_8 : f32 to vector<14x128xf32>
    %10 = vector.extract_strided_slice %8 {offsets = [0, 640], sizes = [14, 128], strides = [1, 1]} : vector<14x1408xf32> to vector<14x128xf32>
    %11 = vector.extract_strided_slice %8 {offsets = [0, 1024], sizes = [14, 128], strides = [1, 1]} : vector<14x1408xf32> to vector<14x128xf32>
    "tpu.trace_start"() <{level = 10 : i32, message = "rl,sl->rs"}> : () -> ()
    %cst_9 = arith.constant dense<0.000000e+00> : vector<14x14xf32>
    %12 = tpu.matmul %11, %10, %cst_9 {dimension_numbers = #tpu.dot_dimension_numbers<[1], [1], [0], [0], [0, 0, 1, 0], [], []>} : vector<14x128xf32>, vector<14x128xf32>, vector<14x14xf32> -> vector<14x14xf32>
    "tpu.trace_stop"() : () -> ()
    %cst_10 = arith.constant 3.125000e-02 : f32
    %13 = vector.broadcast %cst_10 : f32 to vector<14x14xf32>
    %14 = arith.mulf %12, %13 : vector<14x14xf32>
    %c0_11 = arith.constant 0 : index
    %c0_12 = arith.constant 0 : index
    %c0_13 = arith.constant 0 : index
    %15 = vector.load %arg6[%c0_11, %c0_12, %c0_13] : memref<3x14x14xf32, #tpu.memory_space<vmem>>, vector<1x14x14xf32>
    %16 = vector.shape_cast %15 : vector<1x14x14xf32> to vector<14x14xf32>
    %17 = math.tanh %14 : vector<14x14xf32>
    %18 = vector.broadcast %2 : f32 to vector<14x14xf32>
    %19 = arith.mulf %17, %18 : vector<14x14xf32>
    %20 = arith.mulf %0, %19 : vector<14x14xf32>
    %21 = arith.addf %16, %20 : vector<14x14xf32>
    %22 = vector.extract_strided_slice %8 {offsets = [0, 0], sizes = [14, 128], strides = [1, 1]} : vector<14x1408xf32> to vector<14x128xf32>
    %cst_14 = arith.constant dense<0.000000e+00> : vector<14x128xf32>
    %23 = tpu.matmul %21, %22, %cst_14 {dimension_numbers = #tpu.dot_dimension_numbers<[1], [0], [0], [1], [0, 0, 1, 1], [], []>} : vector<14x14xf32>, vector<14x128xf32>, vector<14x128xf32> -> vector<14x128xf32>
    %24 = arith.addf %9, %23 : vector<14x128xf32>
    %25 = vector.extract_strided_slice %8 {offsets = [0, 768], sizes = [14, 128], strides = [1, 1]} : vector<14x1408xf32> to vector<14x128xf32>
    %26 = vector.extract_strided_slice %8 {offsets = [0, 1152], sizes = [14, 128], strides = [1, 1]} : vector<14x1408xf32> to vector<14x128xf32>
    "tpu.trace_start"() <{level = 10 : i32, message = "rl,sl->rs"}> : () -> ()
    %cst_15 = arith.constant dense<0.000000e+00> : vector<14x14xf32>
    %27 = tpu.matmul %26, %25, %cst_15 {dimension_numbers = #tpu.dot_dimension_numbers<[1], [1], [0], [0], [0, 0, 1, 0], [], []>} : vector<14x128xf32>, vector<14x128xf32>, vector<14x14xf32> -> vector<14x14xf32>
    "tpu.trace_stop"() : () -> ()
    %cst_16 = arith.constant 3.125000e-02 : f32
    %28 = vector.broadcast %cst_16 : f32 to vector<14x14xf32>
    %29 = arith.mulf %27, %28 : vector<14x14xf32>
    %c1 = arith.constant 1 : index
    %c0_17 = arith.constant 0 : index
    %c0_18 = arith.constant 0 : index
    %30 = vector.load %arg6[%c1, %c0_17, %c0_18] : memref<3x14x14xf32, #tpu.memory_space<vmem>>, vector<1x14x14xf32>
    %31 = vector.shape_cast %30 : vector<1x14x14xf32> to vector<14x14xf32>
    %32 = math.tanh %29 : vector<14x14xf32>
    %33 = vector.broadcast %2 : f32 to vector<14x14xf32>
    %34 = arith.mulf %32, %33 : vector<14x14xf32>
    %35 = arith.mulf %0, %34 : vector<14x14xf32>
    %36 = arith.addf %31, %35 : vector<14x14xf32>
    %37 = vector.extract_strided_slice %8 {offsets = [0, 128], sizes = [14, 128], strides = [1, 1]} : vector<14x1408xf32> to vector<14x128xf32>
    %cst_19 = arith.constant dense<0.000000e+00> : vector<14x128xf32>
    %38 = tpu.matmul %36, %37, %cst_19 {dimension_numbers = #tpu.dot_dimension_numbers<[1], [0], [0], [1], [0, 0, 1, 1], [], []>} : vector<14x14xf32>, vector<14x128xf32>, vector<14x128xf32> -> vector<14x128xf32>
    %39 = arith.addf %24, %38 : vector<14x128xf32>
    %40 = vector.extract_strided_slice %8 {offsets = [0, 896], sizes = [14, 128], strides = [1, 1]} : vector<14x1408xf32> to vector<14x128xf32>
    %41 = vector.extract_strided_slice %8 {offsets = [0, 1280], sizes = [14, 128], strides = [1, 1]} : vector<14x1408xf32> to vector<14x128xf32>
    "tpu.trace_start"() <{level = 10 : i32, message = "rl,sl->rs"}> : () -> ()
    %cst_20 = arith.constant dense<0.000000e+00> : vector<14x14xf32>
    %42 = tpu.matmul %41, %40, %cst_20 {dimension_numbers = #tpu.dot_dimension_numbers<[1], [1], [0], [0], [0, 0, 1, 0], [], []>} : vector<14x128xf32>, vector<14x128xf32>, vector<14x14xf32> -> vector<14x14xf32>
    "tpu.trace_stop"() : () -> ()
    %cst_21 = arith.constant 3.125000e-02 : f32
    %43 = vector.broadcast %cst_21 : f32 to vector<14x14xf32>
    %44 = arith.mulf %42, %43 : vector<14x14xf32>
    %c2 = arith.constant 2 : index
    %c0_22 = arith.constant 0 : index
    %c0_23 = arith.constant 0 : index
    %45 = vector.load %arg6[%c2, %c0_22, %c0_23] : memref<3x14x14xf32, #tpu.memory_space<vmem>>, vector<1x14x14xf32>
    %46 = vector.shape_cast %45 : vector<1x14x14xf32> to vector<14x14xf32>
    %47 = math.tanh %44 : vector<14x14xf32>
    %48 = vector.broadcast %2 : f32 to vector<14x14xf32>
    %49 = arith.mulf %47, %48 : vector<14x14xf32>
    %50 = arith.mulf %0, %49 : vector<14x14xf32>
    %51 = arith.addf %46, %50 : vector<14x14xf32>
    %52 = vector.extract_strided_slice %8 {offsets = [0, 256], sizes = [14, 128], strides = [1, 1]} : vector<14x1408xf32> to vector<14x128xf32>
    %cst_24 = arith.constant dense<0.000000e+00> : vector<14x128xf32>
    %53 = tpu.matmul %51, %52, %cst_24 {dimension_numbers = #tpu.dot_dimension_numbers<[1], [0], [0], [1], [0, 0, 1, 1], [], []>} : vector<14x14xf32>, vector<14x128xf32>, vector<14x128xf32> -> vector<14x128xf32>
    %54 = arith.addf %39, %53 : vector<14x128xf32>
    %55 = vector.extract_strided_slice %8 {offsets = [0, 384], sizes = [14, 128], strides = [1, 1]} : vector<14x1408xf32> to vector<14x128xf32>
    %c0_25 = arith.constant 0 : index
    %c0_26 = arith.constant 0 : index
    %56 = vector.load %arg5[%c0_25, %c0_26] : memref<1x128xf32, #tpu.memory_space<vmem>>, vector<1x128xf32>
    %57 = vector.broadcast %56 : vector<1x128xf32> to vector<14x128xf32>
    %58 = arith.addf %54, %57 : vector<14x128xf32>
    %59 = arith.addf %58, %55 : vector<14x128xf32>
    %cst_27 = arith.constant 0.000000e+00 : f32
    %60 = vector.broadcast %cst_27 : f32 to vector<14x128xf32>
    %61 = arith.maximumf %59, %60 : vector<14x128xf32>
    %c0_28 = arith.constant 0 : index
    %c0_29 = arith.constant 0 : index
    %62 = vector.load %arg7[%c0_28, %c0_29] : memref<128x7xf32, #tpu.memory_space<vmem>>, vector<128x7xf32>
    %cst_30 = arith.constant dense<0.000000e+00> : vector<14x7xf32>
    %63 = tpu.matmul %61, %62, %cst_30 {dimension_numbers = #tpu.dot_dimension_numbers<[1], [0], [0], [1], [0, 0, 1, 1], [], []>} : vector<14x128xf32>, vector<128x7xf32>, vector<14x7xf32> -> vector<14x7xf32>
    %cst_31 = arith.constant 0.000000e+00 : f32
    %64 = vector.broadcast %cst_31 : f32 to vector<14x1xf32>
    %c0_32 = arith.constant 0 : index
    %c0_33 = arith.constant 0 : index
    %c0_34 = arith.constant 0 : index
    %65 = vector.load %arg2[%c0_32, %c0_33, %c0_34] : memref<7x14x14xf32, #tpu.memory_space<vmem>>, vector<1x14x14xf32>
    %66 = vector.shape_cast %65 : vector<1x14x14xf32> to vector<14x14xf32>
    %67 = vector.extract_strided_slice %63 {offsets = [0, 0], sizes = [14, 1], strides = [1, 1]} : vector<14x7xf32> to vector<14x1xf32>
    %cst_35 = arith.constant dense<0.000000e+00> : vector<14x1xf32>
    %68 = tpu.matmul %66, %67, %cst_35 {dimension_numbers = #tpu.dot_dimension_numbers<[1], [0], [0], [1], [0, 0, 1, 1], [], []>} : vector<14x14xf32>, vector<14x1xf32>, vector<14x1xf32> -> vector<14x1xf32>
    %69 = arith.addf %64, %68 : vector<14x1xf32>
    %c1_36 = arith.constant 1 : index
    %c0_37 = arith.constant 0 : index
    %c0_38 = arith.constant 0 : index
    %70 = vector.load %arg2[%c1_36, %c0_37, %c0_38] : memref<7x14x14xf32, #tpu.memory_space<vmem>>, vector<1x14x14xf32>
    %71 = vector.shape_cast %70 : vector<1x14x14xf32> to vector<14x14xf32>
    %72 = vector.extract_strided_slice %63 {offsets = [0, 1], sizes = [14, 1], strides = [1, 1]} : vector<14x7xf32> to vector<14x1xf32>
    %cst_39 = arith.constant dense<0.000000e+00> : vector<14x1xf32>
    %73 = tpu.matmul %71, %72, %cst_39 {dimension_numbers = #tpu.dot_dimension_numbers<[1], [0], [0], [1], [0, 0, 1, 1], [], []>} : vector<14x14xf32>, vector<14x1xf32>, vector<14x1xf32> -> vector<14x1xf32>
    %74 = arith.addf %69, %73 : vector<14x1xf32>
    %c2_40 = arith.constant 2 : index
    %c0_41 = arith.constant 0 : index
    %c0_42 = arith.constant 0 : index
    %75 = vector.load %arg2[%c2_40, %c0_41, %c0_42] : memref<7x14x14xf32, #tpu.memory_space<vmem>>, vector<1x14x14xf32>
    %76 = vector.shape_cast %75 : vector<1x14x14xf32> to vector<14x14xf32>
    %77 = vector.extract_strided_slice %63 {offsets = [0, 2], sizes = [14, 1], strides = [1, 1]} : vector<14x7xf32> to vector<14x1xf32>
    %cst_43 = arith.constant dense<0.000000e+00> : vector<14x1xf32>
    %78 = tpu.matmul %76, %77, %cst_43 {dimension_numbers = #tpu.dot_dimension_numbers<[1], [0], [0], [1], [0, 0, 1, 1], [], []>} : vector<14x14xf32>, vector<14x1xf32>, vector<14x1xf32> -> vector<14x1xf32>
    %79 = arith.addf %74, %78 : vector<14x1xf32>
    %c3 = arith.constant 3 : index
    %c0_44 = arith.constant 0 : index
    %c0_45 = arith.constant 0 : index
    %80 = vector.load %arg2[%c3, %c0_44, %c0_45] : memref<7x14x14xf32, #tpu.memory_space<vmem>>, vector<1x14x14xf32>
    %81 = vector.shape_cast %80 : vector<1x14x14xf32> to vector<14x14xf32>
    %82 = vector.extract_strided_slice %63 {offsets = [0, 3], sizes = [14, 1], strides = [1, 1]} : vector<14x7xf32> to vector<14x1xf32>
    %cst_46 = arith.constant dense<0.000000e+00> : vector<14x1xf32>
    %83 = tpu.matmul %81, %82, %cst_46 {dimension_numbers = #tpu.dot_dimension_numbers<[1], [0], [0], [1], [0, 0, 1, 1], [], []>} : vector<14x14xf32>, vector<14x1xf32>, vector<14x1xf32> -> vector<14x1xf32>
    %84 = arith.addf %79, %83 : vector<14x1xf32>
    %c4 = arith.constant 4 : index
    %c0_47 = arith.constant 0 : index
    %c0_48 = arith.constant 0 : index
    %85 = vector.load %arg2[%c4, %c0_47, %c0_48] : memref<7x14x14xf32, #tpu.memory_space<vmem>>, vector<1x14x14xf32>
    %86 = vector.shape_cast %85 : vector<1x14x14xf32> to vector<14x14xf32>
    %87 = vector.extract_strided_slice %63 {offsets = [0, 4], sizes = [14, 1], strides = [1, 1]} : vector<14x7xf32> to vector<14x1xf32>
    %cst_49 = arith.constant dense<0.000000e+00> : vector<14x1xf32>
    %88 = tpu.matmul %86, %87, %cst_49 {dimension_numbers = #tpu.dot_dimension_numbers<[1], [0], [0], [1], [0, 0, 1, 1], [], []>} : vector<14x14xf32>, vector<14x1xf32>, vector<14x1xf32> -> vector<14x1xf32>
    %89 = arith.addf %84, %88 : vector<14x1xf32>
    %c5 = arith.constant 5 : index
    %c0_50 = arith.constant 0 : index
    %c0_51 = arith.constant 0 : index
    %90 = vector.load %arg2[%c5, %c0_50, %c0_51] : memref<7x14x14xf32, #tpu.memory_space<vmem>>, vector<1x14x14xf32>
    %91 = vector.shape_cast %90 : vector<1x14x14xf32> to vector<14x14xf32>
    %92 = vector.extract_strided_slice %63 {offsets = [0, 5], sizes = [14, 1], strides = [1, 1]} : vector<14x7xf32> to vector<14x1xf32>
    %cst_52 = arith.constant dense<0.000000e+00> : vector<14x1xf32>
    %93 = tpu.matmul %91, %92, %cst_52 {dimension_numbers = #tpu.dot_dimension_numbers<[1], [0], [0], [1], [0, 0, 1, 1], [], []>} : vector<14x14xf32>, vector<14x1xf32>, vector<14x1xf32> -> vector<14x1xf32>
    %94 = arith.addf %89, %93 : vector<14x1xf32>
    %c6 = arith.constant 6 : index
    %c0_53 = arith.constant 0 : index
    %c0_54 = arith.constant 0 : index
    %95 = vector.load %arg2[%c6, %c0_53, %c0_54] : memref<7x14x14xf32, #tpu.memory_space<vmem>>, vector<1x14x14xf32>
    %96 = vector.shape_cast %95 : vector<1x14x14xf32> to vector<14x14xf32>
    %97 = vector.extract_strided_slice %63 {offsets = [0, 6], sizes = [14, 1], strides = [1, 1]} : vector<14x7xf32> to vector<14x1xf32>
    %cst_55 = arith.constant dense<0.000000e+00> : vector<14x1xf32>
    %98 = tpu.matmul %96, %97, %cst_55 {dimension_numbers = #tpu.dot_dimension_numbers<[1], [0], [0], [1], [0, 0, 1, 1], [], []>} : vector<14x14xf32>, vector<14x1xf32>, vector<14x1xf32> -> vector<14x1xf32>
    %99 = arith.addf %94, %98 : vector<14x1xf32>
    %c1_56 = arith.constant 1 : index
    %100 = memref.load %arg17[%c1_56] : memref<3xf32, #tpu.memory_space<smem>>
    %101 = vector.broadcast %100 : f32 to vector<14x1xf32>
    %102 = arith.addf %99, %101 : vector<14x1xf32>
    %103 = arith.negf %102 : vector<14x1xf32>
    %104 = math.exp %103 : vector<14x1xf32>
    %cst_57 = arith.constant 1.000000e+00 : f32
    %105 = vector.broadcast %cst_57 : f32 to vector<14x1xf32>
    %106 = arith.addf %105, %104 : vector<14x1xf32>
    %107 = arith.divf %105, %106 : vector<14x1xf32>
    %cst_58 = arith.constant 1.000000e+00 : f32
    %108 = vector.broadcast %cst_58 : f32 to vector<14x1xf32>
    %109 = arith.addf %108, %107 : vector<14x1xf32>
    %110 = vector.broadcast %109 : vector<14x1xf32> to vector<14x128xf32>
    %111 = arith.mulf %61, %110 : vector<14x128xf32>
    %c0_59 = arith.constant 0 : index
    %c0_60 = arith.constant 0 : index
    %112 = vector.load %arg8[%c0_59, %c0_60] : memref<128x8xf32, #tpu.memory_space<vmem>>, vector<128x8xf32>
    %cst_61 = arith.constant dense<0.000000e+00> : vector<14x8xf32>
    %113 = tpu.matmul %111, %112, %cst_61 {dimension_numbers = #tpu.dot_dimension_numbers<[1], [0], [0], [1], [0, 0, 1, 1], [], []>} : vector<14x128xf32>, vector<128x8xf32>, vector<14x8xf32> -> vector<14x8xf32>
    %114 = vector.extract_strided_slice %113 {offsets = [0, 0], sizes = [7, 8], strides = [1, 1]} : vector<14x8xf32> to vector<7x8xf32>
    %cst_62 = arith.constant dense<0.000000e+00> : vector<8xf32>
    %115 = vector.multi_reduction <add>, %114, %cst_62 [0] : vector<7x8xf32> to vector<8xf32>
    %116 = vector.shape_cast %115 : vector<8xf32> to vector<1x8xf32>
    %cst_63 = arith.constant 7.000000e+00 : f32
    %117 = vector.broadcast %cst_63 : f32 to vector<1x8xf32>
    %118 = arith.divf %116, %117 : vector<1x8xf32>
    %119 = vector.extract_strided_slice %113 {offsets = [7, 0], sizes = [7, 8], strides = [1, 1]} : vector<14x8xf32> to vector<7x8xf32>
    %cst_64 = arith.constant dense<0.000000e+00> : vector<8xf32>
    %120 = vector.multi_reduction <add>, %119, %cst_64 [0] : vector<7x8xf32> to vector<8xf32>
    %121 = vector.shape_cast %120 : vector<8xf32> to vector<1x8xf32>
    %cst_65 = arith.constant 7.000000e+00 : f32
    %122 = vector.broadcast %cst_65 : f32 to vector<1x8xf32>
    %123 = arith.divf %121, %122 : vector<1x8xf32>
    %124 = tpu.concatenate %118, %123 in 0 : vector<1x8xf32>, vector<1x8xf32> -> vector<2x8xf32>
    %c2_66 = arith.constant 2 : index
    %125 = memref.load %arg17[%c2_66] : memref<3xf32, #tpu.memory_space<smem>>
    %126 = vector.broadcast %125 : f32 to vector<2x8xf32>
    %127 = arith.addf %124, %126 : vector<2x8xf32>
    %128 = arith.negf %127 : vector<2x8xf32>
    %129 = math.exp %128 : vector<2x8xf32>
    %cst_67 = arith.constant 1.000000e+00 : f32
    %130 = vector.broadcast %cst_67 : f32 to vector<2x8xf32>
    %131 = arith.addf %130, %129 : vector<2x8xf32>
    %132 = arith.divf %130, %131 : vector<2x8xf32>
    %133 = tpu.concatenate %132, %132, %132, %132, %132, %132, %132, %132, %132, %132, %132, %132, %132, %132, %132, %132 in 1 : vector<2x8xf32>, vector<2x8xf32>, vector<2x8xf32>, vector<2x8xf32>, vector<2x8xf32>, vector<2x8xf32>, vector<2x8xf32>, vector<2x8xf32>, vector<2x8xf32>, vector<2x8xf32>, vector<2x8xf32>, vector<2x8xf32>, vector<2x8xf32>, vector<2x8xf32>, vector<2x8xf32>, vector<2x8xf32> -> vector<2x128xf32>
    %134 = vector.extract_strided_slice %133 {offsets = [0, 0], sizes = [1, 128], strides = [1, 1]} : vector<2x128xf32> to vector<1x128xf32>
    %135 = vector.shape_cast %134 : vector<1x128xf32> to vector<1x128xf32>
    %136 = vector.broadcast %135 : vector<1x128xf32> to vector<7x128xf32>
    %137 = vector.extract_strided_slice %133 {offsets = [1, 0], sizes = [1, 128], strides = [1, 1]} : vector<2x128xf32> to vector<1x128xf32>
    %138 = vector.shape_cast %137 : vector<1x128xf32> to vector<1x128xf32>
    %139 = vector.broadcast %138 : vector<1x128xf32> to vector<7x128xf32>
    %140 = tpu.concatenate %136, %139 in 0 : vector<7x128xf32>, vector<7x128xf32> -> vector<14x128xf32>
    %cst_68 = arith.constant 1.000000e+00 : f32
    %141 = vector.broadcast %cst_68 : f32 to vector<14x128xf32>
    %142 = arith.addf %141, %140 : vector<14x128xf32>
    %143 = arith.mulf %111, %142 : vector<14x128xf32>
    %c0_69 = arith.constant 0 : index
    %c0_70 = arith.constant 0 : index
    %144 = vector.load %arg9[%c0_69, %c0_70] : memref<128x16xf32, #tpu.memory_space<vmem>>, vector<128x16xf32>
    %cst_71 = arith.constant dense<0.000000e+00> : vector<14x16xf32>
    %145 = tpu.matmul %143, %144, %cst_71 {dimension_numbers = #tpu.dot_dimension_numbers<[1], [0], [0], [1], [0, 0, 1, 1], [], []>} : vector<14x128xf32>, vector<128x16xf32>, vector<14x16xf32> -> vector<14x16xf32>
    %146 = vector.extract_strided_slice %145 {offsets = [0, 0], sizes = [7, 16], strides = [1, 1]} : vector<14x16xf32> to vector<7x16xf32>
    %cst_72 = arith.constant dense<0.000000e+00> : vector<16xf32>
    %147 = vector.multi_reduction <add>, %146, %cst_72 [0] : vector<7x16xf32> to vector<16xf32>
    %148 = vector.shape_cast %147 : vector<16xf32> to vector<1x16xf32>
    %cst_73 = arith.constant 7.000000e+00 : f32
    %149 = vector.broadcast %cst_73 : f32 to vector<1x16xf32>
    %150 = arith.divf %148, %149 : vector<1x16xf32>
    %151 = vector.extract_strided_slice %145 {offsets = [7, 0], sizes = [7, 16], strides = [1, 1]} : vector<14x16xf32> to vector<7x16xf32>
    %cst_74 = arith.constant dense<0.000000e+00> : vector<16xf32>
    %152 = vector.multi_reduction <add>, %151, %cst_74 [0] : vector<7x16xf32> to vector<16xf32>
    %153 = vector.shape_cast %152 : vector<16xf32> to vector<1x16xf32>
    %cst_75 = arith.constant 7.000000e+00 : f32
    %154 = vector.broadcast %cst_75 : f32 to vector<1x16xf32>
    %155 = arith.divf %153, %154 : vector<1x16xf32>
    %156 = tpu.concatenate %150, %155 in 0 : vector<1x16xf32>, vector<1x16xf32> -> vector<2x16xf32>
    %c0_76 = arith.constant 0 : index
    %c0_77 = arith.constant 0 : index
    %157 = vector.load %arg10[%c0_76, %c0_77] : memref<16x8xf32, #tpu.memory_space<vmem>>, vector<16x8xf32>
    %cst_78 = arith.constant dense<0.000000e+00> : vector<2x8xf32>
    %158 = tpu.matmul %156, %157, %cst_78 {dimension_numbers = #tpu.dot_dimension_numbers<[1], [0], [0], [1], [0, 0, 1, 1], [], []>} : vector<2x16xf32>, vector<16x8xf32>, vector<2x8xf32> -> vector<2x8xf32>
    %c0_79 = arith.constant 0 : index
    %c0_80 = arith.constant 0 : index
    %159 = vector.load %arg11[%c0_79, %c0_80] : memref<1x8xf32, #tpu.memory_space<vmem>>, vector<1x8xf32>
    %160 = vector.broadcast %159 : vector<1x8xf32> to vector<2x8xf32>
    %161 = arith.addf %158, %160 : vector<2x8xf32>
    %cst_81 = arith.constant 0.000000e+00 : f32
    %162 = vector.broadcast %cst_81 : f32 to vector<2x8xf32>
    %163 = arith.maximumf %161, %162 : vector<2x8xf32>
    %c0_82 = arith.constant 0 : index
    %c0_83 = arith.constant 0 : index
    %164 = vector.load %arg12[%c0_82, %c0_83] : memref<8x16xf32, #tpu.memory_space<vmem>>, vector<8x16xf32>
    %cst_84 = arith.constant dense<0.000000e+00> : vector<2x16xf32>
    %165 = tpu.matmul %163, %164, %cst_84 {dimension_numbers = #tpu.dot_dimension_numbers<[1], [0], [0], [1], [0, 0, 1, 1], [], []>} : vector<2x8xf32>, vector<8x16xf32>, vector<2x16xf32> -> vector<2x16xf32>
    %c0_85 = arith.constant 0 : index
    %c0_86 = arith.constant 0 : index
    %166 = vector.load %arg13[%c0_85, %c0_86] : memref<1x16xf32, #tpu.memory_space<vmem>>, vector<1x16xf32>
    %167 = vector.broadcast %166 : vector<1x16xf32> to vector<2x16xf32>
    %168 = arith.addf %165, %167 : vector<2x16xf32>
    %169 = arith.negf %168 : vector<2x16xf32>
    %170 = math.exp %169 : vector<2x16xf32>
    %cst_87 = arith.constant 1.000000e+00 : f32
    %171 = vector.broadcast %cst_87 : f32 to vector<2x16xf32>
    %172 = arith.addf %171, %170 : vector<2x16xf32>
    %173 = arith.divf %171, %172 : vector<2x16xf32>
    %c0_88 = arith.constant 0 : index
    %c0_89 = arith.constant 0 : index
    %174 = vector.load %arg14[%c0_88, %c0_89] : memref<16x128xf32, #tpu.memory_space<vmem>>, vector<16x128xf32>
    %cst_90 = arith.constant dense<0.000000e+00> : vector<2x128xf32>
    %175 = tpu.matmul %173, %174, %cst_90 {dimension_numbers = #tpu.dot_dimension_numbers<[1], [0], [0], [1], [0, 0, 1, 1], [], []>} : vector<2x16xf32>, vector<16x128xf32>, vector<2x128xf32> -> vector<2x128xf32>
    %176 = vector.extract_strided_slice %175 {offsets = [0, 0], sizes = [1, 128], strides = [1, 1]} : vector<2x128xf32> to vector<1x128xf32>
    %177 = vector.shape_cast %176 : vector<1x128xf32> to vector<1x128xf32>
    %178 = vector.broadcast %177 : vector<1x128xf32> to vector<7x128xf32>
    %179 = vector.extract_strided_slice %175 {offsets = [1, 0], sizes = [1, 128], strides = [1, 1]} : vector<2x128xf32> to vector<1x128xf32>
    %180 = vector.shape_cast %179 : vector<1x128xf32> to vector<1x128xf32>
    %181 = vector.broadcast %180 : vector<1x128xf32> to vector<7x128xf32>
    %182 = tpu.concatenate %178, %181 in 0 : vector<7x128xf32>, vector<7x128xf32> -> vector<14x128xf32>
    %cst_91 = arith.constant 1.000000e+00 : f32
    %183 = vector.broadcast %cst_91 : f32 to vector<14x128xf32>
    %184 = arith.addf %183, %182 : vector<14x128xf32>
    %185 = arith.mulf %143, %184 : vector<14x128xf32>
    %186 = arith.truncf %185 : vector<14x128xf32> to vector<14x128xbf16>
    %c0_92 = arith.constant 0 : index
    %c0_93 = arith.constant 0 : index
    %187 = vector.load %arg15[%c0_92, %c0_93] : memref<128x128xbf16, #tpu.memory_space<vmem>>, vector<128x128xbf16>
    %cst_94 = arith.constant dense<0.000000e+00> : vector<14x128xf32>
    %188 = tpu.matmul %186, %187, %cst_94 {dimension_numbers = #tpu.dot_dimension_numbers<[1], [0], [0], [1], [0, 0, 1, 1], [], []>} : vector<14x128xbf16>, vector<128x128xbf16>, vector<14x128xf32> -> vector<14x128xf32>
    %c0_95 = arith.constant 0 : index
    %c0_96 = arith.constant 0 : index
    %189 = vector.load %arg16[%c0_95, %c0_96] : memref<1x128xf32, #tpu.memory_space<vmem>>, vector<1x128xf32>
    %190 = vector.broadcast %189 : vector<1x128xf32> to vector<14x128xf32>
    %191 = arith.addf %188, %190 : vector<14x128xf32>
    %192 = vector.extract_strided_slice %8 {offsets = [0, 512], sizes = [14, 128], strides = [1, 1]} : vector<14x1408xf32> to vector<14x128xf32>
    %193 = arith.addf %191, %192 : vector<14x128xf32>
    %cst_97 = arith.constant 0.000000e+00 : f32
    %194 = vector.broadcast %cst_97 : f32 to vector<14x128xf32>
    %195 = arith.maximumf %193, %194 : vector<14x128xf32>
    %c0_98 = arith.constant 0 : index
    %196 = memref.load %arg32[%c0_98] : memref<3xf32, #tpu.memory_space<smem>>
    %197 = arith.truncf %195 : vector<14x128xf32> to vector<14x128xbf16>
    %c0_99 = arith.constant 0 : index
    %c0_100 = arith.constant 0 : index
    %198 = vector.load %arg18[%c0_99, %c0_100] : memref<128x2048xbf16, #tpu.memory_space<vmem>>, vector<128x2048xbf16>
    %cst_101 = arith.constant dense<0.000000e+00> : vector<14x2048xf32>
    %199 = tpu.matmul %197, %198, %cst_101 {dimension_numbers = #tpu.dot_dimension_numbers<[1], [0], [0], [1], [0, 0, 1, 1], [], []>} : vector<14x128xbf16>, vector<128x2048xbf16>, vector<14x2048xf32> -> vector<14x2048xf32>
    %c0_102 = arith.constant 0 : index
    %c0_103 = arith.constant 0 : index
    %200 = vector.load %arg19[%c0_102, %c0_103] : memref<1x2048xf32, #tpu.memory_space<vmem>>, vector<1x2048xf32>
    %201 = vector.broadcast %200 : vector<1x2048xf32> to vector<14x2048xf32>
    %202 = arith.addf %199, %201 : vector<14x2048xf32>
    %cst_104 = arith.constant 0.000000e+00 : f32
    %203 = vector.broadcast %cst_104 : f32 to vector<14x256xf32>
    %204 = vector.extract_strided_slice %202 {offsets = [0, 1280], sizes = [14, 128], strides = [1, 1]} : vector<14x2048xf32> to vector<14x128xf32>
    %205 = vector.extract_strided_slice %202 {offsets = [0, 1664], sizes = [14, 128], strides = [1, 1]} : vector<14x2048xf32> to vector<14x128xf32>
    "tpu.trace_start"() <{level = 10 : i32, message = "rl,sl->rs"}> : () -> ()
    %cst_105 = arith.constant dense<0.000000e+00> : vector<14x14xf32>
    %206 = tpu.matmul %205, %204, %cst_105 {dimension_numbers = #tpu.dot_dimension_numbers<[1], [1], [0], [0], [0, 0, 1, 0], [], []>} : vector<14x128xf32>, vector<14x128xf32>, vector<14x14xf32> -> vector<14x14xf32>
    "tpu.trace_stop"() : () -> ()
    %cst_106 = arith.constant 1.562500e-02 : f32
    %207 = vector.broadcast %cst_106 : f32 to vector<14x14xf32>
    %208 = arith.mulf %206, %207 : vector<14x14xf32>
    %c0_107 = arith.constant 0 : index
    %c0_108 = arith.constant 0 : index
    %c0_109 = arith.constant 0 : index
    %209 = vector.load %arg21[%c0_107, %c0_108, %c0_109] : memref<3x14x14xf32, #tpu.memory_space<vmem>>, vector<1x14x14xf32>
    %210 = vector.shape_cast %209 : vector<1x14x14xf32> to vector<14x14xf32>
    %211 = math.tanh %208 : vector<14x14xf32>
    %212 = vector.broadcast %196 : f32 to vector<14x14xf32>
    %213 = arith.mulf %211, %212 : vector<14x14xf32>
    %214 = arith.mulf %0, %213 : vector<14x14xf32>
    %215 = arith.addf %210, %214 : vector<14x14xf32>
    %216 = vector.extract_strided_slice %202 {offsets = [0, 0], sizes = [14, 256], strides = [1, 1]} : vector<14x2048xf32> to vector<14x256xf32>
    %cst_110 = arith.constant dense<0.000000e+00> : vector<14x256xf32>
    %217 = tpu.matmul %215, %216, %cst_110 {dimension_numbers = #tpu.dot_dimension_numbers<[1], [0], [0], [1], [0, 0, 1, 1], [], []>} : vector<14x14xf32>, vector<14x256xf32>, vector<14x256xf32> -> vector<14x256xf32>
    %218 = arith.addf %203, %217 : vector<14x256xf32>
    %219 = vector.extract_strided_slice %202 {offsets = [0, 1408], sizes = [14, 128], strides = [1, 1]} : vector<14x2048xf32> to vector<14x128xf32>
    %220 = vector.extract_strided_slice %202 {offsets = [0, 1792], sizes = [14, 128], strides = [1, 1]} : vector<14x2048xf32> to vector<14x128xf32>
    "tpu.trace_start"() <{level = 10 : i32, message = "rl,sl->rs"}> : () -> ()
    %cst_111 = arith.constant dense<0.000000e+00> : vector<14x14xf32>
    %221 = tpu.matmul %220, %219, %cst_111 {dimension_numbers = #tpu.dot_dimension_numbers<[1], [1], [0], [0], [0, 0, 1, 0], [], []>} : vector<14x128xf32>, vector<14x128xf32>, vector<14x14xf32> -> vector<14x14xf32>
    "tpu.trace_stop"() : () -> ()
    %cst_112 = arith.constant 1.562500e-02 : f32
    %222 = vector.broadcast %cst_112 : f32 to vector<14x14xf32>
    %223 = arith.mulf %221, %222 : vector<14x14xf32>
    %c1_113 = arith.constant 1 : index
    %c0_114 = arith.constant 0 : index
    %c0_115 = arith.constant 0 : index
    %224 = vector.load %arg21[%c1_113, %c0_114, %c0_115] : memref<3x14x14xf32, #tpu.memory_space<vmem>>, vector<1x14x14xf32>
    %225 = vector.shape_cast %224 : vector<1x14x14xf32> to vector<14x14xf32>
    %226 = math.tanh %223 : vector<14x14xf32>
    %227 = vector.broadcast %196 : f32 to vector<14x14xf32>
    %228 = arith.mulf %226, %227 : vector<14x14xf32>
    %229 = arith.mulf %0, %228 : vector<14x14xf32>
    %230 = arith.addf %225, %229 : vector<14x14xf32>
    %231 = vector.extract_strided_slice %202 {offsets = [0, 256], sizes = [14, 256], strides = [1, 1]} : vector<14x2048xf32> to vector<14x256xf32>
    %cst_116 = arith.constant dense<0.000000e+00> : vector<14x256xf32>
    %232 = tpu.matmul %230, %231, %cst_116 {dimension_numbers = #tpu.dot_dimension_numbers<[1], [0], [0], [1], [0, 0, 1, 1], [], []>} : vector<14x14xf32>, vector<14x256xf32>, vector<14x256xf32> -> vector<14x256xf32>
    %233 = arith.addf %218, %232 : vector<14x256xf32>
    %234 = vector.extract_strided_slice %202 {offsets = [0, 1536], sizes = [14, 128], strides = [1, 1]} : vector<14x2048xf32> to vector<14x128xf32>
    %235 = vector.extract_strided_slice %202 {offsets = [0, 1920], sizes = [14, 128], strides = [1, 1]} : vector<14x2048xf32> to vector<14x128xf32>
    "tpu.trace_start"() <{level = 10 : i32, message = "rl,sl->rs"}> : () -> ()
    %cst_117 = arith.constant dense<0.000000e+00> : vector<14x14xf32>
    %236 = tpu.matmul %235, %234, %cst_117 {dimension_numbers = #tpu.dot_dimension_numbers<[1], [1], [0], [0], [0, 0, 1, 0], [], []>} : vector<14x128xf32>, vector<14x128xf32>, vector<14x14xf32> -> vector<14x14xf32>
    "tpu.trace_stop"() : () -> ()
    %cst_118 = arith.constant 1.562500e-02 : f32
    %237 = vector.broadcast %cst_118 : f32 to vector<14x14xf32>
    %238 = arith.mulf %236, %237 : vector<14x14xf32>
    %c2_119 = arith.constant 2 : index
    %c0_120 = arith.constant 0 : index
    %c0_121 = arith.constant 0 : index
    %239 = vector.load %arg21[%c2_119, %c0_120, %c0_121] : memref<3x14x14xf32, #tpu.memory_space<vmem>>, vector<1x14x14xf32>
    %240 = vector.shape_cast %239 : vector<1x14x14xf32> to vector<14x14xf32>
    %241 = math.tanh %238 : vector<14x14xf32>
    %242 = vector.broadcast %196 : f32 to vector<14x14xf32>
    %243 = arith.mulf %241, %242 : vector<14x14xf32>
    %244 = arith.mulf %0, %243 : vector<14x14xf32>
    %245 = arith.addf %240, %244 : vector<14x14xf32>
    %246 = vector.extract_strided_slice %202 {offsets = [0, 512], sizes = [14, 256], strides = [1, 1]} : vector<14x2048xf32> to vector<14x256xf32>
    %cst_122 = arith.constant dense<0.000000e+00> : vector<14x256xf32>
    %247 = tpu.matmul %245, %246, %cst_122 {dimension_numbers = #tpu.dot_dimension_numbers<[1], [0], [0], [1], [0, 0, 1, 1], [], []>} : vector<14x14xf32>, vector<14x256xf32>, vector<14x256xf32> -> vector<14x256xf32>
    %248 = arith.addf %233, %247 : vector<14x256xf32>
    %249 = vector.extract_strided_slice %202 {offsets = [0, 768], sizes = [14, 256], strides = [1, 1]} : vector<14x2048xf32> to vector<14x256xf32>
    %c0_123 = arith.constant 0 : index
    %c0_124 = arith.constant 0 : index
    %250 = vector.load %arg20[%c0_123, %c0_124] : memref<1x256xf32, #tpu.memory_space<vmem>>, vector<1x256xf32>
    %251 = vector.broadcast %250 : vector<1x256xf32> to vector<14x256xf32>
    %252 = arith.addf %248, %251 : vector<14x256xf32>
    %253 = arith.addf %252, %249 : vector<14x256xf32>
    %cst_125 = arith.constant 0.000000e+00 : f32
    %254 = vector.broadcast %cst_125 : f32 to vector<14x256xf32>
    %255 = arith.maximumf %253, %254 : vector<14x256xf32>
    %c0_126 = arith.constant 0 : index
    %c0_127 = arith.constant 0 : index
    %256 = vector.load %arg22[%c0_126, %c0_127] : memref<256x7xf32, #tpu.memory_space<vmem>>, vector<256x7xf32>
    %cst_128 = arith.constant dense<0.000000e+00> : vector<14x7xf32>
    %257 = tpu.matmul %255, %256, %cst_128 {dimension_numbers = #tpu.dot_dimension_numbers<[1], [0], [0], [1], [0, 0, 1, 1], [], []>} : vector<14x256xf32>, vector<256x7xf32>, vector<14x7xf32> -> vector<14x7xf32>
    %cst_129 = arith.constant 0.000000e+00 : f32
    %258 = vector.broadcast %cst_129 : f32 to vector<14x1xf32>
    %c0_130 = arith.constant 0 : index
    %c0_131 = arith.constant 0 : index
    %c0_132 = arith.constant 0 : index
    %259 = vector.load %arg2[%c0_130, %c0_131, %c0_132] : memref<7x14x14xf32, #tpu.memory_space<vmem>>, vector<1x14x14xf32>
    %260 = vector.shape_cast %259 : vector<1x14x14xf32> to vector<14x14xf32>
    %261 = vector.extract_strided_slice %257 {offsets = [0, 0], sizes = [14, 1], strides = [1, 1]} : vector<14x7xf32> to vector<14x1xf32>
    %cst_133 = arith.constant dense<0.000000e+00> : vector<14x1xf32>
    %262 = tpu.matmul %260, %261, %cst_133 {dimension_numbers = #tpu.dot_dimension_numbers<[1], [0], [0], [1], [0, 0, 1, 1], [], []>} : vector<14x14xf32>, vector<14x1xf32>, vector<14x1xf32> -> vector<14x1xf32>
    %263 = arith.addf %258, %262 : vector<14x1xf32>
    %c1_134 = arith.constant 1 : index
    %c0_135 = arith.constant 0 : index
    %c0_136 = arith.constant 0 : index
    %264 = vector.load %arg2[%c1_134, %c0_135, %c0_136] : memref<7x14x14xf32, #tpu.memory_space<vmem>>, vector<1x14x14xf32>
    %265 = vector.shape_cast %264 : vector<1x14x14xf32> to vector<14x14xf32>
    %266 = vector.extract_strided_slice %257 {offsets = [0, 1], sizes = [14, 1], strides = [1, 1]} : vector<14x7xf32> to vector<14x1xf32>
    %cst_137 = arith.constant dense<0.000000e+00> : vector<14x1xf32>
    %267 = tpu.matmul %265, %266, %cst_137 {dimension_numbers = #tpu.dot_dimension_numbers<[1], [0], [0], [1], [0, 0, 1, 1], [], []>} : vector<14x14xf32>, vector<14x1xf32>, vector<14x1xf32> -> vector<14x1xf32>
    %268 = arith.addf %263, %267 : vector<14x1xf32>
    %c2_138 = arith.constant 2 : index
    %c0_139 = arith.constant 0 : index
    %c0_140 = arith.constant 0 : index
    %269 = vector.load %arg2[%c2_138, %c0_139, %c0_140] : memref<7x14x14xf32, #tpu.memory_space<vmem>>, vector<1x14x14xf32>
    %270 = vector.shape_cast %269 : vector<1x14x14xf32> to vector<14x14xf32>
    %271 = vector.extract_strided_slice %257 {offsets = [0, 2], sizes = [14, 1], strides = [1, 1]} : vector<14x7xf32> to vector<14x1xf32>
    %cst_141 = arith.constant dense<0.000000e+00> : vector<14x1xf32>
    %272 = tpu.matmul %270, %271, %cst_141 {dimension_numbers = #tpu.dot_dimension_numbers<[1], [0], [0], [1], [0, 0, 1, 1], [], []>} : vector<14x14xf32>, vector<14x1xf32>, vector<14x1xf32> -> vector<14x1xf32>
    %273 = arith.addf %268, %272 : vector<14x1xf32>
    %c3_142 = arith.constant 3 : index
    %c0_143 = arith.constant 0 : index
    %c0_144 = arith.constant 0 : index
    %274 = vector.load %arg2[%c3_142, %c0_143, %c0_144] : memref<7x14x14xf32, #tpu.memory_space<vmem>>, vector<1x14x14xf32>
    %275 = vector.shape_cast %274 : vector<1x14x14xf32> to vector<14x14xf32>
    %276 = vector.extract_strided_slice %257 {offsets = [0, 3], sizes = [14, 1], strides = [1, 1]} : vector<14x7xf32> to vector<14x1xf32>
    %cst_145 = arith.constant dense<0.000000e+00> : vector<14x1xf32>
    %277 = tpu.matmul %275, %276, %cst_145 {dimension_numbers = #tpu.dot_dimension_numbers<[1], [0], [0], [1], [0, 0, 1, 1], [], []>} : vector<14x14xf32>, vector<14x1xf32>, vector<14x1xf32> -> vector<14x1xf32>
    %278 = arith.addf %273, %277 : vector<14x1xf32>
    %c4_146 = arith.constant 4 : index
    %c0_147 = arith.constant 0 : index
    %c0_148 = arith.constant 0 : index
    %279 = vector.load %arg2[%c4_146, %c0_147, %c0_148] : memref<7x14x14xf32, #tpu.memory_space<vmem>>, vector<1x14x14xf32>
    %280 = vector.shape_cast %279 : vector<1x14x14xf32> to vector<14x14xf32>
    %281 = vector.extract_strided_slice %257 {offsets = [0, 4], sizes = [14, 1], strides = [1, 1]} : vector<14x7xf32> to vector<14x1xf32>
    %cst_149 = arith.constant dense<0.000000e+00> : vector<14x1xf32>
    %282 = tpu.matmul %280, %281, %cst_149 {dimension_numbers = #tpu.dot_dimension_numbers<[1], [0], [0], [1], [0, 0, 1, 1], [], []>} : vector<14x14xf32>, vector<14x1xf32>, vector<14x1xf32> -> vector<14x1xf32>
    %283 = arith.addf %278, %282 : vector<14x1xf32>
    %c5_150 = arith.constant 5 : index
    %c0_151 = arith.constant 0 : index
    %c0_152 = arith.constant 0 : index
    %284 = vector.load %arg2[%c5_150, %c0_151, %c0_152] : memref<7x14x14xf32, #tpu.memory_space<vmem>>, vector<1x14x14xf32>
    %285 = vector.shape_cast %284 : vector<1x14x14xf32> to vector<14x14xf32>
    %286 = vector.extract_strided_slice %257 {offsets = [0, 5], sizes = [14, 1], strides = [1, 1]} : vector<14x7xf32> to vector<14x1xf32>
    %cst_153 = arith.constant dense<0.000000e+00> : vector<14x1xf32>
    %287 = tpu.matmul %285, %286, %cst_153 {dimension_numbers = #tpu.dot_dimension_numbers<[1], [0], [0], [1], [0, 0, 1, 1], [], []>} : vector<14x14xf32>, vector<14x1xf32>, vector<14x1xf32> -> vector<14x1xf32>
    %288 = arith.addf %283, %287 : vector<14x1xf32>
    %c6_154 = arith.constant 6 : index
    %c0_155 = arith.constant 0 : index
    %c0_156 = arith.constant 0 : index
    %289 = vector.load %arg2[%c6_154, %c0_155, %c0_156] : memref<7x14x14xf32, #tpu.memory_space<vmem>>, vector<1x14x14xf32>
    %290 = vector.shape_cast %289 : vector<1x14x14xf32> to vector<14x14xf32>
    %291 = vector.extract_strided_slice %257 {offsets = [0, 6], sizes = [14, 1], strides = [1, 1]} : vector<14x7xf32> to vector<14x1xf32>
    %cst_157 = arith.constant dense<0.000000e+00> : vector<14x1xf32>
    %292 = tpu.matmul %290, %291, %cst_157 {dimension_numbers = #tpu.dot_dimension_numbers<[1], [0], [0], [1], [0, 0, 1, 1], [], []>} : vector<14x14xf32>, vector<14x1xf32>, vector<14x1xf32> -> vector<14x1xf32>
    %293 = arith.addf %288, %292 : vector<14x1xf32>
    %c1_158 = arith.constant 1 : index
    %294 = memref.load %arg32[%c1_158] : memref<3xf32, #tpu.memory_space<smem>>
    %295 = vector.broadcast %294 : f32 to vector<14x1xf32>
    %296 = arith.addf %293, %295 : vector<14x1xf32>
    %297 = arith.negf %296 : vector<14x1xf32>
    %298 = math.exp %297 : vector<14x1xf32>
    %cst_159 = arith.constant 1.000000e+00 : f32
    %299 = vector.broadcast %cst_159 : f32 to vector<14x1xf32>
    %300 = arith.addf %299, %298 : vector<14x1xf32>
    %301 = arith.divf %299, %300 : vector<14x1xf32>
    %cst_160 = arith.constant 1.000000e+00 : f32
    %302 = vector.broadcast %cst_160 : f32 to vector<14x1xf32>
    %303 = arith.addf %302, %301 : vector<14x1xf32>
    %304 = vector.broadcast %303 : vector<14x1xf32> to vector<14x256xf32>
    %305 = arith.mulf %255, %304 : vector<14x256xf32>
    %c0_161 = arith.constant 0 : index
    %c0_162 = arith.constant 0 : index
    %306 = vector.load %arg23[%c0_161, %c0_162] : memref<256x8xf32, #tpu.memory_space<vmem>>, vector<256x8xf32>
    %cst_163 = arith.constant dense<0.000000e+00> : vector<14x8xf32>
    %307 = tpu.matmul %305, %306, %cst_163 {dimension_numbers = #tpu.dot_dimension_numbers<[1], [0], [0], [1], [0, 0, 1, 1], [], []>} : vector<14x256xf32>, vector<256x8xf32>, vector<14x8xf32> -> vector<14x8xf32>
    %308 = vector.extract_strided_slice %307 {offsets = [0, 0], sizes = [7, 8], strides = [1, 1]} : vector<14x8xf32> to vector<7x8xf32>
    %cst_164 = arith.constant dense<0.000000e+00> : vector<8xf32>
    %309 = vector.multi_reduction <add>, %308, %cst_164 [0] : vector<7x8xf32> to vector<8xf32>
    %310 = vector.shape_cast %309 : vector<8xf32> to vector<1x8xf32>
    %cst_165 = arith.constant 7.000000e+00 : f32
    %311 = vector.broadcast %cst_165 : f32 to vector<1x8xf32>
    %312 = arith.divf %310, %311 : vector<1x8xf32>
    %313 = vector.extract_strided_slice %307 {offsets = [7, 0], sizes = [7, 8], strides = [1, 1]} : vector<14x8xf32> to vector<7x8xf32>
    %cst_166 = arith.constant dense<0.000000e+00> : vector<8xf32>
    %314 = vector.multi_reduction <add>, %313, %cst_166 [0] : vector<7x8xf32> to vector<8xf32>
    %315 = vector.shape_cast %314 : vector<8xf32> to vector<1x8xf32>
    %cst_167 = arith.constant 7.000000e+00 : f32
    %316 = vector.broadcast %cst_167 : f32 to vector<1x8xf32>
    %317 = arith.divf %315, %316 : vector<1x8xf32>
    %318 = tpu.concatenate %312, %317 in 0 : vector<1x8xf32>, vector<1x8xf32> -> vector<2x8xf32>
    %c2_168 = arith.constant 2 : index
    %319 = memref.load %arg32[%c2_168] : memref<3xf32, #tpu.memory_space<smem>>
    %320 = vector.broadcast %319 : f32 to vector<2x8xf32>
    %321 = arith.addf %318, %320 : vector<2x8xf32>
    %322 = arith.negf %321 : vector<2x8xf32>
    %323 = math.exp %322 : vector<2x8xf32>
    %cst_169 = arith.constant 1.000000e+00 : f32
    %324 = vector.broadcast %cst_169 : f32 to vector<2x8xf32>
    %325 = arith.addf %324, %323 : vector<2x8xf32>
    %326 = arith.divf %324, %325 : vector<2x8xf32>
    %327 = tpu.concatenate %326, %326, %326, %326, %326, %326, %326, %326, %326, %326, %326, %326, %326, %326, %326, %326 in 1 : vector<2x8xf32>, vector<2x8xf32>, vector<2x8xf32>, vector<2x8xf32>, vector<2x8xf32>, vector<2x8xf32>, vector<2x8xf32>, vector<2x8xf32>, vector<2x8xf32>, vector<2x8xf32>, vector<2x8xf32>, vector<2x8xf32>, vector<2x8xf32>, vector<2x8xf32>, vector<2x8xf32>, vector<2x8xf32> -> vector<2x128xf32>
    %328 = tpu.concatenate %326, %326, %326, %326, %326, %326, %326, %326, %326, %326, %326, %326, %326, %326, %326, %326 in 1 : vector<2x8xf32>, vector<2x8xf32>, vector<2x8xf32>, vector<2x8xf32>, vector<2x8xf32>, vector<2x8xf32>, vector<2x8xf32>, vector<2x8xf32>, vector<2x8xf32>, vector<2x8xf32>, vector<2x8xf32>, vector<2x8xf32>, vector<2x8xf32>, vector<2x8xf32>, vector<2x8xf32>, vector<2x8xf32> -> vector<2x128xf32>
    %329 = tpu.concatenate %327, %328 in 1 : vector<2x128xf32>, vector<2x128xf32> -> vector<2x256xf32>
    %330 = vector.extract_strided_slice %329 {offsets = [0, 0], sizes = [1, 256], strides = [1, 1]} : vector<2x256xf32> to vector<1x256xf32>
    %331 = vector.shape_cast %330 : vector<1x256xf32> to vector<1x256xf32>
    %332 = vector.broadcast %331 : vector<1x256xf32> to vector<7x256xf32>
    %333 = vector.extract_strided_slice %329 {offsets = [1, 0], sizes = [1, 256], strides = [1, 1]} : vector<2x256xf32> to vector<1x256xf32>
    %334 = vector.shape_cast %333 : vector<1x256xf32> to vector<1x256xf32>
    %335 = vector.broadcast %334 : vector<1x256xf32> to vector<7x256xf32>
    %336 = tpu.concatenate %332, %335 in 0 : vector<7x256xf32>, vector<7x256xf32> -> vector<14x256xf32>
    %cst_170 = arith.constant 1.000000e+00 : f32
    %337 = vector.broadcast %cst_170 : f32 to vector<14x256xf32>
    %338 = arith.addf %337, %336 : vector<14x256xf32>
    %339 = arith.mulf %305, %338 : vector<14x256xf32>
    %c0_171 = arith.constant 0 : index
    %c0_172 = arith.constant 0 : index
    %340 = vector.load %arg24[%c0_171, %c0_172] : memref<256x32xf32, #tpu.memory_space<vmem>>, vector<256x32xf32>
    %cst_173 = arith.constant dense<0.000000e+00> : vector<14x32xf32>
    %341 = tpu.matmul %339, %340, %cst_173 {dimension_numbers = #tpu.dot_dimension_numbers<[1], [0], [0], [1], [0, 0, 1, 1], [], []>} : vector<14x256xf32>, vector<256x32xf32>, vector<14x32xf32> -> vector<14x32xf32>
    %342 = vector.extract_strided_slice %341 {offsets = [0, 0], sizes = [7, 32], strides = [1, 1]} : vector<14x32xf32> to vector<7x32xf32>
    %cst_174 = arith.constant dense<0.000000e+00> : vector<32xf32>
    %343 = vector.multi_reduction <add>, %342, %cst_174 [0] : vector<7x32xf32> to vector<32xf32>
    %344 = vector.shape_cast %343 : vector<32xf32> to vector<1x32xf32>
    %cst_175 = arith.constant 7.000000e+00 : f32
    %345 = vector.broadcast %cst_175 : f32 to vector<1x32xf32>
    %346 = arith.divf %344, %345 : vector<1x32xf32>
    %347 = vector.extract_strided_slice %341 {offsets = [7, 0], sizes = [7, 32], strides = [1, 1]} : vector<14x32xf32> to vector<7x32xf32>
    %cst_176 = arith.constant dense<0.000000e+00> : vector<32xf32>
    %348 = vector.multi_reduction <add>, %347, %cst_176 [0] : vector<7x32xf32> to vector<32xf32>
    %349 = vector.shape_cast %348 : vector<32xf32> to vector<1x32xf32>
    %cst_177 = arith.constant 7.000000e+00 : f32
    %350 = vector.broadcast %cst_177 : f32 to vector<1x32xf32>
    %351 = arith.divf %349, %350 : vector<1x32xf32>
    %352 = tpu.concatenate %346, %351 in 0 : vector<1x32xf32>, vector<1x32xf32> -> vector<2x32xf32>
    %c0_178 = arith.constant 0 : index
    %c0_179 = arith.constant 0 : index
    %353 = vector.load %arg25[%c0_178, %c0_179] : memref<32x16xf32, #tpu.memory_space<vmem>>, vector<32x16xf32>
    %cst_180 = arith.constant dense<0.000000e+00> : vector<2x16xf32>
    %354 = tpu.matmul %352, %353, %cst_180 {dimension_numbers = #tpu.dot_dimension_numbers<[1], [0], [0], [1], [0, 0, 1, 1], [], []>} : vector<2x32xf32>, vector<32x16xf32>, vector<2x16xf32> -> vector<2x16xf32>
    %c0_181 = arith.constant 0 : index
    %c0_182 = arith.constant 0 : index
    %355 = vector.load %arg26[%c0_181, %c0_182] : memref<1x16xf32, #tpu.memory_space<vmem>>, vector<1x16xf32>
    %356 = vector.broadcast %355 : vector<1x16xf32> to vector<2x16xf32>
    %357 = arith.addf %354, %356 : vector<2x16xf32>
    %cst_183 = arith.constant 0.000000e+00 : f32
    %358 = vector.broadcast %cst_183 : f32 to vector<2x16xf32>
    %359 = arith.maximumf %357, %358 : vector<2x16xf32>
    %c0_184 = arith.constant 0 : index
    %c0_185 = arith.constant 0 : index
    %360 = vector.load %arg27[%c0_184, %c0_185] : memref<16x32xf32, #tpu.memory_space<vmem>>, vector<16x32xf32>
    %cst_186 = arith.constant dense<0.000000e+00> : vector<2x32xf32>
    %361 = tpu.matmul %359, %360, %cst_186 {dimension_numbers = #tpu.dot_dimension_numbers<[1], [0], [0], [1], [0, 0, 1, 1], [], []>} : vector<2x16xf32>, vector<16x32xf32>, vector<2x32xf32> -> vector<2x32xf32>
    %c0_187 = arith.constant 0 : index
    %c0_188 = arith.constant 0 : index
    %362 = vector.load %arg28[%c0_187, %c0_188] : memref<1x32xf32, #tpu.memory_space<vmem>>, vector<1x32xf32>
    %363 = vector.broadcast %362 : vector<1x32xf32> to vector<2x32xf32>
    %364 = arith.addf %361, %363 : vector<2x32xf32>
    %365 = arith.negf %364 : vector<2x32xf32>
    %366 = math.exp %365 : vector<2x32xf32>
    %cst_189 = arith.constant 1.000000e+00 : f32
    %367 = vector.broadcast %cst_189 : f32 to vector<2x32xf32>
    %368 = arith.addf %367, %366 : vector<2x32xf32>
    %369 = arith.divf %367, %368 : vector<2x32xf32>
    %c0_190 = arith.constant 0 : index
    %c0_191 = arith.constant 0 : index
    %370 = vector.load %arg29[%c0_190, %c0_191] : memref<32x256xf32, #tpu.memory_space<vmem>>, vector<32x256xf32>
    %cst_192 = arith.constant dense<0.000000e+00> : vector<2x256xf32>
    %371 = tpu.matmul %369, %370, %cst_192 {dimension_numbers = #tpu.dot_dimension_numbers<[1], [0], [0], [1], [0, 0, 1, 1], [], []>} : vector<2x32xf32>, vector<32x256xf32>, vector<2x256xf32> -> vector<2x256xf32>
    %372 = vector.extract_strided_slice %371 {offsets = [0, 0], sizes = [1, 256], strides = [1, 1]} : vector<2x256xf32> to vector<1x256xf32>
    %373 = vector.shape_cast %372 : vector<1x256xf32> to vector<1x256xf32>
    %374 = vector.broadcast %373 : vector<1x256xf32> to vector<7x256xf32>
    %375 = vector.extract_strided_slice %371 {offsets = [1, 0], sizes = [1, 256], strides = [1, 1]} : vector<2x256xf32> to vector<1x256xf32>
    %376 = vector.shape_cast %375 : vector<1x256xf32> to vector<1x256xf32>
    %377 = vector.broadcast %376 : vector<1x256xf32> to vector<7x256xf32>
    %378 = tpu.concatenate %374, %377 in 0 : vector<7x256xf32>, vector<7x256xf32> -> vector<14x256xf32>
    %cst_193 = arith.constant 1.000000e+00 : f32
    %379 = vector.broadcast %cst_193 : f32 to vector<14x256xf32>
    %380 = arith.addf %379, %378 : vector<14x256xf32>
    %381 = arith.mulf %339, %380 : vector<14x256xf32>
    %382 = arith.truncf %381 : vector<14x256xf32> to vector<14x256xbf16>
    %c0_194 = arith.constant 0 : index
    %c0_195 = arith.constant 0 : index
    %383 = vector.load %arg30[%c0_194, %c0_195] : memref<256x256xbf16, #tpu.memory_space<vmem>>, vector<256x256xbf16>
    %cst_196 = arith.constant dense<0.000000e+00> : vector<14x256xf32>
    %384 = tpu.matmul %382, %383, %cst_196 {dimension_numbers = #tpu.dot_dimension_numbers<[1], [0], [0], [1], [0, 0, 1, 1], [], []>} : vector<14x256xbf16>, vector<256x256xbf16>, vector<14x256xf32> -> vector<14x256xf32>
    %c0_197 = arith.constant 0 : index
    %c0_198 = arith.constant 0 : index
    %385 = vector.load %arg31[%c0_197, %c0_198] : memref<1x256xf32, #tpu.memory_space<vmem>>, vector<1x256xf32>
    %386 = vector.broadcast %385 : vector<1x256xf32> to vector<14x256xf32>
    %387 = arith.addf %384, %386 : vector<14x256xf32>
    %388 = vector.extract_strided_slice %202 {offsets = [0, 1024], sizes = [14, 256], strides = [1, 1]} : vector<14x2048xf32> to vector<14x256xf32>
    %389 = arith.addf %387, %388 : vector<14x256xf32>
    %cst_199 = arith.constant 0.000000e+00 : f32
    %390 = vector.broadcast %cst_199 : f32 to vector<14x256xf32>
    %391 = arith.maximumf %389, %390 : vector<14x256xf32>
    %c0_200 = arith.constant 0 : index
    %c0_201 = arith.constant 0 : index
    %392 = vector.load %arg24[%c0_200, %c0_201] : memref<256x32xf32, #tpu.memory_space<vmem>>, vector<256x32xf32>
    %cst_202 = arith.constant dense<0.000000e+00> : vector<14x32xf32>
    %393 = tpu.matmul %391, %392, %cst_202 {dimension_numbers = #tpu.dot_dimension_numbers<[1], [0], [0], [1], [0, 0, 1, 1], [], []>} : vector<14x256xf32>, vector<256x32xf32>, vector<14x32xf32> -> vector<14x32xf32>
    %394 = vector.extract_strided_slice %393 {offsets = [0, 0], sizes = [7, 32], strides = [1, 1]} : vector<14x32xf32> to vector<7x32xf32>
    %cst_203 = arith.constant dense<0.000000e+00> : vector<32xf32>
    %395 = vector.multi_reduction <add>, %394, %cst_203 [0] : vector<7x32xf32> to vector<32xf32>
    %396 = vector.shape_cast %395 : vector<32xf32> to vector<1x32xf32>
    %cst_204 = arith.constant 7.000000e+00 : f32
    %397 = vector.broadcast %cst_204 : f32 to vector<1x32xf32>
    %398 = arith.divf %396, %397 : vector<1x32xf32>
    %399 = vector.extract_strided_slice %393 {offsets = [7, 0], sizes = [7, 32], strides = [1, 1]} : vector<14x32xf32> to vector<7x32xf32>
    %cst_205 = arith.constant dense<0.000000e+00> : vector<32xf32>
    %400 = vector.multi_reduction <add>, %399, %cst_205 [0] : vector<7x32xf32> to vector<32xf32>
    %401 = vector.shape_cast %400 : vector<32xf32> to vector<1x32xf32>
    %cst_206 = arith.constant 7.000000e+00 : f32
    %402 = vector.broadcast %cst_206 : f32 to vector<1x32xf32>
    %403 = arith.divf %401, %402 : vector<1x32xf32>
    %404 = tpu.concatenate %398, %403 in 0 : vector<1x32xf32>, vector<1x32xf32> -> vector<2x32xf32>
    %c0_207 = arith.constant 0 : index
    %c0_208 = arith.constant 0 : index
    %405 = vector.load %arg34[%c0_207, %c0_208] : memref<2x32xf32, #tpu.memory_space<vmem>>, vector<2x32xf32>
    tpu.vector_store %arg34[%c0_207, %c0_208], %404 {strides = array<i32>} : memref<2x32xf32, #tpu.memory_space<vmem>>, vector<2x32xf32>,
    %c0_209 = arith.constant 0 : index
    %c0_210 = arith.constant 0 : index
    %406 = vector.load %arg33[%c0_209, %c0_210] : memref<256x8xf32, #tpu.memory_space<vmem>>, vector<256x8xf32>
    %cst_211 = arith.constant dense<0.000000e+00> : vector<14x8xf32>
    %407 = tpu.matmul %391, %406, %cst_211 {dimension_numbers = #tpu.dot_dimension_numbers<[1], [0], [0], [1], [0, 0, 1, 1], [], []>} : vector<14x256xf32>, vector<256x8xf32>, vector<14x8xf32> -> vector<14x8xf32>
    %408 = vector.extract_strided_slice %407 {offsets = [0, 0], sizes = [7, 8], strides = [1, 1]} : vector<14x8xf32> to vector<7x8xf32>
    %c0_212 = arith.constant 0 : index
    %c0_213 = arith.constant 0 : index
    %c0_214 = arith.constant 0 : index
    %409 = vector.load %arg35[%c0_212, %c0_213, %c0_214] : memref<2x7x8xf32, #tpu.memory_space<vmem>>, vector<1x7x8xf32>
    %410 = vector.shape_cast %409 : vector<1x7x8xf32> to vector<7x8xf32>
    %411 = vector.shape_cast %408 : vector<7x8xf32> to vector<1x7x8xf32>
    tpu.vector_store %arg35[%c0_212, %c0_213, %c0_214], %411 {strides = array<i32>} : memref<2x7x8xf32, #tpu.memory_space<vmem>>, vector<1x7x8xf32>,
    %412 = vector.extract_strided_slice %407 {offsets = [7, 0], sizes = [7, 8], strides = [1, 1]} : vector<14x8xf32> to vector<7x8xf32>
    %c1_215 = arith.constant 1 : index
    %c0_216 = arith.constant 0 : index
    %c0_217 = arith.constant 0 : index
    %413 = vector.load %arg35[%c1_215, %c0_216, %c0_217] : memref<2x7x8xf32, #tpu.memory_space<vmem>>, vector<1x7x8xf32>
    %414 = vector.shape_cast %413 : vector<1x7x8xf32> to vector<7x8xf32>
    %415 = vector.shape_cast %412 : vector<7x8xf32> to vector<1x7x8xf32>
    tpu.vector_store %arg35[%c1_215, %c0_216, %c0_217], %415 {strides = array<i32>} : memref<2x7x8xf32, #tpu.memory_space<vmem>>, vector<1x7x8xf32>,
    return
  }
}

</mosaic_0001>

<llo_original>
// kernel: _lambda_.1
$region0: #{_lambda_.1}
  #allocation0 [shape = 'u32[]', space=smem, size = 0x4, offset = 0x4, fixed_abs, tag = 'smem constant byte address 0x4 - core index']
  #allocation1 [shape = 'u32[144,128]{1,0:T(1,128)}', space=vmem, size = 0x12000, scoped, tag = 'internal scratch']
  %s0 = inlined_call_operand.smem [shape: u32[36], index: -1, kind: input, shape index: {}]
  %s1 = sld [smem:[%s0]]
  %s2 = scalar_lea.smem %s0, 1
  %s3 = sld [smem:[%s2]]
  %s4 = scalar_lea.smem %s0, 2
  %s5 = sld [smem:[%s4]]
  %s6 = scalar_lea.smem %s0, 3
  %s7 = sld [smem:[%s6]]
  %s8 = scalar_lea.smem %s0, 4
  %s9 = sld [smem:[%s8]]
  %s10 = scalar_lea.smem %s0, 5
  %s11 = sld [smem:[%s10]]
  %s12 = scalar_lea.smem %s0, 6
  %s13 = sld [smem:[%s12]]
  %s14 = scalar_lea.smem %s0, 7
  %s15 = sld [smem:[%s14]]
  %s16 = scalar_lea.smem %s0, 8
  %s17 = sld [smem:[%s16]]
  %s18 = scalar_lea.smem %s0, 9
  %s19 = sld [smem:[%s18]]
  %s20 = scalar_lea.smem %s0, 10
  %s21 = sld [smem:[%s20]]
  %s22 = scalar_lea.smem %s0, 11
  %s23 = sld [smem:[%s22]]
  %s24 = scalar_lea.smem %s0, 12
  %s25 = sld [smem:[%s24]]
  %s26 = scalar_lea.smem %s0, 13
  %s27 = sld [smem:[%s26]]
  %s28 = scalar_lea.smem %s0, 14
  %s29 = sld [smem:[%s28]]
  %s30 = scalar_lea.smem %s0, 15
  %s31 = sld [smem:[%s30]]
  %s32 = scalar_lea.smem %s0, 16
  %s33 = sld [smem:[%s32]]
  %s34 = scalar_lea.smem %s0, 17
  %s35 = sld [smem:[%s34]]
  %s36 = scalar_lea.smem %s0, 18
  %s37 = sld [smem:[%s36]]
  %s38 = scalar_lea.smem %s0, 19
  %s39 = sld [smem:[%s38]]
  %s40 = scalar_lea.smem %s0, 20
  %s41 = sld [smem:[%s40]]
  %s42 = scalar_lea.smem %s0, 21
  %s43 = sld [smem:[%s42]]
  %s44 = scalar_lea.smem %s0, 22
  %s45 = sld [smem:[%s44]]
  %s46 = scalar_lea.smem %s0, 23
  %s47 = sld [smem:[%s46]]
  %s48 = scalar_lea.smem %s0, 24
  %s49 = sld [smem:[%s48]]
  %s50 = scalar_lea.smem %s0, 25
  %s51 = sld [smem:[%s50]]
  %s52 = scalar_lea.smem %s0, 26
  %s53 = sld [smem:[%s52]]
  %s54 = scalar_lea.smem %s0, 27
  %s55 = sld [smem:[%s54]]
  %s56 = scalar_lea.smem %s0, 28
  %s57 = sld [smem:[%s56]]
  %s58 = scalar_lea.smem %s0, 29
  %s59 = sld [smem:[%s58]]
  %s60 = scalar_lea.smem %s0, 30
  %s61 = sld [smem:[%s60]]
  %s62 = scalar_lea.smem %s0, 31
  %s63 = sld [smem:[%s62]]
  %s64 = scalar_lea.smem %s0, 32
  %s65 = sld [smem:[%s64]]
  %s66 = scalar_lea.smem %s0, 33
  %s67 = sld [smem:[%s66]]
  %s68 = scalar_lea.smem %s0, 34
  %s69 = sld [smem:[%s68]]
  %s70 = scalar_lea.smem %s0, 35
  %s71 = sld [smem:[%s70]]
  %72 = xla_tuple %s69, %s71
  %s73 = sld [smem:[#allocation0]]
  $region162: #{_lambda_.1} parent=0
    _
  %s75 = ssub.s32 1, %s73
  %s76 = scalar_select 0, %s75, %s73
  $region1: #{_lambda_.1} parent=0
    #allocation2 [shape = 'u8[512]{0}', space=smem, size = 0x200, scoped, tag = 'input window, operand 17, single buffered']
    #allocation3 [shape = 's32[1]{0}', space=sflag, size = 0x4, scoped, tag = 'scoped memory for _lambda_.1']
    #allocation4 [shape = 's32[1]{0}', space=sflag, size = 0x4, scoped, tag = 'scoped memory for _lambda_.1']
    #allocation5 [shape = 'u8[512]{0}', space=smem, size = 0x200, scoped, tag = 'input window, operand 32, single buffered']
    #allocation6 [shape = 's32[1]{0}', space=sflag, size = 0x4, scoped, tag = 'scoped memory for _lambda_.1']
    #allocation7 [shape = 'u8[1024]{0}', space=vmem, size = 0x400, scoped, tag = 'output window, operand 0, single buffered']
    %77 = vsyncpa [#allocation4], 0
    %78 = vsyncpa [#allocation6], 0
    %79 = vsyncpa [#allocation3], 0
    // Predicated region
    $region2: #{_lambda_.1} parent=1 // pred_check
      _
    $region3: #{_lambda_.1} parent=1 // pred_check_branch
      %81 = sbr.rel (0) target = $region5
    $region4: #{_lambda_.1} parent=1 // pred_region
      _
    $region5: #{_lambda_.1} parent=1 // pred_fallthru
      _
    // Predicated region
    $region6: #{_lambda_.1} parent=1 // pred_check
      _
    $region7: #{_lambda_.1} parent=1 // pred_check_branch
      %83 = sbr.rel (0) target = $region9
    $region8: #{_lambda_.1} parent=1 // pred_region
      _
    $region9: #{_lambda_.1} parent=1 // pred_fallthru
      _
    // Predicated region
    $region10: #{_lambda_.1} parent=1 // pred_check
      _
    $region11: #{_lambda_.1} parent=1 // pred_check_branch
      %85 = sbr.rel (0) target = $region13
    $region12: #{_lambda_.1} parent=1 // pred_region
      _
    $region13: #{_lambda_.1} parent=1 // pred_fallthru
      _
    // Predicated region
    $region14: #{_lambda_.1} parent=1 // pred_check
      _
    $region15: #{_lambda_.1} parent=1 // pred_check_branch
      %87 = sbr.rel (0) target = $region17
    $region16: #{_lambda_.1} parent=1 // pred_region
      _
    $region17: #{_lambda_.1} parent=1 // pred_fallthru
      _
    // Predicated region
    $region18: #{_lambda_.1} parent=1 // pred_check
      _
    $region19: #{_lambda_.1} parent=1 // pred_check_branch
      %89 = sbr.rel (0) target = $region21
    $region20: #{_lambda_.1} parent=1 // pred_region
      _
    $region21: #{_lambda_.1} parent=1 // pred_fallthru
      _
    // Predicated region
    $region22: #{_lambda_.1} parent=1 // pred_check
      _
    $region23: #{_lambda_.1} parent=1 // pred_check_branch
      %91 = sbr.rel (0) target = $region25
    $region24: #{_lambda_.1} parent=1 // pred_region
      _
    $region25: #{_lambda_.1} parent=1 // pred_fallthru
      _
    // Predicated region
    $region26: #{_lambda_.1} parent=1 // pred_check
      _
    $region27: #{_lambda_.1} parent=1 // pred_check_branch
      %93 = sbr.rel (0) target = $region29
    $region28: #{_lambda_.1} parent=1 // pred_region
      _
    $region29: #{_lambda_.1} parent=1 // pred_fallthru
      _
    // Predicated region
    $region30: #{_lambda_.1} parent=1 // pred_check
      _
    $region31: #{_lambda_.1} parent=1 // pred_check_branch
      %95 = sbr.rel (0) target = $region33
    $region32: #{_lambda_.1} parent=1 // pred_region
      _
    $region33: #{_lambda_.1} parent=1 // pred_fallthru
      _
    // Predicated region
    $region34: #{_lambda_.1} parent=1 // pred_check
      _
    $region35: #{_lambda_.1} parent=1 // pred_check_branch
      %97 = sbr.rel (0) target = $region37
    $region36: #{_lambda_.1} parent=1 // pred_region
      _
    $region37: #{_lambda_.1} parent=1 // pred_fallthru
      _
    // Predicated region
    $region38: #{_lambda_.1} parent=1 // pred_check
      _
    $region39: #{_lambda_.1} parent=1 // pred_check_branch
      %99 = sbr.rel (0) target = $region41
    $region40: #{_lambda_.1} parent=1 // pred_region
      _
    $region41: #{_lambda_.1} parent=1 // pred_fallthru
      _
    // Predicated region
    $region42: #{_lambda_.1} parent=1 // pred_check
      _
    $region43: #{_lambda_.1} parent=1 // pred_check_branch
      %101 = sbr.rel (0) target = $region45
    $region44: #{_lambda_.1} parent=1 // pred_region
      _
    $region45: #{_lambda_.1} parent=1 // pred_fallthru
      _
    // Predicated region
    $region46: #{_lambda_.1} parent=1 // pred_check
      _
    $region47: #{_lambda_.1} parent=1 // pred_check_branch
      %103 = sbr.rel (0) target = $region49
    $region48: #{_lambda_.1} parent=1 // pred_region
      _
    $region49: #{_lambda_.1} parent=1 // pred_fallthru
      _
    // Predicated region
    $region50: #{_lambda_.1} parent=1 // pred_check
      _
    $region51: #{_lambda_.1} parent=1 // pred_check_branch
      %105 = sbr.rel (0) target = $region53
    $region52: #{_lambda_.1} parent=1 // pred_region
      _
    $region53: #{_lambda_.1} parent=1 // pred_fallthru
      _
    // Predicated region
    $region54: #{_lambda_.1} parent=1 // pred_check
      _
    $region55: #{_lambda_.1} parent=1 // pred_check_branch
      %107 = sbr.rel (0) target = $region57
    $region56: #{_lambda_.1} parent=1 // pred_region
      _
    $region57: #{_lambda_.1} parent=1 // pred_fallthru
      _
    // Predicated region
    $region58: #{_lambda_.1} parent=1 // pred_check
      _
    $region59: #{_lambda_.1} parent=1 // pred_check_branch
      %109 = sbr.rel (0) target = $region61
    $region60: #{_lambda_.1} parent=1 // pred_region
      _
    $region61: #{_lambda_.1} parent=1 // pred_fallthru
      _
    // Predicated region
    $region62: #{_lambda_.1} parent=1 // pred_check
      _
    $region63: #{_lambda_.1} parent=1 // pred_check_branch
      %111 = sbr.rel (0) target = $region65
    $region64: #{_lambda_.1} parent=1 // pred_region
      _
    $region65: #{_lambda_.1} parent=1 // pred_fallthru
      _
    // Predicated region
    $region66: #{_lambda_.1} parent=1 // pred_check
      _
    $region67: #{_lambda_.1} parent=1 // pred_check_branch
      %113 = sbr.rel (0) target = $region69
    $region68: #{_lambda_.1} parent=1 // pred_region
      _
    $region69: #{_lambda_.1} parent=1 // pred_fallthru
      _
    // Predicated region
    $region70: #{_lambda_.1} parent=1 // pred_check
      _
    $region71: #{_lambda_.1} parent=1 // pred_check_branch
      %115 = sbr.rel (0) target = $region73
    $region72: #{_lambda_.1} parent=1 // pred_region
      %s117 = ssub.s32 16, 16
      %118 = vsyncadd [#allocation4], %s117
      %s120 = sshll.u32 %s35, 4
      %s121 = int_to_ptr.vmem [resolvable:$true] %s120
      %123 = dma.vmem_to_smem %s121, 16, [#allocation2], [#allocation4]
    $region73: #{_lambda_.1} parent=1 // pred_fallthru
      _
    // Predicated region
    $region74: #{_lambda_.1} parent=1 // pred_check
      _
    $region75: #{_lambda_.1} parent=1 // pred_check_branch
      %125 = sbr.rel (0) target = $region77
    $region76: #{_lambda_.1} parent=1 // pred_region
      _
    $region77: #{_lambda_.1} parent=1 // pred_fallthru
      _
    // Predicated region
    $region78: #{_lambda_.1} parent=1 // pred_check
      _
    $region79: #{_lambda_.1} parent=1 // pred_check_branch
      %127 = sbr.rel (0) target = $region81
    $region80: #{_lambda_.1} parent=1 // pred_region
      _
    $region81: #{_lambda_.1} parent=1 // pred_fallthru
      _
    // Predicated region
    $region82: #{_lambda_.1} parent=1 // pred_check
      _
    $region83: #{_lambda_.1} parent=1 // pred_check_branch
      %129 = sbr.rel (0) target = $region85
    $region84: #{_lambda_.1} parent=1 // pred_region
      _
    $region85: #{_lambda_.1} parent=1 // pred_fallthru
      _
    // Predicated region
    $region86: #{_lambda_.1} parent=1 // pred_check
      _
    $region87: #{_lambda_.1} parent=1 // pred_check_branch
      %131 = sbr.rel (0) target = $region89
    $region88: #{_lambda_.1} parent=1 // pred_region
      _
    $region89: #{_lambda_.1} parent=1 // pred_fallthru
      _
    // Predicated region
    $region90: #{_lambda_.1} parent=1 // pred_check
      _
    $region91: #{_lambda_.1} parent=1 // pred_check_branch
      %133 = sbr.rel (0) target = $region93
    $region92: #{_lambda_.1} parent=1 // pred_region
      _
    $region93: #{_lambda_.1} parent=1 // pred_fallthru
      _
    // Predicated region
    $region94: #{_lambda_.1} parent=1 // pred_check
      _
    $region95: #{_lambda_.1} parent=1 // pred_check_branch
      %135 = sbr.rel (0) target = $region97
    $region96: #{_lambda_.1} parent=1 // pred_region
      _
    $region97: #{_lambda_.1} parent=1 // pred_fallthru
      _
    // Predicated region
    $region98: #{_lambda_.1} parent=1 // pred_check
      _
    $region99: #{_lambda_.1} parent=1 // pred_check_branch
      %137 = sbr.rel (0) target = $region101
    $region100: #{_lambda_.1} parent=1 // pred_region
      _
    $region101: #{_lambda_.1} parent=1 // pred_fallthru
      _
    // Predicated region
    $region102: #{_lambda_.1} parent=1 // pred_check
      _
    $region103: #{_lambda_.1} parent=1 // pred_check_branch
      %139 = sbr.rel (0) target = $region105
    $region104: #{_lambda_.1} parent=1 // pred_region
      _
    $region105: #{_lambda_.1} parent=1 // pred_fallthru
      _
    // Predicated region
    $region106: #{_lambda_.1} parent=1 // pred_check
      _
    $region107: #{_lambda_.1} parent=1 // pred_check_branch
      %141 = sbr.rel (0) target = $region109
    $region108: #{_lambda_.1} parent=1 // pred_region
      _
    $region109: #{_lambda_.1} parent=1 // pred_fallthru
      _
    // Predicated region
    $region110: #{_lambda_.1} parent=1 // pred_check
      _
    $region111: #{_lambda_.1} parent=1 // pred_check_branch
      %143 = sbr.rel (0) target = $region113
    $region112: #{_lambda_.1} parent=1 // pred_region
      _
    $region113: #{_lambda_.1} parent=1 // pred_fallthru
      _
    // Predicated region
    $region114: #{_lambda_.1} parent=1 // pred_check
      _
    $region115: #{_lambda_.1} parent=1 // pred_check_branch
      %145 = sbr.rel (0) target = $region117
    $region116: #{_lambda_.1} parent=1 // pred_region
      _
    $region117: #{_lambda_.1} parent=1 // pred_fallthru
      _
    // Predicated region
    $region118: #{_lambda_.1} parent=1 // pred_check
      _
    $region119: #{_lambda_.1} parent=1 // pred_check_branch
      %147 = sbr.rel (0) target = $region121
    $region120: #{_lambda_.1} parent=1 // pred_region
      _
    $region121: #{_lambda_.1} parent=1 // pred_fallthru
      _
    // Predicated region
    $region122: #{_lambda_.1} parent=1 // pred_check
      _
    $region123: #{_lambda_.1} parent=1 // pred_check_branch
      %149 = sbr.rel (0) target = $region125
    $region124: #{_lambda_.1} parent=1 // pred_region
      _
    $region125: #{_lambda_.1} parent=1 // pred_fallthru
      _
    // Predicated region
    $region126: #{_lambda_.1} parent=1 // pred_check
      _
    $region127: #{_lambda_.1} parent=1 // pred_check_branch
      %151 = sbr.rel (0) target = $region129
    $region128: #{_lambda_.1} parent=1 // pred_region
      _
    $region129: #{_lambda_.1} parent=1 // pred_fallthru
      _
    // Predicated region
    $region130: #{_lambda_.1} parent=1 // pred_check
      _
    $region131: #{_lambda_.1} parent=1 // pred_check_branch
      %153 = sbr.rel (0) target = $region133
    $region132: #{_lambda_.1} parent=1 // pred_region
      %s155 = ssub.s32 16, 16
      %156 = vsyncadd [#allocation6], %s155
      %s158 = sshll.u32 %s65, 4
      %s159 = int_to_ptr.vmem [resolvable:$true] %s158
      %161 = dma.vmem_to_smem %s159, 16, [#allocation5], [#allocation6]
    $region133: #{_lambda_.1} parent=1 // pred_fallthru
      _
    // Predicated region
    $region134: #{_lambda_.1} parent=1 // pred_check
      _
    $region135: #{_lambda_.1} parent=1 // pred_check_branch
      %163 = sbr.rel (0) target = $region137
    $region136: #{_lambda_.1} parent=1 // pred_region
      _
    $region137: #{_lambda_.1} parent=1 // pred_fallthru
      _
    // Predicated region
    $region138: #{_lambda_.1} parent=1 // pred_check
      _
    $region139: #{_lambda_.1} parent=1 // pred_check_branch
      %165 = sbr.rel (0) target = $region141
    $region140: #{_lambda_.1} parent=1 // pred_region
      %166 = dma.done [#allocation4], 16
    $region141: #{_lambda_.1} parent=1 // pred_fallthru
      _
    // Predicated region
    $region142: #{_lambda_.1} parent=1 // pred_check
      _
    $region143: #{_lambda_.1} parent=1 // pred_check_branch
      %168 = sbr.rel (0) target = $region145
    $region144: #{_lambda_.1} parent=1 // pred_region
      %169 = dma.done [#allocation6], 16
    $region145: #{_lambda_.1} parent=1 // pred_fallthru
      _
    %170 = sfence
    %v172 = vld [vmem:[%s3] sm:$0xff]
    %v173 = vld [vmem:[%s3 + $0x8] sm:$0x3f]
    %v174 = vld [vmem:[%s1] sm:$0xff]
    %v175 = vld [vmem:[%s1 + $0x8] sm:$0x3f]
    %s176 = sld [smem:[#allocation2]]
    %v177 = vpack.c.bf16 %v175, %v174
    %v178 = vld [vmem:[%s7] sm:$0xff]
    %v179 = vld [vmem:[%s7 + $0x8] sm:$0xff]
    %v180 = vld [vmem:[%s7 + $0x10] sm:$0xff]
    %v181 = vld [vmem:[%s7 + $0x18] sm:$0xff]
    %v182 = vld [vmem:[%s7 + $0x20] sm:$0xff]
    %v183 = vld [vmem:[%s7 + $0x28] sm:$0xf]
    %v184 = vld [vmem:[%s7 + $0x2c] sm:$0xff]
    %v185 = vld [vmem:[%s7 + $0x34] sm:$0xff]
    %v186 = vld [vmem:[%s7 + $0x3c] sm:$0xff]
    %v187 = vld [vmem:[%s7 + $0x44] sm:$0xff]
    %v188 = vld [vmem:[%s7 + $0x4c] sm:$0xff]
    %v189 = vld [vmem:[%s7 + $0x54] sm:$0xf]
    %v190 = vld [vmem:[%s7 + $0x58] sm:$0xff]
    %v191 = vld [vmem:[%s7 + $0x60] sm:$0xff]
    %v192 = vld [vmem:[%s7 + $0x68] sm:$0xff]
    %v193 = vld [vmem:[%s7 + $0x70] sm:$0xff]
    %v194 = vld [vmem:[%s7 + $0x78] sm:$0xff]
    %v195 = vld [vmem:[%s7 + $0x80] sm:$0xf]
    %v196 = vld [vmem:[%s9] sm:$0xff]
    %v197 = vld [vmem:[%s9 + $0x8] sm:$0x7]
    %v200 = vlaneseq
    %v201 = vshrl.u32 %v200, 7
    %v202 = vsub.s32 0, %v201
    %v203 = vrot.slane %v196, %v202
    %v204 = vlaneseq
    %v205 = vshrl.u32 %v204, 7
    %v206 = vsub.s32 1, %v205
    %v207 = vrot.slane %v196, %v206
    %v208 = vlaneseq
    %v209 = vshrl.u32 %v208, 7
    %v210 = vsub.s32 2, %v209
    %v211 = vrot.slane %v196, %v210
    %v212 = vlaneseq
    %v213 = vshrl.u32 %v212, 7
    %v214 = vsub.s32 3, %v213
    %v215 = vrot.slane %v196, %v214
    %v216 = vlaneseq
    %v217 = vshrl.u32 %v216, 7
    %v218 = vsub.s32 4, %v217
    %v219 = vrot.slane %v196, %v218
    %v220 = vlaneseq
    %v221 = vshrl.u32 %v220, 7
    %v222 = vsub.s32 5, %v221
    %v223 = vrot.slane %v196, %v222
    %v224 = vlaneseq
    %v225 = vshrl.u32 %v224, 7
    %v226 = vsub.s32 6, %v225
    %v227 = vrot.slane %v196, %v226
    %v228 = vlaneseq
    %v229 = vshrl.u32 %v228, 7
    %v230 = vsub.s32 7, %v229
    %v231 = vrot.slane %v196, %v230
    %v232 = vlaneseq
    %v233 = vshrl.u32 %v232, 7
    %v234 = vsub.s32 0, %v233
    %v235 = vrot.slane %v197, %v234
    %v236 = vlaneseq
    %v237 = vshrl.u32 %v236, 7
    %v238 = vsub.s32 1, %v237
    %v239 = vrot.slane %v197, %v238
    %v240 = vlaneseq
    %v241 = vshrl.u32 %v240, 7
    %v242 = vsub.s32 2, %v241
    %v243 = vrot.slane %v197, %v242
    %v273 = vunpack.c.l.b16 %v178
    %v274 = vunpack.c.h.b16 %v178
    %v275 = vunpack.c.l.b16 %v179
    %v276 = vunpack.c.h.b16 %v179
    %v277 = vunpack.c.l.b16 %v180
    %v278 = vunpack.c.h.b16 %v180
    %v279 = vunpack.c.l.b16 %v181
    %v280 = vunpack.c.h.b16 %v181
    %v281 = vunpack.c.l.b16 %v182
    %v282 = vunpack.c.h.b16 %v182
    %v283 = vunpack.c.l.b16 %v183
    %v284 = vunpack.c.l.b16 %v184
    %v285 = vunpack.c.h.b16 %v184
    %v286 = vunpack.c.l.b16 %v185
    %v287 = vunpack.c.h.b16 %v185
    %v288 = vunpack.c.l.b16 %v186
    %v289 = vunpack.c.h.b16 %v186
    %v290 = vunpack.c.l.b16 %v187
    %v291 = vunpack.c.h.b16 %v187
    %v292 = vunpack.c.l.b16 %v188
    %v293 = vunpack.c.h.b16 %v188
    %v294 = vunpack.c.l.b16 %v189
    %v295 = vunpack.c.l.b16 %v190
    %v296 = vunpack.c.h.b16 %v190
    %v297 = vunpack.c.l.b16 %v191
    %v298 = vunpack.c.h.b16 %v191
    %v299 = vunpack.c.l.b16 %v192
    %v300 = vunpack.c.h.b16 %v192
    %v301 = vunpack.c.l.b16 %v193
    %v302 = vunpack.c.h.b16 %v193
    %v303 = vunpack.c.l.b16 %v194
    %v304 = vunpack.c.h.b16 %v194
    %v305 = vunpack.c.l.b16 %v195
    %v306 = vpack.c.b16 %v284, %v273
    %v307 = vpack.c.b16 %v285, %v274
    %v308 = vpack.c.b16 %v286, %v275
    %v309 = vpack.c.b16 %v287, %v276
    %v310 = vpack.c.b16 %v288, %v277
    %v311 = vpack.c.b16 %v289, %v278
    %v312 = vpack.c.b16 %v290, %v279
    %v313 = vpack.c.b16 %v291, %v280
    %v314 = vpack.c.b16 %v292, %v281
    %v315 = vpack.c.b16 %v293, %v282
    %v316 = vpack.c.b16 %v294, %v283
    %v317 = vpack.c.b16 %v295, %v295
    %v318 = vpack.c.b16 %v296, %v296
    %v319 = vpack.c.b16 %v297, %v297
    %v320 = vpack.c.b16 %v298, %v298
    %v321 = vpack.c.b16 %v299, %v299
    %v322 = vpack.c.b16 %v300, %v300
    %v323 = vpack.c.b16 %v301, %v301
    %v324 = vpack.c.b16 %v302, %v302
    %v325 = vpack.c.b16 %v303, %v303
    %v326 = vpack.c.b16 %v304, %v304
    %v327 = vpack.c.b16 %v305, %v305
    %vm339 = vcmask 195584
    %v341 = vsel %vm339, %v177, 0
    %vm343 = vcmask 1043456
    %v345 = vsel %vm343, %v317, 0
    %v348 = vsel %vm343, %v318, 0
    %v351 = vsel %vm343, %v319, 0
    %v354 = vsel %vm343, %v320, 0
    %v357 = vsel %vm343, %v321, 0
    %v360 = vsel %vm343, %v322, 0
    %v363 = vsel %vm343, %v323, 0
    %v366 = vsel %vm343, %v324, 0
    %v369 = vsel %vm343, %v325, 0
    %v372 = vsel %vm343, %v326, 0
    %v375 = vsel %vm343, %v327, 0
    %377 = vmatprep.subr.bf16.mxu0 %v307
    %378 = vmatpush1.bf16.msra.mxu0 %v306
    %379 = vmatprep.subr.bf16.mxu0 %v348
    %380 = vmatpush1.bf16.msra.mxu0 %v345
    %381 = vmatprep.subr.bf16.mxu0 0
    %382 = vmatpush1.bf16.msra.mxu0 0
    %383 = vmatprep.subr.bf16.mxu0 0
    %384 = vmatpush1.bf16.msra.mxu0 0
    %385 = vmatprep.subr.bf16.mxu0 0
    %386 = vmatpush1.bf16.msra.mxu0 0
    %387 = vmatprep.subr.bf16.mxu0 0
    %388 = vmatpush1.bf16.msra.mxu0 0
    %389 = vmatprep.subr.bf16.mxu0 0
    %390 = vmatpush1.bf16.msra.mxu0 0
    %391 = vmatprep.subr.bf16.mxu0 0
    %392 = vmatpush1.bf16.msra.mxu0 0
    %393 = vmatprep.subr.bf16.mxu0 0
    %394 = vmatpush1.bf16.msra.mxu0 0
    %395 = vmatprep.subr.bf16.mxu0 0
    %396 = vmatpush1.bf16.msra.mxu0 0
    %397 = vmatprep.subr.bf16.mxu0 0
    %398 = vmatpush1.bf16.msra.mxu0 0
    %399 = vmatprep.subr.bf16.mxu0 0
    %400 = vmatpush1.bf16.msra.mxu0 0
    %401 = vmatprep.subr.bf16.mxu0 0
    %402 = vmatpush1.bf16.msra.mxu0 0
    %403 = vmatprep.subr.bf16.mxu0 0
    %404 = vmatpush1.bf16.msra.mxu0 0
    %405 = vmatprep.subr.bf16.mxu0 0
    %406 = vmatpush1.bf16.msra.mxu0 0
    %407 = vmatprep.subr.bf16.mxu0 0
    %408 = vmatpush1.bf16.msra.mxu0 0
    %409 = vmatprep.mubr.bf16.mxu0 0
    %410 = vmatmul.mubr.bf16.gmra.mrb[0].mxu0 %v341
    %v411 = vpop.f32.mrb[0].mxu0
    %v412 = vadd.f32 %v203, %v411
    %v413 = vpop.f32.mrb[0].mxu0
    %v414 = vadd.f32 %v207, %v413
    %v415 = vpop.f32.mrb[0].mxu0
    %v416 = vadd.f32 %v203, %v415
    %v417 = vpop.f32.mrb[0].mxu0
    %v418 = vadd.f32 %v207, %v417
    %419 = vdwg.mxu0
    %420 = vmatprep.subr.bf16.mxu0 %v309
    %421 = vmatpush1.bf16.msra.mxu0 %v308
    %422 = vmatprep.subr.bf16.mxu0 %v354
    %423 = vmatpush1.bf16.msra.mxu0 %v351
    %424 = vmatprep.subr.bf16.mxu0 0
    %425 = vmatpush1.bf16.msra.mxu0 0
    %426 = vmatprep.subr.bf16.mxu0 0
    %427 = vmatpush1.bf16.msra.mxu0 0
    %428 = vmatprep.subr.bf16.mxu0 0
    %429 = vmatpush1.bf16.msra.mxu0 0
    %430 = vmatprep.subr.bf16.mxu0 0
    %431 = vmatpush1.bf16.msra.mxu0 0
    %432 = vmatprep.subr.bf16.mxu0 0
    %433 = vmatpush1.bf16.msra.mxu0 0
    %434 = vmatprep.subr.bf16.mxu0 0
    %435 = vmatpush1.bf16.msra.mxu0 0
    %436 = vmatprep.subr.bf16.mxu0 0
    %437 = vmatpush1.bf16.msra.mxu0 0
    %438 = vmatprep.subr.bf16.mxu0 0
    %439 = vmatpush1.bf16.msra.mxu0 0
    %440 = vmatprep.subr.bf16.mxu0 0
    %441 = vmatpush1.bf16.msra.mxu0 0
    %442 = vmatprep.subr.bf16.mxu0 0
    %443 = vmatpush1.bf16.msra.mxu0 0
    %444 = vmatprep.subr.bf16.mxu0 0
    %445 = vmatpush1.bf16.msra.mxu0 0
    %446 = vmatprep.subr.bf16.mxu0 0
    %447 = vmatpush1.bf16.msra.mxu0 0
    %448 = vmatprep.subr.bf16.mxu0 0
    %449 = vmatpush1.bf16.msra.mxu0 0
    %450 = vmatprep.subr.bf16.mxu0 0
    %451 = vmatpush1.bf16.msra.mxu0 0
    %452 = vmatprep.mubr.bf16.mxu0 0
    %453 = vmatmul.mubr.bf16.gmra.mrb[0].mxu0 %v341
    %v454 = vpop.f32.mrb[0].mxu0
    %v455 = vadd.f32 %v211, %v454
    %v456 = vpop.f32.mrb[0].mxu0
    %v457 = vadd.f32 %v215, %v456
    %v458 = vpop.f32.mrb[0].mxu0
    %v459 = vadd.f32 %v211, %v458
    %v460 = vpop.f32.mrb[0].mxu0
    %v461 = vadd.f32 %v215, %v460
    %462 = vdwg.mxu0
    %463 = vmatprep.subr.bf16.mxu0 %v311
    %464 = vmatpush1.bf16.msra.mxu0 %v310
    %465 = vmatprep.subr.bf16.mxu0 %v360
    %466 = vmatpush1.bf16.msra.mxu0 %v357
    %467 = vmatprep.subr.bf16.mxu0 0
    %468 = vmatpush1.bf16.msra.mxu0 0
    %469 = vmatprep.subr.bf16.mxu0 0
    %470 = vmatpush1.bf16.msra.mxu0 0
    %471 = vmatprep.subr.bf16.mxu0 0
    %472 = vmatpush1.bf16.msra.mxu0 0
    %473 = vmatprep.subr.bf16.mxu0 0
    %474 = vmatpush1.bf16.msra.mxu0 0
    %475 = vmatprep.subr.bf16.mxu0 0
    %476 = vmatpush1.bf16.msra.mxu0 0
    %477 = vmatprep.subr.bf16.mxu0 0
    %478 = vmatpush1.bf16.msra.mxu0 0
    %479 = vmatprep.subr.bf16.mxu0 0
    %480 = vmatpush1.bf16.msra.mxu0 0
    %481 = vmatprep.subr.bf16.mxu0 0
    %482 = vmatpush1.bf16.msra.mxu0 0
    %483 = vmatprep.subr.bf16.mxu0 0
    %484 = vmatpush1.bf16.msra.mxu0 0
    %485 = vmatprep.subr.bf16.mxu0 0
    %486 = vmatpush1.bf16.msra.mxu0 0
    %487 = vmatprep.subr.bf16.mxu0 0
    %488 = vmatpush1.bf16.msra.mxu0 0
    %489 = vmatprep.subr.bf16.mxu0 0
    %490 = vmatpush1.bf16.msra.mxu0 0
    %491 = vmatprep.subr.bf16.mxu0 0
    %492 = vmatpush1.bf16.msra.mxu0 0
    %493 = vmatprep.subr.bf16.mxu0 0
    %494 = vmatpush1.bf16.msra.mxu0 0
    %495 = vmatprep.mubr.bf16.mxu0 0
    %496 = vmatmul.mubr.bf16.gmra.mrb[0].mxu0 %v341
    %v497 = vpop.f32.mrb[0].mxu0
    %v498 = vadd.f32 %v219, %v497
    %v499 = vpop.f32.mrb[0].mxu0
    %v500 = vadd.f32 %v223, %v499
    %v501 = vpop.f32.mrb[0].mxu0
    %v502 = vadd.f32 %v219, %v501
    %v503 = vpop.f32.mrb[0].mxu0
    %v504 = vadd.f32 %v223, %v503
    %505 = vdwg.mxu0
    %506 = vmatprep.subr.bf16.mxu0 %v313
    %507 = vmatpush1.bf16.msra.mxu0 %v312
    %508 = vmatprep.subr.bf16.mxu0 %v366
    %509 = vmatpush1.bf16.msra.mxu0 %v363
    %510 = vmatprep.subr.bf16.mxu0 0
    %511 = vmatpush1.bf16.msra.mxu0 0
    %512 = vmatprep.subr.bf16.mxu0 0
    %513 = vmatpush1.bf16.msra.mxu0 0
    %514 = vmatprep.subr.bf16.mxu0 0
    %515 = vmatpush1.bf16.msra.mxu0 0
    %516 = vmatprep.subr.bf16.mxu0 0
    %517 = vmatpush1.bf16.msra.mxu0 0
    %518 = vmatprep.subr.bf16.mxu0 0
    %519 = vmatpush1.bf16.msra.mxu0 0
    %520 = vmatprep.subr.bf16.mxu0 0
    %521 = vmatpush1.bf16.msra.mxu0 0
    %522 = vmatprep.subr.bf16.mxu0 0
    %523 = vmatpush1.bf16.msra.mxu0 0
    %524 = vmatprep.subr.bf16.mxu0 0
    %525 = vmatpush1.bf16.msra.mxu0 0
    %526 = vmatprep.subr.bf16.mxu0 0
    %527 = vmatpush1.bf16.msra.mxu0 0
    %528 = vmatprep.subr.bf16.mxu0 0
    %529 = vmatpush1.bf16.msra.mxu0 0
    %530 = vmatprep.subr.bf16.mxu0 0
    %531 = vmatpush1.bf16.msra.mxu0 0
    %532 = vmatprep.subr.bf16.mxu0 0
    %533 = vmatpush1.bf16.msra.mxu0 0
    %534 = vmatprep.subr.bf16.mxu0 0
    %535 = vmatpush1.bf16.msra.mxu0 0
    %536 = vmatprep.subr.bf16.mxu0 0
    %537 = vmatpush1.bf16.msra.mxu0 0
    %538 = vmatprep.mubr.bf16.mxu0 0
    %539 = vmatmul.mubr.bf16.gmra.mrb[0].mxu0 %v341
    %v540 = vpop.f32.mrb[0].mxu0
    %v541 = vadd.f32 %v227, %v540
    %v542 = vpop.f32.mrb[0].mxu0
    %v543 = vadd.f32 %v231, %v542
    %v544 = vpop.f32.mrb[0].mxu0
    %v545 = vadd.f32 %v227, %v544
    %v546 = vpop.f32.mrb[0].mxu0
    %v547 = vadd.f32 %v231, %v546
    %548 = vdwg.mxu0
    %549 = vmatprep.subr.bf16.mxu0 %v315
    %550 = vmatpush1.bf16.msra.mxu0 %v314
    %551 = vmatprep.subr.bf16.mxu0 %v372
    %552 = vmatpush1.bf16.msra.mxu0 %v369
    %553 = vmatprep.subr.bf16.mxu0 0
    %554 = vmatpush1.bf16.msra.mxu0 0
    %555 = vmatprep.subr.bf16.mxu0 0
    %556 = vmatpush1.bf16.msra.mxu0 0
    %557 = vmatprep.subr.bf16.mxu0 0
    %558 = vmatpush1.bf16.msra.mxu0 0
    %559 = vmatprep.subr.bf16.mxu0 0
    %560 = vmatpush1.bf16.msra.mxu0 0
    %561 = vmatprep.subr.bf16.mxu0 0
    %562 = vmatpush1.bf16.msra.mxu0 0
    %563 = vmatprep.subr.bf16.mxu0 0
    %564 = vmatpush1.bf16.msra.mxu0 0
    %565 = vmatprep.subr.bf16.mxu0 0
    %566 = vmatpush1.bf16.msra.mxu0 0
    %567 = vmatprep.subr.bf16.mxu0 0
    %568 = vmatpush1.bf16.msra.mxu0 0
    %569 = vmatprep.subr.bf16.mxu0 0
    %570 = vmatpush1.bf16.msra.mxu0 0
    %571 = vmatprep.subr.bf16.mxu0 0
    %572 = vmatpush1.bf16.msra.mxu0 0
    %573 = vmatprep.subr.bf16.mxu0 0
    %574 = vmatpush1.bf16.msra.mxu0 0
    %575 = vmatprep.subr.bf16.mxu0 0
    %576 = vmatpush1.bf16.msra.mxu0 0
    %577 = vmatprep.subr.bf16.mxu0 0
    %578 = vmatpush1.bf16.msra.mxu0 0
    %579 = vmatprep.subr.bf16.mxu0 0
    %580 = vmatpush1.bf16.msra.mxu0 0
    %581 = vmatprep.mubr.bf16.mxu0 0
    %582 = vmatmul.mubr.bf16.gmra.mrb[0].mxu0 %v341
    %v583 = vpop.f32.mrb[0].mxu0
    %v584 = vadd.f32 %v235, %v583
    %v585 = vpop.f32.mrb[0].mxu0
    %v586 = vadd.f32 %v239, %v585
    %v587 = vpop.f32.mrb[0].mxu0
    %v588 = vadd.f32 %v235, %v587
    %v589 = vpop.f32.mrb[0].mxu0
    %v590 = vadd.f32 %v239, %v589
    %591 = vdwg.mxu0
    %592 = vmatprep.subr.bf16.mxu0 0
    %593 = vmatpush1.bf16.msra.mxu0 %v316
    %594 = vmatprep.subr.bf16.mxu0 0
    %595 = vmatpush1.bf16.msra.mxu0 %v375
    %596 = vmatprep.subr.bf16.mxu0 0
    %597 = vmatpush1.bf16.msra.mxu0 0
    %598 = vmatprep.subr.bf16.mxu0 0
    %599 = vmatpush1.bf16.msra.mxu0 0
    %600 = vmatprep.subr.bf16.mxu0 0
    %601 = vmatpush1.bf16.msra.mxu0 0
    %602 = vmatprep.subr.bf16.mxu0 0
    %603 = vmatpush1.bf16.msra.mxu0 0
    %604 = vmatprep.subr.bf16.mxu0 0
    %605 = vmatpush1.bf16.msra.mxu0 0
    %606 = vmatprep.subr.bf16.mxu0 0
    %607 = vmatpush1.bf16.msra.mxu0 0
    %608 = vmatprep.subr.bf16.mxu0 0
    %609 = vmatpush1.bf16.msra.mxu0 0
    %610 = vmatprep.subr.bf16.mxu0 0
    %611 = vmatpush1.bf16.msra.mxu0 0
    %612 = vmatprep.subr.bf16.mxu0 0
    %613 = vmatpush1.bf16.msra.mxu0 0
    %614 = vmatprep.subr.bf16.mxu0 0
    %615 = vmatpush1.bf16.msra.mxu0 0
    %616 = vmatprep.subr.bf16.mxu0 0
    %617 = vmatpush1.bf16.msra.mxu0 0
    %618 = vmatprep.subr.bf16.mxu0 0
    %619 = vmatpush1.bf16.msra.mxu0 0
    %620 = vmatprep.subr.bf16.mxu0 0
    %621 = vmatpush1.bf16.msra.mxu0 0
    %622 = vmatprep.subr.bf16.mxu0 0
    %623 = vmatpush1.bf16.msra.mxu0 0
    %624 = vmatprep.mubr.bf16.mxu0 0
    %625 = vmatmul.mubr.bf16.gmra.mrb[0].mxu0 %v341
    %v626 = vpop.f32.mrb[0].mxu0
    %v627 = vadd.f32 %v243, %v626
    %v628 = vpop.f32.mrb[0].mxu0
    %v629 = vpop.f32.mrb[0].mxu0
    %v630 = vadd.f32 %v243, %v629
    %v631 = vpop.f32.mrb[0].mxu0
    %632 = vdwg.mxu0
    %633 = vmatprep.subr.mxu0 0.0
    %634 = vmatpush1.xpose.msra.mxu0 %v500
    %635 = vmatprep.subr.mxu0 0.0
    %636 = vmatpush1.xpose.msra.mxu0 %v504
    %637 = vmatprep.subr.mxu0 0.0
    %638 = vmatpush1.xpose.msra.mxu0 0.0
    %639 = vmatprep.subr.mxu0 0.0
    %640 = vmatpush1.xpose.msra.mxu0 0.0
    %641 = vmatprep.subr.mxu0 0.0
    %642 = vmatpush1.xpose.msra.mxu0 0.0
    %643 = vmatprep.subr.mxu0 0.0
    %644 = vmatpush1.xpose.msra.mxu0 0.0
    %645 = vmatprep.subr.mxu0 0.0
    %646 = vmatpush1.xpose.msra.mxu0 0.0
    %647 = vmatprep.subr.mxu0 0.0
    %648 = vmatpush1.xpose.msra.mxu0 0.0
    %649 = vmatprep.subr.mxu0 0.0
    %650 = vmatpush1.xpose.msra.mxu0 0.0
    %651 = vmatprep.subr.mxu0 0.0
    %652 = vmatpush1.xpose.msra.mxu0 0.0
    %653 = vmatprep.subr.mxu0 0.0
    %654 = vmatpush1.xpose.msra.mxu0 0.0
    %655 = vmatprep.subr.mxu0 0.0
    %656 = vmatpush1.xpose.msra.mxu0 0.0
    %657 = vmatprep.subr.mxu0 0.0
    %658 = vmatpush1.xpose.msra.mxu0 0.0
    %659 = vmatprep.subr.mxu0 0.0
    %660 = vmatpush1.xpose.msra.mxu0 0.0
    %661 = vmatprep.subr.mxu0 0.0
    %662 = vmatpush1.xpose.msra.mxu0 0.0
    %663 = vmatprep.subr.mxu0 0.0
    %664 = vmatpush1.xpose.msra.mxu0 0.0
    %665 = vmatprep.subr.mxu0 0.0
    %666 = vmatpush1.xpose.msra.mxu0 0.0
    %667 = vmatprep.subr.mxu0 0.0
    %668 = vmatpush1.xpose.msra.mxu0 0.0
    %669 = vmatprep.subr.mxu0 0.0
    %670 = vmatpush1.xpose.msra.mxu0 0.0
    %671 = vmatprep.subr.mxu0 0.0
    %672 = vmatpush1.xpose.msra.mxu0 0.0
    %673 = vmatprep.subr.mxu0 0.0
    %674 = vmatpush1.xpose.msra.mxu0 0.0
    %675 = vmatprep.subr.mxu0 0.0
    %676 = vmatpush1.xpose.msra.mxu0 0.0
    %677 = vmatprep.subr.mxu0 0.0
    %678 = vmatpush1.xpose.msra.mxu0 0.0
    %679 = vmatprep.subr.mxu0 0.0
    %680 = vmatpush1.xpose.msra.mxu0 0.0
    %681 = vmatprep.subr.mxu0 0.0
    %682 = vmatpush1.xpose.msra.mxu0 0.0
    %683 = vmatprep.subr.mxu0 0.0
    %684 = vmatpush1.xpose.msra.mxu0 0.0
    %685 = vmatprep.subr.mxu0 0.0
    %686 = vmatpush1.xpose.msra.mxu0 0.0
    %687 = vmatprep.subr.mxu0 0.0
    %688 = vmatpush1.xpose.msra.mxu0 0.0
    %689 = vmatprep.subr.mxu0 0.0
    %690 = vmatpush1.xpose.msra.mxu0 0.0
    %691 = vmatprep.subr.mxu0 0.0
    %692 = vmatpush1.xpose.msra.mxu0 0.0
    %693 = vmatprep.subr.mxu0 0.0
    %694 = vmatpush1.xpose.msra.mxu0 0.0
    %695 = vmatprep.subr.mxu0 0.0
    %696 = vmatpush1.xpose.msra.mxu0 0.0
    %697 = vmatprep.mubr.f32.mxu0 0.0
    %698 = vmatmul.mubr.f32.gmra.mrb[0].mxu0 %v584
    %v699 = vpop.f32.mrb[0].mxu0
    %v700 = vadd.f32 0.0, %v699
    %v701 = vpop.f32.mrb[0].mxu0
    %702 = vmatprep.mubr.f32.mxu0 0.0
    %703 = vmatmul.mubr.f32.gmra.mrb[0].mxu0 %v588
    %v704 = vpop.f32.mrb[0].mxu0
    %v705 = vadd.f32 0.0, %v704
    %v706 = vpop.f32.mrb[0].mxu0
    %707 = vdwg.mxu0
    %v708 = vmul.f32 %v700, 0.03125
    %v709 = vmul.f32 %v705, 0.03125
    %v710 = vld [vmem:[%s13] sm:$0xff]
    %v711 = vld [vmem:[%s13 + $0x8] sm:$0x3f]
    %v712 = vtanh.pop %v708
    %v713 = vtanh.pop %v709
    %v714 = vstv %s176
    %v715 = vmul.f32 %v712, %v714
    %v716 = vmul.f32 %v713, %v714
    %v717 = vmul.f32 %v172, %v715
    %v718 = vmul.f32 %v173, %v716
    %v719 = vadd.f32 %v710, %v717
    %v720 = vadd.f32 %v711, %v718
    %721 = vmatprep.subr.mxu0 0.0
    %722 = vmatpush1.xpose.msra.mxu0 %v541
    %723 = vmatprep.subr.mxu0 0.0
    %724 = vmatpush1.xpose.msra.mxu0 %v545
    %725 = vmatprep.subr.mxu0 0.0
    %726 = vmatpush1.xpose.msra.mxu0 0.0
    %727 = vmatprep.subr.mxu0 0.0
    %728 = vmatpush1.xpose.msra.mxu0 0.0
    %729 = vmatprep.subr.mxu0 0.0
    %730 = vmatpush1.xpose.msra.mxu0 0.0
    %731 = vmatprep.subr.mxu0 0.0
    %732 = vmatpush1.xpose.msra.mxu0 0.0
    %733 = vmatprep.subr.mxu0 0.0
    %734 = vmatpush1.xpose.msra.mxu0 0.0
    %735 = vmatprep.subr.mxu0 0.0
    %736 = vmatpush1.xpose.msra.mxu0 0.0
    %737 = vmatprep.subr.mxu0 0.0
    %738 = vmatpush1.xpose.msra.mxu0 0.0
    %739 = vmatprep.subr.mxu0 0.0
    %740 = vmatpush1.xpose.msra.mxu0 0.0
    %741 = vmatprep.subr.mxu0 0.0
    %742 = vmatpush1.xpose.msra.mxu0 0.0
    %743 = vmatprep.subr.mxu0 0.0
    %744 = vmatpush1.xpose.msra.mxu0 0.0
    %745 = vmatprep.subr.mxu0 0.0
    %746 = vmatpush1.xpose.msra.mxu0 0.0
    %747 = vmatprep.subr.mxu0 0.0
    %748 = vmatpush1.xpose.msra.mxu0 0.0
    %749 = vmatprep.subr.mxu0 0.0
    %750 = vmatpush1.xpose.msra.mxu0 0.0
    %751 = vmatprep.subr.mxu0 0.0
    %752 = vmatpush1.xpose.msra.mxu0 0.0
    %753 = vmatprep.subr.mxu0 0.0
    %754 = vmatpush1.xpose.msra.mxu0 0.0
    %755 = vmatprep.subr.mxu0 0.0
    %756 = vmatpush1.xpose.msra.mxu0 0.0
    %757 = vmatprep.subr.mxu0 0.0
    %758 = vmatpush1.xpose.msra.mxu0 0.0
    %759 = vmatprep.subr.mxu0 0.0
    %760 = vmatpush1.xpose.msra.mxu0 0.0
    %761 = vmatprep.subr.mxu0 0.0
    %762 = vmatpush1.xpose.msra.mxu0 0.0
    %763 = vmatprep.subr.mxu0 0.0
    %764 = vmatpush1.xpose.msra.mxu0 0.0
    %765 = vmatprep.subr.mxu0 0.0
    %766 = vmatpush1.xpose.msra.mxu0 0.0
    %767 = vmatprep.subr.mxu0 0.0
    %768 = vmatpush1.xpose.msra.mxu0 0.0
    %769 = vmatprep.subr.mxu0 0.0
    %770 = vmatpush1.xpose.msra.mxu0 0.0
    %771 = vmatprep.subr.mxu0 0.0
    %772 = vmatpush1.xpose.msra.mxu0 0.0
    %773 = vmatprep.subr.mxu0 0.0
    %774 = vmatpush1.xpose.msra.mxu0 0.0
    %775 = vmatprep.subr.mxu0 0.0
    %776 = vmatpush1.xpose.msra.mxu0 0.0
    %777 = vmatprep.subr.mxu0 0.0
    %778 = vmatpush1.xpose.msra.mxu0 0.0
    %779 = vmatprep.subr.mxu0 0.0
    %780 = vmatpush1.xpose.msra.mxu0 0.0
    %781 = vmatprep.subr.mxu0 0.0
    %782 = vmatpush1.xpose.msra.mxu0 0.0
    %783 = vmatprep.subr.mxu0 0.0
    %784 = vmatpush1.xpose.msra.mxu0 0.0
    %785 = vmatprep.mubr.f32.mxu0 0.0
    %786 = vmatmul.mubr.f32.gmra.mrb[0].mxu0 %v586
    %v787 = vpop.f32.mrb[0].mxu0
    %v788 = vadd.f32 0.0, %v787
    %v789 = vpop.f32.mrb[0].mxu0
    %790 = vmatprep.mubr.f32.mxu0 0.0
    %791 = vmatmul.mubr.f32.gmra.mrb[0].mxu0 %v590
    %v792 = vpop.f32.mrb[0].mxu0
    %v793 = vadd.f32 0.0, %v792
    %v794 = vpop.f32.mrb[0].mxu0
    %795 = vdwg.mxu0
    %v796 = vmul.f32 %v788, 0.03125
    %v797 = vmul.f32 %v793, 0.03125
    %s798 = scalar_lea.vmem %s13, 16
    %v799 = vld [vmem:[%s798] sm:$0xff]
    %v800 = vld [vmem:[%s798 + $0x8] sm:$0x3f]
    %v801 = vtanh.pop %v796
    %v802 = vtanh.pop %v797
    %v803 = vmul.f32 %v801, %v714
    %v804 = vmul.f32 %v802, %v714
    %v805 = vmul.f32 %v172, %v803
    %v806 = vmul.f32 %v173, %v804
    %v807 = vadd.f32 %v799, %v805
    %v808 = vadd.f32 %v800, %v806
    %vm809 = vcmask 113664
    %v811 = vsel %vm809, %v807, 0
    %v814 = vsel %vm809, %v808, 0
    %vm816 = vcmask 1045504
    %v818 = vsel %vm816, %v418, 0
    %820 = vmatprep.subr.mxu0 0.0
    %821 = vmatpush1.msra.mxu0 %v414
    %822 = vmatprep.subr.mxu0 0.0
    %823 = vmatpush1.msra.mxu0 %v818
    %824 = vmatprep.subr.mxu0 0.0
    %825 = vmatpush1.msra.mxu0 0.0
    %826 = vmatprep.subr.mxu0 0.0
    %827 = vmatpush1.msra.mxu0 0.0
    %828 = vmatprep.subr.mxu0 0.0
    %829 = vmatpush1.msra.mxu0 0.0
    %830 = vmatprep.subr.mxu0 0.0
    %831 = vmatpush1.msra.mxu0 0.0
    %832 = vmatprep.subr.mxu0 0.0
    %833 = vmatpush1.msra.mxu0 0.0
    %834 = vmatprep.subr.mxu0 0.0
    %835 = vmatpush1.msra.mxu0 0.0
    %836 = vmatprep.subr.mxu0 0.0
    %837 = vmatpush1.msra.mxu0 0.0
    %838 = vmatprep.subr.mxu0 0.0
    %839 = vmatpush1.msra.mxu0 0.0
    %840 = vmatprep.subr.mxu0 0.0
    %841 = vmatpush1.msra.mxu0 0.0
    %842 = vmatprep.subr.mxu0 0.0
    %843 = vmatpush1.msra.mxu0 0.0
    %844 = vmatprep.subr.mxu0 0.0
    %845 = vmatpush1.msra.mxu0 0.0
    %846 = vmatprep.subr.mxu0 0.0
    %847 = vmatpush1.msra.mxu0 0.0
    %848 = vmatprep.subr.mxu0 0.0
    %849 = vmatpush1.msra.mxu0 0.0
    %850 = vmatprep.subr.mxu0 0.0
    %851 = vmatpush1.msra.mxu0 0.0
    %852 = vmatprep.subr.mxu0 0.0
    %853 = vmatpush1.msra.mxu0 0.0
    %854 = vmatprep.subr.mxu0 0.0
    %855 = vmatpush1.msra.mxu0 0.0
    %856 = vmatprep.subr.mxu0 0.0
    %857 = vmatpush1.msra.mxu0 0.0
    %858 = vmatprep.subr.mxu0 0.0
    %859 = vmatpush1.msra.mxu0 0.0
    %860 = vmatprep.subr.mxu0 0.0
    %861 = vmatpush1.msra.mxu0 0.0
    %862 = vmatprep.subr.mxu0 0.0
    %863 = vmatpush1.msra.mxu0 0.0
    %864 = vmatprep.subr.mxu0 0.0
    %865 = vmatpush1.msra.mxu0 0.0
    %866 = vmatprep.subr.mxu0 0.0
    %867 = vmatpush1.msra.mxu0 0.0
    %868 = vmatprep.subr.mxu0 0.0
    %869 = vmatpush1.msra.mxu0 0.0
    %870 = vmatprep.subr.mxu0 0.0
    %871 = vmatpush1.msra.mxu0 0.0
    %872 = vmatprep.subr.mxu0 0.0
    %873 = vmatpush1.msra.mxu0 0.0
    %874 = vmatprep.subr.mxu0 0.0
    %875 = vmatpush1.msra.mxu0 0.0
    %876 = vmatprep.subr.mxu0 0.0
    %877 = vmatpush1.msra.mxu0 0.0
    %878 = vmatprep.subr.mxu0 0.0
    %879 = vmatpush1.msra.mxu0 0.0
    %880 = vmatprep.subr.mxu0 0.0
    %881 = vmatpush1.msra.mxu0 0.0
    %882 = vmatprep.subr.mxu0 0.0
    %883 = vmatpush1.msra.mxu0 0.0
    %884 = vmatprep.mubr.f32.mxu0 0.0
    %885 = vmatmul.mubr.f32.gmra.mrb[0].mxu0 %v811
    %v886 = vpop.f32.mrb[0].mxu0
    %v887 = vadd.f32 0.0, %v886
    %v888 = vpop.f32.mrb[0].mxu0
    %889 = vmatprep.mubr.f32.mxu0 0.0
    %890 = vmatmul.mubr.f32.gmra.mrb[0].mxu0 %v814
    %v891 = vpop.f32.mrb[0].mxu0
    %v892 = vadd.f32 0.0, %v891
    %v893 = vpop.f32.mrb[0].mxu0
    %894 = vdwg.mxu0
    %v896 = vsel %vm809, %v719, 0
    %v899 = vsel %vm809, %v720, 0
    %v902 = vsel %vm816, %v416, 0
    %904 = vmatprep.subr.mxu0 0.0
    %905 = vmatpush1.msra.mxu0 %v412
    %906 = vmatprep.subr.mxu0 0.0
    %907 = vmatpush1.msra.mxu0 %v902
    %908 = vmatprep.subr.mxu0 0.0
    %909 = vmatpush1.msra.mxu0 0.0
    %910 = vmatprep.subr.mxu0 0.0
    %911 = vmatpush1.msra.mxu0 0.0
    %912 = vmatprep.subr.mxu0 0.0
    %913 = vmatpush1.msra.mxu0 0.0
    %914 = vmatprep.subr.mxu0 0.0
    %915 = vmatpush1.msra.mxu0 0.0
    %916 = vmatprep.subr.mxu0 0.0
    %917 = vmatpush1.msra.mxu0 0.0
    %918 = vmatprep.subr.mxu0 0.0
    %919 = vmatpush1.msra.mxu0 0.0
    %920 = vmatprep.subr.mxu0 0.0
    %921 = vmatpush1.msra.mxu0 0.0
    %922 = vmatprep.subr.mxu0 0.0
    %923 = vmatpush1.msra.mxu0 0.0
    %924 = vmatprep.subr.mxu0 0.0
    %925 = vmatpush1.msra.mxu0 0.0
    %926 = vmatprep.subr.mxu0 0.0
    %927 = vmatpush1.msra.mxu0 0.0
    %928 = vmatprep.subr.mxu0 0.0
    %929 = vmatpush1.msra.mxu0 0.0
    %930 = vmatprep.subr.mxu0 0.0
    %931 = vmatpush1.msra.mxu0 0.0
    %932 = vmatprep.subr.mxu0 0.0
    %933 = vmatpush1.msra.mxu0 0.0
    %934 = vmatprep.subr.mxu0 0.0
    %935 = vmatpush1.msra.mxu0 0.0
    %936 = vmatprep.subr.mxu0 0.0
    %937 = vmatpush1.msra.mxu0 0.0
    %938 = vmatprep.subr.mxu0 0.0
    %939 = vmatpush1.msra.mxu0 0.0
    %940 = vmatprep.subr.mxu0 0.0
    %941 = vmatpush1.msra.mxu0 0.0
    %942 = vmatprep.subr.mxu0 0.0
    %943 = vmatpush1.msra.mxu0 0.0
    %944 = vmatprep.subr.mxu0 0.0
    %945 = vmatpush1.msra.mxu0 0.0
    %946 = vmatprep.subr.mxu0 0.0
    %947 = vmatpush1.msra.mxu0 0.0
    %948 = vmatprep.subr.mxu0 0.0
    %949 = vmatpush1.msra.mxu0 0.0
    %950 = vmatprep.subr.mxu0 0.0
    %951 = vmatpush1.msra.mxu0 0.0
    %952 = vmatprep.subr.mxu0 0.0
    %953 = vmatpush1.msra.mxu0 0.0
    %954 = vmatprep.subr.mxu0 0.0
    %955 = vmatpush1.msra.mxu0 0.0
    %956 = vmatprep.subr.mxu0 0.0
    %957 = vmatpush1.msra.mxu0 0.0
    %958 = vmatprep.subr.mxu0 0.0
    %959 = vmatpush1.msra.mxu0 0.0
    %960 = vmatprep.subr.mxu0 0.0
    %961 = vmatpush1.msra.mxu0 0.0
    %962 = vmatprep.subr.mxu0 0.0
    %963 = vmatpush1.msra.mxu0 0.0
    %964 = vmatprep.subr.mxu0 0.0
    %965 = vmatpush1.msra.mxu0 0.0
    %966 = vmatprep.subr.mxu0 0.0
    %967 = vmatpush1.msra.mxu0 0.0
    %968 = vmatprep.mubr.f32.mxu0 0.0
    %969 = vmatmul.mubr.f32.gmra.mrb[0].mxu0 %v896
    %v970 = vpop.f32.mrb[0].mxu0
    %v971 = vadd.f32 %v887, %v970
    %v972 = vpop.f32.mrb[0].mxu0
    %973 = vmatprep.mubr.f32.mxu0 0.0
    %974 = vmatmul.mubr.f32.gmra.mrb[0].mxu0 %v899
    %v975 = vpop.f32.mrb[0].mxu0
    %v976 = vadd.f32 %v892, %v975
    %v977 = vpop.f32.mrb[0].mxu0
    %978 = vdwg.mxu0
    %979 = vmatprep.subr.mxu0 0.0
    %980 = vmatpush1.xpose.msra.mxu0 %v543
    %981 = vmatprep.subr.mxu0 0.0
    %982 = vmatpush1.xpose.msra.mxu0 %v547
    %983 = vmatprep.subr.mxu0 0.0
    %984 = vmatpush1.xpose.msra.mxu0 0.0
    %985 = vmatprep.subr.mxu0 0.0
    %986 = vmatpush1.xpose.msra.mxu0 0.0
    %987 = vmatprep.subr.mxu0 0.0
    %988 = vmatpush1.xpose.msra.mxu0 0.0
    %989 = vmatprep.subr.mxu0 0.0
    %990 = vmatpush1.xpose.msra.mxu0 0.0
    %991 = vmatprep.subr.mxu0 0.0
    %992 = vmatpush1.xpose.msra.mxu0 0.0
    %993 = vmatprep.subr.mxu0 0.0
    %994 = vmatpush1.xpose.msra.mxu0 0.0
    %995 = vmatprep.subr.mxu0 0.0
    %996 = vmatpush1.xpose.msra.mxu0 0.0
    %997 = vmatprep.subr.mxu0 0.0
    %998 = vmatpush1.xpose.msra.mxu0 0.0
    %999 = vmatprep.subr.mxu0 0.0
    %1000 = vmatpush1.xpose.msra.mxu0 0.0
    %1001 = vmatprep.subr.mxu0 0.0
    %1002 = vmatpush1.xpose.msra.mxu0 0.0
    %1003 = vmatprep.subr.mxu0 0.0
    %1004 = vmatpush1.xpose.msra.mxu0 0.0
    %1005 = vmatprep.subr.mxu0 0.0
    %1006 = vmatpush1.xpose.msra.mxu0 0.0
    %1007 = vmatprep.subr.mxu0 0.0
    %1008 = vmatpush1.xpose.msra.mxu0 0.0
    %1009 = vmatprep.subr.mxu0 0.0
    %1010 = vmatpush1.xpose.msra.mxu0 0.0
    %1011 = vmatprep.subr.mxu0 0.0
    %1012 = vmatpush1.xpose.msra.mxu0 0.0
    %1013 = vmatprep.subr.mxu0 0.0
    %1014 = vmatpush1.xpose.msra.mxu0 0.0
    %1015 = vmatprep.subr.mxu0 0.0
    %1016 = vmatpush1.xpose.msra.mxu0 0.0
    %1017 = vmatprep.subr.mxu0 0.0
    %1018 = vmatpush1.xpose.msra.mxu0 0.0
    %1019 = vmatprep.subr.mxu0 0.0
    %1020 = vmatpush1.xpose.msra.mxu0 0.0
    %1021 = vmatprep.subr.mxu0 0.0
    %1022 = vmatpush1.xpose.msra.mxu0 0.0
    %1023 = vmatprep.subr.mxu0 0.0
    %1024 = vmatpush1.xpose.msra.mxu0 0.0
    %1025 = vmatprep.subr.mxu0 0.0
    %1026 = vmatpush1.xpose.msra.mxu0 0.0
    %1027 = vmatprep.subr.mxu0 0.0
    %1028 = vmatpush1.xpose.msra.mxu0 0.0
    %1029 = vmatprep.subr.mxu0 0.0
    %1030 = vmatpush1.xpose.msra.mxu0 0.0
    %1031 = vmatprep.subr.mxu0 0.0
    %1032 = vmatpush1.xpose.msra.mxu0 0.0
    %1033 = vmatprep.subr.mxu0 0.0
    %1034 = vmatpush1.xpose.msra.mxu0 0.0
    %1035 = vmatprep.subr.mxu0 0.0
    %1036 = vmatpush1.xpose.msra.mxu0 0.0
    %1037 = vmatprep.subr.mxu0 0.0
    %1038 = vmatpush1.xpose.msra.mxu0 0.0
    %1039 = vmatprep.subr.mxu0 0.0
    %1040 = vmatpush1.xpose.msra.mxu0 0.0
    %1041 = vmatprep.subr.mxu0 0.0
    %1042 = vmatpush1.xpose.msra.mxu0 0.0
    %1043 = vmatprep.mubr.f32.mxu0 0.0
    %1044 = vmatmul.mubr.f32.gmra.mrb[0].mxu0 %v627
    %v1045 = vpop.f32.mrb[0].mxu0
    %v1046 = vadd.f32 0.0, %v1045
    %v1047 = vpop.f32.mrb[0].mxu0
    %1048 = vmatprep.mubr.f32.mxu0 0.0
    %1049 = vmatmul.mubr.f32.gmra.mrb[0].mxu0 %v630
    %v1050 = vpop.f32.mrb[0].mxu0
    %v1051 = vadd.f32 0.0, %v1050
    %v1052 = vpop.f32.mrb[0].mxu0
    %1053 = vdwg.mxu0
    %v1054 = vmul.f32 %v1046, 0.03125
    %v1055 = vmul.f32 %v1051, 0.03125
    %s1056 = scalar_lea.vmem %s13, 32
    %v1057 = vld [vmem:[%s1056] sm:$0xff]
    %v1058 = vld [vmem:[%s1056 + $0x8] sm:$0x3f]
    %v1059 = vtanh.pop %v1054
    %v1060 = vtanh.pop %v1055
    %v1061 = vmul.f32 %v1059, %v714
    %v1062 = vmul.f32 %v1060, %v714
    %v1063 = vmul.f32 %v172, %v1061
    %v1064 = vmul.f32 %v173, %v1062
    %v1065 = vadd.f32 %v1057, %v1063
    %v1066 = vadd.f32 %v1058, %v1064
    %v1068 = vsel %vm809, %v1065, 0
    %v1071 = vsel %vm809, %v1066, 0
    %v1074 = vsel %vm816, %v459, 0
    %1076 = vmatprep.subr.mxu0 0.0
    %1077 = vmatpush1.msra.mxu0 %v455
    %1078 = vmatprep.subr.mxu0 0.0
    %1079 = vmatpush1.msra.mxu0 %v1074
    %1080 = vmatprep.subr.mxu0 0.0
    %1081 = vmatpush1.msra.mxu0 0.0
    %1082 = vmatprep.subr.mxu0 0.0
    %1083 = vmatpush1.msra.mxu0 0.0
    %1084 = vmatprep.subr.mxu0 0.0
    %1085 = vmatpush1.msra.mxu0 0.0
    %1086 = vmatprep.subr.mxu0 0.0
    %1087 = vmatpush1.msra.mxu0 0.0
    %1088 = vmatprep.subr.mxu0 0.0
    %1089 = vmatpush1.msra.mxu0 0.0
    %1090 = vmatprep.subr.mxu0 0.0
    %1091 = vmatpush1.msra.mxu0 0.0
    %1092 = vmatprep.subr.mxu0 0.0
    %1093 = vmatpush1.msra.mxu0 0.0
    %1094 = vmatprep.subr.mxu0 0.0
    %1095 = vmatpush1.msra.mxu0 0.0
    %1096 = vmatprep.subr.mxu0 0.0
    %1097 = vmatpush1.msra.mxu0 0.0
    %1098 = vmatprep.subr.mxu0 0.0
    %1099 = vmatpush1.msra.mxu0 0.0
    %1100 = vmatprep.subr.mxu0 0.0
    %1101 = vmatpush1.msra.mxu0 0.0
    %1102 = vmatprep.subr.mxu0 0.0
    %1103 = vmatpush1.msra.mxu0 0.0
    %1104 = vmatprep.subr.mxu0 0.0
    %1105 = vmatpush1.msra.mxu0 0.0
    %1106 = vmatprep.subr.mxu0 0.0
    %1107 = vmatpush1.msra.mxu0 0.0
    %1108 = vmatprep.subr.mxu0 0.0
    %1109 = vmatpush1.msra.mxu0 0.0
    %1110 = vmatprep.subr.mxu0 0.0
    %1111 = vmatpush1.msra.mxu0 0.0
    %1112 = vmatprep.subr.mxu0 0.0
    %1113 = vmatpush1.msra.mxu0 0.0
    %1114 = vmatprep.subr.mxu0 0.0
    %1115 = vmatpush1.msra.mxu0 0.0
    %1116 = vmatprep.subr.mxu0 0.0
    %1117 = vmatpush1.msra.mxu0 0.0
    %1118 = vmatprep.subr.mxu0 0.0
    %1119 = vmatpush1.msra.mxu0 0.0
    %1120 = vmatprep.subr.mxu0 0.0
    %1121 = vmatpush1.msra.mxu0 0.0
    %1122 = vmatprep.subr.mxu0 0.0
    %1123 = vmatpush1.msra.mxu0 0.0
    %1124 = vmatprep.subr.mxu0 0.0
    %1125 = vmatpush1.msra.mxu0 0.0
    %1126 = vmatprep.subr.mxu0 0.0
    %1127 = vmatpush1.msra.mxu0 0.0
    %1128 = vmatprep.subr.mxu0 0.0
    %1129 = vmatpush1.msra.mxu0 0.0
    %1130 = vmatprep.subr.mxu0 0.0
    %1131 = vmatpush1.msra.mxu0 0.0
    %1132 = vmatprep.subr.mxu0 0.0
    %1133 = vmatpush1.msra.mxu0 0.0
    %1134 = vmatprep.subr.mxu0 0.0
    %1135 = vmatpush1.msra.mxu0 0.0
    %1136 = vmatprep.subr.mxu0 0.0
    %1137 = vmatpush1.msra.mxu0 0.0
    %1138 = vmatprep.subr.mxu0 0.0
    %1139 = vmatpush1.msra.mxu0 0.0
    %1140 = vmatprep.mubr.f32.mxu0 0.0
    %1141 = vmatmul.mubr.f32.gmra.mrb[0].mxu0 %v1068
    %v1142 = vpop.f32.mrb[0].mxu0
    %v1143 = vadd.f32 0.0, %v1142
    %v1144 = vpop.f32.mrb[0].mxu0
    %1145 = vmatprep.mubr.f32.mxu0 0.0
    %1146 = vmatmul.mubr.f32.gmra.mrb[0].mxu0 %v1071
    %v1147 = vpop.f32.mrb[0].mxu0
    %v1148 = vadd.f32 0.0, %v1147
    %v1149 = vpop.f32.mrb[0].mxu0
    %1150 = vdwg.mxu0
    %v1151 = vadd.f32 %v971, %v1143
    %v1152 = vadd.f32 %v976, %v1148
    %v1153 = vld [vmem:[%s11] sm:$0x1]
    %v1155 = vlaneseq
    %v1156 = vshrl.u32 %v1155, 7
    %v1157 = vsub.s32 0, %v1156
    %v1158 = vrot.slane %v1153, %v1157
    %v1160 = vadd.f32 %v1151, %v1158
    %v1161 = vadd.f32 %v1152, %v1158
    %v1162 = vadd.f32 %v1160, %v457
    %v1163 = vadd.f32 %v1161, %v461
    %v1164 = vmax.f32 %v1162, 0.0
    %v1165 = vmax.f32 %v1163, 0.0
    %v1166 = vld [vmem:[%s15] sm:$0xff]
    %v1167 = vld [vmem:[%s15 + $0x8] sm:$0xff]
    %v1168 = vld [vmem:[%s15 + $0x10] sm:$0xff]
    %v1169 = vld [vmem:[%s15 + $0x18] sm:$0xff]
    %v1170 = vld [vmem:[%s15 + $0x20] sm:$0xff]
    %v1171 = vld [vmem:[%s15 + $0x28] sm:$0xff]
    %v1172 = vld [vmem:[%s15 + $0x30] sm:$0xff]
    %v1173 = vld [vmem:[%s15 + $0x38] sm:$0xff]
    %v1174 = vld [vmem:[%s15 + $0x40] sm:$0xff]
    %v1175 = vld [vmem:[%s15 + $0x48] sm:$0xff]
    %v1176 = vld [vmem:[%s15 + $0x50] sm:$0xff]
    %v1177 = vld [vmem:[%s15 + $0x58] sm:$0xff]
    %v1178 = vld [vmem:[%s15 + $0x60] sm:$0xff]
    %v1179 = vld [vmem:[%s15 + $0x68] sm:$0xff]
    %v1180 = vld [vmem:[%s15 + $0x70] sm:$0xff]
    %v1181 = vld [vmem:[%s15 + $0x78] sm:$0xff]
    %1182 = vmatprep.subr.mxu0 0.0
    %1183 = vmatpush1.msra.mxu0 %v1166
    %1184 = vmatprep.subr.mxu0 0.0
    %1185 = vmatpush1.msra.mxu0 %v1167
    %1186 = vmatprep.subr.mxu0 0.0
    %1187 = vmatpush1.msra.mxu0 %v1168
    %1188 = vmatprep.subr.mxu0 0.0
    %1189 = vmatpush1.msra.mxu0 %v1169
    %1190 = vmatprep.subr.mxu0 0.0
    %1191 = vmatpush1.msra.mxu0 %v1170
    %1192 = vmatprep.subr.mxu0 0.0
    %1193 = vmatpush1.msra.mxu0 %v1171
    %1194 = vmatprep.subr.mxu0 0.0
    %1195 = vmatpush1.msra.mxu0 %v1172
    %1196 = vmatprep.subr.mxu0 0.0
    %1197 = vmatpush1.msra.mxu0 %v1173
    %1198 = vmatprep.subr.mxu0 0.0
    %1199 = vmatpush1.msra.mxu0 %v1174
    %1200 = vmatprep.subr.mxu0 0.0
    %1201 = vmatpush1.msra.mxu0 %v1175
    %1202 = vmatprep.subr.mxu0 0.0
    %1203 = vmatpush1.msra.mxu0 %v1176
    %1204 = vmatprep.subr.mxu0 0.0
    %1205 = vmatpush1.msra.mxu0 %v1177
    %1206 = vmatprep.subr.mxu0 0.0
    %1207 = vmatpush1.msra.mxu0 %v1178
    %1208 = vmatprep.subr.mxu0 0.0
    %1209 = vmatpush1.msra.mxu0 %v1179
    %1210 = vmatprep.subr.mxu0 0.0
    %1211 = vmatpush1.msra.mxu0 %v1180
    %1212 = vmatprep.subr.mxu0 0.0
    %1213 = vmatpush1.msra.mxu0 %v1181
    %1214 = vmatprep.subr.mxu0 0.0
    %1215 = vmatpush1.msra.mxu0 0.0
    %1216 = vmatprep.subr.mxu0 0.0
    %1217 = vmatpush1.msra.mxu0 0.0
    %1218 = vmatprep.subr.mxu0 0.0
    %1219 = vmatpush1.msra.mxu0 0.0
    %1220 = vmatprep.subr.mxu0 0.0
    %1221 = vmatpush1.msra.mxu0 0.0
    %1222 = vmatprep.subr.mxu0 0.0
    %1223 = vmatpush1.msra.mxu0 0.0
    %1224 = vmatprep.subr.mxu0 0.0
    %1225 = vmatpush1.msra.mxu0 0.0
    %1226 = vmatprep.subr.mxu0 0.0
    %1227 = vmatpush1.msra.mxu0 0.0
    %1228 = vmatprep.subr.mxu0 0.0
    %1229 = vmatpush1.msra.mxu0 0.0
    %1230 = vmatprep.subr.mxu0 0.0
    %1231 = vmatpush1.msra.mxu0 0.0
    %1232 = vmatprep.subr.mxu0 0.0
    %1233 = vmatpush1.msra.mxu0 0.0
    %1234 = vmatprep.subr.mxu0 0.0
    %1235 = vmatpush1.msra.mxu0 0.0
    %1236 = vmatprep.subr.mxu0 0.0
    %1237 = vmatpush1.msra.mxu0 0.0
    %1238 = vmatprep.subr.mxu0 0.0
    %1239 = vmatpush1.msra.mxu0 0.0
    %1240 = vmatprep.subr.mxu0 0.0
    %1241 = vmatpush1.msra.mxu0 0.0
    %1242 = vmatprep.subr.mxu0 0.0
    %1243 = vmatpush1.msra.mxu0 0.0
    %1244 = vmatprep.subr.mxu0 0.0
    %1245 = vmatpush1.msra.mxu0 0.0
    %1246 = vmatprep.mubr.f32.mxu0 0.0
    %1247 = vmatmul.mubr.f32.gmra.mrb[0].mxu0 %v1164
    %v1248 = vpop.f32.mrb[0].mxu0
    %v1249 = vadd.f32 0.0, %v1248
    %v1250 = vpop.f32.mrb[0].mxu0
    %1251 = vmatprep.mubr.f32.mxu0 0.0
    %1252 = vmatmul.mubr.f32.gmra.mrb[0].mxu0 %v1165
    %v1253 = vpop.f32.mrb[0].mxu0
    %v1254 = vadd.f32 0.0, %v1253
    %v1255 = vpop.f32.mrb[0].mxu0
    %1256 = vdwg.mxu0
    %v1257 = vld [vmem:[%s5] sm:$0xff]
    %v1258 = vld [vmem:[%s5 + $0x8] sm:$0x3f]
    %s1259 = scalar_lea.vmem %s5, 16
    %v1260 = vld [vmem:[%s1259] sm:$0xff]
    %v1261 = vld [vmem:[%s1259 + $0x8] sm:$0x3f]
    %1264 = vrot.lane.b32.xlu0 %v1249, 127
    %v1265 = vpop.permute.xlu0 %1264
    %1266 = vrot.lane.b32.xlu0 %v1254, 127
    %v1267 = vpop.permute.xlu0 %1266
    %v1270 = vsel %vm809, %v1260, 0
    %v1273 = vsel %vm809, %v1261, 0
    %v1275 = vsel %vm816, %v1267, 0
    %1277 = vmatprep.subr.mxu0 0.0
    %1278 = vmatpush1.msra.mxu0 %v1265
    %1279 = vmatprep.subr.mxu0 0.0
    %1280 = vmatpush1.msra.mxu0 %v1275
    %1281 = vmatprep.subr.mxu0 0.0
    %1282 = vmatpush1.msra.mxu0 0.0
    %1283 = vmatprep.subr.mxu0 0.0
    %1284 = vmatpush1.msra.mxu0 0.0
    %1285 = vmatprep.subr.mxu0 0.0
    %1286 = vmatpush1.msra.mxu0 0.0
    %1287 = vmatprep.subr.mxu0 0.0
    %1288 = vmatpush1.msra.mxu0 0.0
    %1289 = vmatprep.subr.mxu0 0.0
    %1290 = vmatpush1.msra.mxu0 0.0
    %1291 = vmatprep.subr.mxu0 0.0
    %1292 = vmatpush1.msra.mxu0 0.0
    %1293 = vmatprep.subr.mxu0 0.0
    %1294 = vmatpush1.msra.mxu0 0.0
    %1295 = vmatprep.subr.mxu0 0.0
    %1296 = vmatpush1.msra.mxu0 0.0
    %1297 = vmatprep.subr.mxu0 0.0
    %1298 = vmatpush1.msra.mxu0 0.0
    %1299 = vmatprep.subr.mxu0 0.0
    %1300 = vmatpush1.msra.mxu0 0.0
    %1301 = vmatprep.subr.mxu0 0.0
    %1302 = vmatpush1.msra.mxu0 0.0
    %1303 = vmatprep.subr.mxu0 0.0
    %1304 = vmatpush1.msra.mxu0 0.0
    %1305 = vmatprep.subr.mxu0 0.0
    %1306 = vmatpush1.msra.mxu0 0.0
    %1307 = vmatprep.subr.mxu0 0.0
    %1308 = vmatpush1.msra.mxu0 0.0
    %1309 = vmatprep.subr.mxu0 0.0
    %1310 = vmatpush1.msra.mxu0 0.0
    %1311 = vmatprep.subr.mxu0 0.0
    %1312 = vmatpush1.msra.mxu0 0.0
    %1313 = vmatprep.subr.mxu0 0.0
    %1314 = vmatpush1.msra.mxu0 0.0
    %1315 = vmatprep.subr.mxu0 0.0
    %1316 = vmatpush1.msra.mxu0 0.0
    %1317 = vmatprep.subr.mxu0 0.0
    %1318 = vmatpush1.msra.mxu0 0.0
    %1319 = vmatprep.subr.mxu0 0.0
    %1320 = vmatpush1.msra.mxu0 0.0
    %1321 = vmatprep.subr.mxu0 0.0
    %1322 = vmatpush1.msra.mxu0 0.0
    %1323 = vmatprep.subr.mxu0 0.0
    %1324 = vmatpush1.msra.mxu0 0.0
    %1325 = vmatprep.subr.mxu0 0.0
    %1326 = vmatpush1.msra.mxu0 0.0
    %1327 = vmatprep.subr.mxu0 0.0
    %1328 = vmatpush1.msra.mxu0 0.0
    %1329 = vmatprep.subr.mxu0 0.0
    %1330 = vmatpush1.msra.mxu0 0.0
    %1331 = vmatprep.subr.mxu0 0.0
    %1332 = vmatpush1.msra.mxu0 0.0
    %1333 = vmatprep.subr.mxu0 0.0
    %1334 = vmatpush1.msra.mxu0 0.0
    %1335 = vmatprep.subr.mxu0 0.0
    %1336 = vmatpush1.msra.mxu0 0.0
    %1337 = vmatprep.subr.mxu0 0.0
    %1338 = vmatpush1.msra.mxu0 0.0
    %1339 = vmatprep.subr.mxu0 0.0
    %1340 = vmatpush1.msra.mxu0 0.0
    %1341 = vmatprep.mubr.f32.mxu0 0.0
    %1342 = vmatmul.mubr.f32.gmra.mrb[0].mxu0 %v1270
    %v1343 = vpop.f32.mrb[0].mxu0
    %v1344 = vadd.f32 0.0, %v1343
    %v1345 = vpop.f32.mrb[0].mxu0
    %1346 = vmatprep.mubr.f32.mxu0 0.0
    %1347 = vmatmul.mubr.f32.gmra.mrb[0].mxu0 %v1273
    %v1348 = vpop.f32.mrb[0].mxu0
    %v1349 = vadd.f32 0.0, %v1348
    %v1350 = vpop.f32.mrb[0].mxu0
    %1351 = vdwg.mxu0
    %v1353 = vsel %vm809, %v1257, 0
    %v1356 = vsel %vm809, %v1258, 0
    %v1358 = vsel %vm816, %v1254, 0
    %1360 = vmatprep.subr.mxu0 0.0
    %1361 = vmatpush1.msra.mxu0 %v1249
    %1362 = vmatprep.subr.mxu0 0.0
    %1363 = vmatpush1.msra.mxu0 %v1358
    %1364 = vmatprep.subr.mxu0 0.0
    %1365 = vmatpush1.msra.mxu0 0.0
    %1366 = vmatprep.subr.mxu0 0.0
    %1367 = vmatpush1.msra.mxu0 0.0
    %1368 = vmatprep.subr.mxu0 0.0
    %1369 = vmatpush1.msra.mxu0 0.0
    %1370 = vmatprep.subr.mxu0 0.0
    %1371 = vmatpush1.msra.mxu0 0.0
    %1372 = vmatprep.subr.mxu0 0.0
    %1373 = vmatpush1.msra.mxu0 0.0
    %1374 = vmatprep.subr.mxu0 0.0
    %1375 = vmatpush1.msra.mxu0 0.0
    %1376 = vmatprep.subr.mxu0 0.0
    %1377 = vmatpush1.msra.mxu0 0.0
    %1378 = vmatprep.subr.mxu0 0.0
    %1379 = vmatpush1.msra.mxu0 0.0
    %1380 = vmatprep.subr.mxu0 0.0
    %1381 = vmatpush1.msra.mxu0 0.0
    %1382 = vmatprep.subr.mxu0 0.0
    %1383 = vmatpush1.msra.mxu0 0.0
    %1384 = vmatprep.subr.mxu0 0.0
    %1385 = vmatpush1.msra.mxu0 0.0
    %1386 = vmatprep.subr.mxu0 0.0
    %1387 = vmatpush1.msra.mxu0 0.0
    %1388 = vmatprep.subr.mxu0 0.0
    %1389 = vmatpush1.msra.mxu0 0.0
    %1390 = vmatprep.subr.mxu0 0.0
    %1391 = vmatpush1.msra.mxu0 0.0
    %1392 = vmatprep.subr.mxu0 0.0
    %1393 = vmatpush1.msra.mxu0 0.0
    %1394 = vmatprep.subr.mxu0 0.0
    %1395 = vmatpush1.msra.mxu0 0.0
    %1396 = vmatprep.subr.mxu0 0.0
    %1397 = vmatpush1.msra.mxu0 0.0
    %1398 = vmatprep.subr.mxu0 0.0
    %1399 = vmatpush1.msra.mxu0 0.0
    %1400 = vmatprep.subr.mxu0 0.0
    %1401 = vmatpush1.msra.mxu0 0.0
    %1402 = vmatprep.subr.mxu0 0.0
    %1403 = vmatpush1.msra.mxu0 0.0
    %1404 = vmatprep.subr.mxu0 0.0
    %1405 = vmatpush1.msra.mxu0 0.0
    %1406 = vmatprep.subr.mxu0 0.0
    %1407 = vmatpush1.msra.mxu0 0.0
    %1408 = vmatprep.subr.mxu0 0.0
    %1409 = vmatpush1.msra.mxu0 0.0
    %1410 = vmatprep.subr.mxu0 0.0
    %1411 = vmatpush1.msra.mxu0 0.0
    %1412 = vmatprep.subr.mxu0 0.0
    %1413 = vmatpush1.msra.mxu0 0.0
    %1414 = vmatprep.subr.mxu0 0.0
    %1415 = vmatpush1.msra.mxu0 0.0
    %1416 = vmatprep.subr.mxu0 0.0
    %1417 = vmatpush1.msra.mxu0 0.0
    %1418 = vmatprep.subr.mxu0 0.0
    %1419 = vmatpush1.msra.mxu0 0.0
    %1420 = vmatprep.subr.mxu0 0.0
    %1421 = vmatpush1.msra.mxu0 0.0
    %1422 = vmatprep.subr.mxu0 0.0
    %1423 = vmatpush1.msra.mxu0 0.0
    %1424 = vmatprep.mubr.f32.mxu0 0.0
    %1425 = vmatmul.mubr.f32.gmra.mrb[0].mxu0 %v1353
    %v1426 = vpop.f32.mrb[0].mxu0
    %v1427 = vadd.f32 %v1344, %v1426
    %v1428 = vpop.f32.mrb[0].mxu0
    %1429 = vmatprep.mubr.f32.mxu0 0.0
    %1430 = vmatmul.mubr.f32.gmra.mrb[0].mxu0 %v1356
    %v1431 = vpop.f32.mrb[0].mxu0
    %v1432 = vadd.f32 %v1349, %v1431
    %v1433 = vpop.f32.mrb[0].mxu0
    %1434 = vdwg.mxu0
    %s1435 = scalar_lea.vmem %s5, 32
    %v1436 = vld [vmem:[%s1435] sm:$0xff]
    %v1437 = vld [vmem:[%s1435 + $0x8] sm:$0x3f]
    %1438 = vrot.lane.b32.xlu0 %v1249, 126
    %v1439 = vpop.permute.xlu0 %1438
    %1440 = vrot.lane.b32.xlu0 %v1254, 126
    %v1441 = vpop.permute.xlu0 %1440
    %v1444 = vsel %vm809, %v1436, 0
    %v1447 = vsel %vm809, %v1437, 0
    %v1449 = vsel %vm816, %v1441, 0
    %1451 = vmatprep.subr.mxu0 0.0
    %1452 = vmatpush1.msra.mxu0 %v1439
    %1453 = vmatprep.subr.mxu0 0.0
    %1454 = vmatpush1.msra.mxu0 %v1449
    %1455 = vmatprep.subr.mxu0 0.0
    %1456 = vmatpush1.msra.mxu0 0.0
    %1457 = vmatprep.subr.mxu0 0.0
    %1458 = vmatpush1.msra.mxu0 0.0
    %1459 = vmatprep.subr.mxu0 0.0
    %1460 = vmatpush1.msra.mxu0 0.0
    %1461 = vmatprep.subr.mxu0 0.0
    %1462 = vmatpush1.msra.mxu0 0.0
    %1463 = vmatprep.subr.mxu0 0.0
    %1464 = vmatpush1.msra.mxu0 0.0
    %1465 = vmatprep.subr.mxu0 0.0
    %1466 = vmatpush1.msra.mxu0 0.0
    %1467 = vmatprep.subr.mxu0 0.0
    %1468 = vmatpush1.msra.mxu0 0.0
    %1469 = vmatprep.subr.mxu0 0.0
    %1470 = vmatpush1.msra.mxu0 0.0
    %1471 = vmatprep.subr.mxu0 0.0
    %1472 = vmatpush1.msra.mxu0 0.0
    %1473 = vmatprep.subr.mxu0 0.0
    %1474 = vmatpush1.msra.mxu0 0.0
    %1475 = vmatprep.subr.mxu0 0.0
    %1476 = vmatpush1.msra.mxu0 0.0
    %1477 = vmatprep.subr.mxu0 0.0
    %1478 = vmatpush1.msra.mxu0 0.0
    %1479 = vmatprep.subr.mxu0 0.0
    %1480 = vmatpush1.msra.mxu0 0.0
    %1481 = vmatprep.subr.mxu0 0.0
    %1482 = vmatpush1.msra.mxu0 0.0
    %1483 = vmatprep.subr.mxu0 0.0
    %1484 = vmatpush1.msra.mxu0 0.0
    %1485 = vmatprep.subr.mxu0 0.0
    %1486 = vmatpush1.msra.mxu0 0.0
    %1487 = vmatprep.subr.mxu0 0.0
    %1488 = vmatpush1.msra.mxu0 0.0
    %1489 = vmatprep.subr.mxu0 0.0
    %1490 = vmatpush1.msra.mxu0 0.0
    %1491 = vmatprep.subr.mxu0 0.0
    %1492 = vmatpush1.msra.mxu0 0.0
    %1493 = vmatprep.subr.mxu0 0.0
    %1494 = vmatpush1.msra.mxu0 0.0
    %1495 = vmatprep.subr.mxu0 0.0
    %1496 = vmatpush1.msra.mxu0 0.0
    %1497 = vmatprep.subr.mxu0 0.0
    %1498 = vmatpush1.msra.mxu0 0.0
    %1499 = vmatprep.subr.mxu0 0.0
    %1500 = vmatpush1.msra.mxu0 0.0
    %1501 = vmatprep.subr.mxu0 0.0
    %1502 = vmatpush1.msra.mxu0 0.0
    %1503 = vmatprep.subr.mxu0 0.0
    %1504 = vmatpush1.msra.mxu0 0.0
    %1505 = vmatprep.subr.mxu0 0.0
    %1506 = vmatpush1.msra.mxu0 0.0
    %1507 = vmatprep.subr.mxu0 0.0
    %1508 = vmatpush1.msra.mxu0 0.0
    %1509 = vmatprep.subr.mxu0 0.0
    %1510 = vmatpush1.msra.mxu0 0.0
    %1511 = vmatprep.subr.mxu0 0.0
    %1512 = vmatpush1.msra.mxu0 0.0
    %1513 = vmatprep.subr.mxu0 0.0
    %1514 = vmatpush1.msra.mxu0 0.0
    %1515 = vmatprep.mubr.f32.mxu0 0.0
    %1516 = vmatmul.mubr.f32.gmra.mrb[0].mxu0 %v1444
    %v1517 = vpop.f32.mrb[0].mxu0
    %v1518 = vadd.f32 0.0, %v1517
    %v1519 = vpop.f32.mrb[0].mxu0
    %1520 = vmatprep.mubr.f32.mxu0 0.0
    %1521 = vmatmul.mubr.f32.gmra.mrb[0].mxu0 %v1447
    %v1522 = vpop.f32.mrb[0].mxu0
    %v1523 = vadd.f32 0.0, %v1522
    %v1524 = vpop.f32.mrb[0].mxu0
    %1525 = vdwg.mxu0
    %v1526 = vadd.f32 %v1427, %v1518
    %v1527 = vadd.f32 %v1432, %v1523
    %s1528 = scalar_lea.vmem %s5, 48
    %v1529 = vld [vmem:[%s1528] sm:$0xff]
    %v1530 = vld [vmem:[%s1528 + $0x8] sm:$0x3f]
    %1531 = vrot.lane.b32.xlu0 %v1249, 125
    %v1532 = vpop.permute.xlu0 %1531
    %1533 = vrot.lane.b32.xlu0 %v1254, 125
    %v1534 = vpop.permute.xlu0 %1533
    %v1537 = vsel %vm809, %v1529, 0
    %v1540 = vsel %vm809, %v1530, 0
    %v1542 = vsel %vm816, %v1534, 0
    %1544 = vmatprep.subr.mxu0 0.0
    %1545 = vmatpush1.msra.mxu0 %v1532
    %1546 = vmatprep.subr.mxu0 0.0
    %1547 = vmatpush1.msra.mxu0 %v1542
    %1548 = vmatprep.subr.mxu0 0.0
    %1549 = vmatpush1.msra.mxu0 0.0
    %1550 = vmatprep.subr.mxu0 0.0
    %1551 = vmatpush1.msra.mxu0 0.0
    %1552 = vmatprep.subr.mxu0 0.0
    %1553 = vmatpush1.msra.mxu0 0.0
    %1554 = vmatprep.subr.mxu0 0.0
    %1555 = vmatpush1.msra.mxu0 0.0
    %1556 = vmatprep.subr.mxu0 0.0
    %1557 = vmatpush1.msra.mxu0 0.0
    %1558 = vmatprep.subr.mxu0 0.0
    %1559 = vmatpush1.msra.mxu0 0.0
    %1560 = vmatprep.subr.mxu0 0.0
    %1561 = vmatpush1.msra.mxu0 0.0
    %1562 = vmatprep.subr.mxu0 0.0
    %1563 = vmatpush1.msra.mxu0 0.0
    %1564 = vmatprep.subr.mxu0 0.0
    %1565 = vmatpush1.msra.mxu0 0.0
    %1566 = vmatprep.subr.mxu0 0.0
    %1567 = vmatpush1.msra.mxu0 0.0
    %1568 = vmatprep.subr.mxu0 0.0
    %1569 = vmatpush1.msra.mxu0 0.0
    %1570 = vmatprep.subr.mxu0 0.0
    %1571 = vmatpush1.msra.mxu0 0.0
    %1572 = vmatprep.subr.mxu0 0.0
    %1573 = vmatpush1.msra.mxu0 0.0
    %1574 = vmatprep.subr.mxu0 0.0
    %1575 = vmatpush1.msra.mxu0 0.0
    %1576 = vmatprep.subr.mxu0 0.0
    %1577 = vmatpush1.msra.mxu0 0.0
    %1578 = vmatprep.subr.mxu0 0.0
    %1579 = vmatpush1.msra.mxu0 0.0
    %1580 = vmatprep.subr.mxu0 0.0
    %1581 = vmatpush1.msra.mxu0 0.0
    %1582 = vmatprep.subr.mxu0 0.0
    %1583 = vmatpush1.msra.mxu0 0.0
    %1584 = vmatprep.subr.mxu0 0.0
    %1585 = vmatpush1.msra.mxu0 0.0
    %1586 = vmatprep.subr.mxu0 0.0
    %1587 = vmatpush1.msra.mxu0 0.0
    %1588 = vmatprep.subr.mxu0 0.0
    %1589 = vmatpush1.msra.mxu0 0.0
    %1590 = vmatprep.subr.mxu0 0.0
    %1591 = vmatpush1.msra.mxu0 0.0
    %1592 = vmatprep.subr.mxu0 0.0
    %1593 = vmatpush1.msra.mxu0 0.0
    %1594 = vmatprep.subr.mxu0 0.0
    %1595 = vmatpush1.msra.mxu0 0.0
    %1596 = vmatprep.subr.mxu0 0.0
    %1597 = vmatpush1.msra.mxu0 0.0
    %1598 = vmatprep.subr.mxu0 0.0
    %1599 = vmatpush1.msra.mxu0 0.0
    %1600 = vmatprep.subr.mxu0 0.0
    %1601 = vmatpush1.msra.mxu0 0.0
    %1602 = vmatprep.subr.mxu0 0.0
    %1603 = vmatpush1.msra.mxu0 0.0
    %1604 = vmatprep.subr.mxu0 0.0
    %1605 = vmatpush1.msra.mxu0 0.0
    %1606 = vmatprep.subr.mxu0 0.0
    %1607 = vmatpush1.msra.mxu0 0.0
    %1608 = vmatprep.mubr.f32.mxu0 0.0
    %1609 = vmatmul.mubr.f32.gmra.mrb[0].mxu0 %v1537
    %v1610 = vpop.f32.mrb[0].mxu0
    %v1611 = vadd.f32 0.0, %v1610
    %v1612 = vpop.f32.mrb[0].mxu0
    %1613 = vmatprep.mubr.f32.mxu0 0.0
    %1614 = vmatmul.mubr.f32.gmra.mrb[0].mxu0 %v1540
    %v1615 = vpop.f32.mrb[0].mxu0
    %v1616 = vadd.f32 0.0, %v1615
    %v1617 = vpop.f32.mrb[0].mxu0
    %1618 = vdwg.mxu0
    %v1619 = vadd.f32 %v1526, %v1611
    %v1620 = vadd.f32 %v1527, %v1616
    %s1621 = scalar_lea.vmem %s5, 64
    %v1622 = vld [vmem:[%s1621] sm:$0xff]
    %v1623 = vld [vmem:[%s1621 + $0x8] sm:$0x3f]
    %1624 = vrot.lane.b32.xlu0 %v1249, 124
    %v1625 = vpop.permute.xlu0 %1624
    %1626 = vrot.lane.b32.xlu0 %v1254, 124
    %v1627 = vpop.permute.xlu0 %1626
    %v1630 = vsel %vm809, %v1622, 0
    %v1633 = vsel %vm809, %v1623, 0
    %v1635 = vsel %vm816, %v1627, 0
    %1637 = vmatprep.subr.mxu0 0.0
    %1638 = vmatpush1.msra.mxu0 %v1625
    %1639 = vmatprep.subr.mxu0 0.0
    %1640 = vmatpush1.msra.mxu0 %v1635
    %1641 = vmatprep.subr.mxu0 0.0
    %1642 = vmatpush1.msra.mxu0 0.0
    %1643 = vmatprep.subr.mxu0 0.0
    %1644 = vmatpush1.msra.mxu0 0.0
    %1645 = vmatprep.subr.mxu0 0.0
    %1646 = vmatpush1.msra.mxu0 0.0
    %1647 = vmatprep.subr.mxu0 0.0
    %1648 = vmatpush1.msra.mxu0 0.0
    %1649 = vmatprep.subr.mxu0 0.0
    %1650 = vmatpush1.msra.mxu0 0.0
    %1651 = vmatprep.subr.mxu0 0.0
    %1652 = vmatpush1.msra.mxu0 0.0
    %1653 = vmatprep.subr.mxu0 0.0
    %1654 = vmatpush1.msra.mxu0 0.0
    %1655 = vmatprep.subr.mxu0 0.0
    %1656 = vmatpush1.msra.mxu0 0.0
    %1657 = vmatprep.subr.mxu0 0.0
    %1658 = vmatpush1.msra.mxu0 0.0
    %1659 = vmatprep.subr.mxu0 0.0
    %1660 = vmatpush1.msra.mxu0 0.0
    %1661 = vmatprep.subr.mxu0 0.0
    %1662 = vmatpush1.msra.mxu0 0.0
    %1663 = vmatprep.subr.mxu0 0.0
    %1664 = vmatpush1.msra.mxu0 0.0
    %1665 = vmatprep.subr.mxu0 0.0
    %1666 = vmatpush1.msra.mxu0 0.0
    %1667 = vmatprep.subr.mxu0 0.0
    %1668 = vmatpush1.msra.mxu0 0.0
    %1669 = vmatprep.subr.mxu0 0.0
    %1670 = vmatpush1.msra.mxu0 0.0
    %1671 = vmatprep.subr.mxu0 0.0
    %1672 = vmatpush1.msra.mxu0 0.0
    %1673 = vmatprep.subr.mxu0 0.0
    %1674 = vmatpush1.msra.mxu0 0.0
    %1675 = vmatprep.subr.mxu0 0.0
    %1676 = vmatpush1.msra.mxu0 0.0
    %1677 = vmatprep.subr.mxu0 0.0
    %1678 = vmatpush1.msra.mxu0 0.0
    %1679 = vmatprep.subr.mxu0 0.0
    %1680 = vmatpush1.msra.mxu0 0.0
    %1681 = vmatprep.subr.mxu0 0.0
    %1682 = vmatpush1.msra.mxu0 0.0
    %1683 = vmatprep.subr.mxu0 0.0
    %1684 = vmatpush1.msra.mxu0 0.0
    %1685 = vmatprep.subr.mxu0 0.0
    %1686 = vmatpush1.msra.mxu0 0.0
    %1687 = vmatprep.subr.mxu0 0.0
    %1688 = vmatpush1.msra.mxu0 0.0
    %1689 = vmatprep.subr.mxu0 0.0
    %1690 = vmatpush1.msra.mxu0 0.0
    %1691 = vmatprep.subr.mxu0 0.0
    %1692 = vmatpush1.msra.mxu0 0.0
    %1693 = vmatprep.subr.mxu0 0.0
    %1694 = vmatpush1.msra.mxu0 0.0
    %1695 = vmatprep.subr.mxu0 0.0
    %1696 = vmatpush1.msra.mxu0 0.0
    %1697 = vmatprep.subr.mxu0 0.0
    %1698 = vmatpush1.msra.mxu0 0.0
    %1699 = vmatprep.subr.mxu0 0.0
    %1700 = vmatpush1.msra.mxu0 0.0
    %1701 = vmatprep.mubr.f32.mxu0 0.0
    %1702 = vmatmul.mubr.f32.gmra.mrb[0].mxu0 %v1630
    %v1703 = vpop.f32.mrb[0].mxu0
    %v1704 = vadd.f32 0.0, %v1703
    %v1705 = vpop.f32.mrb[0].mxu0
    %1706 = vmatprep.mubr.f32.mxu0 0.0
    %1707 = vmatmul.mubr.f32.gmra.mrb[0].mxu0 %v1633
    %v1708 = vpop.f32.mrb[0].mxu0
    %v1709 = vadd.f32 0.0, %v1708
    %v1710 = vpop.f32.mrb[0].mxu0
    %1711 = vdwg.mxu0
    %v1712 = vadd.f32 %v1619, %v1704
    %v1713 = vadd.f32 %v1620, %v1709
    %s1714 = scalar_lea.vmem %s5, 80
    %v1715 = vld [vmem:[%s1714] sm:$0xff]
    %v1716 = vld [vmem:[%s1714 + $0x8] sm:$0x3f]
    %1717 = vrot.lane.b32.xlu0 %v1249, 123
    %v1718 = vpop.permute.xlu0 %1717
    %1719 = vrot.lane.b32.xlu0 %v1254, 123
    %v1720 = vpop.permute.xlu0 %1719
    %v1723 = vsel %vm809, %v1715, 0
    %v1726 = vsel %vm809, %v1716, 0
    %v1728 = vsel %vm816, %v1720, 0
    %1730 = vmatprep.subr.mxu0 0.0
    %1731 = vmatpush1.msra.mxu0 %v1718
    %1732 = vmatprep.subr.mxu0 0.0
    %1733 = vmatpush1.msra.mxu0 %v1728
    %1734 = vmatprep.subr.mxu0 0.0
    %1735 = vmatpush1.msra.mxu0 0.0
    %1736 = vmatprep.subr.mxu0 0.0
    %1737 = vmatpush1.msra.mxu0 0.0
    %1738 = vmatprep.subr.mxu0 0.0
    %1739 = vmatpush1.msra.mxu0 0.0
    %1740 = vmatprep.subr.mxu0 0.0
    %1741 = vmatpush1.msra.mxu0 0.0
    %1742 = vmatprep.subr.mxu0 0.0
    %1743 = vmatpush1.msra.mxu0 0.0
    %1744 = vmatprep.subr.mxu0 0.0
    %1745 = vmatpush1.msra.mxu0 0.0
    %1746 = vmatprep.subr.mxu0 0.0
    %1747 = vmatpush1.msra.mxu0 0.0
    %1748 = vmatprep.subr.mxu0 0.0
    %1749 = vmatpush1.msra.mxu0 0.0
    %1750 = vmatprep.subr.mxu0 0.0
    %1751 = vmatpush1.msra.mxu0 0.0
    %1752 = vmatprep.subr.mxu0 0.0
    %1753 = vmatpush1.msra.mxu0 0.0
    %1754 = vmatprep.subr.mxu0 0.0
    %1755 = vmatpush1.msra.mxu0 0.0
    %1756 = vmatprep.subr.mxu0 0.0
    %1757 = vmatpush1.msra.mxu0 0.0
    %1758 = vmatprep.subr.mxu0 0.0
    %1759 = vmatpush1.msra.mxu0 0.0
    %1760 = vmatprep.subr.mxu0 0.0
    %1761 = vmatpush1.msra.mxu0 0.0
    %1762 = vmatprep.subr.mxu0 0.0
    %1763 = vmatpush1.msra.mxu0 0.0
    %1764 = vmatprep.subr.mxu0 0.0
    %1765 = vmatpush1.msra.mxu0 0.0
    %1766 = vmatprep.subr.mxu0 0.0
    %1767 = vmatpush1.msra.mxu0 0.0
    %1768 = vmatprep.subr.mxu0 0.0
    %1769 = vmatpush1.msra.mxu0 0.0
    %1770 = vmatprep.subr.mxu0 0.0
    %1771 = vmatpush1.msra.mxu0 0.0
    %1772 = vmatprep.subr.mxu0 0.0
    %1773 = vmatpush1.msra.mxu0 0.0
    %1774 = vmatprep.subr.mxu0 0.0
    %1775 = vmatpush1.msra.mxu0 0.0
    %1776 = vmatprep.subr.mxu0 0.0
    %1777 = vmatpush1.msra.mxu0 0.0
    %1778 = vmatprep.subr.mxu0 0.0
    %1779 = vmatpush1.msra.mxu0 0.0
    %1780 = vmatprep.subr.mxu0 0.0
    %1781 = vmatpush1.msra.mxu0 0.0
    %1782 = vmatprep.subr.mxu0 0.0
    %1783 = vmatpush1.msra.mxu0 0.0
    %1784 = vmatprep.subr.mxu0 0.0
    %1785 = vmatpush1.msra.mxu0 0.0
    %1786 = vmatprep.subr.mxu0 0.0
    %1787 = vmatpush1.msra.mxu0 0.0
    %1788 = vmatprep.subr.mxu0 0.0
    %1789 = vmatpush1.msra.mxu0 0.0
    %1790 = vmatprep.subr.mxu0 0.0
    %1791 = vmatpush1.msra.mxu0 0.0
    %1792 = vmatprep.subr.mxu0 0.0
    %1793 = vmatpush1.msra.mxu0 0.0
    %1794 = vmatprep.mubr.f32.mxu0 0.0
    %1795 = vmatmul.mubr.f32.gmra.mrb[0].mxu0 %v1723
    %v1796 = vpop.f32.mrb[0].mxu0
    %v1797 = vadd.f32 0.0, %v1796
    %v1798 = vpop.f32.mrb[0].mxu0
    %1799 = vmatprep.mubr.f32.mxu0 0.0
    %1800 = vmatmul.mubr.f32.gmra.mrb[0].mxu0 %v1726
    %v1801 = vpop.f32.mrb[0].mxu0
    %v1802 = vadd.f32 0.0, %v1801
    %v1803 = vpop.f32.mrb[0].mxu0
    %1804 = vdwg.mxu0
    %v1805 = vadd.f32 %v1712, %v1797
    %v1806 = vadd.f32 %v1713, %v1802
    %s1807 = scalar_lea.vmem %s5, 96
    %v1808 = vld [vmem:[%s1807] sm:$0xff]
    %v1809 = vld [vmem:[%s1807 + $0x8] sm:$0x3f]
    %1810 = vrot.lane.b32.xlu0 %v1249, 122
    %v1811 = vpop.permute.xlu0 %1810
    %1812 = vrot.lane.b32.xlu0 %v1254, 122
    %v1813 = vpop.permute.xlu0 %1812
    %v1816 = vsel %vm809, %v1808, 0
    %v1819 = vsel %vm809, %v1809, 0
    %v1821 = vsel %vm816, %v1813, 0
    %1823 = vmatprep.subr.mxu0 0.0
    %1824 = vmatpush1.msra.mxu0 %v1811
    %1825 = vmatprep.subr.mxu0 0.0
    %1826 = vmatpush1.msra.mxu0 %v1821
    %1827 = vmatprep.subr.mxu0 0.0
    %1828 = vmatpush1.msra.mxu0 0.0
    %1829 = vmatprep.subr.mxu0 0.0
    %1830 = vmatpush1.msra.mxu0 0.0
    %1831 = vmatprep.subr.mxu0 0.0
    %1832 = vmatpush1.msra.mxu0 0.0
    %1833 = vmatprep.subr.mxu0 0.0
    %1834 = vmatpush1.msra.mxu0 0.0
    %1835 = vmatprep.subr.mxu0 0.0
    %1836 = vmatpush1.msra.mxu0 0.0
    %1837 = vmatprep.subr.mxu0 0.0
    %1838 = vmatpush1.msra.mxu0 0.0
    %1839 = vmatprep.subr.mxu0 0.0
    %1840 = vmatpush1.msra.mxu0 0.0
    %1841 = vmatprep.subr.mxu0 0.0
    %1842 = vmatpush1.msra.mxu0 0.0
    %1843 = vmatprep.subr.mxu0 0.0
    %1844 = vmatpush1.msra.mxu0 0.0
    %1845 = vmatprep.subr.mxu0 0.0
    %1846 = vmatpush1.msra.mxu0 0.0
    %1847 = vmatprep.subr.mxu0 0.0
    %1848 = vmatpush1.msra.mxu0 0.0
    %1849 = vmatprep.subr.mxu0 0.0
    %1850 = vmatpush1.msra.mxu0 0.0
    %1851 = vmatprep.subr.mxu0 0.0
    %1852 = vmatpush1.msra.mxu0 0.0
    %1853 = vmatprep.subr.mxu0 0.0
    %1854 = vmatpush1.msra.mxu0 0.0
    %1855 = vmatprep.subr.mxu0 0.0
    %1856 = vmatpush1.msra.mxu0 0.0
    %1857 = vmatprep.subr.mxu0 0.0
    %1858 = vmatpush1.msra.mxu0 0.0
    %1859 = vmatprep.subr.mxu0 0.0
    %1860 = vmatpush1.msra.mxu0 0.0
    %1861 = vmatprep.subr.mxu0 0.0
    %1862 = vmatpush1.msra.mxu0 0.0
    %1863 = vmatprep.subr.mxu0 0.0
    %1864 = vmatpush1.msra.mxu0 0.0
    %1865 = vmatprep.subr.mxu0 0.0
    %1866 = vmatpush1.msra.mxu0 0.0
    %1867 = vmatprep.subr.mxu0 0.0
    %1868 = vmatpush1.msra.mxu0 0.0
    %1869 = vmatprep.subr.mxu0 0.0
    %1870 = vmatpush1.msra.mxu0 0.0
    %1871 = vmatprep.subr.mxu0 0.0
    %1872 = vmatpush1.msra.mxu0 0.0
    %1873 = vmatprep.subr.mxu0 0.0
    %1874 = vmatpush1.msra.mxu0 0.0
    %1875 = vmatprep.subr.mxu0 0.0
    %1876 = vmatpush1.msra.mxu0 0.0
    %1877 = vmatprep.subr.mxu0 0.0
    %1878 = vmatpush1.msra.mxu0 0.0
    %1879 = vmatprep.subr.mxu0 0.0
    %1880 = vmatpush1.msra.mxu0 0.0
    %1881 = vmatprep.subr.mxu0 0.0
    %1882 = vmatpush1.msra.mxu0 0.0
    %1883 = vmatprep.subr.mxu0 0.0
    %1884 = vmatpush1.msra.mxu0 0.0
    %1885 = vmatprep.subr.mxu0 0.0
    %1886 = vmatpush1.msra.mxu0 0.0
    %1887 = vmatprep.mubr.f32.mxu0 0.0
    %1888 = vmatmul.mubr.f32.gmra.mrb[0].mxu0 %v1816
    %v1889 = vpop.f32.mrb[0].mxu0
    %v1890 = vadd.f32 0.0, %v1889
    %v1891 = vpop.f32.mrb[0].mxu0
    %1892 = vmatprep.mubr.f32.mxu0 0.0
    %1893 = vmatmul.mubr.f32.gmra.mrb[0].mxu0 %v1819
    %v1894 = vpop.f32.mrb[0].mxu0
    %v1895 = vadd.f32 0.0, %v1894
    %v1896 = vpop.f32.mrb[0].mxu0
    %1897 = vdwg.mxu0
    %v1898 = vadd.f32 %v1805, %v1890
    %v1899 = vadd.f32 %v1806, %v1895
    %s1900 = sld [smem:[#allocation2 + $0x1]]
    %v1901 = vstv %s1900
    %v1902 = vadd.f32 %v1898, %v1901
    %v1903 = vadd.f32 %v1899, %v1901
    %v1904 = vxor.u32 %v1902, 2147483648
    %v1905 = vxor.u32 %v1903, 2147483648
    %v1906 = vmul.f32 %v1904, 1.442695
    %v1907 = vpow.pop %v1906
    %v1908 = vmul.f32 %v1905, 1.442695
    %v1909 = vpow.pop %v1908
    %v1910 = vadd.f32 %v1907, 1.0
    %v1911 = vadd.f32 %v1909, 1.0
    %v1912 = vrcp.pop %v1910
    %v1913 = vmul.f32 1.0, %v1912
    %v1914 = vrcp.pop %v1911
    %v1915 = vmul.f32 1.0, %v1914
    %v1916 = vadd.f32 %v1913, 1.0
    %v1917 = vadd.f32 %v1915, 1.0
    %1919 = vset.pattern.permute.xlu0 0
    %1920 = vperm.xlu0 %1919, %v1916
    %v1921 = vpop.permute.xlu0 %1920
    %1924 = vset.pattern.permute.xlu0 0
    %1925 = vperm.xlu0 %1924, %v1917
    %v1926 = vpop.permute.xlu0 %1925
    %v1928 = vmul.f32 %v1164, %v1921
    %v1929 = vmul.f32 %v1165, %v1926
    %v1930 = vld [vmem:[%s17] sm:$0xff]
    %v1931 = vld [vmem:[%s17 + $0x8] sm:$0xff]
    %v1932 = vld [vmem:[%s17 + $0x10] sm:$0xff]
    %v1933 = vld [vmem:[%s17 + $0x18] sm:$0xff]
    %v1934 = vld [vmem:[%s17 + $0x20] sm:$0xff]
    %v1935 = vld [vmem:[%s17 + $0x28] sm:$0xff]
    %v1936 = vld [vmem:[%s17 + $0x30] sm:$0xff]
    %v1937 = vld [vmem:[%s17 + $0x38] sm:$0xff]
    %v1938 = vld [vmem:[%s17 + $0x40] sm:$0xff]
    %v1939 = vld [vmem:[%s17 + $0x48] sm:$0xff]
    %v1940 = vld [vmem:[%s17 + $0x50] sm:$0xff]
    %v1941 = vld [vmem:[%s17 + $0x58] sm:$0xff]
    %v1942 = vld [vmem:[%s17 + $0x60] sm:$0xff]
    %v1943 = vld [vmem:[%s17 + $0x68] sm:$0xff]
    %v1944 = vld [vmem:[%s17 + $0x70] sm:$0xff]
    %v1945 = vld [vmem:[%s17 + $0x78] sm:$0xff]
    %1946 = vmatprep.subr.mxu0 0.0
    %1947 = vmatpush1.msra.mxu0 %v1930
    %1948 = vmatprep.subr.mxu0 0.0
    %1949 = vmatpush1.msra.mxu0 %v1931
    %1950 = vmatprep.subr.mxu0 0.0
    %1951 = vmatpush1.msra.mxu0 %v1932
    %1952 = vmatprep.subr.mxu0 0.0
    %1953 = vmatpush1.msra.mxu0 %v1933
    %1954 = vmatprep.subr.mxu0 0.0
    %1955 = vmatpush1.msra.mxu0 %v1934
    %1956 = vmatprep.subr.mxu0 0.0
    %1957 = vmatpush1.msra.mxu0 %v1935
    %1958 = vmatprep.subr.mxu0 0.0
    %1959 = vmatpush1.msra.mxu0 %v1936
    %1960 = vmatprep.subr.mxu0 0.0
    %1961 = vmatpush1.msra.mxu0 %v1937
    %1962 = vmatprep.subr.mxu0 0.0
    %1963 = vmatpush1.msra.mxu0 %v1938
    %1964 = vmatprep.subr.mxu0 0.0
    %1965 = vmatpush1.msra.mxu0 %v1939
    %1966 = vmatprep.subr.mxu0 0.0
    %1967 = vmatpush1.msra.mxu0 %v1940
    %1968 = vmatprep.subr.mxu0 0.0
    %1969 = vmatpush1.msra.mxu0 %v1941
    %1970 = vmatprep.subr.mxu0 0.0
    %1971 = vmatpush1.msra.mxu0 %v1942
    %1972 = vmatprep.subr.mxu0 0.0
    %1973 = vmatpush1.msra.mxu0 %v1943
    %1974 = vmatprep.subr.mxu0 0.0
    %1975 = vmatpush1.msra.mxu0 %v1944
    %1976 = vmatprep.subr.mxu0 0.0
    %1977 = vmatpush1.msra.mxu0 %v1945
    %1978 = vmatprep.subr.mxu0 0.0
    %1979 = vmatpush1.msra.mxu0 0.0
    %1980 = vmatprep.subr.mxu0 0.0
    %1981 = vmatpush1.msra.mxu0 0.0
    %1982 = vmatprep.subr.mxu0 0.0
    %1983 = vmatpush1.msra.mxu0 0.0
    %1984 = vmatprep.subr.mxu0 0.0
    %1985 = vmatpush1.msra.mxu0 0.0
    %1986 = vmatprep.subr.mxu0 0.0
    %1987 = vmatpush1.msra.mxu0 0.0
    %1988 = vmatprep.subr.mxu0 0.0
    %1989 = vmatpush1.msra.mxu0 0.0
    %1990 = vmatprep.subr.mxu0 0.0
    %1991 = vmatpush1.msra.mxu0 0.0
    %1992 = vmatprep.subr.mxu0 0.0
    %1993 = vmatpush1.msra.mxu0 0.0
    %1994 = vmatprep.subr.mxu0 0.0
    %1995 = vmatpush1.msra.mxu0 0.0
    %1996 = vmatprep.subr.mxu0 0.0
    %1997 = vmatpush1.msra.mxu0 0.0
    %1998 = vmatprep.subr.mxu0 0.0
    %1999 = vmatpush1.msra.mxu0 0.0
    %2000 = vmatprep.subr.mxu0 0.0
    %2001 = vmatpush1.msra.mxu0 0.0
    %2002 = vmatprep.subr.mxu0 0.0
    %2003 = vmatpush1.msra.mxu0 0.0
    %2004 = vmatprep.subr.mxu0 0.0
    %2005 = vmatpush1.msra.mxu0 0.0
    %2006 = vmatprep.subr.mxu0 0.0
    %2007 = vmatpush1.msra.mxu0 0.0
    %2008 = vmatprep.subr.mxu0 0.0
    %2009 = vmatpush1.msra.mxu0 0.0
    %2010 = vmatprep.mubr.f32.mxu0 0.0
    %2011 = vmatmul.mubr.f32.gmra.mrb[0].mxu0 %v1928
    %v2012 = vpop.f32.mrb[0].mxu0
    %v2013 = vadd.f32 0.0, %v2012
    %v2014 = vpop.f32.mrb[0].mxu0
    %2015 = vmatprep.mubr.f32.mxu0 0.0
    %2016 = vmatmul.mubr.f32.gmra.mrb[0].mxu0 %v1929
    %v2017 = vpop.f32.mrb[0].mxu0
    %v2018 = vadd.f32 0.0, %v2017
    %v2019 = vpop.f32.mrb[0].mxu0
    %2020 = vdwg.mxu0
    %vm2021 = vcmask 63488
    %v2022 = vsel %vm2021, %v2013, 0.0
    %v2023 = vrot.slane %v2022, 4
    %v2024 = vadd.f32 %v2022, %v2023
    %v2025 = vrot.slane %v2024, 2
    %v2026 = vadd.f32 %v2024, %v2025
    %v2027 = vrot.slane %v2026, 1
    %v2028 = vadd.f32 %v2026, %v2027
    %v2029 = vrcp.pop 7.0
    %v2030 = vmul.f32 %v2028, %v2029
    %vm2033 = vcmask 1040384
    %v2034 = vrot.slane %v2013, 7
    %v2035 = vrot.slane %v2018, 7
    %v2036 = vsel %vm2033, %v2034, %v2035
    %v2038 = vsel %vm2021, %v2036, 0.0
    %v2039 = vrot.slane %v2038, 4
    %v2040 = vadd.f32 %v2038, %v2039
    %v2041 = vrot.slane %v2040, 2
    %v2042 = vadd.f32 %v2040, %v2041
    %v2043 = vrot.slane %v2042, 1
    %v2044 = vadd.f32 %v2042, %v2043
    %v2045 = vmul.f32 %v2044, %v2029
    %v2046 = vsel %vm2033, %v2030, %v2045
    %s2047 = sld [smem:[#allocation2 + $0x2]]
    %v2048 = vstv %s2047
    %v2049 = vadd.f32 %v2046, %v2048
    %v2050 = vxor.u32 %v2049, 2147483648
    %v2051 = vmul.f32 %v2050, 1.442695
    %v2052 = vpow.pop %v2051
    %v2053 = vadd.f32 %v2052, 1.0
    %v2054 = vrcp.pop %v2053
    %v2055 = vmul.f32 1.0, %v2054
    %2057 = vrot.lane.b32.xlu0 %v2055, 8
    %v2058 = vpop.permute.xlu0 %2057
    %2060 = vrot.lane.b32.xlu0 %v2055, 16
    %v2061 = vpop.permute.xlu0 %2060
    %2063 = vrot.lane.b32.xlu0 %v2055, 24
    %v2064 = vpop.permute.xlu0 %2063
    %2066 = vrot.lane.b32.xlu0 %v2055, 32
    %v2067 = vpop.permute.xlu0 %2066
    %2069 = vrot.lane.b32.xlu0 %v2055, 40
    %v2070 = vpop.permute.xlu0 %2069
    %2072 = vrot.lane.b32.xlu0 %v2055, 48
    %v2073 = vpop.permute.xlu0 %2072
    %2075 = vrot.lane.b32.xlu0 %v2055, 56
    %v2076 = vpop.permute.xlu0 %2075
    %2078 = vrot.lane.b32.xlu0 %v2055, 64
    %v2079 = vpop.permute.xlu0 %2078
    %2081 = vrot.lane.b32.xlu0 %v2055, 72
    %v2082 = vpop.permute.xlu0 %2081
    %2084 = vrot.lane.b32.xlu0 %v2055, 80
    %v2085 = vpop.permute.xlu0 %2084
    %2087 = vrot.lane.b32.xlu0 %v2055, 88
    %v2088 = vpop.permute.xlu0 %2087
    %2090 = vrot.lane.b32.xlu0 %v2055, 96
    %v2091 = vpop.permute.xlu0 %2090
    %2093 = vrot.lane.b32.xlu0 %v2055, 104
    %v2094 = vpop.permute.xlu0 %2093
    %2096 = vrot.lane.b32.xlu0 %v2055, 112
    %v2097 = vpop.permute.xlu0 %2096
    %2099 = vrot.lane.b32.xlu0 %v2055, 120
    %v2100 = vpop.permute.xlu0 %2099
    %vm2102 = vcmask 64512
    %v2103 = vsel %vm2102, %v2055, %v2058
    %vm2104 = vcmask 130048
    %v2105 = vsel %vm2104, %v2103, %v2061
    %v2106 = vsel %vm339, %v2105, %v2064
    %vm2107 = vcmask 261120
    %v2108 = vsel %vm2107, %v2106, %v2067
    %vm2109 = vcmask 326656
    %v2110 = vsel %vm2109, %v2108, %v2070
    %vm2111 = vcmask 392192
    %v2112 = vsel %vm2111, %v2110, %v2073
    %vm2113 = vcmask 457728
    %v2114 = vsel %vm2113, %v2112, %v2076
    %vm2115 = vcmask 523264
    %v2116 = vsel %vm2115, %v2114, %v2079
    %vm2117 = vcmask 588800
    %v2118 = vsel %vm2117, %v2116, %v2082
    %vm2119 = vcmask 654336
    %v2120 = vsel %vm2119, %v2118, %v2085
    %vm2121 = vcmask 719872
    %v2122 = vsel %vm2121, %v2120, %v2088
    %vm2123 = vcmask 785408
    %v2124 = vsel %vm2123, %v2122, %v2091
    %vm2125 = vcmask 850944
    %v2126 = vsel %vm2125, %v2124, %v2094
    %vm2127 = vcmask 916480
    %v2128 = vsel %vm2127, %v2126, %v2097
    %vm2129 = vcmask 982016
    %v2130 = vsel %vm2129, %v2128, %v2100
    %v2131 = vlaneseq
    %v2132 = vshrl.u32 %v2131, 7
    %v2133 = vsub.s32 0, %v2132
    %v2134 = vrot.slane %v2130, %v2133
    %v2135 = vlaneseq
    %v2136 = vshrl.u32 %v2135, 7
    %v2137 = vsub.s32 1, %v2136
    %v2138 = vrot.slane %v2130, %v2137
    %vm2139 = vcmask 1046528
    %v2140 = vsel %vm2139, %v2134, %v2138
    %v2141 = vadd.f32 %v2140, 1.0
    %v2142 = vadd.f32 %v2138, 1.0
    %v2143 = vmul.f32 %v1928, %v2141
    %v2144 = vmul.f32 %v1929, %v2142
    %v2145 = vld [vmem:[%s19] sm:$0xff]
    %v2146 = vld [vmem:[%s19 + $0x8] sm:$0xff]
    %v2147 = vld [vmem:[%s19 + $0x10] sm:$0xff]
    %v2148 = vld [vmem:[%s19 + $0x18] sm:$0xff]
    %v2149 = vld [vmem:[%s19 + $0x20] sm:$0xff]
    %v2150 = vld [vmem:[%s19 + $0x28] sm:$0xff]
    %v2151 = vld [vmem:[%s19 + $0x30] sm:$0xff]
    %v2152 = vld [vmem:[%s19 + $0x38] sm:$0xff]
    %v2153 = vld [vmem:[%s19 + $0x40] sm:$0xff]
    %v2154 = vld [vmem:[%s19 + $0x48] sm:$0xff]
    %v2155 = vld [vmem:[%s19 + $0x50] sm:$0xff]
    %v2156 = vld [vmem:[%s19 + $0x58] sm:$0xff]
    %v2157 = vld [vmem:[%s19 + $0x60] sm:$0xff]
    %v2158 = vld [vmem:[%s19 + $0x68] sm:$0xff]
    %v2159 = vld [vmem:[%s19 + $0x70] sm:$0xff]
    %v2160 = vld [vmem:[%s19 + $0x78] sm:$0xff]
    %2161 = vmatprep.subr.mxu0 0.0
    %2162 = vmatpush1.msra.mxu0 %v2145
    %2163 = vmatprep.subr.mxu0 0.0
    %2164 = vmatpush1.msra.mxu0 %v2146
    %2165 = vmatprep.subr.mxu0 0.0
    %2166 = vmatpush1.msra.mxu0 %v2147
    %2167 = vmatprep.subr.mxu0 0.0
    %2168 = vmatpush1.msra.mxu0 %v2148
    %2169 = vmatprep.subr.mxu0 0.0
    %2170 = vmatpush1.msra.mxu0 %v2149
    %2171 = vmatprep.subr.mxu0 0.0
    %2172 = vmatpush1.msra.mxu0 %v2150
    %2173 = vmatprep.subr.mxu0 0.0
    %2174 = vmatpush1.msra.mxu0 %v2151
    %2175 = vmatprep.subr.mxu0 0.0
    %2176 = vmatpush1.msra.mxu0 %v2152
    %2177 = vmatprep.subr.mxu0 0.0
    %2178 = vmatpush1.msra.mxu0 %v2153
    %2179 = vmatprep.subr.mxu0 0.0
    %2180 = vmatpush1.msra.mxu0 %v2154
    %2181 = vmatprep.subr.mxu0 0.0
    %2182 = vmatpush1.msra.mxu0 %v2155
    %2183 = vmatprep.subr.mxu0 0.0
    %2184 = vmatpush1.msra.mxu0 %v2156
    %2185 = vmatprep.subr.mxu0 0.0
    %2186 = vmatpush1.msra.mxu0 %v2157
    %2187 = vmatprep.subr.mxu0 0.0
    %2188 = vmatpush1.msra.mxu0 %v2158
    %2189 = vmatprep.subr.mxu0 0.0
    %2190 = vmatpush1.msra.mxu0 %v2159
    %2191 = vmatprep.subr.mxu0 0.0
    %2192 = vmatpush1.msra.mxu0 %v2160
    %2193 = vmatprep.subr.mxu0 0.0
    %2194 = vmatpush1.msra.mxu0 0.0
    %2195 = vmatprep.subr.mxu0 0.0
    %2196 = vmatpush1.msra.mxu0 0.0
    %2197 = vmatprep.subr.mxu0 0.0
    %2198 = vmatpush1.msra.mxu0 0.0
    %2199 = vmatprep.subr.mxu0 0.0
    %2200 = vmatpush1.msra.mxu0 0.0
    %2201 = vmatprep.subr.mxu0 0.0
    %2202 = vmatpush1.msra.mxu0 0.0
    %2203 = vmatprep.subr.mxu0 0.0
    %2204 = vmatpush1.msra.mxu0 0.0
    %2205 = vmatprep.subr.mxu0 0.0
    %2206 = vmatpush1.msra.mxu0 0.0
    %2207 = vmatprep.subr.mxu0 0.0
    %2208 = vmatpush1.msra.mxu0 0.0
    %2209 = vmatprep.subr.mxu0 0.0
    %2210 = vmatpush1.msra.mxu0 0.0
    %2211 = vmatprep.subr.mxu0 0.0
    %2212 = vmatpush1.msra.mxu0 0.0
    %2213 = vmatprep.subr.mxu0 0.0
    %2214 = vmatpush1.msra.mxu0 0.0
    %2215 = vmatprep.subr.mxu0 0.0
    %2216 = vmatpush1.msra.mxu0 0.0
    %2217 = vmatprep.subr.mxu0 0.0
    %2218 = vmatpush1.msra.mxu0 0.0
    %2219 = vmatprep.subr.mxu0 0.0
    %2220 = vmatpush1.msra.mxu0 0.0
    %2221 = vmatprep.subr.mxu0 0.0
    %2222 = vmatpush1.msra.mxu0 0.0
    %2223 = vmatprep.subr.mxu0 0.0
    %2224 = vmatpush1.msra.mxu0 0.0
    %2225 = vmatprep.mubr.f32.mxu0 0.0
    %2226 = vmatmul.mubr.f32.gmra.mrb[0].mxu0 %v2143
    %v2227 = vpop.f32.mrb[0].mxu0
    %v2228 = vadd.f32 0.0, %v2227
    %v2229 = vpop.f32.mrb[0].mxu0
    %2230 = vmatprep.mubr.f32.mxu0 0.0
    %2231 = vmatmul.mubr.f32.gmra.mrb[0].mxu0 %v2144
    %v2232 = vpop.f32.mrb[0].mxu0
    %v2233 = vadd.f32 0.0, %v2232
    %v2234 = vpop.f32.mrb[0].mxu0
    %2235 = vdwg.mxu0
    %vm2236 = vcmask 129024
    %v2237 = vsel %vm2236, %v2228, 0.0
    %v2238 = vrot.slane %v2237, 4
    %v2239 = vadd.f32 %v2237, %v2238
    %v2240 = vrot.slane %v2239, 2
    %v2241 = vadd.f32 %v2239, %v2240
    %v2242 = vrot.slane %v2241, 1
    %v2243 = vadd.f32 %v2241, %v2242
    %v2244 = vmul.f32 %v2243, %v2029
    %v2247 = vrot.slane %v2228, 7
    %v2248 = vrot.slane %v2233, 7
    %v2249 = vsel %vm2033, %v2247, %v2248
    %v2251 = vsel %vm2236, %v2249, 0.0
    %v2252 = vrot.slane %v2251, 4
    %v2253 = vadd.f32 %v2251, %v2252
    %v2254 = vrot.slane %v2253, 2
    %v2255 = vadd.f32 %v2253, %v2254
    %v2256 = vrot.slane %v2255, 1
    %v2257 = vadd.f32 %v2255, %v2256
    %v2258 = vmul.f32 %v2257, %v2029
    %v2259 = vsel %vm2033, %v2244, %v2258
    %v2260 = vld [vmem:[%s21] sm:$0xff]
    %v2261 = vld [vmem:[%s21 + $0x8] sm:$0xff]
    %v2262 = vld [vmem:[%s23] sm:$0x1]
    %v2264 = vlaneseq
    %v2265 = vshrl.u32 %v2264, 7
    %v2266 = vsub.s32 0, %v2265
    %v2267 = vrot.slane %v2262, %v2266
    %v2270 = vsel %vm2104, %v2259, 0
    %2272 = vmatprep.subr.mxu0 0.0
    %2273 = vmatpush1.msra.mxu0 %v2260
    %2274 = vmatprep.subr.mxu0 0.0
    %2275 = vmatpush1.msra.mxu0 %v2261
    %2276 = vmatprep.subr.mxu0 0.0
    %2277 = vmatpush1.msra.mxu0 0.0
    %2278 = vmatprep.subr.mxu0 0.0
    %2279 = vmatpush1.msra.mxu0 0.0
    %2280 = vmatprep.subr.mxu0 0.0
    %2281 = vmatpush1.msra.mxu0 0.0
    %2282 = vmatprep.subr.mxu0 0.0
    %2283 = vmatpush1.msra.mxu0 0.0
    %2284 = vmatprep.subr.mxu0 0.0
    %2285 = vmatpush1.msra.mxu0 0.0
    %2286 = vmatprep.subr.mxu0 0.0
    %2287 = vmatpush1.msra.mxu0 0.0
    %2288 = vmatprep.subr.mxu0 0.0
    %2289 = vmatpush1.msra.mxu0 0.0
    %2290 = vmatprep.subr.mxu0 0.0
    %2291 = vmatpush1.msra.mxu0 0.0
    %2292 = vmatprep.subr.mxu0 0.0
    %2293 = vmatpush1.msra.mxu0 0.0
    %2294 = vmatprep.subr.mxu0 0.0
    %2295 = vmatpush1.msra.mxu0 0.0
    %2296 = vmatprep.subr.mxu0 0.0
    %2297 = vmatpush1.msra.mxu0 0.0
    %2298 = vmatprep.subr.mxu0 0.0
    %2299 = vmatpush1.msra.mxu0 0.0
    %2300 = vmatprep.subr.mxu0 0.0
    %2301 = vmatpush1.msra.mxu0 0.0
    %2302 = vmatprep.subr.mxu0 0.0
    %2303 = vmatpush1.msra.mxu0 0.0
    %2304 = vmatprep.subr.mxu0 0.0
    %2305 = vmatpush1.msra.mxu0 0.0
    %2306 = vmatprep.subr.mxu0 0.0
    %2307 = vmatpush1.msra.mxu0 0.0
    %2308 = vmatprep.subr.mxu0 0.0
    %2309 = vmatpush1.msra.mxu0 0.0
    %2310 = vmatprep.subr.mxu0 0.0
    %2311 = vmatpush1.msra.mxu0 0.0
    %2312 = vmatprep.subr.mxu0 0.0
    %2313 = vmatpush1.msra.mxu0 0.0
    %2314 = vmatprep.subr.mxu0 0.0
    %2315 = vmatpush1.msra.mxu0 0.0
    %2316 = vmatprep.subr.mxu0 0.0
    %2317 = vmatpush1.msra.mxu0 0.0
    %2318 = vmatprep.subr.mxu0 0.0
    %2319 = vmatpush1.msra.mxu0 0.0
    %2320 = vmatprep.subr.mxu0 0.0
    %2321 = vmatpush1.msra.mxu0 0.0
    %2322 = vmatprep.subr.mxu0 0.0
    %2323 = vmatpush1.msra.mxu0 0.0
    %2324 = vmatprep.subr.mxu0 0.0
    %2325 = vmatpush1.msra.mxu0 0.0
    %2326 = vmatprep.subr.mxu0 0.0
    %2327 = vmatpush1.msra.mxu0 0.0
    %2328 = vmatprep.subr.mxu0 0.0
    %2329 = vmatpush1.msra.mxu0 0.0
    %2330 = vmatprep.subr.mxu0 0.0
    %2331 = vmatpush1.msra.mxu0 0.0
    %2332 = vmatprep.subr.mxu0 0.0
    %2333 = vmatpush1.msra.mxu0 0.0
    %2334 = vmatprep.subr.mxu0 0.0
    %2335 = vmatpush1.msra.mxu0 0.0
    %2336 = vmatprep.mubr.f32.mxu0 0.0
    %2337 = vmatmul.mubr.f32.gmra.mrb[0].mxu0 %v2270
    %v2338 = vpop.f32.mrb[0].mxu0
    %v2339 = vadd.f32 %v2267, %v2338
    %v2340 = vpop.f32.mrb[0].mxu0
    %2341 = vdwg.mxu0
    %v2342 = vmax.f32 %v2339, 0.0
    %v2343 = vld [vmem:[%s25] sm:$0xff]
    %v2344 = vld [vmem:[%s27] sm:$0x1]
    %v2346 = vlaneseq
    %v2347 = vshrl.u32 %v2346, 7
    %v2348 = vsub.s32 0, %v2347
    %v2349 = vrot.slane %v2344, %v2348
    %v2352 = vsel %vm2102, %v2342, 0
    %2354 = vmatprep.subr.mxu0 0.0
    %2355 = vmatpush1.msra.mxu0 %v2343
    %2356 = vmatprep.subr.mxu0 0.0
    %2357 = vmatpush1.msra.mxu0 0.0
    %2358 = vmatprep.subr.mxu0 0.0
    %2359 = vmatpush1.msra.mxu0 0.0
    %2360 = vmatprep.subr.mxu0 0.0
    %2361 = vmatpush1.msra.mxu0 0.0
    %2362 = vmatprep.subr.mxu0 0.0
    %2363 = vmatpush1.msra.mxu0 0.0
    %2364 = vmatprep.subr.mxu0 0.0
    %2365 = vmatpush1.msra.mxu0 0.0
    %2366 = vmatprep.subr.mxu0 0.0
    %2367 = vmatpush1.msra.mxu0 0.0
    %2368 = vmatprep.subr.mxu0 0.0
    %2369 = vmatpush1.msra.mxu0 0.0
    %2370 = vmatprep.subr.mxu0 0.0
    %2371 = vmatpush1.msra.mxu0 0.0
    %2372 = vmatprep.subr.mxu0 0.0
    %2373 = vmatpush1.msra.mxu0 0.0
    %2374 = vmatprep.subr.mxu0 0.0
    %2375 = vmatpush1.msra.mxu0 0.0
    %2376 = vmatprep.subr.mxu0 0.0
    %2377 = vmatpush1.msra.mxu0 0.0
    %2378 = vmatprep.subr.mxu0 0.0
    %2379 = vmatpush1.msra.mxu0 0.0
    %2380 = vmatprep.subr.mxu0 0.0
    %2381 = vmatpush1.msra.mxu0 0.0
    %2382 = vmatprep.subr.mxu0 0.0
    %2383 = vmatpush1.msra.mxu0 0.0
    %2384 = vmatprep.subr.mxu0 0.0
    %2385 = vmatpush1.msra.mxu0 0.0
    %2386 = vmatprep.subr.mxu0 0.0
    %2387 = vmatpush1.msra.mxu0 0.0
    %2388 = vmatprep.subr.mxu0 0.0
    %2389 = vmatpush1.msra.mxu0 0.0
    %2390 = vmatprep.subr.mxu0 0.0
    %2391 = vmatpush1.msra.mxu0 0.0
    %2392 = vmatprep.subr.mxu0 0.0
    %2393 = vmatpush1.msra.mxu0 0.0
    %2394 = vmatprep.subr.mxu0 0.0
    %2395 = vmatpush1.msra.mxu0 0.0
    %2396 = vmatprep.subr.mxu0 0.0
    %2397 = vmatpush1.msra.mxu0 0.0
    %2398 = vmatprep.subr.mxu0 0.0
    %2399 = vmatpush1.msra.mxu0 0.0
    %2400 = vmatprep.subr.mxu0 0.0
    %2401 = vmatpush1.msra.mxu0 0.0
    %2402 = vmatprep.subr.mxu0 0.0
    %2403 = vmatpush1.msra.mxu0 0.0
    %2404 = vmatprep.subr.mxu0 0.0
    %2405 = vmatpush1.msra.mxu0 0.0
    %2406 = vmatprep.subr.mxu0 0.0
    %2407 = vmatpush1.msra.mxu0 0.0
    %2408 = vmatprep.subr.mxu0 0.0
    %2409 = vmatpush1.msra.mxu0 0.0
    %2410 = vmatprep.subr.mxu0 0.0
    %2411 = vmatpush1.msra.mxu0 0.0
    %2412 = vmatprep.subr.mxu0 0.0
    %2413 = vmatpush1.msra.mxu0 0.0
    %2414 = vmatprep.subr.mxu0 0.0
    %2415 = vmatpush1.msra.mxu0 0.0
    %2416 = vmatprep.subr.mxu0 0.0
    %2417 = vmatpush1.msra.mxu0 0.0
    %2418 = vmatprep.mubr.f32.mxu0 0.0
    %2419 = vmatmul.mubr.f32.gmra.mrb[0].mxu0 %v2352
    %v2420 = vpop.f32.mrb[0].mxu0
    %v2421 = vadd.f32 %v2349, %v2420
    %v2422 = vpop.f32.mrb[0].mxu0
    %2423 = vdwg.mxu0
    %v2424 = vxor.u32 %v2421, 2147483648
    %v2425 = vmul.f32 %v2424, 1.442695
    %v2426 = vpow.pop %v2425
    %v2427 = vadd.f32 %v2426, 1.0
    %v2428 = vrcp.pop %v2427
    %v2429 = vmul.f32 1.0, %v2428
    %v2430 = vld [vmem:[%s29] sm:$0xff]
    %v2431 = vld [vmem:[%s29 + $0x8] sm:$0xff]
    %v2433 = vsel %vm2104, %v2429, 0
    %2435 = vmatprep.subr.mxu0 0.0
    %2436 = vmatpush1.msra.mxu0 %v2430
    %2437 = vmatprep.subr.mxu0 0.0
    %2438 = vmatpush1.msra.mxu0 %v2431
    %2439 = vmatprep.subr.mxu0 0.0
    %2440 = vmatpush1.msra.mxu0 0.0
    %2441 = vmatprep.subr.mxu0 0.0
    %2442 = vmatpush1.msra.mxu0 0.0
    %2443 = vmatprep.subr.mxu0 0.0
    %2444 = vmatpush1.msra.mxu0 0.0
    %2445 = vmatprep.subr.mxu0 0.0
    %2446 = vmatpush1.msra.mxu0 0.0
    %2447 = vmatprep.subr.mxu0 0.0
    %2448 = vmatpush1.msra.mxu0 0.0
    %2449 = vmatprep.subr.mxu0 0.0
    %2450 = vmatpush1.msra.mxu0 0.0
    %2451 = vmatprep.subr.mxu0 0.0
    %2452 = vmatpush1.msra.mxu0 0.0
    %2453 = vmatprep.subr.mxu0 0.0
    %2454 = vmatpush1.msra.mxu0 0.0
    %2455 = vmatprep.subr.mxu0 0.0
    %2456 = vmatpush1.msra.mxu0 0.0
    %2457 = vmatprep.subr.mxu0 0.0
    %2458 = vmatpush1.msra.mxu0 0.0
    %2459 = vmatprep.subr.mxu0 0.0
    %2460 = vmatpush1.msra.mxu0 0.0
    %2461 = vmatprep.subr.mxu0 0.0
    %2462 = vmatpush1.msra.mxu0 0.0
    %2463 = vmatprep.subr.mxu0 0.0
    %2464 = vmatpush1.msra.mxu0 0.0
    %2465 = vmatprep.subr.mxu0 0.0
    %2466 = vmatpush1.msra.mxu0 0.0
    %2467 = vmatprep.subr.mxu0 0.0
    %2468 = vmatpush1.msra.mxu0 0.0
    %2469 = vmatprep.subr.mxu0 0.0
    %2470 = vmatpush1.msra.mxu0 0.0
    %2471 = vmatprep.subr.mxu0 0.0
    %2472 = vmatpush1.msra.mxu0 0.0
    %2473 = vmatprep.subr.mxu0 0.0
    %2474 = vmatpush1.msra.mxu0 0.0
    %2475 = vmatprep.subr.mxu0 0.0
    %2476 = vmatpush1.msra.mxu0 0.0
    %2477 = vmatprep.subr.mxu0 0.0
    %2478 = vmatpush1.msra.mxu0 0.0
    %2479 = vmatprep.subr.mxu0 0.0
    %2480 = vmatpush1.msra.mxu0 0.0
    %2481 = vmatprep.subr.mxu0 0.0
    %2482 = vmatpush1.msra.mxu0 0.0
    %2483 = vmatprep.subr.mxu0 0.0
    %2484 = vmatpush1.msra.mxu0 0.0
    %2485 = vmatprep.subr.mxu0 0.0
    %2486 = vmatpush1.msra.mxu0 0.0
    %2487 = vmatprep.subr.mxu0 0.0
    %2488 = vmatpush1.msra.mxu0 0.0
    %2489 = vmatprep.subr.mxu0 0.0
    %2490 = vmatpush1.msra.mxu0 0.0
    %2491 = vmatprep.subr.mxu0 0.0
    %2492 = vmatpush1.msra.mxu0 0.0
    %2493 = vmatprep.subr.mxu0 0.0
    %2494 = vmatpush1.msra.mxu0 0.0
    %2495 = vmatprep.subr.mxu0 0.0
    %2496 = vmatpush1.msra.mxu0 0.0
    %2497 = vmatprep.subr.mxu0 0.0
    %2498 = vmatpush1.msra.mxu0 0.0
    %2499 = vmatprep.mubr.f32.mxu0 0.0
    %2500 = vmatmul.mubr.f32.gmra.mrb[0].mxu0 %v2433
    %v2501 = vpop.f32.mrb[0].mxu0
    %v2502 = vadd.f32 0.0, %v2501
    %v2503 = vpop.f32.mrb[0].mxu0
    %2504 = vdwg.mxu0
    %v2505 = vlaneseq
    %v2506 = vshrl.u32 %v2505, 7
    %v2507 = vsub.s32 0, %v2506
    %v2508 = vrot.slane %v2502, %v2507
    %v2509 = vlaneseq
    %v2510 = vshrl.u32 %v2509, 7
    %v2511 = vsub.s32 1, %v2510
    %v2512 = vrot.slane %v2502, %v2511
    %v2513 = vsel %vm2139, %v2508, %v2512
    %v2514 = vadd.f32 %v2513, 1.0
    %v2515 = vadd.f32 %v2512, 1.0
    %v2516 = vmul.f32 %v2143, %v2514
    %v2517 = vmul.f32 %v2144, %v2515
    %v2518 = vpack.c.bf16 %v2517, %v2516
    %v2519 = vld [vmem:[%s31] sm:$0xf]
    %v2520 = vld [vmem:[%s31 + $0x4] sm:$0xf]
    %v2521 = vld [vmem:[%s31 + $0x8] sm:$0xf]
    %v2522 = vld [vmem:[%s31 + $0xc] sm:$0xf]
    %v2523 = vld [vmem:[%s31 + $0x10] sm:$0xf]
    %v2524 = vld [vmem:[%s31 + $0x14] sm:$0xf]
    %v2525 = vld [vmem:[%s31 + $0x18] sm:$0xf]
    %v2526 = vld [vmem:[%s31 + $0x1c] sm:$0xf]
    %v2527 = vld [vmem:[%s31 + $0x20] sm:$0xf]
    %v2528 = vld [vmem:[%s31 + $0x24] sm:$0xf]
    %v2529 = vld [vmem:[%s31 + $0x28] sm:$0xf]
    %v2530 = vld [vmem:[%s31 + $0x2c] sm:$0xf]
    %v2531 = vld [vmem:[%s31 + $0x30] sm:$0xf]
    %v2532 = vld [vmem:[%s31 + $0x34] sm:$0xf]
    %v2533 = vld [vmem:[%s31 + $0x38] sm:$0xf]
    %v2534 = vld [vmem:[%s31 + $0x3c] sm:$0xf]
    %v2535 = vld [vmem:[%s33] sm:$0x1]
    %v2537 = vlaneseq
    %v2538 = vshrl.u32 %v2537, 7
    %v2539 = vsub.s32 0, %v2538
    %v2540 = vrot.slane %v2535, %v2539
    %v2558 = vunpack.c.l.b16 %v2519
    %v2559 = vunpack.c.l.b16 %v2520
    %v2560 = vunpack.c.l.b16 %v2521
    %v2561 = vunpack.c.l.b16 %v2522
    %v2562 = vunpack.c.l.b16 %v2523
    %v2563 = vunpack.c.l.b16 %v2524
    %v2564 = vunpack.c.l.b16 %v2525
    %v2565 = vunpack.c.l.b16 %v2526
    %v2566 = vunpack.c.l.b16 %v2527
    %v2567 = vunpack.c.l.b16 %v2528
    %v2568 = vunpack.c.l.b16 %v2529
    %v2569 = vunpack.c.l.b16 %v2530
    %v2570 = vunpack.c.l.b16 %v2531
    %v2571 = vunpack.c.l.b16 %v2532
    %v2572 = vunpack.c.l.b16 %v2533
    %v2573 = vunpack.c.l.b16 %v2534
    %v2574 = vpack.c.b16 %v2559, %v2558
    %v2575 = vpack.c.b16 %v2561, %v2560
    %v2576 = vpack.c.b16 %v2563, %v2562
    %v2577 = vpack.c.b16 %v2565, %v2564
    %v2578 = vpack.c.b16 %v2567, %v2566
    %v2579 = vpack.c.b16 %v2569, %v2568
    %v2580 = vpack.c.b16 %v2571, %v2570
    %v2581 = vpack.c.b16 %v2573, %v2572
    %2590 = vmatprep.subr.bf16.mxu0 0
    %2591 = vmatpush1.bf16.msra.mxu0 %v2574
    %2592 = vmatprep.subr.bf16.mxu0 0
    %2593 = vmatpush1.bf16.msra.mxu0 %v2575
    %2594 = vmatprep.subr.bf16.mxu0 0
    %2595 = vmatpush1.bf16.msra.mxu0 %v2576
    %2596 = vmatprep.subr.bf16.mxu0 0
    %2597 = vmatpush1.bf16.msra.mxu0 %v2577
    %2598 = vmatprep.subr.bf16.mxu0 0
    %2599 = vmatpush1.bf16.msra.mxu0 %v2578
    %2600 = vmatprep.subr.bf16.mxu0 0
    %2601 = vmatpush1.bf16.msra.mxu0 %v2579
    %2602 = vmatprep.subr.bf16.mxu0 0
    %2603 = vmatpush1.bf16.msra.mxu0 %v2580
    %2604 = vmatprep.subr.bf16.mxu0 0
    %2605 = vmatpush1.bf16.msra.mxu0 %v2581
    %2606 = vmatprep.subr.bf16.mxu0 0
    %2607 = vmatpush1.bf16.msra.mxu0 0
    %2608 = vmatprep.subr.bf16.mxu0 0
    %2609 = vmatpush1.bf16.msra.mxu0 0
    %2610 = vmatprep.subr.bf16.mxu0 0
    %2611 = vmatpush1.bf16.msra.mxu0 0
    %2612 = vmatprep.subr.bf16.mxu0 0
    %2613 = vmatpush1.bf16.msra.mxu0 0
    %2614 = vmatprep.subr.bf16.mxu0 0
    %2615 = vmatpush1.bf16.msra.mxu0 0
    %2616 = vmatprep.subr.bf16.mxu0 0
    %2617 = vmatpush1.bf16.msra.mxu0 0
    %2618 = vmatprep.subr.bf16.mxu0 0
    %2619 = vmatpush1.bf16.msra.mxu0 0
    %2620 = vmatprep.subr.bf16.mxu0 0
    %2621 = vmatpush1.bf16.msra.mxu0 0
    %2622 = vmatprep.mubr.bf16.mxu0 0
    %2623 = vmatmul.mubr.bf16.gmra.mrb[0].mxu0 %v2518
    %v2624 = vpop.f32.mrb[0].mxu0
    %v2625 = vadd.f32 %v2540, %v2624
    %v2626 = vpop.f32.mrb[0].mxu0
    %v2627 = vpop.f32.mrb[0].mxu0
    %v2628 = vadd.f32 %v2540, %v2627
    %v2629 = vpop.f32.mrb[0].mxu0
    %2630 = vdwg.mxu0
    %v2631 = vadd.f32 %v2625, %v498
    %v2632 = vadd.f32 %v2628, %v502
    %v2633 = vmax.f32 %v2631, 0.0
    %v2634 = vmax.f32 %v2632, 0.0
    %s2635 = sld [smem:[#allocation5]]
    %v2636 = vpack.c.bf16 %v2634, %v2633
    %v2637 = vld [vmem:[%s37] sm:$0xff]
    %v2638 = vld [vmem:[%s37 + $0x8] sm:$0xff]
    %v2639 = vld [vmem:[%s37 + $0x10] sm:$0xff]
    %v2640 = vld [vmem:[%s37 + $0x18] sm:$0xff]
    %v2641 = vld [vmem:[%s37 + $0x20] sm:$0xff]
    %v2642 = vld [vmem:[%s37 + $0x28] sm:$0xff]
    %v2643 = vld [vmem:[%s37 + $0x30] sm:$0xff]
    %v2644 = vld [vmem:[%s37 + $0x38] sm:$0xff]
    %v2645 = vld [vmem:[%s37 + $0x40] sm:$0xff]
    %v2646 = vld [vmem:[%s37 + $0x48] sm:$0xff]
    %v2647 = vld [vmem:[%s37 + $0x50] sm:$0xff]
    %v2648 = vld [vmem:[%s37 + $0x58] sm:$0xff]
    %v2649 = vld [vmem:[%s37 + $0x60] sm:$0xff]
    %v2650 = vld [vmem:[%s37 + $0x68] sm:$0xff]
    %v2651 = vld [vmem:[%s37 + $0x70] sm:$0xff]
    %v2652 = vld [vmem:[%s37 + $0x78] sm:$0xff]
    %v2653 = vld [vmem:[%s37 + $0x80] sm:$0xff]
    %v2654 = vld [vmem:[%s37 + $0x88] sm:$0xff]
    %v2655 = vld [vmem:[%s37 + $0x90] sm:$0xff]
    %v2656 = vld [vmem:[%s37 + $0x98] sm:$0xff]
    %v2657 = vld [vmem:[%s37 + $0xa0] sm:$0xff]
    %v2658 = vld [vmem:[%s37 + $0xa8] sm:$0xff]
    %v2659 = vld [vmem:[%s37 + $0xb0] sm:$0xff]
    %v2660 = vld [vmem:[%s37 + $0xb8] sm:$0xff]
    %v2661 = vld [vmem:[%s37 + $0xc0] sm:$0xff]
    %v2662 = vld [vmem:[%s37 + $0xc8] sm:$0xff]
    %v2663 = vld [vmem:[%s37 + $0xd0] sm:$0xff]
    %v2664 = vld [vmem:[%s37 + $0xd8] sm:$0xff]
    %v2665 = vld [vmem:[%s37 + $0xe0] sm:$0xff]
    %v2666 = vld [vmem:[%s37 + $0xe8] sm:$0xff]
    %v2667 = vld [vmem:[%s37 + $0xf0] sm:$0xff]
    %v2668 = vld [vmem:[%s37 + $0xf8] sm:$0xff]
    %v2669 = vld [vmem:[%s37 + $0x100] sm:$0xff]
    %v2670 = vld [vmem:[%s37 + $0x108] sm:$0xff]
    %v2671 = vld [vmem:[%s37 + $0x110] sm:$0xff]
    %v2672 = vld [vmem:[%s37 + $0x118] sm:$0xff]
    %v2673 = vld [vmem:[%s37 + $0x120] sm:$0xff]
    %v2674 = vld [vmem:[%s37 + $0x128] sm:$0xff]
    %v2675 = vld [vmem:[%s37 + $0x130] sm:$0xff]
    %v2676 = vld [vmem:[%s37 + $0x138] sm:$0xff]
    %v2677 = vld [vmem:[%s37 + $0x140] sm:$0xff]
    %v2678 = vld [vmem:[%s37 + $0x148] sm:$0xff]
    %v2679 = vld [vmem:[%s37 + $0x150] sm:$0xff]
    %v2680 = vld [vmem:[%s37 + $0x158] sm:$0xff]
    %v2681 = vld [vmem:[%s37 + $0x160] sm:$0xff]
    %v2682 = vld [vmem:[%s37 + $0x168] sm:$0xff]
    %v2683 = vld [vmem:[%s37 + $0x170] sm:$0xff]
    %v2684 = vld [vmem:[%s37 + $0x178] sm:$0xff]
    %v2685 = vld [vmem:[%s37 + $0x180] sm:$0xff]
    %v2686 = vld [vmem:[%s37 + $0x188] sm:$0xff]
    %v2687 = vld [vmem:[%s37 + $0x190] sm:$0xff]
    %v2688 = vld [vmem:[%s37 + $0x198] sm:$0xff]
    %v2689 = vld [vmem:[%s37 + $0x1a0] sm:$0xff]
    %v2690 = vld [vmem:[%s37 + $0x1a8] sm:$0xff]
    %v2691 = vld [vmem:[%s37 + $0x1b0] sm:$0xff]
    %v2692 = vld [vmem:[%s37 + $0x1b8] sm:$0xff]
    %v2693 = vld [vmem:[%s37 + $0x1c0] sm:$0xff]
    %v2694 = vld [vmem:[%s37 + $0x1c8] sm:$0xff]
    %v2695 = vld [vmem:[%s37 + $0x1d0] sm:$0xff]
    %v2696 = vld [vmem:[%s37 + $0x1d8] sm:$0xff]
    %v2697 = vld [vmem:[%s37 + $0x1e0] sm:$0xff]
    %v2698 = vld [vmem:[%s37 + $0x1e8] sm:$0xff]
    %v2699 = vld [vmem:[%s37 + $0x1f0] sm:$0xff]
    %v2700 = vld [vmem:[%s37 + $0x1f8] sm:$0xff]
    %v2701 = vld [vmem:[%s37 + $0x200] sm:$0xff]
    %v2702 = vld [vmem:[%s37 + $0x208] sm:$0xff]
    %v2703 = vld [vmem:[%s37 + $0x210] sm:$0xff]
    %v2704 = vld [vmem:[%s37 + $0x218] sm:$0xff]
    %v2705 = vld [vmem:[%s37 + $0x220] sm:$0xff]
    %v2706 = vld [vmem:[%s37 + $0x228] sm:$0xff]
    %v2707 = vld [vmem:[%s37 + $0x230] sm:$0xff]
    %v2708 = vld [vmem:[%s37 + $0x238] sm:$0xff]
    %v2709 = vld [vmem:[%s37 + $0x240] sm:$0xff]
    %v2710 = vld [vmem:[%s37 + $0x248] sm:$0xff]
    %v2711 = vld [vmem:[%s37 + $0x250] sm:$0xff]
    %v2712 = vld [vmem:[%s37 + $0x258] sm:$0xff]
    %v2713 = vld [vmem:[%s37 + $0x260] sm:$0xff]
    %v2714 = vld [vmem:[%s37 + $0x268] sm:$0xff]
    %v2715 = vld [vmem:[%s37 + $0x270] sm:$0xff]
    %v2716 = vld [vmem:[%s37 + $0x278] sm:$0xff]
    %v2717 = vld [vmem:[%s37 + $0x280] sm:$0xff]
    %v2718 = vld [vmem:[%s37 + $0x288] sm:$0xff]
    %v2719 = vld [vmem:[%s37 + $0x290] sm:$0xff]
    %v2720 = vld [vmem:[%s37 + $0x298] sm:$0xff]
    %v2721 = vld [vmem:[%s37 + $0x2a0] sm:$0xff]
    %v2722 = vld [vmem:[%s37 + $0x2a8] sm:$0xff]
    %v2723 = vld [vmem:[%s37 + $0x2b0] sm:$0xff]
    %v2724 = vld [vmem:[%s37 + $0x2b8] sm:$0xff]
    %v2725 = vld [vmem:[%s37 + $0x2c0] sm:$0xff]
    %v2726 = vld [vmem:[%s37 + $0x2c8] sm:$0xff]
    %v2727 = vld [vmem:[%s37 + $0x2d0] sm:$0xff]
    %v2728 = vld [vmem:[%s37 + $0x2d8] sm:$0xff]
    %v2729 = vld [vmem:[%s37 + $0x2e0] sm:$0xff]
    %v2730 = vld [vmem:[%s37 + $0x2e8] sm:$0xff]
    %v2731 = vld [vmem:[%s37 + $0x2f0] sm:$0xff]
    %v2732 = vld [vmem:[%s37 + $0x2f8] sm:$0xff]
    %v2733 = vld [vmem:[%s37 + $0x300] sm:$0xff]
    %v2734 = vld [vmem:[%s37 + $0x308] sm:$0xff]
    %v2735 = vld [vmem:[%s37 + $0x310] sm:$0xff]
    %v2736 = vld [vmem:[%s37 + $0x318] sm:$0xff]
    %v2737 = vld [vmem:[%s37 + $0x320] sm:$0xff]
    %v2738 = vld [vmem:[%s37 + $0x328] sm:$0xff]
    %v2739 = vld [vmem:[%s37 + $0x330] sm:$0xff]
    %v2740 = vld [vmem:[%s37 + $0x338] sm:$0xff]
    %v2741 = vld [vmem:[%s37 + $0x340] sm:$0xff]
    %v2742 = vld [vmem:[%s37 + $0x348] sm:$0xff]
    %v2743 = vld [vmem:[%s37 + $0x350] sm:$0xff]
    %v2744 = vld [vmem:[%s37 + $0x358] sm:$0xff]
    %v2745 = vld [vmem:[%s37 + $0x360] sm:$0xff]
    %v2746 = vld [vmem:[%s37 + $0x368] sm:$0xff]
    %v2747 = vld [vmem:[%s37 + $0x370] sm:$0xff]
    %v2748 = vld [vmem:[%s37 + $0x378] sm:$0xff]
    %v2749 = vld [vmem:[%s37 + $0x380] sm:$0xff]
    %v2750 = vld [vmem:[%s37 + $0x388] sm:$0xff]
    %v2751 = vld [vmem:[%s37 + $0x390] sm:$0xff]
    %v2752 = vld [vmem:[%s37 + $0x398] sm:$0xff]
    %v2753 = vld [vmem:[%s37 + $0x3a0] sm:$0xff]
    %v2754 = vld [vmem:[%s37 + $0x3a8] sm:$0xff]
    %v2755 = vld [vmem:[%s37 + $0x3b0] sm:$0xff]
    %v2756 = vld [vmem:[%s37 + $0x3b8] sm:$0xff]
    %v2757 = vld [vmem:[%s37 + $0x3c0] sm:$0xff]
    %v2758 = vld [vmem:[%s37 + $0x3c8] sm:$0xff]
    %v2759 = vld [vmem:[%s37 + $0x3d0] sm:$0xff]
    %v2760 = vld [vmem:[%s37 + $0x3d8] sm:$0xff]
    %v2761 = vld [vmem:[%s37 + $0x3e0] sm:$0xff]
    %v2762 = vld [vmem:[%s37 + $0x3e8] sm:$0xff]
    %v2763 = vld [vmem:[%s37 + $0x3f0] sm:$0xff]
    %v2764 = vld [vmem:[%s37 + $0x3f8] sm:$0xff]
    %v2765 = vld [vmem:[%s39] sm:$0xff]
    %v2766 = vld [vmem:[%s39 + $0x8] sm:$0xff]
    %v2769 = vlaneseq
    %v2770 = vshrl.u32 %v2769, 7
    %v2771 = vsub.s32 0, %v2770
    %v2772 = vrot.slane %v2765, %v2771
    %v2773 = vlaneseq
    %v2774 = vshrl.u32 %v2773, 7
    %v2775 = vsub.s32 1, %v2774
    %v2776 = vrot.slane %v2765, %v2775
    %v2777 = vlaneseq
    %v2778 = vshrl.u32 %v2777, 7
    %v2779 = vsub.s32 2, %v2778
    %v2780 = vrot.slane %v2765, %v2779
    %v2781 = vlaneseq
    %v2782 = vshrl.u32 %v2781, 7
    %v2783 = vsub.s32 3, %v2782
    %v2784 = vrot.slane %v2765, %v2783
    %v2785 = vlaneseq
    %v2786 = vshrl.u32 %v2785, 7
    %v2787 = vsub.s32 4, %v2786
    %v2788 = vrot.slane %v2765, %v2787
    %v2789 = vlaneseq
    %v2790 = vshrl.u32 %v2789, 7
    %v2791 = vsub.s32 5, %v2790
    %v2792 = vrot.slane %v2765, %v2791
    %v2793 = vlaneseq
    %v2794 = vshrl.u32 %v2793, 7
    %v2795 = vsub.s32 6, %v2794
    %v2796 = vrot.slane %v2765, %v2795
    %v2797 = vlaneseq
    %v2798 = vshrl.u32 %v2797, 7
    %v2799 = vsub.s32 7, %v2798
    %v2800 = vrot.slane %v2765, %v2799
    %v2801 = vlaneseq
    %v2802 = vshrl.u32 %v2801, 7
    %v2803 = vsub.s32 0, %v2802
    %v2804 = vrot.slane %v2766, %v2803
    %v2805 = vlaneseq
    %v2806 = vshrl.u32 %v2805, 7
    %v2807 = vsub.s32 1, %v2806
    %v2808 = vrot.slane %v2766, %v2807
    %v2809 = vlaneseq
    %v2810 = vshrl.u32 %v2809, 7
    %v2811 = vsub.s32 2, %v2810
    %v2812 = vrot.slane %v2766, %v2811
    %v2813 = vlaneseq
    %v2814 = vshrl.u32 %v2813, 7
    %v2815 = vsub.s32 3, %v2814
    %v2816 = vrot.slane %v2766, %v2815
    %v2817 = vlaneseq
    %v2818 = vshrl.u32 %v2817, 7
    %v2819 = vsub.s32 4, %v2818
    %v2820 = vrot.slane %v2766, %v2819
    %v2821 = vlaneseq
    %v2822 = vshrl.u32 %v2821, 7
    %v2823 = vsub.s32 5, %v2822
    %v2824 = vrot.slane %v2766, %v2823
    %v2825 = vlaneseq
    %v2826 = vshrl.u32 %v2825, 7
    %v2827 = vsub.s32 6, %v2826
    %v2828 = vrot.slane %v2766, %v2827
    %v2829 = vlaneseq
    %v2830 = vshrl.u32 %v2829, 7
    %v2831 = vsub.s32 7, %v2830
    %v2832 = vrot.slane %v2766, %v2831
    %v2977 = vunpack.c.l.b16 %v2637
    %v2978 = vunpack.c.h.b16 %v2637
    %v2979 = vunpack.c.l.b16 %v2638
    %v2980 = vunpack.c.h.b16 %v2638
    %v2981 = vunpack.c.l.b16 %v2639
    %v2982 = vunpack.c.h.b16 %v2639
    %v2983 = vunpack.c.l.b16 %v2640
    %v2984 = vunpack.c.h.b16 %v2640
    %v2985 = vunpack.c.l.b16 %v2641
    %v2986 = vunpack.c.h.b16 %v2641
    %v2987 = vunpack.c.l.b16 %v2642
    %v2988 = vunpack.c.h.b16 %v2642
    %v2989 = vunpack.c.l.b16 %v2643
    %v2990 = vunpack.c.h.b16 %v2643
    %v2991 = vunpack.c.l.b16 %v2644
    %v2992 = vunpack.c.h.b16 %v2644
    %v2993 = vunpack.c.l.b16 %v2645
    %v2994 = vunpack.c.h.b16 %v2645
    %v2995 = vunpack.c.l.b16 %v2646
    %v2996 = vunpack.c.h.b16 %v2646
    %v2997 = vunpack.c.l.b16 %v2647
    %v2998 = vunpack.c.h.b16 %v2647
    %v2999 = vunpack.c.l.b16 %v2648
    %v3000 = vunpack.c.h.b16 %v2648
    %v3001 = vunpack.c.l.b16 %v2649
    %v3002 = vunpack.c.h.b16 %v2649
    %v3003 = vunpack.c.l.b16 %v2650
    %v3004 = vunpack.c.h.b16 %v2650
    %v3005 = vunpack.c.l.b16 %v2651
    %v3006 = vunpack.c.h.b16 %v2651
    %v3007 = vunpack.c.l.b16 %v2652
    %v3008 = vunpack.c.h.b16 %v2652
    %v3009 = vunpack.c.l.b16 %v2653
    %v3010 = vunpack.c.h.b16 %v2653
    %v3011 = vunpack.c.l.b16 %v2654
    %v3012 = vunpack.c.h.b16 %v2654
    %v3013 = vunpack.c.l.b16 %v2655
    %v3014 = vunpack.c.h.b16 %v2655
    %v3015 = vunpack.c.l.b16 %v2656
    %v3016 = vunpack.c.h.b16 %v2656
    %v3017 = vunpack.c.l.b16 %v2657
    %v3018 = vunpack.c.h.b16 %v2657
    %v3019 = vunpack.c.l.b16 %v2658
    %v3020 = vunpack.c.h.b16 %v2658
    %v3021 = vunpack.c.l.b16 %v2659
    %v3022 = vunpack.c.h.b16 %v2659
    %v3023 = vunpack.c.l.b16 %v2660
    %v3024 = vunpack.c.h.b16 %v2660
    %v3025 = vunpack.c.l.b16 %v2661
    %v3026 = vunpack.c.h.b16 %v2661
    %v3027 = vunpack.c.l.b16 %v2662
    %v3028 = vunpack.c.h.b16 %v2662
    %v3029 = vunpack.c.l.b16 %v2663
    %v3030 = vunpack.c.h.b16 %v2663
    %v3031 = vunpack.c.l.b16 %v2664
    %v3032 = vunpack.c.h.b16 %v2664
    %v3033 = vunpack.c.l.b16 %v2665
    %v3034 = vunpack.c.h.b16 %v2665
    %v3035 = vunpack.c.l.b16 %v2666
    %v3036 = vunpack.c.h.b16 %v2666
    %v3037 = vunpack.c.l.b16 %v2667
    %v3038 = vunpack.c.h.b16 %v2667
    %v3039 = vunpack.c.l.b16 %v2668
    %v3040 = vunpack.c.h.b16 %v2668
    %v3041 = vunpack.c.l.b16 %v2669
    %v3042 = vunpack.c.h.b16 %v2669
    %v3043 = vunpack.c.l.b16 %v2670
    %v3044 = vunpack.c.h.b16 %v2670
    %v3045 = vunpack.c.l.b16 %v2671
    %v3046 = vunpack.c.h.b16 %v2671
    %v3047 = vunpack.c.l.b16 %v2672
    %v3048 = vunpack.c.h.b16 %v2672
    %v3049 = vunpack.c.l.b16 %v2673
    %v3050 = vunpack.c.h.b16 %v2673
    %v3051 = vunpack.c.l.b16 %v2674
    %v3052 = vunpack.c.h.b16 %v2674
    %v3053 = vunpack.c.l.b16 %v2675
    %v3054 = vunpack.c.h.b16 %v2675
    %v3055 = vunpack.c.l.b16 %v2676
    %v3056 = vunpack.c.h.b16 %v2676
    %v3057 = vunpack.c.l.b16 %v2677
    %v3058 = vunpack.c.h.b16 %v2677
    %v3059 = vunpack.c.l.b16 %v2678
    %v3060 = vunpack.c.h.b16 %v2678
    %v3061 = vunpack.c.l.b16 %v2679
    %v3062 = vunpack.c.h.b16 %v2679
    %v3063 = vunpack.c.l.b16 %v2680
    %v3064 = vunpack.c.h.b16 %v2680
    %v3065 = vunpack.c.l.b16 %v2681
    %v3066 = vunpack.c.h.b16 %v2681
    %v3067 = vunpack.c.l.b16 %v2682
    %v3068 = vunpack.c.h.b16 %v2682
    %v3069 = vunpack.c.l.b16 %v2683
    %v3070 = vunpack.c.h.b16 %v2683
    %v3071 = vunpack.c.l.b16 %v2684
    %v3072 = vunpack.c.h.b16 %v2684
    %v3073 = vunpack.c.l.b16 %v2685
    %v3074 = vunpack.c.h.b16 %v2685
    %v3075 = vunpack.c.l.b16 %v2686
    %v3076 = vunpack.c.h.b16 %v2686
    %v3077 = vunpack.c.l.b16 %v2687
    %v3078 = vunpack.c.h.b16 %v2687
    %v3079 = vunpack.c.l.b16 %v2688
    %v3080 = vunpack.c.h.b16 %v2688
    %v3081 = vunpack.c.l.b16 %v2689
    %v3082 = vunpack.c.h.b16 %v2689
    %v3083 = vunpack.c.l.b16 %v2690
    %v3084 = vunpack.c.h.b16 %v2690
    %v3085 = vunpack.c.l.b16 %v2691
    %v3086 = vunpack.c.h.b16 %v2691
    %v3087 = vunpack.c.l.b16 %v2692
    %v3088 = vunpack.c.h.b16 %v2692
    %v3089 = vunpack.c.l.b16 %v2693
    %v3090 = vunpack.c.h.b16 %v2693
    %v3091 = vunpack.c.l.b16 %v2694
    %v3092 = vunpack.c.h.b16 %v2694
    %v3093 = vunpack.c.l.b16 %v2695
    %v3094 = vunpack.c.h.b16 %v2695
    %v3095 = vunpack.c.l.b16 %v2696
    %v3096 = vunpack.c.h.b16 %v2696
    %v3097 = vunpack.c.l.b16 %v2697
    %v3098 = vunpack.c.h.b16 %v2697
    %v3099 = vunpack.c.l.b16 %v2698
    %v3100 = vunpack.c.h.b16 %v2698
    %v3101 = vunpack.c.l.b16 %v2699
    %v3102 = vunpack.c.h.b16 %v2699
    %v3103 = vunpack.c.l.b16 %v2700
    %v3104 = vunpack.c.h.b16 %v2700
    %v3105 = vunpack.c.l.b16 %v2701
    %v3106 = vunpack.c.h.b16 %v2701
    %v3107 = vunpack.c.l.b16 %v2702
    %v3108 = vunpack.c.h.b16 %v2702
    %v3109 = vunpack.c.l.b16 %v2703
    %v3110 = vunpack.c.h.b16 %v2703
    %v3111 = vunpack.c.l.b16 %v2704
    %v3112 = vunpack.c.h.b16 %v2704
    %v3113 = vunpack.c.l.b16 %v2705
    %v3114 = vunpack.c.h.b16 %v2705
    %v3115 = vunpack.c.l.b16 %v2706
    %v3116 = vunpack.c.h.b16 %v2706
    %v3117 = vunpack.c.l.b16 %v2707
    %v3118 = vunpack.c.h.b16 %v2707
    %v3119 = vunpack.c.l.b16 %v2708
    %v3120 = vunpack.c.h.b16 %v2708
    %v3121 = vunpack.c.l.b16 %v2709
    %v3122 = vunpack.c.h.b16 %v2709
    %v3123 = vunpack.c.l.b16 %v2710
    %v3124 = vunpack.c.h.b16 %v2710
    %v3125 = vunpack.c.l.b16 %v2711
    %v3126 = vunpack.c.h.b16 %v2711
    %v3127 = vunpack.c.l.b16 %v2712
    %v3128 = vunpack.c.h.b16 %v2712
    %v3129 = vunpack.c.l.b16 %v2713
    %v3130 = vunpack.c.h.b16 %v2713
    %v3131 = vunpack.c.l.b16 %v2714
    %v3132 = vunpack.c.h.b16 %v2714
    %v3133 = vunpack.c.l.b16 %v2715
    %v3134 = vunpack.c.h.b16 %v2715
    %v3135 = vunpack.c.l.b16 %v2716
    %v3136 = vunpack.c.h.b16 %v2716
    %v3137 = vunpack.c.l.b16 %v2717
    %v3138 = vunpack.c.h.b16 %v2717
    %v3139 = vunpack.c.l.b16 %v2718
    %v3140 = vunpack.c.h.b16 %v2718
    %v3141 = vunpack.c.l.b16 %v2719
    %v3142 = vunpack.c.h.b16 %v2719
    %v3143 = vunpack.c.l.b16 %v2720
    %v3144 = vunpack.c.h.b16 %v2720
    %v3145 = vunpack.c.l.b16 %v2721
    %v3146 = vunpack.c.h.b16 %v2721
    %v3147 = vunpack.c.l.b16 %v2722
    %v3148 = vunpack.c.h.b16 %v2722
    %v3149 = vunpack.c.l.b16 %v2723
    %v3150 = vunpack.c.h.b16 %v2723
    %v3151 = vunpack.c.l.b16 %v2724
    %v3152 = vunpack.c.h.b16 %v2724
    %v3153 = vunpack.c.l.b16 %v2725
    %v3154 = vunpack.c.h.b16 %v2725
    %v3155 = vunpack.c.l.b16 %v2726
    %v3156 = vunpack.c.h.b16 %v2726
    %v3157 = vunpack.c.l.b16 %v2727
    %v3158 = vunpack.c.h.b16 %v2727
    %v3159 = vunpack.c.l.b16 %v2728
    %v3160 = vunpack.c.h.b16 %v2728
    %v3161 = vunpack.c.l.b16 %v2729
    %v3162 = vunpack.c.h.b16 %v2729
    %v3163 = vunpack.c.l.b16 %v2730
    %v3164 = vunpack.c.h.b16 %v2730
    %v3165 = vunpack.c.l.b16 %v2731
    %v3166 = vunpack.c.h.b16 %v2731
    %v3167 = vunpack.c.l.b16 %v2732
    %v3168 = vunpack.c.h.b16 %v2732
    %v3169 = vunpack.c.l.b16 %v2733
    %v3170 = vunpack.c.h.b16 %v2733
    %v3171 = vunpack.c.l.b16 %v2734
    %v3172 = vunpack.c.h.b16 %v2734
    %v3173 = vunpack.c.l.b16 %v2735
    %v3174 = vunpack.c.h.b16 %v2735
    %v3175 = vunpack.c.l.b16 %v2736
    %v3176 = vunpack.c.h.b16 %v2736
    %v3177 = vunpack.c.l.b16 %v2737
    %v3178 = vunpack.c.h.b16 %v2737
    %v3179 = vunpack.c.l.b16 %v2738
    %v3180 = vunpack.c.h.b16 %v2738
    %v3181 = vunpack.c.l.b16 %v2739
    %v3182 = vunpack.c.h.b16 %v2739
    %v3183 = vunpack.c.l.b16 %v2740
    %v3184 = vunpack.c.h.b16 %v2740
    %v3185 = vunpack.c.l.b16 %v2741
    %v3186 = vunpack.c.h.b16 %v2741
    %v3187 = vunpack.c.l.b16 %v2742
    %v3188 = vunpack.c.h.b16 %v2742
    %v3189 = vunpack.c.l.b16 %v2743
    %v3190 = vunpack.c.h.b16 %v2743
    %v3191 = vunpack.c.l.b16 %v2744
    %v3192 = vunpack.c.h.b16 %v2744
    %v3193 = vunpack.c.l.b16 %v2745
    %v3194 = vunpack.c.h.b16 %v2745
    %v3195 = vunpack.c.l.b16 %v2746
    %v3196 = vunpack.c.h.b16 %v2746
    %v3197 = vunpack.c.l.b16 %v2747
    %v3198 = vunpack.c.h.b16 %v2747
    %v3199 = vunpack.c.l.b16 %v2748
    %v3200 = vunpack.c.h.b16 %v2748
    %v3201 = vunpack.c.l.b16 %v2749
    %v3202 = vunpack.c.h.b16 %v2749
    %v3203 = vunpack.c.l.b16 %v2750
    %v3204 = vunpack.c.h.b16 %v2750
    %v3205 = vunpack.c.l.b16 %v2751
    %v3206 = vunpack.c.h.b16 %v2751
    %v3207 = vunpack.c.l.b16 %v2752
    %v3208 = vunpack.c.h.b16 %v2752
    %v3209 = vunpack.c.l.b16 %v2753
    %v3210 = vunpack.c.h.b16 %v2753
    %v3211 = vunpack.c.l.b16 %v2754
    %v3212 = vunpack.c.h.b16 %v2754
    %v3213 = vunpack.c.l.b16 %v2755
    %v3214 = vunpack.c.h.b16 %v2755
    %v3215 = vunpack.c.l.b16 %v2756
    %v3216 = vunpack.c.h.b16 %v2756
    %v3217 = vunpack.c.l.b16 %v2757
    %v3218 = vunpack.c.h.b16 %v2757
    %v3219 = vunpack.c.l.b16 %v2758
    %v3220 = vunpack.c.h.b16 %v2758
    %v3221 = vunpack.c.l.b16 %v2759
    %v3222 = vunpack.c.h.b16 %v2759
    %v3223 = vunpack.c.l.b16 %v2760
    %v3224 = vunpack.c.h.b16 %v2760
    %v3225 = vunpack.c.l.b16 %v2761
    %v3226 = vunpack.c.h.b16 %v2761
    %v3227 = vunpack.c.l.b16 %v2762
    %v3228 = vunpack.c.h.b16 %v2762
    %v3229 = vunpack.c.l.b16 %v2763
    %v3230 = vunpack.c.h.b16 %v2763
    %v3231 = vunpack.c.l.b16 %v2764
    %v3232 = vunpack.c.h.b16 %v2764
    %v3233 = vpack.c.b16 %v2993, %v2977
    %v3234 = vpack.c.b16 %v2994, %v2978
    %v3235 = vpack.c.b16 %v2995, %v2979
    %v3236 = vpack.c.b16 %v2996, %v2980
    %v3237 = vpack.c.b16 %v2997, %v2981
    %v3238 = vpack.c.b16 %v2998, %v2982
    %v3239 = vpack.c.b16 %v2999, %v2983
    %v3240 = vpack.c.b16 %v3000, %v2984
    %v3241 = vpack.c.b16 %v3001, %v2985
    %v3242 = vpack.c.b16 %v3002, %v2986
    %v3243 = vpack.c.b16 %v3003, %v2987
    %v3244 = vpack.c.b16 %v3004, %v2988
    %v3245 = vpack.c.b16 %v3005, %v2989
    %v3246 = vpack.c.b16 %v3006, %v2990
    %v3247 = vpack.c.b16 %v3007, %v2991
    %v3248 = vpack.c.b16 %v3008, %v2992
    %v3249 = vpack.c.b16 %v3025, %v3009
    %v3250 = vpack.c.b16 %v3026, %v3010
    %v3251 = vpack.c.b16 %v3027, %v3011
    %v3252 = vpack.c.b16 %v3028, %v3012
    %v3253 = vpack.c.b16 %v3029, %v3013
    %v3254 = vpack.c.b16 %v3030, %v3014
    %v3255 = vpack.c.b16 %v3031, %v3015
    %v3256 = vpack.c.b16 %v3032, %v3016
    %v3257 = vpack.c.b16 %v3033, %v3017
    %v3258 = vpack.c.b16 %v3034, %v3018
    %v3259 = vpack.c.b16 %v3035, %v3019
    %v3260 = vpack.c.b16 %v3036, %v3020
    %v3261 = vpack.c.b16 %v3037, %v3021
    %v3262 = vpack.c.b16 %v3038, %v3022
    %v3263 = vpack.c.b16 %v3039, %v3023
    %v3264 = vpack.c.b16 %v3040, %v3024
    %v3265 = vpack.c.b16 %v3057, %v3041
    %v3266 = vpack.c.b16 %v3058, %v3042
    %v3267 = vpack.c.b16 %v3059, %v3043
    %v3268 = vpack.c.b16 %v3060, %v3044
    %v3269 = vpack.c.b16 %v3061, %v3045
    %v3270 = vpack.c.b16 %v3062, %v3046
    %v3271 = vpack.c.b16 %v3063, %v3047
    %v3272 = vpack.c.b16 %v3064, %v3048
    %v3273 = vpack.c.b16 %v3065, %v3049
    %v3274 = vpack.c.b16 %v3066, %v3050
    %v3275 = vpack.c.b16 %v3067, %v3051
    %v3276 = vpack.c.b16 %v3068, %v3052
    %v3277 = vpack.c.b16 %v3069, %v3053
    %v3278 = vpack.c.b16 %v3070, %v3054
    %v3279 = vpack.c.b16 %v3071, %v3055
    %v3280 = vpack.c.b16 %v3072, %v3056
    %v3281 = vpack.c.b16 %v3089, %v3073
    %v3282 = vpack.c.b16 %v3090, %v3074
    %v3283 = vpack.c.b16 %v3091, %v3075
    %v3284 = vpack.c.b16 %v3092, %v3076
    %v3285 = vpack.c.b16 %v3093, %v3077
    %v3286 = vpack.c.b16 %v3094, %v3078
    %v3287 = vpack.c.b16 %v3095, %v3079
    %v3288 = vpack.c.b16 %v3096, %v3080
    %v3289 = vpack.c.b16 %v3097, %v3081
    %v3290 = vpack.c.b16 %v3098, %v3082
    %v3291 = vpack.c.b16 %v3099, %v3083
    %v3292 = vpack.c.b16 %v3100, %v3084
    %v3293 = vpack.c.b16 %v3101, %v3085
    %v3294 = vpack.c.b16 %v3102, %v3086
    %v3295 = vpack.c.b16 %v3103, %v3087
    %v3296 = vpack.c.b16 %v3104, %v3088
    %v3297 = vpack.c.b16 %v3121, %v3105
    %v3298 = vpack.c.b16 %v3122, %v3106
    %v3299 = vpack.c.b16 %v3123, %v3107
    %v3300 = vpack.c.b16 %v3124, %v3108
    %v3301 = vpack.c.b16 %v3125, %v3109
    %v3302 = vpack.c.b16 %v3126, %v3110
    %v3303 = vpack.c.b16 %v3127, %v3111
    %v3304 = vpack.c.b16 %v3128, %v3112
    %v3305 = vpack.c.b16 %v3129, %v3113
    %v3306 = vpack.c.b16 %v3130, %v3114
    %v3307 = vpack.c.b16 %v3131, %v3115
    %v3308 = vpack.c.b16 %v3132, %v3116
    %v3309 = vpack.c.b16 %v3133, %v3117
    %v3310 = vpack.c.b16 %v3134, %v3118
    %v3311 = vpack.c.b16 %v3135, %v3119
    %v3312 = vpack.c.b16 %v3136, %v3120
    %v3313 = vpack.c.b16 %v3153, %v3137
    %v3314 = vpack.c.b16 %v3154, %v3138
    %v3315 = vpack.c.b16 %v3155, %v3139
    %v3316 = vpack.c.b16 %v3156, %v3140
    %v3317 = vpack.c.b16 %v3157, %v3141
    %v3318 = vpack.c.b16 %v3158, %v3142
    %v3319 = vpack.c.b16 %v3159, %v3143
    %v3320 = vpack.c.b16 %v3160, %v3144
    %v3321 = vpack.c.b16 %v3161, %v3145
    %v3322 = vpack.c.b16 %v3162, %v3146
    %v3323 = vpack.c.b16 %v3163, %v3147
    %v3324 = vpack.c.b16 %v3164, %v3148
    %v3325 = vpack.c.b16 %v3165, %v3149
    %v3326 = vpack.c.b16 %v3166, %v3150
    %v3327 = vpack.c.b16 %v3167, %v3151
    %v3328 = vpack.c.b16 %v3168, %v3152
    %v3329 = vpack.c.b16 %v3185, %v3169
    %v3330 = vpack.c.b16 %v3186, %v3170
    %v3331 = vpack.c.b16 %v3187, %v3171
    %v3332 = vpack.c.b16 %v3188, %v3172
    %v3333 = vpack.c.b16 %v3189, %v3173
    %v3334 = vpack.c.b16 %v3190, %v3174
    %v3335 = vpack.c.b16 %v3191, %v3175
    %v3336 = vpack.c.b16 %v3192, %v3176
    %v3337 = vpack.c.b16 %v3193, %v3177
    %v3338 = vpack.c.b16 %v3194, %v3178
    %v3339 = vpack.c.b16 %v3195, %v3179
    %v3340 = vpack.c.b16 %v3196, %v3180
    %v3341 = vpack.c.b16 %v3197, %v3181
    %v3342 = vpack.c.b16 %v3198, %v3182
    %v3343 = vpack.c.b16 %v3199, %v3183
    %v3344 = vpack.c.b16 %v3200, %v3184
    %v3345 = vpack.c.b16 %v3217, %v3201
    %v3346 = vpack.c.b16 %v3218, %v3202
    %v3347 = vpack.c.b16 %v3219, %v3203
    %v3348 = vpack.c.b16 %v3220, %v3204
    %v3349 = vpack.c.b16 %v3221, %v3205
    %v3350 = vpack.c.b16 %v3222, %v3206
    %v3351 = vpack.c.b16 %v3223, %v3207
    %v3352 = vpack.c.b16 %v3224, %v3208
    %v3353 = vpack.c.b16 %v3225, %v3209
    %v3354 = vpack.c.b16 %v3226, %v3210
    %v3355 = vpack.c.b16 %v3227, %v3211
    %v3356 = vpack.c.b16 %v3228, %v3212
    %v3357 = vpack.c.b16 %v3229, %v3213
    %v3358 = vpack.c.b16 %v3230, %v3214
    %v3359 = vpack.c.b16 %v3231, %v3215
    %v3360 = vpack.c.b16 %v3232, %v3216
    %3489 = vmatprep.subr.bf16.mxu0 %v3234
    %3490 = vmatpush1.bf16.msra.mxu0 %v3233
    %3491 = vmatprep.subr.bf16.mxu0 %v3250
    %3492 = vmatpush1.bf16.msra.mxu0 %v3249
    %3493 = vmatprep.subr.bf16.mxu0 %v3266
    %3494 = vmatpush1.bf16.msra.mxu0 %v3265
    %3495 = vmatprep.subr.bf16.mxu0 %v3282
    %3496 = vmatpush1.bf16.msra.mxu0 %v3281
    %3497 = vmatprep.subr.bf16.mxu0 %v3298
    %3498 = vmatpush1.bf16.msra.mxu0 %v3297
    %3499 = vmatprep.subr.bf16.mxu0 %v3314
    %3500 = vmatpush1.bf16.msra.mxu0 %v3313
    %3501 = vmatprep.subr.bf16.mxu0 %v3330
    %3502 = vmatpush1.bf16.msra.mxu0 %v3329
    %3503 = vmatprep.subr.bf16.mxu0 %v3346
    %3504 = vmatpush1.bf16.msra.mxu0 %v3345
    %3505 = vmatprep.subr.bf16.mxu0 0
    %3506 = vmatpush1.bf16.msra.mxu0 0
    %3507 = vmatprep.subr.bf16.mxu0 0
    %3508 = vmatpush1.bf16.msra.mxu0 0
    %3509 = vmatprep.subr.bf16.mxu0 0
    %3510 = vmatpush1.bf16.msra.mxu0 0
    %3511 = vmatprep.subr.bf16.mxu0 0
    %3512 = vmatpush1.bf16.msra.mxu0 0
    %3513 = vmatprep.subr.bf16.mxu0 0
    %3514 = vmatpush1.bf16.msra.mxu0 0
    %3515 = vmatprep.subr.bf16.mxu0 0
    %3516 = vmatpush1.bf16.msra.mxu0 0
    %3517 = vmatprep.subr.bf16.mxu0 0
    %3518 = vmatpush1.bf16.msra.mxu0 0
    %3519 = vmatprep.subr.bf16.mxu0 0
    %3520 = vmatpush1.bf16.msra.mxu0 0
    %3521 = vmatprep.mubr.bf16.mxu0 0
    %3522 = vmatmul.mubr.bf16.gmra.mrb[0].mxu0 %v2636
    %v3523 = vpop.f32.mrb[0].mxu0
    %v3524 = vadd.f32 %v2772, %v3523
    %v3525 = vpop.f32.mrb[0].mxu0
    %v3526 = vadd.f32 %v2776, %v3525
    %v3527 = vpop.f32.mrb[0].mxu0
    %v3528 = vadd.f32 %v2772, %v3527
    %v3529 = vpop.f32.mrb[0].mxu0
    %v3530 = vadd.f32 %v2776, %v3529
    %3531 = vdwg.mxu0
    %3532 = vmatprep.subr.bf16.mxu0 %v3236
    %3533 = vmatpush1.bf16.msra.mxu0 %v3235
    %3534 = vmatprep.subr.bf16.mxu0 %v3252
    %3535 = vmatpush1.bf16.msra.mxu0 %v3251
    %3536 = vmatprep.subr.bf16.mxu0 %v3268
    %3537 = vmatpush1.bf16.msra.mxu0 %v3267
    %3538 = vmatprep.subr.bf16.mxu0 %v3284
    %3539 = vmatpush1.bf16.msra.mxu0 %v3283
    %3540 = vmatprep.subr.bf16.mxu0 %v3300
    %3541 = vmatpush1.bf16.msra.mxu0 %v3299
    %3542 = vmatprep.subr.bf16.mxu0 %v3316
    %3543 = vmatpush1.bf16.msra.mxu0 %v3315
    %3544 = vmatprep.subr.bf16.mxu0 %v3332
    %3545 = vmatpush1.bf16.msra.mxu0 %v3331
    %3546 = vmatprep.subr.bf16.mxu0 %v3348
    %3547 = vmatpush1.bf16.msra.mxu0 %v3347
    %3548 = vmatprep.subr.bf16.mxu0 0
    %3549 = vmatpush1.bf16.msra.mxu0 0
    %3550 = vmatprep.subr.bf16.mxu0 0
    %3551 = vmatpush1.bf16.msra.mxu0 0
    %3552 = vmatprep.subr.bf16.mxu0 0
    %3553 = vmatpush1.bf16.msra.mxu0 0
    %3554 = vmatprep.subr.bf16.mxu0 0
    %3555 = vmatpush1.bf16.msra.mxu0 0
    %3556 = vmatprep.subr.bf16.mxu0 0
    %3557 = vmatpush1.bf16.msra.mxu0 0
    %3558 = vmatprep.subr.bf16.mxu0 0
    %3559 = vmatpush1.bf16.msra.mxu0 0
    %3560 = vmatprep.subr.bf16.mxu0 0
    %3561 = vmatpush1.bf16.msra.mxu0 0
    %3562 = vmatprep.subr.bf16.mxu0 0
    %3563 = vmatpush1.bf16.msra.mxu0 0
    %3564 = vmatprep.mubr.bf16.mxu0 0
    %3565 = vmatmul.mubr.bf16.gmra.mrb[0].mxu0 %v2636
    %v3566 = vpop.f32.mrb[0].mxu0
    %v3567 = vadd.f32 %v2780, %v3566
    %v3568 = vpop.f32.mrb[0].mxu0
    %v3569 = vadd.f32 %v2784, %v3568
    %v3570 = vpop.f32.mrb[0].mxu0
    %v3571 = vadd.f32 %v2780, %v3570
    %v3572 = vpop.f32.mrb[0].mxu0
    %v3573 = vadd.f32 %v2784, %v3572
    %3574 = vdwg.mxu0
    %3575 = vmatprep.subr.bf16.mxu0 %v3238
    %3576 = vmatpush1.bf16.msra.mxu0 %v3237
    %3577 = vmatprep.subr.bf16.mxu0 %v3254
    %3578 = vmatpush1.bf16.msra.mxu0 %v3253
    %3579 = vmatprep.subr.bf16.mxu0 %v3270
    %3580 = vmatpush1.bf16.msra.mxu0 %v3269
    %3581 = vmatprep.subr.bf16.mxu0 %v3286
    %3582 = vmatpush1.bf16.msra.mxu0 %v3285
    %3583 = vmatprep.subr.bf16.mxu0 %v3302
    %3584 = vmatpush1.bf16.msra.mxu0 %v3301
    %3585 = vmatprep.subr.bf16.mxu0 %v3318
    %3586 = vmatpush1.bf16.msra.mxu0 %v3317
    %3587 = vmatprep.subr.bf16.mxu0 %v3334
    %3588 = vmatpush1.bf16.msra.mxu0 %v3333
    %3589 = vmatprep.subr.bf16.mxu0 %v3350
    %3590 = vmatpush1.bf16.msra.mxu0 %v3349
    %3591 = vmatprep.subr.bf16.mxu0 0
    %3592 = vmatpush1.bf16.msra.mxu0 0
    %3593 = vmatprep.subr.bf16.mxu0 0
    %3594 = vmatpush1.bf16.msra.mxu0 0
    %3595 = vmatprep.subr.bf16.mxu0 0
    %3596 = vmatpush1.bf16.msra.mxu0 0
    %3597 = vmatprep.subr.bf16.mxu0 0
    %3598 = vmatpush1.bf16.msra.mxu0 0
    %3599 = vmatprep.subr.bf16.mxu0 0
    %3600 = vmatpush1.bf16.msra.mxu0 0
    %3601 = vmatprep.subr.bf16.mxu0 0
    %3602 = vmatpush1.bf16.msra.mxu0 0
    %3603 = vmatprep.subr.bf16.mxu0 0
    %3604 = vmatpush1.bf16.msra.mxu0 0
    %3605 = vmatprep.subr.bf16.mxu0 0
    %3606 = vmatpush1.bf16.msra.mxu0 0
    %3607 = vmatprep.mubr.bf16.mxu0 0
    %3608 = vmatmul.mubr.bf16.gmra.mrb[0].mxu0 %v2636
    %v3609 = vpop.f32.mrb[0].mxu0
    %v3610 = vadd.f32 %v2788, %v3609
    %v3611 = vpop.f32.mrb[0].mxu0
    %v3612 = vadd.f32 %v2792, %v3611
    %v3613 = vpop.f32.mrb[0].mxu0
    %v3614 = vadd.f32 %v2788, %v3613
    %v3615 = vpop.f32.mrb[0].mxu0
    %v3616 = vadd.f32 %v2792, %v3615
    %3617 = vdwg.mxu0
    %3618 = vmatprep.subr.bf16.mxu0 %v3240
    %3619 = vmatpush1.bf16.msra.mxu0 %v3239
    %3620 = vmatprep.subr.bf16.mxu0 %v3256
    %3621 = vmatpush1.bf16.msra.mxu0 %v3255
    %3622 = vmatprep.subr.bf16.mxu0 %v3272
    %3623 = vmatpush1.bf16.msra.mxu0 %v3271
    %3624 = vmatprep.subr.bf16.mxu0 %v3288
    %3625 = vmatpush1.bf16.msra.mxu0 %v3287
    %3626 = vmatprep.subr.bf16.mxu0 %v3304
    %3627 = vmatpush1.bf16.msra.mxu0 %v3303
    %3628 = vmatprep.subr.bf16.mxu0 %v3320
    %3629 = vmatpush1.bf16.msra.mxu0 %v3319
    %3630 = vmatprep.subr.bf16.mxu0 %v3336
    %3631 = vmatpush1.bf16.msra.mxu0 %v3335
    %3632 = vmatprep.subr.bf16.mxu0 %v3352
    %3633 = vmatpush1.bf16.msra.mxu0 %v3351
    %3634 = vmatprep.subr.bf16.mxu0 0
    %3635 = vmatpush1.bf16.msra.mxu0 0
    %3636 = vmatprep.subr.bf16.mxu0 0
    %3637 = vmatpush1.bf16.msra.mxu0 0
    %3638 = vmatprep.subr.bf16.mxu0 0
    %3639 = vmatpush1.bf16.msra.mxu0 0
    %3640 = vmatprep.subr.bf16.mxu0 0
    %3641 = vmatpush1.bf16.msra.mxu0 0
    %3642 = vmatprep.subr.bf16.mxu0 0
    %3643 = vmatpush1.bf16.msra.mxu0 0
    %3644 = vmatprep.subr.bf16.mxu0 0
    %3645 = vmatpush1.bf16.msra.mxu0 0
    %3646 = vmatprep.subr.bf16.mxu0 0
    %3647 = vmatpush1.bf16.msra.mxu0 0
    %3648 = vmatprep.subr.bf16.mxu0 0
    %3649 = vmatpush1.bf16.msra.mxu0 0
    %3650 = vmatprep.mubr.bf16.mxu0 0
    %3651 = vmatmul.mubr.bf16.gmra.mrb[0].mxu0 %v2636
    %v3652 = vpop.f32.mrb[0].mxu0
    %v3653 = vadd.f32 %v2796, %v3652
    %v3654 = vpop.f32.mrb[0].mxu0
    %v3655 = vadd.f32 %v2800, %v3654
    %v3656 = vpop.f32.mrb[0].mxu0
    %v3657 = vadd.f32 %v2796, %v3656
    %v3658 = vpop.f32.mrb[0].mxu0
    %v3659 = vadd.f32 %v2800, %v3658
    %3660 = vdwg.mxu0
    %3661 = vmatprep.subr.bf16.mxu0 %v3242
    %3662 = vmatpush1.bf16.msra.mxu0 %v3241
    %3663 = vmatprep.subr.bf16.mxu0 %v3258
    %3664 = vmatpush1.bf16.msra.mxu0 %v3257
    %3665 = vmatprep.subr.bf16.mxu0 %v3274
    %3666 = vmatpush1.bf16.msra.mxu0 %v3273
    %3667 = vmatprep.subr.bf16.mxu0 %v3290
    %3668 = vmatpush1.bf16.msra.mxu0 %v3289
    %3669 = vmatprep.subr.bf16.mxu0 %v3306
    %3670 = vmatpush1.bf16.msra.mxu0 %v3305
    %3671 = vmatprep.subr.bf16.mxu0 %v3322
    %3672 = vmatpush1.bf16.msra.mxu0 %v3321
    %3673 = vmatprep.subr.bf16.mxu0 %v3338
    %3674 = vmatpush1.bf16.msra.mxu0 %v3337
    %3675 = vmatprep.subr.bf16.mxu0 %v3354
    %3676 = vmatpush1.bf16.msra.mxu0 %v3353
    %3677 = vmatprep.subr.bf16.mxu0 0
    %3678 = vmatpush1.bf16.msra.mxu0 0
    %3679 = vmatprep.subr.bf16.mxu0 0
    %3680 = vmatpush1.bf16.msra.mxu0 0
    %3681 = vmatprep.subr.bf16.mxu0 0
    %3682 = vmatpush1.bf16.msra.mxu0 0
    %3683 = vmatprep.subr.bf16.mxu0 0
    %3684 = vmatpush1.bf16.msra.mxu0 0
    %3685 = vmatprep.subr.bf16.mxu0 0
    %3686 = vmatpush1.bf16.msra.mxu0 0
    %3687 = vmatprep.subr.bf16.mxu0 0
    %3688 = vmatpush1.bf16.msra.mxu0 0
    %3689 = vmatprep.subr.bf16.mxu0 0
    %3690 = vmatpush1.bf16.msra.mxu0 0
    %3691 = vmatprep.subr.bf16.mxu0 0
    %3692 = vmatpush1.bf16.msra.mxu0 0
    %3693 = vmatprep.mubr.bf16.mxu0 0
    %3694 = vmatmul.mubr.bf16.gmra.mrb[0].mxu0 %v2636
    %v3695 = vpop.f32.mrb[0].mxu0
    %v3696 = vadd.f32 %v2804, %v3695
    %v3697 = vpop.f32.mrb[0].mxu0
    %v3698 = vadd.f32 %v2808, %v3697
    %v3699 = vpop.f32.mrb[0].mxu0
    %v3700 = vadd.f32 %v2804, %v3699
    %v3701 = vpop.f32.mrb[0].mxu0
    %v3702 = vadd.f32 %v2808, %v3701
    %3703 = vdwg.mxu0
    %3704 = vmatprep.subr.bf16.mxu0 %v3244
    %3705 = vmatpush1.bf16.msra.mxu0 %v3243
    %3706 = vmatprep.subr.bf16.mxu0 %v3260
    %3707 = vmatpush1.bf16.msra.mxu0 %v3259
    %3708 = vmatprep.subr.bf16.mxu0 %v3276
    %3709 = vmatpush1.bf16.msra.mxu0 %v3275
    %3710 = vmatprep.subr.bf16.mxu0 %v3292
    %3711 = vmatpush1.bf16.msra.mxu0 %v3291
    %3712 = vmatprep.subr.bf16.mxu0 %v3308
    %3713 = vmatpush1.bf16.msra.mxu0 %v3307
    %3714 = vmatprep.subr.bf16.mxu0 %v3324
    %3715 = vmatpush1.bf16.msra.mxu0 %v3323
    %3716 = vmatprep.subr.bf16.mxu0 %v3340
    %3717 = vmatpush1.bf16.msra.mxu0 %v3339
    %3718 = vmatprep.subr.bf16.mxu0 %v3356
    %3719 = vmatpush1.bf16.msra.mxu0 %v3355
    %3720 = vmatprep.subr.bf16.mxu0 0
    %3721 = vmatpush1.bf16.msra.mxu0 0
    %3722 = vmatprep.subr.bf16.mxu0 0
    %3723 = vmatpush1.bf16.msra.mxu0 0
    %3724 = vmatprep.subr.bf16.mxu0 0
    %3725 = vmatpush1.bf16.msra.mxu0 0
    %3726 = vmatprep.subr.bf16.mxu0 0
    %3727 = vmatpush1.bf16.msra.mxu0 0
    %3728 = vmatprep.subr.bf16.mxu0 0
    %3729 = vmatpush1.bf16.msra.mxu0 0
    %3730 = vmatprep.subr.bf16.mxu0 0
    %3731 = vmatpush1.bf16.msra.mxu0 0
    %3732 = vmatprep.subr.bf16.mxu0 0
    %3733 = vmatpush1.bf16.msra.mxu0 0
    %3734 = vmatprep.subr.bf16.mxu0 0
    %3735 = vmatpush1.bf16.msra.mxu0 0
    %3736 = vmatprep.mubr.bf16.mxu0 0
    %3737 = vmatmul.mubr.bf16.gmra.mrb[0].mxu0 %v2636
    %v3738 = vpop.f32.mrb[0].mxu0
    %v3739 = vadd.f32 %v2812, %v3738
    %v3740 = vpop.f32.mrb[0].mxu0
    %v3741 = vadd.f32 %v2816, %v3740
    %v3742 = vpop.f32.mrb[0].mxu0
    %v3743 = vadd.f32 %v2812, %v3742
    %v3744 = vpop.f32.mrb[0].mxu0
    %v3745 = vadd.f32 %v2816, %v3744
    %3746 = vdwg.mxu0
    %3747 = vmatprep.subr.bf16.mxu0 %v3246
    %3748 = vmatpush1.bf16.msra.mxu0 %v3245
    %3749 = vmatprep.subr.bf16.mxu0 %v3262
    %3750 = vmatpush1.bf16.msra.mxu0 %v3261
    %3751 = vmatprep.subr.bf16.mxu0 %v3278
    %3752 = vmatpush1.bf16.msra.mxu0 %v3277
    %3753 = vmatprep.subr.bf16.mxu0 %v3294
    %3754 = vmatpush1.bf16.msra.mxu0 %v3293
    %3755 = vmatprep.subr.bf16.mxu0 %v3310
    %3756 = vmatpush1.bf16.msra.mxu0 %v3309
    %3757 = vmatprep.subr.bf16.mxu0 %v3326
    %3758 = vmatpush1.bf16.msra.mxu0 %v3325
    %3759 = vmatprep.subr.bf16.mxu0 %v3342
    %3760 = vmatpush1.bf16.msra.mxu0 %v3341
    %3761 = vmatprep.subr.bf16.mxu0 %v3358
    %3762 = vmatpush1.bf16.msra.mxu0 %v3357
    %3763 = vmatprep.subr.bf16.mxu0 0
    %3764 = vmatpush1.bf16.msra.mxu0 0
    %3765 = vmatprep.subr.bf16.mxu0 0
    %3766 = vmatpush1.bf16.msra.mxu0 0
    %3767 = vmatprep.subr.bf16.mxu0 0
    %3768 = vmatpush1.bf16.msra.mxu0 0
    %3769 = vmatprep.subr.bf16.mxu0 0
    %3770 = vmatpush1.bf16.msra.mxu0 0
    %3771 = vmatprep.subr.bf16.mxu0 0
    %3772 = vmatpush1.bf16.msra.mxu0 0
    %3773 = vmatprep.subr.bf16.mxu0 0
    %3774 = vmatpush1.bf16.msra.mxu0 0
    %3775 = vmatprep.subr.bf16.mxu0 0
    %3776 = vmatpush1.bf16.msra.mxu0 0
    %3777 = vmatprep.subr.bf16.mxu0 0
    %3778 = vmatpush1.bf16.msra.mxu0 0
    %3779 = vmatprep.mubr.bf16.mxu0 0
    %3780 = vmatmul.mubr.bf16.gmra.mrb[0].mxu0 %v2636
    %v3781 = vpop.f32.mrb[0].mxu0
    %v3782 = vadd.f32 %v2820, %v3781
    %v3783 = vpop.f32.mrb[0].mxu0
    %v3784 = vadd.f32 %v2824, %v3783
    %v3785 = vpop.f32.mrb[0].mxu0
    %v3786 = vadd.f32 %v2820, %v3785
    %v3787 = vpop.f32.mrb[0].mxu0
    %v3788 = vadd.f32 %v2824, %v3787
    %3789 = vdwg.mxu0
    %3790 = vmatprep.subr.bf16.mxu0 %v3248
    %3791 = vmatpush1.bf16.msra.mxu0 %v3247
    %3792 = vmatprep.subr.bf16.mxu0 %v3264
    %3793 = vmatpush1.bf16.msra.mxu0 %v3263
    %3794 = vmatprep.subr.bf16.mxu0 %v3280
    %3795 = vmatpush1.bf16.msra.mxu0 %v3279
    %3796 = vmatprep.subr.bf16.mxu0 %v3296
    %3797 = vmatpush1.bf16.msra.mxu0 %v3295
    %3798 = vmatprep.subr.bf16.mxu0 %v3312
    %3799 = vmatpush1.bf16.msra.mxu0 %v3311
    %3800 = vmatprep.subr.bf16.mxu0 %v3328
    %3801 = vmatpush1.bf16.msra.mxu0 %v3327
    %3802 = vmatprep.subr.bf16.mxu0 %v3344
    %3803 = vmatpush1.bf16.msra.mxu0 %v3343
    %3804 = vmatprep.subr.bf16.mxu0 %v3360
    %3805 = vmatpush1.bf16.msra.mxu0 %v3359
    %3806 = vmatprep.subr.bf16.mxu0 0
    %3807 = vmatpush1.bf16.msra.mxu0 0
    %3808 = vmatprep.subr.bf16.mxu0 0
    %3809 = vmatpush1.bf16.msra.mxu0 0
    %3810 = vmatprep.subr.bf16.mxu0 0
    %3811 = vmatpush1.bf16.msra.mxu0 0
    %3812 = vmatprep.subr.bf16.mxu0 0
    %3813 = vmatpush1.bf16.msra.mxu0 0
    %3814 = vmatprep.subr.bf16.mxu0 0
    %3815 = vmatpush1.bf16.msra.mxu0 0
    %3816 = vmatprep.subr.bf16.mxu0 0
    %3817 = vmatpush1.bf16.msra.mxu0 0
    %3818 = vmatprep.subr.bf16.mxu0 0
    %3819 = vmatpush1.bf16.msra.mxu0 0
    %3820 = vmatprep.subr.bf16.mxu0 0
    %3821 = vmatpush1.bf16.msra.mxu0 0
    %3822 = vmatprep.mubr.bf16.mxu0 0
    %3823 = vmatmul.mubr.bf16.gmra.mrb[0].mxu0 %v2636
    %v3824 = vpop.f32.mrb[0].mxu0
    %v3825 = vadd.f32 %v2828, %v3824
    %v3826 = vpop.f32.mrb[0].mxu0
    %v3827 = vadd.f32 %v2832, %v3826
    %v3828 = vpop.f32.mrb[0].mxu0
    %v3829 = vadd.f32 %v2828, %v3828
    %v3830 = vpop.f32.mrb[0].mxu0
    %v3831 = vadd.f32 %v2832, %v3830
    %3832 = vdwg.mxu0
    %3833 = vmatprep.subr.mxu0 0.0
    %3834 = vmatpush1.xpose.msra.mxu0 %v3739
    %3835 = vmatprep.subr.mxu0 0.0
    %3836 = vmatpush1.xpose.msra.mxu0 %v3743
    %3837 = vmatprep.subr.mxu0 0.0
    %3838 = vmatpush1.xpose.msra.mxu0 0.0
    %3839 = vmatprep.subr.mxu0 0.0
    %3840 = vmatpush1.xpose.msra.mxu0 0.0
    %3841 = vmatprep.subr.mxu0 0.0
    %3842 = vmatpush1.xpose.msra.mxu0 0.0
    %3843 = vmatprep.subr.mxu0 0.0
    %3844 = vmatpush1.xpose.msra.mxu0 0.0
    %3845 = vmatprep.subr.mxu0 0.0
    %3846 = vmatpush1.xpose.msra.mxu0 0.0
    %3847 = vmatprep.subr.mxu0 0.0
    %3848 = vmatpush1.xpose.msra.mxu0 0.0
    %3849 = vmatprep.subr.mxu0 0.0
    %3850 = vmatpush1.xpose.msra.mxu0 0.0
    %3851 = vmatprep.subr.mxu0 0.0
    %3852 = vmatpush1.xpose.msra.mxu0 0.0
    %3853 = vmatprep.subr.mxu0 0.0
    %3854 = vmatpush1.xpose.msra.mxu0 0.0
    %3855 = vmatprep.subr.mxu0 0.0
    %3856 = vmatpush1.xpose.msra.mxu0 0.0
    %3857 = vmatprep.subr.mxu0 0.0
    %3858 = vmatpush1.xpose.msra.mxu0 0.0
    %3859 = vmatprep.subr.mxu0 0.0
    %3860 = vmatpush1.xpose.msra.mxu0 0.0
    %3861 = vmatprep.subr.mxu0 0.0
    %3862 = vmatpush1.xpose.msra.mxu0 0.0
    %3863 = vmatprep.subr.mxu0 0.0
    %3864 = vmatpush1.xpose.msra.mxu0 0.0
    %3865 = vmatprep.subr.mxu0 0.0
    %3866 = vmatpush1.xpose.msra.mxu0 0.0
    %3867 = vmatprep.subr.mxu0 0.0
    %3868 = vmatpush1.xpose.msra.mxu0 0.0
    %3869 = vmatprep.subr.mxu0 0.0
    %3870 = vmatpush1.xpose.msra.mxu0 0.0
    %3871 = vmatprep.subr.mxu0 0.0
    %3872 = vmatpush1.xpose.msra.mxu0 0.0
    %3873 = vmatprep.subr.mxu0 0.0
    %3874 = vmatpush1.xpose.msra.mxu0 0.0
    %3875 = vmatprep.subr.mxu0 0.0
    %3876 = vmatpush1.xpose.msra.mxu0 0.0
    %3877 = vmatprep.subr.mxu0 0.0
    %3878 = vmatpush1.xpose.msra.mxu0 0.0
    %3879 = vmatprep.subr.mxu0 0.0
    %3880 = vmatpush1.xpose.msra.mxu0 0.0
    %3881 = vmatprep.subr.mxu0 0.0
    %3882 = vmatpush1.xpose.msra.mxu0 0.0
    %3883 = vmatprep.subr.mxu0 0.0
    %3884 = vmatpush1.xpose.msra.mxu0 0.0
    %3885 = vmatprep.subr.mxu0 0.0
    %3886 = vmatpush1.xpose.msra.mxu0 0.0
    %3887 = vmatprep.subr.mxu0 0.0
    %3888 = vmatpush1.xpose.msra.mxu0 0.0
    %3889 = vmatprep.subr.mxu0 0.0
    %3890 = vmatpush1.xpose.msra.mxu0 0.0
    %3891 = vmatprep.subr.mxu0 0.0
    %3892 = vmatpush1.xpose.msra.mxu0 0.0
    %3893 = vmatprep.subr.mxu0 0.0
    %3894 = vmatpush1.xpose.msra.mxu0 0.0
    %3895 = vmatprep.subr.mxu0 0.0
    %3896 = vmatpush1.xpose.msra.mxu0 0.0
    %3897 = vmatprep.mubr.f32.mxu0 0.0
    %3898 = vmatmul.mubr.f32.gmra.mrb[0].mxu0 %v3784
    %v3899 = vpop.f32.mrb[0].mxu0
    %v3900 = vadd.f32 0.0, %v3899
    %v3901 = vpop.f32.mrb[0].mxu0
    %3902 = vmatprep.mubr.f32.mxu0 0.0
    %3903 = vmatmul.mubr.f32.gmra.mrb[0].mxu0 %v3788
    %v3904 = vpop.f32.mrb[0].mxu0
    %v3905 = vadd.f32 0.0, %v3904
    %v3906 = vpop.f32.mrb[0].mxu0
    %3907 = vdwg.mxu0
    %v3908 = vmul.f32 %v3900, 0.015625
    %v3909 = vmul.f32 %v3905, 0.015625
    %v3910 = vld [vmem:[%s43] sm:$0xff]
    %v3911 = vld [vmem:[%s43 + $0x8] sm:$0x3f]
    %v3912 = vtanh.pop %v3908
    %v3913 = vtanh.pop %v3909
    %v3914 = vstv %s2635
    %v3915 = vmul.f32 %v3912, %v3914
    %v3916 = vmul.f32 %v3913, %v3914
    %v3917 = vmul.f32 %v172, %v3915
    %v3918 = vmul.f32 %v173, %v3916
    %v3919 = vadd.f32 %v3910, %v3917
    %v3920 = vadd.f32 %v3911, %v3918
    %3921 = vmatprep.subr.mxu0 0.0
    %3922 = vmatpush1.xpose.msra.mxu0 %v3741
    %3923 = vmatprep.subr.mxu0 0.0
    %3924 = vmatpush1.xpose.msra.mxu0 %v3745
    %3925 = vmatprep.subr.mxu0 0.0
    %3926 = vmatpush1.xpose.msra.mxu0 0.0
    %3927 = vmatprep.subr.mxu0 0.0
    %3928 = vmatpush1.xpose.msra.mxu0 0.0
    %3929 = vmatprep.subr.mxu0 0.0
    %3930 = vmatpush1.xpose.msra.mxu0 0.0
    %3931 = vmatprep.subr.mxu0 0.0
    %3932 = vmatpush1.xpose.msra.mxu0 0.0
    %3933 = vmatprep.subr.mxu0 0.0
    %3934 = vmatpush1.xpose.msra.mxu0 0.0
    %3935 = vmatprep.subr.mxu0 0.0
    %3936 = vmatpush1.xpose.msra.mxu0 0.0
    %3937 = vmatprep.subr.mxu0 0.0
    %3938 = vmatpush1.xpose.msra.mxu0 0.0
    %3939 = vmatprep.subr.mxu0 0.0
    %3940 = vmatpush1.xpose.msra.mxu0 0.0
    %3941 = vmatprep.subr.mxu0 0.0
    %3942 = vmatpush1.xpose.msra.mxu0 0.0
    %3943 = vmatprep.subr.mxu0 0.0
    %3944 = vmatpush1.xpose.msra.mxu0 0.0
    %3945 = vmatprep.subr.mxu0 0.0
    %3946 = vmatpush1.xpose.msra.mxu0 0.0
    %3947 = vmatprep.subr.mxu0 0.0
    %3948 = vmatpush1.xpose.msra.mxu0 0.0
    %3949 = vmatprep.subr.mxu0 0.0
    %3950 = vmatpush1.xpose.msra.mxu0 0.0
    %3951 = vmatprep.subr.mxu0 0.0
    %3952 = vmatpush1.xpose.msra.mxu0 0.0
    %3953 = vmatprep.subr.mxu0 0.0
    %3954 = vmatpush1.xpose.msra.mxu0 0.0
    %3955 = vmatprep.subr.mxu0 0.0
    %3956 = vmatpush1.xpose.msra.mxu0 0.0
    %3957 = vmatprep.subr.mxu0 0.0
    %3958 = vmatpush1.xpose.msra.mxu0 0.0
    %3959 = vmatprep.subr.mxu0 0.0
    %3960 = vmatpush1.xpose.msra.mxu0 0.0
    %3961 = vmatprep.subr.mxu0 0.0
    %3962 = vmatpush1.xpose.msra.mxu0 0.0
    %3963 = vmatprep.subr.mxu0 0.0
    %3964 = vmatpush1.xpose.msra.mxu0 0.0
    %3965 = vmatprep.subr.mxu0 0.0
    %3966 = vmatpush1.xpose.msra.mxu0 0.0
    %3967 = vmatprep.subr.mxu0 0.0
    %3968 = vmatpush1.xpose.msra.mxu0 0.0
    %3969 = vmatprep.subr.mxu0 0.0
    %3970 = vmatpush1.xpose.msra.mxu0 0.0
    %3971 = vmatprep.subr.mxu0 0.0
    %3972 = vmatpush1.xpose.msra.mxu0 0.0
    %3973 = vmatprep.subr.mxu0 0.0
    %3974 = vmatpush1.xpose.msra.mxu0 0.0
    %3975 = vmatprep.subr.mxu0 0.0
    %3976 = vmatpush1.xpose.msra.mxu0 0.0
    %3977 = vmatprep.subr.mxu0 0.0
    %3978 = vmatpush1.xpose.msra.mxu0 0.0
    %3979 = vmatprep.subr.mxu0 0.0
    %3980 = vmatpush1.xpose.msra.mxu0 0.0
    %3981 = vmatprep.subr.mxu0 0.0
    %3982 = vmatpush1.xpose.msra.mxu0 0.0
    %3983 = vmatprep.subr.mxu0 0.0
    %3984 = vmatpush1.xpose.msra.mxu0 0.0
    %3985 = vmatprep.mubr.f32.mxu0 0.0
    %3986 = vmatmul.mubr.f32.gmra.mrb[0].mxu0 %v3825
    %v3987 = vpop.f32.mrb[0].mxu0
    %v3988 = vadd.f32 0.0, %v3987
    %v3989 = vpop.f32.mrb[0].mxu0
    %3990 = vmatprep.mubr.f32.mxu0 0.0
    %3991 = vmatmul.mubr.f32.gmra.mrb[0].mxu0 %v3829
    %v3992 = vpop.f32.mrb[0].mxu0
    %v3993 = vadd.f32 0.0, %v3992
    %v3994 = vpop.f32.mrb[0].mxu0
    %3995 = vdwg.mxu0
    %v3996 = vmul.f32 %v3988, 0.015625
    %v3997 = vmul.f32 %v3993, 0.015625
    %s3998 = scalar_lea.vmem %s43, 16
    %v3999 = vld [vmem:[%s3998] sm:$0xff]
    %v4000 = vld [vmem:[%s3998 + $0x8] sm:$0x3f]
    %v4001 = vtanh.pop %v3996
    %v4002 = vtanh.pop %v3997
    %v4003 = vmul.f32 %v4001, %v3914
    %v4004 = vmul.f32 %v4002, %v3914
    %v4005 = vmul.f32 %v172, %v4003
    %v4006 = vmul.f32 %v173, %v4004
    %v4007 = vadd.f32 %v3999, %v4005
    %v4008 = vadd.f32 %v4000, %v4006
    %v4010 = vsel %vm809, %v4007, 0
    %v4013 = vsel %vm809, %v4008, 0
    %v4016 = vsel %vm816, %v3571, 0
    %v4019 = vsel %vm816, %v3573, 0
    %4021 = vmatprep.subr.mxu0 %v3569
    %4022 = vmatpush1.msra.mxu0 %v3567
    %4023 = vmatprep.subr.mxu0 %v4019
    %4024 = vmatpush1.msra.mxu0 %v4016
    %4025 = vmatprep.subr.mxu0 0.0
    %4026 = vmatpush1.msra.mxu0 0.0
    %4027 = vmatprep.subr.mxu0 0.0
    %4028 = vmatpush1.msra.mxu0 0.0
    %4029 = vmatprep.subr.mxu0 0.0
    %4030 = vmatpush1.msra.mxu0 0.0
    %4031 = vmatprep.subr.mxu0 0.0
    %4032 = vmatpush1.msra.mxu0 0.0
    %4033 = vmatprep.subr.mxu0 0.0
    %4034 = vmatpush1.msra.mxu0 0.0
    %4035 = vmatprep.subr.mxu0 0.0
    %4036 = vmatpush1.msra.mxu0 0.0
    %4037 = vmatprep.subr.mxu0 0.0
    %4038 = vmatpush1.msra.mxu0 0.0
    %4039 = vmatprep.subr.mxu0 0.0
    %4040 = vmatpush1.msra.mxu0 0.0
    %4041 = vmatprep.subr.mxu0 0.0
    %4042 = vmatpush1.msra.mxu0 0.0
    %4043 = vmatprep.subr.mxu0 0.0
    %4044 = vmatpush1.msra.mxu0 0.0
    %4045 = vmatprep.subr.mxu0 0.0
    %4046 = vmatpush1.msra.mxu0 0.0
    %4047 = vmatprep.subr.mxu0 0.0
    %4048 = vmatpush1.msra.mxu0 0.0
    %4049 = vmatprep.subr.mxu0 0.0
    %4050 = vmatpush1.msra.mxu0 0.0
    %4051 = vmatprep.subr.mxu0 0.0
    %4052 = vmatpush1.msra.mxu0 0.0
    %4053 = vmatprep.subr.mxu0 0.0
    %4054 = vmatpush1.msra.mxu0 0.0
    %4055 = vmatprep.subr.mxu0 0.0
    %4056 = vmatpush1.msra.mxu0 0.0
    %4057 = vmatprep.subr.mxu0 0.0
    %4058 = vmatpush1.msra.mxu0 0.0
    %4059 = vmatprep.subr.mxu0 0.0
    %4060 = vmatpush1.msra.mxu0 0.0
    %4061 = vmatprep.subr.mxu0 0.0
    %4062 = vmatpush1.msra.mxu0 0.0
    %4063 = vmatprep.subr.mxu0 0.0
    %4064 = vmatpush1.msra.mxu0 0.0
    %4065 = vmatprep.subr.mxu0 0.0
    %4066 = vmatpush1.msra.mxu0 0.0
    %4067 = vmatprep.subr.mxu0 0.0
    %4068 = vmatpush1.msra.mxu0 0.0
    %4069 = vmatprep.subr.mxu0 0.0
    %4070 = vmatpush1.msra.mxu0 0.0
    %4071 = vmatprep.subr.mxu0 0.0
    %4072 = vmatpush1.msra.mxu0 0.0
    %4073 = vmatprep.subr.mxu0 0.0
    %4074 = vmatpush1.msra.mxu0 0.0
    %4075 = vmatprep.subr.mxu0 0.0
    %4076 = vmatpush1.msra.mxu0 0.0
    %4077 = vmatprep.subr.mxu0 0.0
    %4078 = vmatpush1.msra.mxu0 0.0
    %4079 = vmatprep.subr.mxu0 0.0
    %4080 = vmatpush1.msra.mxu0 0.0
    %4081 = vmatprep.subr.mxu0 0.0
    %4082 = vmatpush1.msra.mxu0 0.0
    %4083 = vmatprep.subr.mxu0 0.0
    %4084 = vmatpush1.msra.mxu0 0.0
    %4085 = vmatprep.mubr.f32.mxu0 0.0
    %4086 = vmatmul.mubr.f32.gmra.mrb[0].mxu0 %v4010
    %v4087 = vpop.f32.mrb[0].mxu0
    %v4088 = vadd.f32 0.0, %v4087
    %v4089 = vpop.f32.mrb[0].mxu0
    %v4090 = vadd.f32 0.0, %v4089
    %4091 = vmatprep.mubr.f32.mxu0 0.0
    %4092 = vmatmul.mubr.f32.gmra.mrb[0].mxu0 %v4013
    %v4093 = vpop.f32.mrb[0].mxu0
    %v4094 = vadd.f32 0.0, %v4093
    %v4095 = vpop.f32.mrb[0].mxu0
    %v4096 = vadd.f32 0.0, %v4095
    %4097 = vdwg.mxu0
    %v4099 = vsel %vm809, %v3919, 0
    %v4102 = vsel %vm809, %v3920, 0
    %v4105 = vsel %vm816, %v3528, 0
    %v4108 = vsel %vm816, %v3530, 0
    %4110 = vmatprep.subr.mxu0 %v3526
    %4111 = vmatpush1.msra.mxu0 %v3524
    %4112 = vmatprep.subr.mxu0 %v4108
    %4113 = vmatpush1.msra.mxu0 %v4105
    %4114 = vmatprep.subr.mxu0 0.0
    %4115 = vmatpush1.msra.mxu0 0.0
    %4116 = vmatprep.subr.mxu0 0.0
    %4117 = vmatpush1.msra.mxu0 0.0
    %4118 = vmatprep.subr.mxu0 0.0
    %4119 = vmatpush1.msra.mxu0 0.0
    %4120 = vmatprep.subr.mxu0 0.0
    %4121 = vmatpush1.msra.mxu0 0.0
    %4122 = vmatprep.subr.mxu0 0.0
    %4123 = vmatpush1.msra.mxu0 0.0
    %4124 = vmatprep.subr.mxu0 0.0
    %4125 = vmatpush1.msra.mxu0 0.0
    %4126 = vmatprep.subr.mxu0 0.0
    %4127 = vmatpush1.msra.mxu0 0.0
    %4128 = vmatprep.subr.mxu0 0.0
    %4129 = vmatpush1.msra.mxu0 0.0
    %4130 = vmatprep.subr.mxu0 0.0
    %4131 = vmatpush1.msra.mxu0 0.0
    %4132 = vmatprep.subr.mxu0 0.0
    %4133 = vmatpush1.msra.mxu0 0.0
    %4134 = vmatprep.subr.mxu0 0.0
    %4135 = vmatpush1.msra.mxu0 0.0
    %4136 = vmatprep.subr.mxu0 0.0
    %4137 = vmatpush1.msra.mxu0 0.0
    %4138 = vmatprep.subr.mxu0 0.0
    %4139 = vmatpush1.msra.mxu0 0.0
    %4140 = vmatprep.subr.mxu0 0.0
    %4141 = vmatpush1.msra.mxu0 0.0
    %4142 = vmatprep.subr.mxu0 0.0
    %4143 = vmatpush1.msra.mxu0 0.0
    %4144 = vmatprep.subr.mxu0 0.0
    %4145 = vmatpush1.msra.mxu0 0.0
    %4146 = vmatprep.subr.mxu0 0.0
    %4147 = vmatpush1.msra.mxu0 0.0
    %4148 = vmatprep.subr.mxu0 0.0
    %4149 = vmatpush1.msra.mxu0 0.0
    %4150 = vmatprep.subr.mxu0 0.0
    %4151 = vmatpush1.msra.mxu0 0.0
    %4152 = vmatprep.subr.mxu0 0.0
    %4153 = vmatpush1.msra.mxu0 0.0
    %4154 = vmatprep.subr.mxu0 0.0
    %4155 = vmatpush1.msra.mxu0 0.0
    %4156 = vmatprep.subr.mxu0 0.0
    %4157 = vmatpush1.msra.mxu0 0.0
    %4158 = vmatprep.subr.mxu0 0.0
    %4159 = vmatpush1.msra.mxu0 0.0
    %4160 = vmatprep.subr.mxu0 0.0
    %4161 = vmatpush1.msra.mxu0 0.0
    %4162 = vmatprep.subr.mxu0 0.0
    %4163 = vmatpush1.msra.mxu0 0.0
    %4164 = vmatprep.subr.mxu0 0.0
    %4165 = vmatpush1.msra.mxu0 0.0
    %4166 = vmatprep.subr.mxu0 0.0
    %4167 = vmatpush1.msra.mxu0 0.0
    %4168 = vmatprep.subr.mxu0 0.0
    %4169 = vmatpush1.msra.mxu0 0.0
    %4170 = vmatprep.subr.mxu0 0.0
    %4171 = vmatpush1.msra.mxu0 0.0
    %4172 = vmatprep.subr.mxu0 0.0
    %4173 = vmatpush1.msra.mxu0 0.0
    %4174 = vmatprep.mubr.f32.mxu0 0.0
    %4175 = vmatmul.mubr.f32.gmra.mrb[0].mxu0 %v4099
    %v4176 = vpop.f32.mrb[0].mxu0
    %v4177 = vadd.f32 %v4088, %v4176
    %v4178 = vpop.f32.mrb[0].mxu0
    %v4179 = vadd.f32 %v4090, %v4178
    %4180 = vmatprep.mubr.f32.mxu0 0.0
    %4181 = vmatmul.mubr.f32.gmra.mrb[0].mxu0 %v4102
    %v4182 = vpop.f32.mrb[0].mxu0
    %v4183 = vadd.f32 %v4094, %v4182
    %v4184 = vpop.f32.mrb[0].mxu0
    %v4185 = vadd.f32 %v4096, %v4184
    %4186 = vdwg.mxu0
    %4187 = vmatprep.subr.mxu0 0.0
    %4188 = vmatpush1.xpose.msra.mxu0 %v3782
    %4189 = vmatprep.subr.mxu0 0.0
    %4190 = vmatpush1.xpose.msra.mxu0 %v3786
    %4191 = vmatprep.subr.mxu0 0.0
    %4192 = vmatpush1.xpose.msra.mxu0 0.0
    %4193 = vmatprep.subr.mxu0 0.0
    %4194 = vmatpush1.xpose.msra.mxu0 0.0
    %4195 = vmatprep.subr.mxu0 0.0
    %4196 = vmatpush1.xpose.msra.mxu0 0.0
    %4197 = vmatprep.subr.mxu0 0.0
    %4198 = vmatpush1.xpose.msra.mxu0 0.0
    %4199 = vmatprep.subr.mxu0 0.0
    %4200 = vmatpush1.xpose.msra.mxu0 0.0
    %4201 = vmatprep.subr.mxu0 0.0
    %4202 = vmatpush1.xpose.msra.mxu0 0.0
    %4203 = vmatprep.subr.mxu0 0.0
    %4204 = vmatpush1.xpose.msra.mxu0 0.0
    %4205 = vmatprep.subr.mxu0 0.0
    %4206 = vmatpush1.xpose.msra.mxu0 0.0
    %4207 = vmatprep.subr.mxu0 0.0
    %4208 = vmatpush1.xpose.msra.mxu0 0.0
    %4209 = vmatprep.subr.mxu0 0.0
    %4210 = vmatpush1.xpose.msra.mxu0 0.0
    %4211 = vmatprep.subr.mxu0 0.0
    %4212 = vmatpush1.xpose.msra.mxu0 0.0
    %4213 = vmatprep.subr.mxu0 0.0
    %4214 = vmatpush1.xpose.msra.mxu0 0.0
    %4215 = vmatprep.subr.mxu0 0.0
    %4216 = vmatpush1.xpose.msra.mxu0 0.0
    %4217 = vmatprep.subr.mxu0 0.0
    %4218 = vmatpush1.xpose.msra.mxu0 0.0
    %4219 = vmatprep.subr.mxu0 0.0
    %4220 = vmatpush1.xpose.msra.mxu0 0.0
    %4221 = vmatprep.subr.mxu0 0.0
    %4222 = vmatpush1.xpose.msra.mxu0 0.0
    %4223 = vmatprep.subr.mxu0 0.0
    %4224 = vmatpush1.xpose.msra.mxu0 0.0
    %4225 = vmatprep.subr.mxu0 0.0
    %4226 = vmatpush1.xpose.msra.mxu0 0.0
    %4227 = vmatprep.subr.mxu0 0.0
    %4228 = vmatpush1.xpose.msra.mxu0 0.0
    %4229 = vmatprep.subr.mxu0 0.0
    %4230 = vmatpush1.xpose.msra.mxu0 0.0
    %4231 = vmatprep.subr.mxu0 0.0
    %4232 = vmatpush1.xpose.msra.mxu0 0.0
    %4233 = vmatprep.subr.mxu0 0.0
    %4234 = vmatpush1.xpose.msra.mxu0 0.0
    %4235 = vmatprep.subr.mxu0 0.0
    %4236 = vmatpush1.xpose.msra.mxu0 0.0
    %4237 = vmatprep.subr.mxu0 0.0
    %4238 = vmatpush1.xpose.msra.mxu0 0.0
    %4239 = vmatprep.subr.mxu0 0.0
    %4240 = vmatpush1.xpose.msra.mxu0 0.0
    %4241 = vmatprep.subr.mxu0 0.0
    %4242 = vmatpush1.xpose.msra.mxu0 0.0
    %4243 = vmatprep.subr.mxu0 0.0
    %4244 = vmatpush1.xpose.msra.mxu0 0.0
    %4245 = vmatprep.subr.mxu0 0.0
    %4246 = vmatpush1.xpose.msra.mxu0 0.0
    %4247 = vmatprep.subr.mxu0 0.0
    %4248 = vmatpush1.xpose.msra.mxu0 0.0
    %4249 = vmatprep.subr.mxu0 0.0
    %4250 = vmatpush1.xpose.msra.mxu0 0.0
    %4251 = vmatprep.mubr.f32.mxu0 0.0
    %4252 = vmatmul.mubr.f32.gmra.mrb[0].mxu0 %v3827
    %v4253 = vpop.f32.mrb[0].mxu0
    %v4254 = vadd.f32 0.0, %v4253
    %v4255 = vpop.f32.mrb[0].mxu0
    %4256 = vmatprep.mubr.f32.mxu0 0.0
    %4257 = vmatmul.mubr.f32.gmra.mrb[0].mxu0 %v3831
    %v4258 = vpop.f32.mrb[0].mxu0
    %v4259 = vadd.f32 0.0, %v4258
    %v4260 = vpop.f32.mrb[0].mxu0
    %4261 = vdwg.mxu0
    %v4262 = vmul.f32 %v4254, 0.015625
    %v4263 = vmul.f32 %v4259, 0.015625
    %s4264 = scalar_lea.vmem %s43, 32
    %v4265 = vld [vmem:[%s4264] sm:$0xff]
    %v4266 = vld [vmem:[%s4264 + $0x8] sm:$0x3f]
    %v4267 = vtanh.pop %v4262
    %v4268 = vtanh.pop %v4263
    %v4269 = vmul.f32 %v4267, %v3914
    %v4270 = vmul.f32 %v4268, %v3914
    %v4271 = vmul.f32 %v172, %v4269
    %v4272 = vmul.f32 %v173, %v4270
    %v4273 = vadd.f32 %v4265, %v4271
    %v4274 = vadd.f32 %v4266, %v4272
    %v4276 = vsel %vm809, %v4273, 0
    %v4279 = vsel %vm809, %v4274, 0
    %v4282 = vsel %vm816, %v3614, 0
    %v4285 = vsel %vm816, %v3616, 0
    %4287 = vmatprep.subr.mxu0 %v3612
    %4288 = vmatpush1.msra.mxu0 %v3610
    %4289 = vmatprep.subr.mxu0 %v4285
    %4290 = vmatpush1.msra.mxu0 %v4282
    %4291 = vmatprep.subr.mxu0 0.0
    %4292 = vmatpush1.msra.mxu0 0.0
    %4293 = vmatprep.subr.mxu0 0.0
    %4294 = vmatpush1.msra.mxu0 0.0
    %4295 = vmatprep.subr.mxu0 0.0
    %4296 = vmatpush1.msra.mxu0 0.0
    %4297 = vmatprep.subr.mxu0 0.0
    %4298 = vmatpush1.msra.mxu0 0.0
    %4299 = vmatprep.subr.mxu0 0.0
    %4300 = vmatpush1.msra.mxu0 0.0
    %4301 = vmatprep.subr.mxu0 0.0
    %4302 = vmatpush1.msra.mxu0 0.0
    %4303 = vmatprep.subr.mxu0 0.0
    %4304 = vmatpush1.msra.mxu0 0.0
    %4305 = vmatprep.subr.mxu0 0.0
    %4306 = vmatpush1.msra.mxu0 0.0
    %4307 = vmatprep.subr.mxu0 0.0
    %4308 = vmatpush1.msra.mxu0 0.0
    %4309 = vmatprep.subr.mxu0 0.0
    %4310 = vmatpush1.msra.mxu0 0.0
    %4311 = vmatprep.subr.mxu0 0.0
    %4312 = vmatpush1.msra.mxu0 0.0
    %4313 = vmatprep.subr.mxu0 0.0
    %4314 = vmatpush1.msra.mxu0 0.0
    %4315 = vmatprep.subr.mxu0 0.0
    %4316 = vmatpush1.msra.mxu0 0.0
    %4317 = vmatprep.subr.mxu0 0.0
    %4318 = vmatpush1.msra.mxu0 0.0
    %4319 = vmatprep.subr.mxu0 0.0
    %4320 = vmatpush1.msra.mxu0 0.0
    %4321 = vmatprep.subr.mxu0 0.0
    %4322 = vmatpush1.msra.mxu0 0.0
    %4323 = vmatprep.subr.mxu0 0.0
    %4324 = vmatpush1.msra.mxu0 0.0
    %4325 = vmatprep.subr.mxu0 0.0
    %4326 = vmatpush1.msra.mxu0 0.0
    %4327 = vmatprep.subr.mxu0 0.0
    %4328 = vmatpush1.msra.mxu0 0.0
    %4329 = vmatprep.subr.mxu0 0.0
    %4330 = vmatpush1.msra.mxu0 0.0
    %4331 = vmatprep.subr.mxu0 0.0
    %4332 = vmatpush1.msra.mxu0 0.0
    %4333 = vmatprep.subr.mxu0 0.0
    %4334 = vmatpush1.msra.mxu0 0.0
    %4335 = vmatprep.subr.mxu0 0.0
    %4336 = vmatpush1.msra.mxu0 0.0
    %4337 = vmatprep.subr.mxu0 0.0
    %4338 = vmatpush1.msra.mxu0 0.0
    %4339 = vmatprep.subr.mxu0 0.0
    %4340 = vmatpush1.msra.mxu0 0.0
    %4341 = vmatprep.subr.mxu0 0.0
    %4342 = vmatpush1.msra.mxu0 0.0
    %4343 = vmatprep.subr.mxu0 0.0
    %4344 = vmatpush1.msra.mxu0 0.0
    %4345 = vmatprep.subr.mxu0 0.0
    %4346 = vmatpush1.msra.mxu0 0.0
    %4347 = vmatprep.subr.mxu0 0.0
    %4348 = vmatpush1.msra.mxu0 0.0
    %4349 = vmatprep.subr.mxu0 0.0
    %4350 = vmatpush1.msra.mxu0 0.0
    %4351 = vmatprep.mubr.f32.mxu0 0.0
    %4352 = vmatmul.mubr.f32.gmra.mrb[0].mxu0 %v4276
    %v4353 = vpop.f32.mrb[0].mxu0
    %v4354 = vadd.f32 0.0, %v4353
    %v4355 = vpop.f32.mrb[0].mxu0
    %v4356 = vadd.f32 0.0, %v4355
    %4357 = vmatprep.mubr.f32.mxu0 0.0
    %4358 = vmatmul.mubr.f32.gmra.mrb[0].mxu0 %v4279
    %v4359 = vpop.f32.mrb[0].mxu0
    %v4360 = vadd.f32 0.0, %v4359
    %v4361 = vpop.f32.mrb[0].mxu0
    %v4362 = vadd.f32 0.0, %v4361
    %4363 = vdwg.mxu0
    %v4364 = vadd.f32 %v4177, %v4354
    %v4365 = vadd.f32 %v4179, %v4356
    %v4366 = vadd.f32 %v4183, %v4360
    %v4367 = vadd.f32 %v4185, %v4362
    %v4368 = vld [vmem:[%s41] sm:$0x3]
    %v4370 = vlaneseq
    %v4371 = vshrl.u32 %v4370, 7
    %v4372 = vsub.s32 0, %v4371
    %v4373 = vrot.slane %v4368, %v4372
    %v4374 = vlaneseq
    %v4375 = vshrl.u32 %v4374, 7
    %v4376 = vsub.s32 1, %v4375
    %v4377 = vrot.slane %v4368, %v4376
    %v4380 = vadd.f32 %v4364, %v4373
    %v4381 = vadd.f32 %v4365, %v4377
    %v4382 = vadd.f32 %v4366, %v4373
    %v4383 = vadd.f32 %v4367, %v4377
    %v4384 = vadd.f32 %v4380, %v3653
    %v4385 = vadd.f32 %v4381, %v3655
    %v4386 = vadd.f32 %v4382, %v3657
    %v4387 = vadd.f32 %v4383, %v3659
    %v4388 = vmax.f32 %v4384, 0.0
    %v4389 = vmax.f32 %v4385, 0.0
    %v4390 = vmax.f32 %v4386, 0.0
    %v4391 = vmax.f32 %v4387, 0.0
    %v4392 = vld [vmem:[%s45] sm:$0xff]
    %v4393 = vld [vmem:[%s45 + $0x8] sm:$0xff]
    %v4394 = vld [vmem:[%s45 + $0x10] sm:$0xff]
    %v4395 = vld [vmem:[%s45 + $0x18] sm:$0xff]
    %v4396 = vld [vmem:[%s45 + $0x20] sm:$0xff]
    %v4397 = vld [vmem:[%s45 + $0x28] sm:$0xff]
    %v4398 = vld [vmem:[%s45 + $0x30] sm:$0xff]
    %v4399 = vld [vmem:[%s45 + $0x38] sm:$0xff]
    %v4400 = vld [vmem:[%s45 + $0x40] sm:$0xff]
    %v4401 = vld [vmem:[%s45 + $0x48] sm:$0xff]
    %v4402 = vld [vmem:[%s45 + $0x50] sm:$0xff]
    %v4403 = vld [vmem:[%s45 + $0x58] sm:$0xff]
    %v4404 = vld [vmem:[%s45 + $0x60] sm:$0xff]
    %v4405 = vld [vmem:[%s45 + $0x68] sm:$0xff]
    %v4406 = vld [vmem:[%s45 + $0x70] sm:$0xff]
    %v4407 = vld [vmem:[%s45 + $0x78] sm:$0xff]
    %v4408 = vld [vmem:[%s45 + $0x80] sm:$0xff]
    %v4409 = vld [vmem:[%s45 + $0x88] sm:$0xff]
    %v4410 = vld [vmem:[%s45 + $0x90] sm:$0xff]
    %v4411 = vld [vmem:[%s45 + $0x98] sm:$0xff]
    %v4412 = vld [vmem:[%s45 + $0xa0] sm:$0xff]
    %v4413 = vld [vmem:[%s45 + $0xa8] sm:$0xff]
    %v4414 = vld [vmem:[%s45 + $0xb0] sm:$0xff]
    %v4415 = vld [vmem:[%s45 + $0xb8] sm:$0xff]
    %v4416 = vld [vmem:[%s45 + $0xc0] sm:$0xff]
    %v4417 = vld [vmem:[%s45 + $0xc8] sm:$0xff]
    %v4418 = vld [vmem:[%s45 + $0xd0] sm:$0xff]
    %v4419 = vld [vmem:[%s45 + $0xd8] sm:$0xff]
    %v4420 = vld [vmem:[%s45 + $0xe0] sm:$0xff]
    %v4421 = vld [vmem:[%s45 + $0xe8] sm:$0xff]
    %v4422 = vld [vmem:[%s45 + $0xf0] sm:$0xff]
    %v4423 = vld [vmem:[%s45 + $0xf8] sm:$0xff]
    %4424 = vmatprep.subr.mxu0 0.0
    %4425 = vmatpush1.msra.mxu0 %v4392
    %4426 = vmatprep.subr.mxu0 0.0
    %4427 = vmatpush1.msra.mxu0 %v4393
    %4428 = vmatprep.subr.mxu0 0.0
    %4429 = vmatpush1.msra.mxu0 %v4394
    %4430 = vmatprep.subr.mxu0 0.0
    %4431 = vmatpush1.msra.mxu0 %v4395
    %4432 = vmatprep.subr.mxu0 0.0
    %4433 = vmatpush1.msra.mxu0 %v4396
    %4434 = vmatprep.subr.mxu0 0.0
    %4435 = vmatpush1.msra.mxu0 %v4397
    %4436 = vmatprep.subr.mxu0 0.0
    %4437 = vmatpush1.msra.mxu0 %v4398
    %4438 = vmatprep.subr.mxu0 0.0
    %4439 = vmatpush1.msra.mxu0 %v4399
    %4440 = vmatprep.subr.mxu0 0.0
    %4441 = vmatpush1.msra.mxu0 %v4400
    %4442 = vmatprep.subr.mxu0 0.0
    %4443 = vmatpush1.msra.mxu0 %v4401
    %4444 = vmatprep.subr.mxu0 0.0
    %4445 = vmatpush1.msra.mxu0 %v4402
    %4446 = vmatprep.subr.mxu0 0.0
    %4447 = vmatpush1.msra.mxu0 %v4403
    %4448 = vmatprep.subr.mxu0 0.0
    %4449 = vmatpush1.msra.mxu0 %v4404
    %4450 = vmatprep.subr.mxu0 0.0
    %4451 = vmatpush1.msra.mxu0 %v4405
    %4452 = vmatprep.subr.mxu0 0.0
    %4453 = vmatpush1.msra.mxu0 %v4406
    %4454 = vmatprep.subr.mxu0 0.0
    %4455 = vmatpush1.msra.mxu0 %v4407
    %4456 = vmatprep.subr.mxu0 0.0
    %4457 = vmatpush1.msra.mxu0 %v4408
    %4458 = vmatprep.subr.mxu0 0.0
    %4459 = vmatpush1.msra.mxu0 %v4409
    %4460 = vmatprep.subr.mxu0 0.0
    %4461 = vmatpush1.msra.mxu0 %v4410
    %4462 = vmatprep.subr.mxu0 0.0
    %4463 = vmatpush1.msra.mxu0 %v4411
    %4464 = vmatprep.subr.mxu0 0.0
    %4465 = vmatpush1.msra.mxu0 %v4412
    %4466 = vmatprep.subr.mxu0 0.0
    %4467 = vmatpush1.msra.mxu0 %v4413
    %4468 = vmatprep.subr.mxu0 0.0
    %4469 = vmatpush1.msra.mxu0 %v4414
    %4470 = vmatprep.subr.mxu0 0.0
    %4471 = vmatpush1.msra.mxu0 %v4415
    %4472 = vmatprep.subr.mxu0 0.0
    %4473 = vmatpush1.msra.mxu0 %v4416
    %4474 = vmatprep.subr.mxu0 0.0
    %4475 = vmatpush1.msra.mxu0 %v4417
    %4476 = vmatprep.subr.mxu0 0.0
    %4477 = vmatpush1.msra.mxu0 %v4418
    %4478 = vmatprep.subr.mxu0 0.0
    %4479 = vmatpush1.msra.mxu0 %v4419
    %4480 = vmatprep.subr.mxu0 0.0
    %4481 = vmatpush1.msra.mxu0 %v4420
    %4482 = vmatprep.subr.mxu0 0.0
    %4483 = vmatpush1.msra.mxu0 %v4421
    %4484 = vmatprep.subr.mxu0 0.0
    %4485 = vmatpush1.msra.mxu0 %v4422
    %4486 = vmatprep.subr.mxu0 0.0
    %4487 = vmatpush1.msra.mxu0 %v4423
    %4488 = vmatprep.mubr.f32.mxu0 %v4389
    %4489 = vmatmul.mubr.f32.gmra.mrb[0].mxu0 %v4388
    %v4490 = vpop.f32.mrb[0].mxu0
    %v4491 = vadd.f32 0.0, %v4490
    %v4492 = vpop.f32.mrb[0].mxu0
    %4493 = vmatprep.mubr.f32.mxu0 %v4391
    %4494 = vmatmul.mubr.f32.gmra.mrb[0].mxu0 %v4390
    %v4495 = vpop.f32.mrb[0].mxu0
    %v4496 = vadd.f32 0.0, %v4495
    %v4497 = vpop.f32.mrb[0].mxu0
    %4498 = vdwg.mxu0
    %v4499 = vld [vmem:[%s5] sm:$0xff]
    %v4500 = vld [vmem:[%s5 + $0x8] sm:$0x3f]
    %v4501 = vld [vmem:[%s1259] sm:$0xff]
    %v4502 = vld [vmem:[%s1259 + $0x8] sm:$0x3f]
    %4505 = vrot.lane.b32.xlu0 %v4491, 127
    %v4506 = vpop.permute.xlu0 %4505
    %4507 = vrot.lane.b32.xlu0 %v4496, 127
    %v4508 = vpop.permute.xlu0 %4507
    %v4511 = vsel %vm809, %v4501, 0
    %v4514 = vsel %vm809, %v4502, 0
    %v4516 = vsel %vm816, %v4508, 0
    %4518 = vmatprep.subr.mxu0 0.0
    %4519 = vmatpush1.msra.mxu0 %v4506
    %4520 = vmatprep.subr.mxu0 0.0
    %4521 = vmatpush1.msra.mxu0 %v4516
    %4522 = vmatprep.subr.mxu0 0.0
    %4523 = vmatpush1.msra.mxu0 0.0
    %4524 = vmatprep.subr.mxu0 0.0
    %4525 = vmatpush1.msra.mxu0 0.0
    %4526 = vmatprep.subr.mxu0 0.0
    %4527 = vmatpush1.msra.mxu0 0.0
    %4528 = vmatprep.subr.mxu0 0.0
    %4529 = vmatpush1.msra.mxu0 0.0
    %4530 = vmatprep.subr.mxu0 0.0
    %4531 = vmatpush1.msra.mxu0 0.0
    %4532 = vmatprep.subr.mxu0 0.0
    %4533 = vmatpush1.msra.mxu0 0.0
    %4534 = vmatprep.subr.mxu0 0.0
    %4535 = vmatpush1.msra.mxu0 0.0
    %4536 = vmatprep.subr.mxu0 0.0
    %4537 = vmatpush1.msra.mxu0 0.0
    %4538 = vmatprep.subr.mxu0 0.0
    %4539 = vmatpush1.msra.mxu0 0.0
    %4540 = vmatprep.subr.mxu0 0.0
    %4541 = vmatpush1.msra.mxu0 0.0
    %4542 = vmatprep.subr.mxu0 0.0
    %4543 = vmatpush1.msra.mxu0 0.0
    %4544 = vmatprep.subr.mxu0 0.0
    %4545 = vmatpush1.msra.mxu0 0.0
    %4546 = vmatprep.subr.mxu0 0.0
    %4547 = vmatpush1.msra.mxu0 0.0
    %4548 = vmatprep.subr.mxu0 0.0
    %4549 = vmatpush1.msra.mxu0 0.0
    %4550 = vmatprep.subr.mxu0 0.0
    %4551 = vmatpush1.msra.mxu0 0.0
    %4552 = vmatprep.subr.mxu0 0.0
    %4553 = vmatpush1.msra.mxu0 0.0
    %4554 = vmatprep.subr.mxu0 0.0
    %4555 = vmatpush1.msra.mxu0 0.0
    %4556 = vmatprep.subr.mxu0 0.0
    %4557 = vmatpush1.msra.mxu0 0.0
    %4558 = vmatprep.subr.mxu0 0.0
    %4559 = vmatpush1.msra.mxu0 0.0
    %4560 = vmatprep.subr.mxu0 0.0
    %4561 = vmatpush1.msra.mxu0 0.0
    %4562 = vmatprep.subr.mxu0 0.0
    %4563 = vmatpush1.msra.mxu0 0.0
    %4564 = vmatprep.subr.mxu0 0.0
    %4565 = vmatpush1.msra.mxu0 0.0
    %4566 = vmatprep.subr.mxu0 0.0
    %4567 = vmatpush1.msra.mxu0 0.0
    %4568 = vmatprep.subr.mxu0 0.0
    %4569 = vmatpush1.msra.mxu0 0.0
    %4570 = vmatprep.subr.mxu0 0.0
    %4571 = vmatpush1.msra.mxu0 0.0
    %4572 = vmatprep.subr.mxu0 0.0
    %4573 = vmatpush1.msra.mxu0 0.0
    %4574 = vmatprep.subr.mxu0 0.0
    %4575 = vmatpush1.msra.mxu0 0.0
    %4576 = vmatprep.subr.mxu0 0.0
    %4577 = vmatpush1.msra.mxu0 0.0
    %4578 = vmatprep.subr.mxu0 0.0
    %4579 = vmatpush1.msra.mxu0 0.0
    %4580 = vmatprep.subr.mxu0 0.0
    %4581 = vmatpush1.msra.mxu0 0.0
    %4582 = vmatprep.mubr.f32.mxu0 0.0
    %4583 = vmatmul.mubr.f32.gmra.mrb[0].mxu0 %v4511
    %v4584 = vpop.f32.mrb[0].mxu0
    %v4585 = vadd.f32 0.0, %v4584
    %v4586 = vpop.f32.mrb[0].mxu0
    %4587 = vmatprep.mubr.f32.mxu0 0.0
    %4588 = vmatmul.mubr.f32.gmra.mrb[0].mxu0 %v4514
    %v4589 = vpop.f32.mrb[0].mxu0
    %v4590 = vadd.f32 0.0, %v4589
    %v4591 = vpop.f32.mrb[0].mxu0
    %4592 = vdwg.mxu0
    %v4594 = vsel %vm809, %v4499, 0
    %v4597 = vsel %vm809, %v4500, 0
    %v4599 = vsel %vm816, %v4496, 0
    %4601 = vmatprep.subr.mxu0 0.0
    %4602 = vmatpush1.msra.mxu0 %v4491
    %4603 = vmatprep.subr.mxu0 0.0
    %4604 = vmatpush1.msra.mxu0 %v4599
    %4605 = vmatprep.subr.mxu0 0.0
    %4606 = vmatpush1.msra.mxu0 0.0
    %4607 = vmatprep.subr.mxu0 0.0
    %4608 = vmatpush1.msra.mxu0 0.0
    %4609 = vmatprep.subr.mxu0 0.0
    %4610 = vmatpush1.msra.mxu0 0.0
    %4611 = vmatprep.subr.mxu0 0.0
    %4612 = vmatpush1.msra.mxu0 0.0
    %4613 = vmatprep.subr.mxu0 0.0
    %4614 = vmatpush1.msra.mxu0 0.0
    %4615 = vmatprep.subr.mxu0 0.0
    %4616 = vmatpush1.msra.mxu0 0.0
    %4617 = vmatprep.subr.mxu0 0.0
    %4618 = vmatpush1.msra.mxu0 0.0
    %4619 = vmatprep.subr.mxu0 0.0
    %4620 = vmatpush1.msra.mxu0 0.0
    %4621 = vmatprep.subr.mxu0 0.0
    %4622 = vmatpush1.msra.mxu0 0.0
    %4623 = vmatprep.subr.mxu0 0.0
    %4624 = vmatpush1.msra.mxu0 0.0
    %4625 = vmatprep.subr.mxu0 0.0
    %4626 = vmatpush1.msra.mxu0 0.0
    %4627 = vmatprep.subr.mxu0 0.0
    %4628 = vmatpush1.msra.mxu0 0.0
    %4629 = vmatprep.subr.mxu0 0.0
    %4630 = vmatpush1.msra.mxu0 0.0
    %4631 = vmatprep.subr.mxu0 0.0
    %4632 = vmatpush1.msra.mxu0 0.0
    %4633 = vmatprep.subr.mxu0 0.0
    %4634 = vmatpush1.msra.mxu0 0.0
    %4635 = vmatprep.subr.mxu0 0.0
    %4636 = vmatpush1.msra.mxu0 0.0
    %4637 = vmatprep.subr.mxu0 0.0
    %4638 = vmatpush1.msra.mxu0 0.0
    %4639 = vmatprep.subr.mxu0 0.0
    %4640 = vmatpush1.msra.mxu0 0.0
    %4641 = vmatprep.subr.mxu0 0.0
    %4642 = vmatpush1.msra.mxu0 0.0
    %4643 = vmatprep.subr.mxu0 0.0
    %4644 = vmatpush1.msra.mxu0 0.0
    %4645 = vmatprep.subr.mxu0 0.0
    %4646 = vmatpush1.msra.mxu0 0.0
    %4647 = vmatprep.subr.mxu0 0.0
    %4648 = vmatpush1.msra.mxu0 0.0
    %4649 = vmatprep.subr.mxu0 0.0
    %4650 = vmatpush1.msra.mxu0 0.0
    %4651 = vmatprep.subr.mxu0 0.0
    %4652 = vmatpush1.msra.mxu0 0.0
    %4653 = vmatprep.subr.mxu0 0.0
    %4654 = vmatpush1.msra.mxu0 0.0
    %4655 = vmatprep.subr.mxu0 0.0
    %4656 = vmatpush1.msra.mxu0 0.0
    %4657 = vmatprep.subr.mxu0 0.0
    %4658 = vmatpush1.msra.mxu0 0.0
    %4659 = vmatprep.subr.mxu0 0.0
    %4660 = vmatpush1.msra.mxu0 0.0
    %4661 = vmatprep.subr.mxu0 0.0
    %4662 = vmatpush1.msra.mxu0 0.0
    %4663 = vmatprep.subr.mxu0 0.0
    %4664 = vmatpush1.msra.mxu0 0.0
    %4665 = vmatprep.mubr.f32.mxu0 0.0
    %4666 = vmatmul.mubr.f32.gmra.mrb[0].mxu0 %v4594
    %v4667 = vpop.f32.mrb[0].mxu0
    %v4668 = vadd.f32 %v4585, %v4667
    %v4669 = vpop.f32.mrb[0].mxu0
    %4670 = vmatprep.mubr.f32.mxu0 0.0
    %4671 = vmatmul.mubr.f32.gmra.mrb[0].mxu0 %v4597
    %v4672 = vpop.f32.mrb[0].mxu0
    %v4673 = vadd.f32 %v4590, %v4672
    %v4674 = vpop.f32.mrb[0].mxu0
    %4675 = vdwg.mxu0
    %v4676 = vld [vmem:[%s1435] sm:$0xff]
    %v4677 = vld [vmem:[%s1435 + $0x8] sm:$0x3f]
    %4678 = vrot.lane.b32.xlu0 %v4491, 126
    %v4679 = vpop.permute.xlu0 %4678
    %4680 = vrot.lane.b32.xlu0 %v4496, 126
    %v4681 = vpop.permute.xlu0 %4680
    %v4684 = vsel %vm809, %v4676, 0
    %v4687 = vsel %vm809, %v4677, 0
    %v4689 = vsel %vm816, %v4681, 0
    %4691 = vmatprep.subr.mxu0 0.0
    %4692 = vmatpush1.msra.mxu0 %v4679
    %4693 = vmatprep.subr.mxu0 0.0
    %4694 = vmatpush1.msra.mxu0 %v4689
    %4695 = vmatprep.subr.mxu0 0.0
    %4696 = vmatpush1.msra.mxu0 0.0
    %4697 = vmatprep.subr.mxu0 0.0
    %4698 = vmatpush1.msra.mxu0 0.0
    %4699 = vmatprep.subr.mxu0 0.0
    %4700 = vmatpush1.msra.mxu0 0.0
    %4701 = vmatprep.subr.mxu0 0.0
    %4702 = vmatpush1.msra.mxu0 0.0
    %4703 = vmatprep.subr.mxu0 0.0
    %4704 = vmatpush1.msra.mxu0 0.0
    %4705 = vmatprep.subr.mxu0 0.0
    %4706 = vmatpush1.msra.mxu0 0.0
    %4707 = vmatprep.subr.mxu0 0.0
    %4708 = vmatpush1.msra.mxu0 0.0
    %4709 = vmatprep.subr.mxu0 0.0
    %4710 = vmatpush1.msra.mxu0 0.0
    %4711 = vmatprep.subr.mxu0 0.0
    %4712 = vmatpush1.msra.mxu0 0.0
    %4713 = vmatprep.subr.mxu0 0.0
    %4714 = vmatpush1.msra.mxu0 0.0
    %4715 = vmatprep.subr.mxu0 0.0
    %4716 = vmatpush1.msra.mxu0 0.0
    %4717 = vmatprep.subr.mxu0 0.0
    %4718 = vmatpush1.msra.mxu0 0.0
    %4719 = vmatprep.subr.mxu0 0.0
    %4720 = vmatpush1.msra.mxu0 0.0
    %4721 = vmatprep.subr.mxu0 0.0
    %4722 = vmatpush1.msra.mxu0 0.0
    %4723 = vmatprep.subr.mxu0 0.0
    %4724 = vmatpush1.msra.mxu0 0.0
    %4725 = vmatprep.subr.mxu0 0.0
    %4726 = vmatpush1.msra.mxu0 0.0
    %4727 = vmatprep.subr.mxu0 0.0
    %4728 = vmatpush1.msra.mxu0 0.0
    %4729 = vmatprep.subr.mxu0 0.0
    %4730 = vmatpush1.msra.mxu0 0.0
    %4731 = vmatprep.subr.mxu0 0.0
    %4732 = vmatpush1.msra.mxu0 0.0
    %4733 = vmatprep.subr.mxu0 0.0
    %4734 = vmatpush1.msra.mxu0 0.0
    %4735 = vmatprep.subr.mxu0 0.0
    %4736 = vmatpush1.msra.mxu0 0.0
    %4737 = vmatprep.subr.mxu0 0.0
    %4738 = vmatpush1.msra.mxu0 0.0
    %4739 = vmatprep.subr.mxu0 0.0
    %4740 = vmatpush1.msra.mxu0 0.0
    %4741 = vmatprep.subr.mxu0 0.0
    %4742 = vmatpush1.msra.mxu0 0.0
    %4743 = vmatprep.subr.mxu0 0.0
    %4744 = vmatpush1.msra.mxu0 0.0
    %4745 = vmatprep.subr.mxu0 0.0
    %4746 = vmatpush1.msra.mxu0 0.0
    %4747 = vmatprep.subr.mxu0 0.0
    %4748 = vmatpush1.msra.mxu0 0.0
    %4749 = vmatprep.subr.mxu0 0.0
    %4750 = vmatpush1.msra.mxu0 0.0
    %4751 = vmatprep.subr.mxu0 0.0
    %4752 = vmatpush1.msra.mxu0 0.0
    %4753 = vmatprep.subr.mxu0 0.0
    %4754 = vmatpush1.msra.mxu0 0.0
    %4755 = vmatprep.mubr.f32.mxu0 0.0
    %4756 = vmatmul.mubr.f32.gmra.mrb[0].mxu0 %v4684
    %v4757 = vpop.f32.mrb[0].mxu0
    %v4758 = vadd.f32 0.0, %v4757
    %v4759 = vpop.f32.mrb[0].mxu0
    %4760 = vmatprep.mubr.f32.mxu0 0.0
    %4761 = vmatmul.mubr.f32.gmra.mrb[0].mxu0 %v4687
    %v4762 = vpop.f32.mrb[0].mxu0
    %v4763 = vadd.f32 0.0, %v4762
    %v4764 = vpop.f32.mrb[0].mxu0
    %4765 = vdwg.mxu0
    %v4766 = vadd.f32 %v4668, %v4758
    %v4767 = vadd.f32 %v4673, %v4763
    %v4768 = vld [vmem:[%s1528] sm:$0xff]
    %v4769 = vld [vmem:[%s1528 + $0x8] sm:$0x3f]
    %4770 = vrot.lane.b32.xlu0 %v4491, 125
    %v4771 = vpop.permute.xlu0 %4770
    %4772 = vrot.lane.b32.xlu0 %v4496, 125
    %v4773 = vpop.permute.xlu0 %4772
    %v4776 = vsel %vm809, %v4768, 0
    %v4779 = vsel %vm809, %v4769, 0
    %v4781 = vsel %vm816, %v4773, 0
    %4783 = vmatprep.subr.mxu0 0.0
    %4784 = vmatpush1.msra.mxu0 %v4771
    %4785 = vmatprep.subr.mxu0 0.0
    %4786 = vmatpush1.msra.mxu0 %v4781
    %4787 = vmatprep.subr.mxu0 0.0
    %4788 = vmatpush1.msra.mxu0 0.0
    %4789 = vmatprep.subr.mxu0 0.0
    %4790 = vmatpush1.msra.mxu0 0.0
    %4791 = vmatprep.subr.mxu0 0.0
    %4792 = vmatpush1.msra.mxu0 0.0
    %4793 = vmatprep.subr.mxu0 0.0
    %4794 = vmatpush1.msra.mxu0 0.0
    %4795 = vmatprep.subr.mxu0 0.0
    %4796 = vmatpush1.msra.mxu0 0.0
    %4797 = vmatprep.subr.mxu0 0.0
    %4798 = vmatpush1.msra.mxu0 0.0
    %4799 = vmatprep.subr.mxu0 0.0
    %4800 = vmatpush1.msra.mxu0 0.0
    %4801 = vmatprep.subr.mxu0 0.0
    %4802 = vmatpush1.msra.mxu0 0.0
    %4803 = vmatprep.subr.mxu0 0.0
    %4804 = vmatpush1.msra.mxu0 0.0
    %4805 = vmatprep.subr.mxu0 0.0
    %4806 = vmatpush1.msra.mxu0 0.0
    %4807 = vmatprep.subr.mxu0 0.0
    %4808 = vmatpush1.msra.mxu0 0.0
    %4809 = vmatprep.subr.mxu0 0.0
    %4810 = vmatpush1.msra.mxu0 0.0
    %4811 = vmatprep.subr.mxu0 0.0
    %4812 = vmatpush1.msra.mxu0 0.0
    %4813 = vmatprep.subr.mxu0 0.0
    %4814 = vmatpush1.msra.mxu0 0.0
    %4815 = vmatprep.subr.mxu0 0.0
    %4816 = vmatpush1.msra.mxu0 0.0
    %4817 = vmatprep.subr.mxu0 0.0
    %4818 = vmatpush1.msra.mxu0 0.0
    %4819 = vmatprep.subr.mxu0 0.0
    %4820 = vmatpush1.msra.mxu0 0.0
    %4821 = vmatprep.subr.mxu0 0.0
    %4822 = vmatpush1.msra.mxu0 0.0
    %4823 = vmatprep.subr.mxu0 0.0
    %4824 = vmatpush1.msra.mxu0 0.0
    %4825 = vmatprep.subr.mxu0 0.0
    %4826 = vmatpush1.msra.mxu0 0.0
    %4827 = vmatprep.subr.mxu0 0.0
    %4828 = vmatpush1.msra.mxu0 0.0
    %4829 = vmatprep.subr.mxu0 0.0
    %4830 = vmatpush1.msra.mxu0 0.0
    %4831 = vmatprep.subr.mxu0 0.0
    %4832 = vmatpush1.msra.mxu0 0.0
    %4833 = vmatprep.subr.mxu0 0.0
    %4834 = vmatpush1.msra.mxu0 0.0
    %4835 = vmatprep.subr.mxu0 0.0
    %4836 = vmatpush1.msra.mxu0 0.0
    %4837 = vmatprep.subr.mxu0 0.0
    %4838 = vmatpush1.msra.mxu0 0.0
    %4839 = vmatprep.subr.mxu0 0.0
    %4840 = vmatpush1.msra.mxu0 0.0
    %4841 = vmatprep.subr.mxu0 0.0
    %4842 = vmatpush1.msra.mxu0 0.0
    %4843 = vmatprep.subr.mxu0 0.0
    %4844 = vmatpush1.msra.mxu0 0.0
    %4845 = vmatprep.subr.mxu0 0.0
    %4846 = vmatpush1.msra.mxu0 0.0
    %4847 = vmatprep.mubr.f32.mxu0 0.0
    %4848 = vmatmul.mubr.f32.gmra.mrb[0].mxu0 %v4776
    %v4849 = vpop.f32.mrb[0].mxu0
    %v4850 = vadd.f32 0.0, %v4849
    %v4851 = vpop.f32.mrb[0].mxu0
    %4852 = vmatprep.mubr.f32.mxu0 0.0
    %4853 = vmatmul.mubr.f32.gmra.mrb[0].mxu0 %v4779
    %v4854 = vpop.f32.mrb[0].mxu0
    %v4855 = vadd.f32 0.0, %v4854
    %v4856 = vpop.f32.mrb[0].mxu0
    %4857 = vdwg.mxu0
    %v4858 = vadd.f32 %v4766, %v4850
    %v4859 = vadd.f32 %v4767, %v4855
    %v4860 = vld [vmem:[%s1621] sm:$0xff]
    %v4861 = vld [vmem:[%s1621 + $0x8] sm:$0x3f]
    %4862 = vrot.lane.b32.xlu0 %v4491, 124
    %v4863 = vpop.permute.xlu0 %4862
    %4864 = vrot.lane.b32.xlu0 %v4496, 124
    %v4865 = vpop.permute.xlu0 %4864
    %v4868 = vsel %vm809, %v4860, 0
    %v4871 = vsel %vm809, %v4861, 0
    %v4873 = vsel %vm816, %v4865, 0
    %4875 = vmatprep.subr.mxu0 0.0
    %4876 = vmatpush1.msra.mxu0 %v4863
    %4877 = vmatprep.subr.mxu0 0.0
    %4878 = vmatpush1.msra.mxu0 %v4873
    %4879 = vmatprep.subr.mxu0 0.0
    %4880 = vmatpush1.msra.mxu0 0.0
    %4881 = vmatprep.subr.mxu0 0.0
    %4882 = vmatpush1.msra.mxu0 0.0
    %4883 = vmatprep.subr.mxu0 0.0
    %4884 = vmatpush1.msra.mxu0 0.0
    %4885 = vmatprep.subr.mxu0 0.0
    %4886 = vmatpush1.msra.mxu0 0.0
    %4887 = vmatprep.subr.mxu0 0.0
    %4888 = vmatpush1.msra.mxu0 0.0
    %4889 = vmatprep.subr.mxu0 0.0
    %4890 = vmatpush1.msra.mxu0 0.0
    %4891 = vmatprep.subr.mxu0 0.0
    %4892 = vmatpush1.msra.mxu0 0.0
    %4893 = vmatprep.subr.mxu0 0.0
    %4894 = vmatpush1.msra.mxu0 0.0
    %4895 = vmatprep.subr.mxu0 0.0
    %4896 = vmatpush1.msra.mxu0 0.0
    %4897 = vmatprep.subr.mxu0 0.0
    %4898 = vmatpush1.msra.mxu0 0.0
    %4899 = vmatprep.subr.mxu0 0.0
    %4900 = vmatpush1.msra.mxu0 0.0
    %4901 = vmatprep.subr.mxu0 0.0
    %4902 = vmatpush1.msra.mxu0 0.0
    %4903 = vmatprep.subr.mxu0 0.0
    %4904 = vmatpush1.msra.mxu0 0.0
    %4905 = vmatprep.subr.mxu0 0.0
    %4906 = vmatpush1.msra.mxu0 0.0
    %4907 = vmatprep.subr.mxu0 0.0
    %4908 = vmatpush1.msra.mxu0 0.0
    %4909 = vmatprep.subr.mxu0 0.0
    %4910 = vmatpush1.msra.mxu0 0.0
    %4911 = vmatprep.subr.mxu0 0.0
    %4912 = vmatpush1.msra.mxu0 0.0
    %4913 = vmatprep.subr.mxu0 0.0
    %4914 = vmatpush1.msra.mxu0 0.0
    %4915 = vmatprep.subr.mxu0 0.0
    %4916 = vmatpush1.msra.mxu0 0.0
    %4917 = vmatprep.subr.mxu0 0.0
    %4918 = vmatpush1.msra.mxu0 0.0
    %4919 = vmatprep.subr.mxu0 0.0
    %4920 = vmatpush1.msra.mxu0 0.0
    %4921 = vmatprep.subr.mxu0 0.0
    %4922 = vmatpush1.msra.mxu0 0.0
    %4923 = vmatprep.subr.mxu0 0.0
    %4924 = vmatpush1.msra.mxu0 0.0
    %4925 = vmatprep.subr.mxu0 0.0
    %4926 = vmatpush1.msra.mxu0 0.0
    %4927 = vmatprep.subr.mxu0 0.0
    %4928 = vmatpush1.msra.mxu0 0.0
    %4929 = vmatprep.subr.mxu0 0.0
    %4930 = vmatpush1.msra.mxu0 0.0
    %4931 = vmatprep.subr.mxu0 0.0
    %4932 = vmatpush1.msra.mxu0 0.0
    %4933 = vmatprep.subr.mxu0 0.0
    %4934 = vmatpush1.msra.mxu0 0.0
    %4935 = vmatprep.subr.mxu0 0.0
    %4936 = vmatpush1.msra.mxu0 0.0
    %4937 = vmatprep.subr.mxu0 0.0
    %4938 = vmatpush1.msra.mxu0 0.0
    %4939 = vmatprep.mubr.f32.mxu0 0.0
    %4940 = vmatmul.mubr.f32.gmra.mrb[0].mxu0 %v4868
    %v4941 = vpop.f32.mrb[0].mxu0
    %v4942 = vadd.f32 0.0, %v4941
    %v4943 = vpop.f32.mrb[0].mxu0
    %4944 = vmatprep.mubr.f32.mxu0 0.0
    %4945 = vmatmul.mubr.f32.gmra.mrb[0].mxu0 %v4871
    %v4946 = vpop.f32.mrb[0].mxu0
    %v4947 = vadd.f32 0.0, %v4946
    %v4948 = vpop.f32.mrb[0].mxu0
    %4949 = vdwg.mxu0
    %v4950 = vadd.f32 %v4858, %v4942
    %v4951 = vadd.f32 %v4859, %v4947
    %v4952 = vld [vmem:[%s1714] sm:$0xff]
    %v4953 = vld [vmem:[%s1714 + $0x8] sm:$0x3f]
    %4954 = vrot.lane.b32.xlu0 %v4491, 123
    %v4955 = vpop.permute.xlu0 %4954
    %4956 = vrot.lane.b32.xlu0 %v4496, 123
    %v4957 = vpop.permute.xlu0 %4956
    %v4960 = vsel %vm809, %v4952, 0
    %v4963 = vsel %vm809, %v4953, 0
    %v4965 = vsel %vm816, %v4957, 0
    %4967 = vmatprep.subr.mxu0 0.0
    %4968 = vmatpush1.msra.mxu0 %v4955
    %4969 = vmatprep.subr.mxu0 0.0
    %4970 = vmatpush1.msra.mxu0 %v4965
    %4971 = vmatprep.subr.mxu0 0.0
    %4972 = vmatpush1.msra.mxu0 0.0
    %4973 = vmatprep.subr.mxu0 0.0
    %4974 = vmatpush1.msra.mxu0 0.0
    %4975 = vmatprep.subr.mxu0 0.0
    %4976 = vmatpush1.msra.mxu0 0.0
    %4977 = vmatprep.subr.mxu0 0.0
    %4978 = vmatpush1.msra.mxu0 0.0
    %4979 = vmatprep.subr.mxu0 0.0
    %4980 = vmatpush1.msra.mxu0 0.0
    %4981 = vmatprep.subr.mxu0 0.0
    %4982 = vmatpush1.msra.mxu0 0.0
    %4983 = vmatprep.subr.mxu0 0.0
    %4984 = vmatpush1.msra.mxu0 0.0
    %4985 = vmatprep.subr.mxu0 0.0
    %4986 = vmatpush1.msra.mxu0 0.0
    %4987 = vmatprep.subr.mxu0 0.0
    %4988 = vmatpush1.msra.mxu0 0.0
    %4989 = vmatprep.subr.mxu0 0.0
    %4990 = vmatpush1.msra.mxu0 0.0
    %4991 = vmatprep.subr.mxu0 0.0
    %4992 = vmatpush1.msra.mxu0 0.0
    %4993 = vmatprep.subr.mxu0 0.0
    %4994 = vmatpush1.msra.mxu0 0.0
    %4995 = vmatprep.subr.mxu0 0.0
    %4996 = vmatpush1.msra.mxu0 0.0
    %4997 = vmatprep.subr.mxu0 0.0
    %4998 = vmatpush1.msra.mxu0 0.0
    %4999 = vmatprep.subr.mxu0 0.0
    %5000 = vmatpush1.msra.mxu0 0.0
    %5001 = vmatprep.subr.mxu0 0.0
    %5002 = vmatpush1.msra.mxu0 0.0
    %5003 = vmatprep.subr.mxu0 0.0
    %5004 = vmatpush1.msra.mxu0 0.0
    %5005 = vmatprep.subr.mxu0 0.0
    %5006 = vmatpush1.msra.mxu0 0.0
    %5007 = vmatprep.subr.mxu0 0.0
    %5008 = vmatpush1.msra.mxu0 0.0
    %5009 = vmatprep.subr.mxu0 0.0
    %5010 = vmatpush1.msra.mxu0 0.0
    %5011 = vmatprep.subr.mxu0 0.0
    %5012 = vmatpush1.msra.mxu0 0.0
    %5013 = vmatprep.subr.mxu0 0.0
    %5014 = vmatpush1.msra.mxu0 0.0
    %5015 = vmatprep.subr.mxu0 0.0
    %5016 = vmatpush1.msra.mxu0 0.0
    %5017 = vmatprep.subr.mxu0 0.0
    %5018 = vmatpush1.msra.mxu0 0.0
    %5019 = vmatprep.subr.mxu0 0.0
    %5020 = vmatpush1.msra.mxu0 0.0
    %5021 = vmatprep.subr.mxu0 0.0
    %5022 = vmatpush1.msra.mxu0 0.0
    %5023 = vmatprep.subr.mxu0 0.0
    %5024 = vmatpush1.msra.mxu0 0.0
    %5025 = vmatprep.subr.mxu0 0.0
    %5026 = vmatpush1.msra.mxu0 0.0
    %5027 = vmatprep.subr.mxu0 0.0
    %5028 = vmatpush1.msra.mxu0 0.0
    %5029 = vmatprep.subr.mxu0 0.0
    %5030 = vmatpush1.msra.mxu0 0.0
    %5031 = vmatprep.mubr.f32.mxu0 0.0
    %5032 = vmatmul.mubr.f32.gmra.mrb[0].mxu0 %v4960
    %v5033 = vpop.f32.mrb[0].mxu0
    %v5034 = vadd.f32 0.0, %v5033
    %v5035 = vpop.f32.mrb[0].mxu0
    %5036 = vmatprep.mubr.f32.mxu0 0.0
    %5037 = vmatmul.mubr.f32.gmra.mrb[0].mxu0 %v4963
    %v5038 = vpop.f32.mrb[0].mxu0
    %v5039 = vadd.f32 0.0, %v5038
    %v5040 = vpop.f32.mrb[0].mxu0
    %5041 = vdwg.mxu0
    %v5042 = vadd.f32 %v4950, %v5034
    %v5043 = vadd.f32 %v4951, %v5039
    %v5044 = vld [vmem:[%s1807] sm:$0xff]
    %v5045 = vld [vmem:[%s1807 + $0x8] sm:$0x3f]
    %5046 = vrot.lane.b32.xlu0 %v4491, 122
    %v5047 = vpop.permute.xlu0 %5046
    %5048 = vrot.lane.b32.xlu0 %v4496, 122
    %v5049 = vpop.permute.xlu0 %5048
    %v5052 = vsel %vm809, %v5044, 0
    %v5055 = vsel %vm809, %v5045, 0
    %v5057 = vsel %vm816, %v5049, 0
    %5059 = vmatprep.subr.mxu0 0.0
    %5060 = vmatpush1.msra.mxu0 %v5047
    %5061 = vmatprep.subr.mxu0 0.0
    %5062 = vmatpush1.msra.mxu0 %v5057
    %5063 = vmatprep.subr.mxu0 0.0
    %5064 = vmatpush1.msra.mxu0 0.0
    %5065 = vmatprep.subr.mxu0 0.0
    %5066 = vmatpush1.msra.mxu0 0.0
    %5067 = vmatprep.subr.mxu0 0.0
    %5068 = vmatpush1.msra.mxu0 0.0
    %5069 = vmatprep.subr.mxu0 0.0
    %5070 = vmatpush1.msra.mxu0 0.0
    %5071 = vmatprep.subr.mxu0 0.0
    %5072 = vmatpush1.msra.mxu0 0.0
    %5073 = vmatprep.subr.mxu0 0.0
    %5074 = vmatpush1.msra.mxu0 0.0
    %5075 = vmatprep.subr.mxu0 0.0
    %5076 = vmatpush1.msra.mxu0 0.0
    %5077 = vmatprep.subr.mxu0 0.0
    %5078 = vmatpush1.msra.mxu0 0.0
    %5079 = vmatprep.subr.mxu0 0.0
    %5080 = vmatpush1.msra.mxu0 0.0
    %5081 = vmatprep.subr.mxu0 0.0
    %5082 = vmatpush1.msra.mxu0 0.0
    %5083 = vmatprep.subr.mxu0 0.0
    %5084 = vmatpush1.msra.mxu0 0.0
    %5085 = vmatprep.subr.mxu0 0.0
    %5086 = vmatpush1.msra.mxu0 0.0
    %5087 = vmatprep.subr.mxu0 0.0
    %5088 = vmatpush1.msra.mxu0 0.0
    %5089 = vmatprep.subr.mxu0 0.0
    %5090 = vmatpush1.msra.mxu0 0.0
    %5091 = vmatprep.subr.mxu0 0.0
    %5092 = vmatpush1.msra.mxu0 0.0
    %5093 = vmatprep.subr.mxu0 0.0
    %5094 = vmatpush1.msra.mxu0 0.0
    %5095 = vmatprep.subr.mxu0 0.0
    %5096 = vmatpush1.msra.mxu0 0.0
    %5097 = vmatprep.subr.mxu0 0.0
    %5098 = vmatpush1.msra.mxu0 0.0
    %5099 = vmatprep.subr.mxu0 0.0
    %5100 = vmatpush1.msra.mxu0 0.0
    %5101 = vmatprep.subr.mxu0 0.0
    %5102 = vmatpush1.msra.mxu0 0.0
    %5103 = vmatprep.subr.mxu0 0.0
    %5104 = vmatpush1.msra.mxu0 0.0
    %5105 = vmatprep.subr.mxu0 0.0
    %5106 = vmatpush1.msra.mxu0 0.0
    %5107 = vmatprep.subr.mxu0 0.0
    %5108 = vmatpush1.msra.mxu0 0.0
    %5109 = vmatprep.subr.mxu0 0.0
    %5110 = vmatpush1.msra.mxu0 0.0
    %5111 = vmatprep.subr.mxu0 0.0
    %5112 = vmatpush1.msra.mxu0 0.0
    %5113 = vmatprep.subr.mxu0 0.0
    %5114 = vmatpush1.msra.mxu0 0.0
    %5115 = vmatprep.subr.mxu0 0.0
    %5116 = vmatpush1.msra.mxu0 0.0
    %5117 = vmatprep.subr.mxu0 0.0
    %5118 = vmatpush1.msra.mxu0 0.0
    %5119 = vmatprep.subr.mxu0 0.0
    %5120 = vmatpush1.msra.mxu0 0.0
    %5121 = vmatprep.subr.mxu0 0.0
    %5122 = vmatpush1.msra.mxu0 0.0
    %5123 = vmatprep.mubr.f32.mxu0 0.0
    %5124 = vmatmul.mubr.f32.gmra.mrb[0].mxu0 %v5052
    %v5125 = vpop.f32.mrb[0].mxu0
    %v5126 = vadd.f32 0.0, %v5125
    %v5127 = vpop.f32.mrb[0].mxu0
    %5128 = vmatprep.mubr.f32.mxu0 0.0
    %5129 = vmatmul.mubr.f32.gmra.mrb[0].mxu0 %v5055
    %v5130 = vpop.f32.mrb[0].mxu0
    %v5131 = vadd.f32 0.0, %v5130
    %v5132 = vpop.f32.mrb[0].mxu0
    %5133 = vdwg.mxu0
    %v5134 = vadd.f32 %v5042, %v5126
    %v5135 = vadd.f32 %v5043, %v5131
    %s5136 = sld [smem:[#allocation5 + $0x1]]
    %v5137 = vstv %s5136
    %v5138 = vadd.f32 %v5134, %v5137
    %v5139 = vadd.f32 %v5135, %v5137
    %v5140 = vxor.u32 %v5138, 2147483648
    %v5141 = vxor.u32 %v5139, 2147483648
    %v5142 = vmul.f32 %v5140, 1.442695
    %v5143 = vpow.pop %v5142
    %v5144 = vmul.f32 %v5141, 1.442695
    %v5145 = vpow.pop %v5144
    %v5146 = vadd.f32 %v5143, 1.0
    %v5147 = vadd.f32 %v5145, 1.0
    %v5148 = vrcp.pop %v5146
    %v5149 = vmul.f32 1.0, %v5148
    %v5150 = vrcp.pop %v5147
    %v5151 = vmul.f32 1.0, %v5150
    %v5152 = vadd.f32 %v5149, 1.0
    %v5153 = vadd.f32 %v5151, 1.0
    %5155 = vset.pattern.permute.xlu0 0
    %5156 = vperm.xlu0 %5155, %v5152
    %v5157 = vpop.permute.xlu0 %5156
    %5160 = vset.pattern.permute.xlu0 0
    %5161 = vperm.xlu0 %5160, %v5153
    %v5162 = vpop.permute.xlu0 %5161
    %v5164 = vmul.f32 %v4388, %v5157
    %v5165 = vmul.f32 %v4389, %v5157
    %v5166 = vmul.f32 %v4390, %v5162
    %v5167 = vmul.f32 %v4391, %v5162
    %v5168 = vld [vmem:[%s47] sm:$0xff]
    %v5169 = vld [vmem:[%s47 + $0x8] sm:$0xff]
    %v5170 = vld [vmem:[%s47 + $0x10] sm:$0xff]
    %v5171 = vld [vmem:[%s47 + $0x18] sm:$0xff]
    %v5172 = vld [vmem:[%s47 + $0x20] sm:$0xff]
    %v5173 = vld [vmem:[%s47 + $0x28] sm:$0xff]
    %v5174 = vld [vmem:[%s47 + $0x30] sm:$0xff]
    %v5175 = vld [vmem:[%s47 + $0x38] sm:$0xff]
    %v5176 = vld [vmem:[%s47 + $0x40] sm:$0xff]
    %v5177 = vld [vmem:[%s47 + $0x48] sm:$0xff]
    %v5178 = vld [vmem:[%s47 + $0x50] sm:$0xff]
    %v5179 = vld [vmem:[%s47 + $0x58] sm:$0xff]
    %v5180 = vld [vmem:[%s47 + $0x60] sm:$0xff]
    %v5181 = vld [vmem:[%s47 + $0x68] sm:$0xff]
    %v5182 = vld [vmem:[%s47 + $0x70] sm:$0xff]
    %v5183 = vld [vmem:[%s47 + $0x78] sm:$0xff]
    %v5184 = vld [vmem:[%s47 + $0x80] sm:$0xff]
    %v5185 = vld [vmem:[%s47 + $0x88] sm:$0xff]
    %v5186 = vld [vmem:[%s47 + $0x90] sm:$0xff]
    %v5187 = vld [vmem:[%s47 + $0x98] sm:$0xff]
    %v5188 = vld [vmem:[%s47 + $0xa0] sm:$0xff]
    %v5189 = vld [vmem:[%s47 + $0xa8] sm:$0xff]
    %v5190 = vld [vmem:[%s47 + $0xb0] sm:$0xff]
    %v5191 = vld [vmem:[%s47 + $0xb8] sm:$0xff]
    %v5192 = vld [vmem:[%s47 + $0xc0] sm:$0xff]
    %v5193 = vld [vmem:[%s47 + $0xc8] sm:$0xff]
    %v5194 = vld [vmem:[%s47 + $0xd0] sm:$0xff]
    %v5195 = vld [vmem:[%s47 + $0xd8] sm:$0xff]
    %v5196 = vld [vmem:[%s47 + $0xe0] sm:$0xff]
    %v5197 = vld [vmem:[%s47 + $0xe8] sm:$0xff]
    %v5198 = vld [vmem:[%s47 + $0xf0] sm:$0xff]
    %v5199 = vld [vmem:[%s47 + $0xf8] sm:$0xff]
    %5200 = vmatprep.subr.mxu0 0.0
    %5201 = vmatpush1.msra.mxu0 %v5168
    %5202 = vmatprep.subr.mxu0 0.0
    %5203 = vmatpush1.msra.mxu0 %v5169
    %5204 = vmatprep.subr.mxu0 0.0
    %5205 = vmatpush1.msra.mxu0 %v5170
    %5206 = vmatprep.subr.mxu0 0.0
    %5207 = vmatpush1.msra.mxu0 %v5171
    %5208 = vmatprep.subr.mxu0 0.0
    %5209 = vmatpush1.msra.mxu0 %v5172
    %5210 = vmatprep.subr.mxu0 0.0
    %5211 = vmatpush1.msra.mxu0 %v5173
    %5212 = vmatprep.subr.mxu0 0.0
    %5213 = vmatpush1.msra.mxu0 %v5174
    %5214 = vmatprep.subr.mxu0 0.0
    %5215 = vmatpush1.msra.mxu0 %v5175
    %5216 = vmatprep.subr.mxu0 0.0
    %5217 = vmatpush1.msra.mxu0 %v5176
    %5218 = vmatprep.subr.mxu0 0.0
    %5219 = vmatpush1.msra.mxu0 %v5177
    %5220 = vmatprep.subr.mxu0 0.0
    %5221 = vmatpush1.msra.mxu0 %v5178
    %5222 = vmatprep.subr.mxu0 0.0
    %5223 = vmatpush1.msra.mxu0 %v5179
    %5224 = vmatprep.subr.mxu0 0.0
    %5225 = vmatpush1.msra.mxu0 %v5180
    %5226 = vmatprep.subr.mxu0 0.0
    %5227 = vmatpush1.msra.mxu0 %v5181
    %5228 = vmatprep.subr.mxu0 0.0
    %5229 = vmatpush1.msra.mxu0 %v5182
    %5230 = vmatprep.subr.mxu0 0.0
    %5231 = vmatpush1.msra.mxu0 %v5183
    %5232 = vmatprep.subr.mxu0 0.0
    %5233 = vmatpush1.msra.mxu0 %v5184
    %5234 = vmatprep.subr.mxu0 0.0
    %5235 = vmatpush1.msra.mxu0 %v5185
    %5236 = vmatprep.subr.mxu0 0.0
    %5237 = vmatpush1.msra.mxu0 %v5186
    %5238 = vmatprep.subr.mxu0 0.0
    %5239 = vmatpush1.msra.mxu0 %v5187
    %5240 = vmatprep.subr.mxu0 0.0
    %5241 = vmatpush1.msra.mxu0 %v5188
    %5242 = vmatprep.subr.mxu0 0.0
    %5243 = vmatpush1.msra.mxu0 %v5189
    %5244 = vmatprep.subr.mxu0 0.0
    %5245 = vmatpush1.msra.mxu0 %v5190
    %5246 = vmatprep.subr.mxu0 0.0
    %5247 = vmatpush1.msra.mxu0 %v5191
    %5248 = vmatprep.subr.mxu0 0.0
    %5249 = vmatpush1.msra.mxu0 %v5192
    %5250 = vmatprep.subr.mxu0 0.0
    %5251 = vmatpush1.msra.mxu0 %v5193
    %5252 = vmatprep.subr.mxu0 0.0
    %5253 = vmatpush1.msra.mxu0 %v5194
    %5254 = vmatprep.subr.mxu0 0.0
    %5255 = vmatpush1.msra.mxu0 %v5195
    %5256 = vmatprep.subr.mxu0 0.0
    %5257 = vmatpush1.msra.mxu0 %v5196
    %5258 = vmatprep.subr.mxu0 0.0
    %5259 = vmatpush1.msra.mxu0 %v5197
    %5260 = vmatprep.subr.mxu0 0.0
    %5261 = vmatpush1.msra.mxu0 %v5198
    %5262 = vmatprep.subr.mxu0 0.0
    %5263 = vmatpush1.msra.mxu0 %v5199
    %5264 = vmatprep.mubr.f32.mxu0 %v5165
    %5265 = vmatmul.mubr.f32.gmra.mrb[0].mxu0 %v5164
    %v5266 = vpop.f32.mrb[0].mxu0
    %v5267 = vadd.f32 0.0, %v5266
    %v5268 = vpop.f32.mrb[0].mxu0
    %5269 = vmatprep.mubr.f32.mxu0 %v5167
    %5270 = vmatmul.mubr.f32.gmra.mrb[0].mxu0 %v5166
    %v5271 = vpop.f32.mrb[0].mxu0
    %v5272 = vadd.f32 0.0, %v5271
    %v5273 = vpop.f32.mrb[0].mxu0
    %5274 = vdwg.mxu0
    %v5275 = vsel %vm2021, %v5267, 0.0
    %v5276 = vrot.slane %v5275, 4
    %v5277 = vadd.f32 %v5275, %v5276
    %v5278 = vrot.slane %v5277, 2
    %v5279 = vadd.f32 %v5277, %v5278
    %v5280 = vrot.slane %v5279, 1
    %v5281 = vadd.f32 %v5279, %v5280
    %v5282 = vmul.f32 %v5281, %v2029
    %v5285 = vrot.slane %v5267, 7
    %v5286 = vrot.slane %v5272, 7
    %v5287 = vsel %vm2033, %v5285, %v5286
    %v5289 = vsel %vm2021, %v5287, 0.0
    %v5290 = vrot.slane %v5289, 4
    %v5291 = vadd.f32 %v5289, %v5290
    %v5292 = vrot.slane %v5291, 2
    %v5293 = vadd.f32 %v5291, %v5292
    %v5294 = vrot.slane %v5293, 1
    %v5295 = vadd.f32 %v5293, %v5294
    %v5296 = vmul.f32 %v5295, %v2029
    %v5297 = vsel %vm2033, %v5282, %v5296
    %s5298 = sld [smem:[#allocation5 + $0x2]]
    %v5299 = vstv %s5298
    %v5300 = vadd.f32 %v5297, %v5299
    %v5301 = vxor.u32 %v5300, 2147483648
    %v5302 = vmul.f32 %v5301, 1.442695
    %v5303 = vpow.pop %v5302
    %v5304 = vadd.f32 %v5303, 1.0
    %v5305 = vrcp.pop %v5304
    %v5306 = vmul.f32 1.0, %v5305
    %5308 = vrot.lane.b32.xlu0 %v5306, 8
    %v5309 = vpop.permute.xlu0 %5308
    %5311 = vrot.lane.b32.xlu0 %v5306, 16
    %v5312 = vpop.permute.xlu0 %5311
    %5314 = vrot.lane.b32.xlu0 %v5306, 24
    %v5315 = vpop.permute.xlu0 %5314
    %5317 = vrot.lane.b32.xlu0 %v5306, 32
    %v5318 = vpop.permute.xlu0 %5317
    %5320 = vrot.lane.b32.xlu0 %v5306, 40
    %v5321 = vpop.permute.xlu0 %5320
    %5323 = vrot.lane.b32.xlu0 %v5306, 48
    %v5324 = vpop.permute.xlu0 %5323
    %5326 = vrot.lane.b32.xlu0 %v5306, 56
    %v5327 = vpop.permute.xlu0 %5326
    %5329 = vrot.lane.b32.xlu0 %v5306, 64
    %v5330 = vpop.permute.xlu0 %5329
    %5332 = vrot.lane.b32.xlu0 %v5306, 72
    %v5333 = vpop.permute.xlu0 %5332
    %5335 = vrot.lane.b32.xlu0 %v5306, 80
    %v5336 = vpop.permute.xlu0 %5335
    %5338 = vrot.lane.b32.xlu0 %v5306, 88
    %v5339 = vpop.permute.xlu0 %5338
    %5341 = vrot.lane.b32.xlu0 %v5306, 96
    %v5342 = vpop.permute.xlu0 %5341
    %5344 = vrot.lane.b32.xlu0 %v5306, 104
    %v5345 = vpop.permute.xlu0 %5344
    %5347 = vrot.lane.b32.xlu0 %v5306, 112
    %v5348 = vpop.permute.xlu0 %5347
    %5350 = vrot.lane.b32.xlu0 %v5306, 120
    %v5351 = vpop.permute.xlu0 %5350
    %v5353 = vsel %vm2102, %v5306, %v5309
    %v5354 = vsel %vm2104, %v5353, %v5312
    %v5355 = vsel %vm339, %v5354, %v5315
    %v5356 = vsel %vm2107, %v5355, %v5318
    %v5357 = vsel %vm2109, %v5356, %v5321
    %v5358 = vsel %vm2111, %v5357, %v5324
    %v5359 = vsel %vm2113, %v5358, %v5327
    %v5360 = vsel %vm2115, %v5359, %v5330
    %v5361 = vsel %vm2117, %v5360, %v5333
    %v5362 = vsel %vm2119, %v5361, %v5336
    %v5363 = vsel %vm2121, %v5362, %v5339
    %v5364 = vsel %vm2123, %v5363, %v5342
    %v5365 = vsel %vm2125, %v5364, %v5345
    %v5366 = vsel %vm2127, %v5365, %v5348
    %v5367 = vsel %vm2129, %v5366, %v5351
    %v5368 = vlaneseq
    %v5369 = vshrl.u32 %v5368, 7
    %v5370 = vsub.s32 0, %v5369
    %v5371 = vrot.slane %v5367, %v5370
    %v5372 = vlaneseq
    %v5373 = vshrl.u32 %v5372, 7
    %v5374 = vsub.s32 1, %v5373
    %v5375 = vrot.slane %v5367, %v5374
    %v5376 = vsel %vm2139, %v5371, %v5375
    %v5377 = vadd.f32 %v5376, 1.0
    %v5378 = vadd.f32 %v5375, 1.0
    %v5379 = vmul.f32 %v5164, %v5377
    %v5380 = vmul.f32 %v5165, %v5377
    %v5381 = vmul.f32 %v5166, %v5378
    %v5382 = vmul.f32 %v5167, %v5378
    %v5383 = vld [vmem:[%s49] sm:$0xff]
    %v5384 = vld [vmem:[%s49 + $0x8] sm:$0xff]
    %v5385 = vld [vmem:[%s49 + $0x10] sm:$0xff]
    %v5386 = vld [vmem:[%s49 + $0x18] sm:$0xff]
    %v5387 = vld [vmem:[%s49 + $0x20] sm:$0xff]
    %v5388 = vld [vmem:[%s49 + $0x28] sm:$0xff]
    %v5389 = vld [vmem:[%s49 + $0x30] sm:$0xff]
    %v5390 = vld [vmem:[%s49 + $0x38] sm:$0xff]
    %v5391 = vld [vmem:[%s49 + $0x40] sm:$0xff]
    %v5392 = vld [vmem:[%s49 + $0x48] sm:$0xff]
    %v5393 = vld [vmem:[%s49 + $0x50] sm:$0xff]
    %v5394 = vld [vmem:[%s49 + $0x58] sm:$0xff]
    %v5395 = vld [vmem:[%s49 + $0x60] sm:$0xff]
    %v5396 = vld [vmem:[%s49 + $0x68] sm:$0xff]
    %v5397 = vld [vmem:[%s49 + $0x70] sm:$0xff]
    %v5398 = vld [vmem:[%s49 + $0x78] sm:$0xff]
    %v5399 = vld [vmem:[%s49 + $0x80] sm:$0xff]
    %v5400 = vld [vmem:[%s49 + $0x88] sm:$0xff]
    %v5401 = vld [vmem:[%s49 + $0x90] sm:$0xff]
    %v5402 = vld [vmem:[%s49 + $0x98] sm:$0xff]
    %v5403 = vld [vmem:[%s49 + $0xa0] sm:$0xff]
    %v5404 = vld [vmem:[%s49 + $0xa8] sm:$0xff]
    %v5405 = vld [vmem:[%s49 + $0xb0] sm:$0xff]
    %v5406 = vld [vmem:[%s49 + $0xb8] sm:$0xff]
    %v5407 = vld [vmem:[%s49 + $0xc0] sm:$0xff]
    %v5408 = vld [vmem:[%s49 + $0xc8] sm:$0xff]
    %v5409 = vld [vmem:[%s49 + $0xd0] sm:$0xff]
    %v5410 = vld [vmem:[%s49 + $0xd8] sm:$0xff]
    %v5411 = vld [vmem:[%s49 + $0xe0] sm:$0xff]
    %v5412 = vld [vmem:[%s49 + $0xe8] sm:$0xff]
    %v5413 = vld [vmem:[%s49 + $0xf0] sm:$0xff]
    %v5414 = vld [vmem:[%s49 + $0xf8] sm:$0xff]
    %5415 = vmatprep.subr.mxu0 0.0
    %5416 = vmatpush1.msra.mxu0 %v5383
    %5417 = vmatprep.subr.mxu0 0.0
    %5418 = vmatpush1.msra.mxu0 %v5384
    %5419 = vmatprep.subr.mxu0 0.0
    %5420 = vmatpush1.msra.mxu0 %v5385
    %5421 = vmatprep.subr.mxu0 0.0
    %5422 = vmatpush1.msra.mxu0 %v5386
    %5423 = vmatprep.subr.mxu0 0.0
    %5424 = vmatpush1.msra.mxu0 %v5387
    %5425 = vmatprep.subr.mxu0 0.0
    %5426 = vmatpush1.msra.mxu0 %v5388
    %5427 = vmatprep.subr.mxu0 0.0
    %5428 = vmatpush1.msra.mxu0 %v5389
    %5429 = vmatprep.subr.mxu0 0.0
    %5430 = vmatpush1.msra.mxu0 %v5390
    %5431 = vmatprep.subr.mxu0 0.0
    %5432 = vmatpush1.msra.mxu0 %v5391
    %5433 = vmatprep.subr.mxu0 0.0
    %5434 = vmatpush1.msra.mxu0 %v5392
    %5435 = vmatprep.subr.mxu0 0.0
    %5436 = vmatpush1.msra.mxu0 %v5393
    %5437 = vmatprep.subr.mxu0 0.0
    %5438 = vmatpush1.msra.mxu0 %v5394
    %5439 = vmatprep.subr.mxu0 0.0
    %5440 = vmatpush1.msra.mxu0 %v5395
    %5441 = vmatprep.subr.mxu0 0.0
    %5442 = vmatpush1.msra.mxu0 %v5396
    %5443 = vmatprep.subr.mxu0 0.0
    %5444 = vmatpush1.msra.mxu0 %v5397
    %5445 = vmatprep.subr.mxu0 0.0
    %5446 = vmatpush1.msra.mxu0 %v5398
    %5447 = vmatprep.subr.mxu0 0.0
    %5448 = vmatpush1.msra.mxu0 %v5399
    %5449 = vmatprep.subr.mxu0 0.0
    %5450 = vmatpush1.msra.mxu0 %v5400
    %5451 = vmatprep.subr.mxu0 0.0
    %5452 = vmatpush1.msra.mxu0 %v5401
    %5453 = vmatprep.subr.mxu0 0.0
    %5454 = vmatpush1.msra.mxu0 %v5402
    %5455 = vmatprep.subr.mxu0 0.0
    %5456 = vmatpush1.msra.mxu0 %v5403
    %5457 = vmatprep.subr.mxu0 0.0
    %5458 = vmatpush1.msra.mxu0 %v5404
    %5459 = vmatprep.subr.mxu0 0.0
    %5460 = vmatpush1.msra.mxu0 %v5405
    %5461 = vmatprep.subr.mxu0 0.0
    %5462 = vmatpush1.msra.mxu0 %v5406
    %5463 = vmatprep.subr.mxu0 0.0
    %5464 = vmatpush1.msra.mxu0 %v5407
    %5465 = vmatprep.subr.mxu0 0.0
    %5466 = vmatpush1.msra.mxu0 %v5408
    %5467 = vmatprep.subr.mxu0 0.0
    %5468 = vmatpush1.msra.mxu0 %v5409
    %5469 = vmatprep.subr.mxu0 0.0
    %5470 = vmatpush1.msra.mxu0 %v5410
    %5471 = vmatprep.subr.mxu0 0.0
    %5472 = vmatpush1.msra.mxu0 %v5411
    %5473 = vmatprep.subr.mxu0 0.0
    %5474 = vmatpush1.msra.mxu0 %v5412
    %5475 = vmatprep.subr.mxu0 0.0
    %5476 = vmatpush1.msra.mxu0 %v5413
    %5477 = vmatprep.subr.mxu0 0.0
    %5478 = vmatpush1.msra.mxu0 %v5414
    %5479 = vmatprep.mubr.f32.mxu0 %v5380
    %5480 = vmatmul.mubr.f32.gmra.mrb[0].mxu0 %v5379
    %v5481 = vpop.f32.mrb[0].mxu0
    %v5482 = vadd.f32 0.0, %v5481
    %v5483 = vpop.f32.mrb[0].mxu0
    %5484 = vmatprep.mubr.f32.mxu0 %v5382
    %5485 = vmatmul.mubr.f32.gmra.mrb[0].mxu0 %v5381
    %v5486 = vpop.f32.mrb[0].mxu0
    %v5487 = vadd.f32 0.0, %v5486
    %v5488 = vpop.f32.mrb[0].mxu0
    %5489 = vdwg.mxu0
    %vm5490 = vcmask 260096
    %v5491 = vsel %vm5490, %v5482, 0.0
    %v5492 = vrot.slane %v5491, 4
    %v5493 = vadd.f32 %v5491, %v5492
    %v5494 = vrot.slane %v5493, 2
    %v5495 = vadd.f32 %v5493, %v5494
    %v5496 = vrot.slane %v5495, 1
    %v5497 = vadd.f32 %v5495, %v5496
    %v5498 = vmul.f32 %v5497, %v2029
    %v5501 = vrot.slane %v5482, 7
    %v5502 = vrot.slane %v5487, 7
    %v5503 = vsel %vm2033, %v5501, %v5502
    %v5505 = vsel %vm5490, %v5503, 0.0
    %v5506 = vrot.slane %v5505, 4
    %v5507 = vadd.f32 %v5505, %v5506
    %v5508 = vrot.slane %v5507, 2
    %v5509 = vadd.f32 %v5507, %v5508
    %v5510 = vrot.slane %v5509, 1
    %v5511 = vadd.f32 %v5509, %v5510
    %v5512 = vmul.f32 %v5511, %v2029
    %v5513 = vsel %vm2033, %v5498, %v5512
    %v5514 = vld [vmem:[%s51] sm:$0xff]
    %v5515 = vld [vmem:[%s51 + $0x8] sm:$0xff]
    %v5516 = vld [vmem:[%s51 + $0x10] sm:$0xff]
    %v5517 = vld [vmem:[%s51 + $0x18] sm:$0xff]
    %v5518 = vld [vmem:[%s53] sm:$0x1]
    %v5520 = vlaneseq
    %v5521 = vshrl.u32 %v5520, 7
    %v5522 = vsub.s32 0, %v5521
    %v5523 = vrot.slane %v5518, %v5522
    %v5526 = vsel %vm2107, %v5513, 0
    %5528 = vmatprep.subr.mxu0 0.0
    %5529 = vmatpush1.msra.mxu0 %v5514
    %5530 = vmatprep.subr.mxu0 0.0
    %5531 = vmatpush1.msra.mxu0 %v5515
    %5532 = vmatprep.subr.mxu0 0.0
    %5533 = vmatpush1.msra.mxu0 %v5516
    %5534 = vmatprep.subr.mxu0 0.0
    %5535 = vmatpush1.msra.mxu0 %v5517
    %5536 = vmatprep.subr.mxu0 0.0
    %5537 = vmatpush1.msra.mxu0 0.0
    %5538 = vmatprep.subr.mxu0 0.0
    %5539 = vmatpush1.msra.mxu0 0.0
    %5540 = vmatprep.subr.mxu0 0.0
    %5541 = vmatpush1.msra.mxu0 0.0
    %5542 = vmatprep.subr.mxu0 0.0
    %5543 = vmatpush1.msra.mxu0 0.0
    %5544 = vmatprep.subr.mxu0 0.0
    %5545 = vmatpush1.msra.mxu0 0.0
    %5546 = vmatprep.subr.mxu0 0.0
    %5547 = vmatpush1.msra.mxu0 0.0
    %5548 = vmatprep.subr.mxu0 0.0
    %5549 = vmatpush1.msra.mxu0 0.0
    %5550 = vmatprep.subr.mxu0 0.0
    %5551 = vmatpush1.msra.mxu0 0.0
    %5552 = vmatprep.subr.mxu0 0.0
    %5553 = vmatpush1.msra.mxu0 0.0
    %5554 = vmatprep.subr.mxu0 0.0
    %5555 = vmatpush1.msra.mxu0 0.0
    %5556 = vmatprep.subr.mxu0 0.0
    %5557 = vmatpush1.msra.mxu0 0.0
    %5558 = vmatprep.subr.mxu0 0.0
    %5559 = vmatpush1.msra.mxu0 0.0
    %5560 = vmatprep.subr.mxu0 0.0
    %5561 = vmatpush1.msra.mxu0 0.0
    %5562 = vmatprep.subr.mxu0 0.0
    %5563 = vmatpush1.msra.mxu0 0.0
    %5564 = vmatprep.subr.mxu0 0.0
    %5565 = vmatpush1.msra.mxu0 0.0
    %5566 = vmatprep.subr.mxu0 0.0
    %5567 = vmatpush1.msra.mxu0 0.0
    %5568 = vmatprep.subr.mxu0 0.0
    %5569 = vmatpush1.msra.mxu0 0.0
    %5570 = vmatprep.subr.mxu0 0.0
    %5571 = vmatpush1.msra.mxu0 0.0
    %5572 = vmatprep.subr.mxu0 0.0
    %5573 = vmatpush1.msra.mxu0 0.0
    %5574 = vmatprep.subr.mxu0 0.0
    %5575 = vmatpush1.msra.mxu0 0.0
    %5576 = vmatprep.subr.mxu0 0.0
    %5577 = vmatpush1.msra.mxu0 0.0
    %5578 = vmatprep.subr.mxu0 0.0
    %5579 = vmatpush1.msra.mxu0 0.0
    %5580 = vmatprep.subr.mxu0 0.0
    %5581 = vmatpush1.msra.mxu0 0.0
    %5582 = vmatprep.subr.mxu0 0.0
    %5583 = vmatpush1.msra.mxu0 0.0
    %5584 = vmatprep.subr.mxu0 0.0
    %5585 = vmatpush1.msra.mxu0 0.0
    %5586 = vmatprep.subr.mxu0 0.0
    %5587 = vmatpush1.msra.mxu0 0.0
    %5588 = vmatprep.subr.mxu0 0.0
    %5589 = vmatpush1.msra.mxu0 0.0
    %5590 = vmatprep.subr.mxu0 0.0
    %5591 = vmatpush1.msra.mxu0 0.0
    %5592 = vmatprep.mubr.f32.mxu0 0.0
    %5593 = vmatmul.mubr.f32.gmra.mrb[0].mxu0 %v5526
    %v5594 = vpop.f32.mrb[0].mxu0
    %v5595 = vadd.f32 %v5523, %v5594
    %v5596 = vpop.f32.mrb[0].mxu0
    %5597 = vdwg.mxu0
    %v5598 = vmax.f32 %v5595, 0.0
    %v5599 = vld [vmem:[%s55] sm:$0xff]
    %v5600 = vld [vmem:[%s55 + $0x8] sm:$0xff]
    %v5601 = vld [vmem:[%s57] sm:$0x1]
    %v5603 = vlaneseq
    %v5604 = vshrl.u32 %v5603, 7
    %v5605 = vsub.s32 0, %v5604
    %v5606 = vrot.slane %v5601, %v5605
    %v5609 = vsel %vm2104, %v5598, 0
    %5611 = vmatprep.subr.mxu0 0.0
    %5612 = vmatpush1.msra.mxu0 %v5599
    %5613 = vmatprep.subr.mxu0 0.0
    %5614 = vmatpush1.msra.mxu0 %v5600
    %5615 = vmatprep.subr.mxu0 0.0
    %5616 = vmatpush1.msra.mxu0 0.0
    %5617 = vmatprep.subr.mxu0 0.0
    %5618 = vmatpush1.msra.mxu0 0.0
    %5619 = vmatprep.subr.mxu0 0.0
    %5620 = vmatpush1.msra.mxu0 0.0
    %5621 = vmatprep.subr.mxu0 0.0
    %5622 = vmatpush1.msra.mxu0 0.0
    %5623 = vmatprep.subr.mxu0 0.0
    %5624 = vmatpush1.msra.mxu0 0.0
    %5625 = vmatprep.subr.mxu0 0.0
    %5626 = vmatpush1.msra.mxu0 0.0
    %5627 = vmatprep.subr.mxu0 0.0
    %5628 = vmatpush1.msra.mxu0 0.0
    %5629 = vmatprep.subr.mxu0 0.0
    %5630 = vmatpush1.msra.mxu0 0.0
    %5631 = vmatprep.subr.mxu0 0.0
    %5632 = vmatpush1.msra.mxu0 0.0
    %5633 = vmatprep.subr.mxu0 0.0
    %5634 = vmatpush1.msra.mxu0 0.0
    %5635 = vmatprep.subr.mxu0 0.0
    %5636 = vmatpush1.msra.mxu0 0.0
    %5637 = vmatprep.subr.mxu0 0.0
    %5638 = vmatpush1.msra.mxu0 0.0
    %5639 = vmatprep.subr.mxu0 0.0
    %5640 = vmatpush1.msra.mxu0 0.0
    %5641 = vmatprep.subr.mxu0 0.0
    %5642 = vmatpush1.msra.mxu0 0.0
    %5643 = vmatprep.subr.mxu0 0.0
    %5644 = vmatpush1.msra.mxu0 0.0
    %5645 = vmatprep.subr.mxu0 0.0
    %5646 = vmatpush1.msra.mxu0 0.0
    %5647 = vmatprep.subr.mxu0 0.0
    %5648 = vmatpush1.msra.mxu0 0.0
    %5649 = vmatprep.subr.mxu0 0.0
    %5650 = vmatpush1.msra.mxu0 0.0
    %5651 = vmatprep.subr.mxu0 0.0
    %5652 = vmatpush1.msra.mxu0 0.0
    %5653 = vmatprep.subr.mxu0 0.0
    %5654 = vmatpush1.msra.mxu0 0.0
    %5655 = vmatprep.subr.mxu0 0.0
    %5656 = vmatpush1.msra.mxu0 0.0
    %5657 = vmatprep.subr.mxu0 0.0
    %5658 = vmatpush1.msra.mxu0 0.0
    %5659 = vmatprep.subr.mxu0 0.0
    %5660 = vmatpush1.msra.mxu0 0.0
    %5661 = vmatprep.subr.mxu0 0.0
    %5662 = vmatpush1.msra.mxu0 0.0
    %5663 = vmatprep.subr.mxu0 0.0
    %5664 = vmatpush1.msra.mxu0 0.0
    %5665 = vmatprep.subr.mxu0 0.0
    %5666 = vmatpush1.msra.mxu0 0.0
    %5667 = vmatprep.subr.mxu0 0.0
    %5668 = vmatpush1.msra.mxu0 0.0
    %5669 = vmatprep.subr.mxu0 0.0
    %5670 = vmatpush1.msra.mxu0 0.0
    %5671 = vmatprep.subr.mxu0 0.0
    %5672 = vmatpush1.msra.mxu0 0.0
    %5673 = vmatprep.subr.mxu0 0.0
    %5674 = vmatpush1.msra.mxu0 0.0
    %5675 = vmatprep.mubr.f32.mxu0 0.0
    %5676 = vmatmul.mubr.f32.gmra.mrb[0].mxu0 %v5609
    %v5677 = vpop.f32.mrb[0].mxu0
    %v5678 = vadd.f32 %v5606, %v5677
    %v5679 = vpop.f32.mrb[0].mxu0
    %5680 = vdwg.mxu0
    %v5681 = vxor.u32 %v5678, 2147483648
    %v5682 = vmul.f32 %v5681, 1.442695
    %v5683 = vpow.pop %v5682
    %v5684 = vadd.f32 %v5683, 1.0
    %v5685 = vrcp.pop %v5684
    %v5686 = vmul.f32 1.0, %v5685
    %v5687 = vld [vmem:[%s59] sm:$0xff]
    %v5688 = vld [vmem:[%s59 + $0x8] sm:$0xff]
    %v5689 = vld [vmem:[%s59 + $0x10] sm:$0xff]
    %v5690 = vld [vmem:[%s59 + $0x18] sm:$0xff]
    %v5691 = vld [vmem:[%s59 + $0x20] sm:$0xff]
    %v5692 = vld [vmem:[%s59 + $0x28] sm:$0xff]
    %v5693 = vld [vmem:[%s59 + $0x30] sm:$0xff]
    %v5694 = vld [vmem:[%s59 + $0x38] sm:$0xff]
    %v5696 = vsel %vm2107, %v5686, 0
    %5698 = vmatprep.subr.mxu0 %v5688
    %5699 = vmatpush1.msra.mxu0 %v5687
    %5700 = vmatprep.subr.mxu0 %v5690
    %5701 = vmatpush1.msra.mxu0 %v5689
    %5702 = vmatprep.subr.mxu0 %v5692
    %5703 = vmatpush1.msra.mxu0 %v5691
    %5704 = vmatprep.subr.mxu0 %v5694
    %5705 = vmatpush1.msra.mxu0 %v5693
    %5706 = vmatprep.subr.mxu0 0.0
    %5707 = vmatpush1.msra.mxu0 0.0
    %5708 = vmatprep.subr.mxu0 0.0
    %5709 = vmatpush1.msra.mxu0 0.0
    %5710 = vmatprep.subr.mxu0 0.0
    %5711 = vmatpush1.msra.mxu0 0.0
    %5712 = vmatprep.subr.mxu0 0.0
    %5713 = vmatpush1.msra.mxu0 0.0
    %5714 = vmatprep.subr.mxu0 0.0
    %5715 = vmatpush1.msra.mxu0 0.0
    %5716 = vmatprep.subr.mxu0 0.0
    %5717 = vmatpush1.msra.mxu0 0.0
    %5718 = vmatprep.subr.mxu0 0.0
    %5719 = vmatpush1.msra.mxu0 0.0
    %5720 = vmatprep.subr.mxu0 0.0
    %5721 = vmatpush1.msra.mxu0 0.0
    %5722 = vmatprep.subr.mxu0 0.0
    %5723 = vmatpush1.msra.mxu0 0.0
    %5724 = vmatprep.subr.mxu0 0.0
    %5725 = vmatpush1.msra.mxu0 0.0
    %5726 = vmatprep.subr.mxu0 0.0
    %5727 = vmatpush1.msra.mxu0 0.0
    %5728 = vmatprep.subr.mxu0 0.0
    %5729 = vmatpush1.msra.mxu0 0.0
    %5730 = vmatprep.subr.mxu0 0.0
    %5731 = vmatpush1.msra.mxu0 0.0
    %5732 = vmatprep.subr.mxu0 0.0
    %5733 = vmatpush1.msra.mxu0 0.0
    %5734 = vmatprep.subr.mxu0 0.0
    %5735 = vmatpush1.msra.mxu0 0.0
    %5736 = vmatprep.subr.mxu0 0.0
    %5737 = vmatpush1.msra.mxu0 0.0
    %5738 = vmatprep.subr.mxu0 0.0
    %5739 = vmatpush1.msra.mxu0 0.0
    %5740 = vmatprep.subr.mxu0 0.0
    %5741 = vmatpush1.msra.mxu0 0.0
    %5742 = vmatprep.subr.mxu0 0.0
    %5743 = vmatpush1.msra.mxu0 0.0
    %5744 = vmatprep.subr.mxu0 0.0
    %5745 = vmatpush1.msra.mxu0 0.0
    %5746 = vmatprep.subr.mxu0 0.0
    %5747 = vmatpush1.msra.mxu0 0.0
    %5748 = vmatprep.subr.mxu0 0.0
    %5749 = vmatpush1.msra.mxu0 0.0
    %5750 = vmatprep.subr.mxu0 0.0
    %5751 = vmatpush1.msra.mxu0 0.0
    %5752 = vmatprep.subr.mxu0 0.0
    %5753 = vmatpush1.msra.mxu0 0.0
    %5754 = vmatprep.subr.mxu0 0.0
    %5755 = vmatpush1.msra.mxu0 0.0
    %5756 = vmatprep.subr.mxu0 0.0
    %5757 = vmatpush1.msra.mxu0 0.0
    %5758 = vmatprep.subr.mxu0 0.0
    %5759 = vmatpush1.msra.mxu0 0.0
    %5760 = vmatprep.subr.mxu0 0.0
    %5761 = vmatpush1.msra.mxu0 0.0
    %5762 = vmatprep.mubr.f32.mxu0 0.0
    %5763 = vmatmul.mubr.f32.gmra.mrb[0].mxu0 %v5696
    %v5764 = vpop.f32.mrb[0].mxu0
    %v5765 = vadd.f32 0.0, %v5764
    %v5766 = vpop.f32.mrb[0].mxu0
    %v5767 = vadd.f32 0.0, %v5766
    %5768 = vdwg.mxu0
    %v5769 = vlaneseq
    %v5770 = vshrl.u32 %v5769, 7
    %v5771 = vsub.s32 0, %v5770
    %v5772 = vrot.slane %v5765, %v5771
    %v5773 = vlaneseq
    %v5774 = vshrl.u32 %v5773, 7
    %v5775 = vsub.s32 0, %v5774
    %v5776 = vrot.slane %v5767, %v5775
    %v5777 = vlaneseq
    %v5778 = vshrl.u32 %v5777, 7
    %v5779 = vsub.s32 1, %v5778
    %v5780 = vrot.slane %v5765, %v5779
    %v5781 = vlaneseq
    %v5782 = vshrl.u32 %v5781, 7
    %v5783 = vsub.s32 1, %v5782
    %v5784 = vrot.slane %v5767, %v5783
    %v5785 = vsel %vm2139, %v5772, %v5780
    %v5786 = vsel %vm2139, %v5776, %v5784
    %v5787 = vadd.f32 %v5785, 1.0
    %v5788 = vadd.f32 %v5786, 1.0
    %v5789 = vadd.f32 %v5780, 1.0
    %v5790 = vadd.f32 %v5784, 1.0
    %v5791 = vmul.f32 %v5379, %v5787
    %v5792 = vmul.f32 %v5380, %v5788
    %v5793 = vmul.f32 %v5381, %v5789
    %v5794 = vmul.f32 %v5382, %v5790
    %v5795 = vpack.c.bf16 %v5793, %v5791
    %v5796 = vpack.c.bf16 %v5794, %v5792
    %v5797 = vld [vmem:[%s61] sm:$0xff]
    %v5798 = vld [vmem:[%s61 + $0x8] sm:$0xff]
    %v5799 = vld [vmem:[%s61 + $0x10] sm:$0xff]
    %v5800 = vld [vmem:[%s61 + $0x18] sm:$0xff]
    %v5801 = vld [vmem:[%s61 + $0x20] sm:$0xff]
    %v5802 = vld [vmem:[%s61 + $0x28] sm:$0xff]
    %v5803 = vld [vmem:[%s61 + $0x30] sm:$0xff]
    %v5804 = vld [vmem:[%s61 + $0x38] sm:$0xff]
    %v5805 = vld [vmem:[%s61 + $0x40] sm:$0xff]
    %v5806 = vld [vmem:[%s61 + $0x48] sm:$0xff]
    %v5807 = vld [vmem:[%s61 + $0x50] sm:$0xff]
    %v5808 = vld [vmem:[%s61 + $0x58] sm:$0xff]
    %v5809 = vld [vmem:[%s61 + $0x60] sm:$0xff]
    %v5810 = vld [vmem:[%s61 + $0x68] sm:$0xff]
    %v5811 = vld [vmem:[%s61 + $0x70] sm:$0xff]
    %v5812 = vld [vmem:[%s61 + $0x78] sm:$0xff]
    %v5813 = vld [vmem:[%s61 + $0x80] sm:$0xff]
    %v5814 = vld [vmem:[%s61 + $0x88] sm:$0xff]
    %v5815 = vld [vmem:[%s61 + $0x90] sm:$0xff]
    %v5816 = vld [vmem:[%s61 + $0x98] sm:$0xff]
    %v5817 = vld [vmem:[%s61 + $0xa0] sm:$0xff]
    %v5818 = vld [vmem:[%s61 + $0xa8] sm:$0xff]
    %v5819 = vld [vmem:[%s61 + $0xb0] sm:$0xff]
    %v5820 = vld [vmem:[%s61 + $0xb8] sm:$0xff]
    %v5821 = vld [vmem:[%s61 + $0xc0] sm:$0xff]
    %v5822 = vld [vmem:[%s61 + $0xc8] sm:$0xff]
    %v5823 = vld [vmem:[%s61 + $0xd0] sm:$0xff]
    %v5824 = vld [vmem:[%s61 + $0xd8] sm:$0xff]
    %v5825 = vld [vmem:[%s61 + $0xe0] sm:$0xff]
    %v5826 = vld [vmem:[%s61 + $0xe8] sm:$0xff]
    %v5827 = vld [vmem:[%s61 + $0xf0] sm:$0xff]
    %v5828 = vld [vmem:[%s61 + $0xf8] sm:$0xff]
    %v5829 = vld [vmem:[%s63] sm:$0x3]
    %v5831 = vlaneseq
    %v5832 = vshrl.u32 %v5831, 7
    %v5833 = vsub.s32 0, %v5832
    %v5834 = vrot.slane %v5829, %v5833
    %v5835 = vlaneseq
    %v5836 = vshrl.u32 %v5835, 7
    %v5837 = vsub.s32 1, %v5836
    %v5838 = vrot.slane %v5829, %v5837
    %v5873 = vunpack.c.l.b16 %v5797
    %v5874 = vunpack.c.h.b16 %v5797
    %v5875 = vunpack.c.l.b16 %v5798
    %v5876 = vunpack.c.h.b16 %v5798
    %v5877 = vunpack.c.l.b16 %v5799
    %v5878 = vunpack.c.h.b16 %v5799
    %v5879 = vunpack.c.l.b16 %v5800
    %v5880 = vunpack.c.h.b16 %v5800
    %v5881 = vunpack.c.l.b16 %v5801
    %v5882 = vunpack.c.h.b16 %v5801
    %v5883 = vunpack.c.l.b16 %v5802
    %v5884 = vunpack.c.h.b16 %v5802
    %v5885 = vunpack.c.l.b16 %v5803
    %v5886 = vunpack.c.h.b16 %v5803
    %v5887 = vunpack.c.l.b16 %v5804
    %v5888 = vunpack.c.h.b16 %v5804
    %v5889 = vunpack.c.l.b16 %v5805
    %v5890 = vunpack.c.h.b16 %v5805
    %v5891 = vunpack.c.l.b16 %v5806
    %v5892 = vunpack.c.h.b16 %v5806
    %v5893 = vunpack.c.l.b16 %v5807
    %v5894 = vunpack.c.h.b16 %v5807
    %v5895 = vunpack.c.l.b16 %v5808
    %v5896 = vunpack.c.h.b16 %v5808
    %v5897 = vunpack.c.l.b16 %v5809
    %v5898 = vunpack.c.h.b16 %v5809
    %v5899 = vunpack.c.l.b16 %v5810
    %v5900 = vunpack.c.h.b16 %v5810
    %v5901 = vunpack.c.l.b16 %v5811
    %v5902 = vunpack.c.h.b16 %v5811
    %v5903 = vunpack.c.l.b16 %v5812
    %v5904 = vunpack.c.h.b16 %v5812
    %v5905 = vunpack.c.l.b16 %v5813
    %v5906 = vunpack.c.h.b16 %v5813
    %v5907 = vunpack.c.l.b16 %v5814
    %v5908 = vunpack.c.h.b16 %v5814
    %v5909 = vunpack.c.l.b16 %v5815
    %v5910 = vunpack.c.h.b16 %v5815
    %v5911 = vunpack.c.l.b16 %v5816
    %v5912 = vunpack.c.h.b16 %v5816
    %v5913 = vunpack.c.l.b16 %v5817
    %v5914 = vunpack.c.h.b16 %v5817
    %v5915 = vunpack.c.l.b16 %v5818
    %v5916 = vunpack.c.h.b16 %v5818
    %v5917 = vunpack.c.l.b16 %v5819
    %v5918 = vunpack.c.h.b16 %v5819
    %v5919 = vunpack.c.l.b16 %v5820
    %v5920 = vunpack.c.h.b16 %v5820
    %v5921 = vunpack.c.l.b16 %v5821
    %v5922 = vunpack.c.h.b16 %v5821
    %v5923 = vunpack.c.l.b16 %v5822
    %v5924 = vunpack.c.h.b16 %v5822
    %v5925 = vunpack.c.l.b16 %v5823
    %v5926 = vunpack.c.h.b16 %v5823
    %v5927 = vunpack.c.l.b16 %v5824
    %v5928 = vunpack.c.h.b16 %v5824
    %v5929 = vunpack.c.l.b16 %v5825
    %v5930 = vunpack.c.h.b16 %v5825
    %v5931 = vunpack.c.l.b16 %v5826
    %v5932 = vunpack.c.h.b16 %v5826
    %v5933 = vunpack.c.l.b16 %v5827
    %v5934 = vunpack.c.h.b16 %v5827
    %v5935 = vunpack.c.l.b16 %v5828
    %v5936 = vunpack.c.h.b16 %v5828
    %v5937 = vpack.c.b16 %v5875, %v5873
    %v5938 = vpack.c.b16 %v5876, %v5874
    %v5939 = vpack.c.b16 %v5879, %v5877
    %v5940 = vpack.c.b16 %v5880, %v5878
    %v5941 = vpack.c.b16 %v5883, %v5881
    %v5942 = vpack.c.b16 %v5884, %v5882
    %v5943 = vpack.c.b16 %v5887, %v5885
    %v5944 = vpack.c.b16 %v5888, %v5886
    %v5945 = vpack.c.b16 %v5891, %v5889
    %v5946 = vpack.c.b16 %v5892, %v5890
    %v5947 = vpack.c.b16 %v5895, %v5893
    %v5948 = vpack.c.b16 %v5896, %v5894
    %v5949 = vpack.c.b16 %v5899, %v5897
    %v5950 = vpack.c.b16 %v5900, %v5898
    %v5951 = vpack.c.b16 %v5903, %v5901
    %v5952 = vpack.c.b16 %v5904, %v5902
    %v5953 = vpack.c.b16 %v5907, %v5905
    %v5954 = vpack.c.b16 %v5908, %v5906
    %v5955 = vpack.c.b16 %v5911, %v5909
    %v5956 = vpack.c.b16 %v5912, %v5910
    %v5957 = vpack.c.b16 %v5915, %v5913
    %v5958 = vpack.c.b16 %v5916, %v5914
    %v5959 = vpack.c.b16 %v5919, %v5917
    %v5960 = vpack.c.b16 %v5920, %v5918
    %v5961 = vpack.c.b16 %v5923, %v5921
    %v5962 = vpack.c.b16 %v5924, %v5922
    %v5963 = vpack.c.b16 %v5927, %v5925
    %v5964 = vpack.c.b16 %v5928, %v5926
    %v5965 = vpack.c.b16 %v5931, %v5929
    %v5966 = vpack.c.b16 %v5932, %v5930
    %v5967 = vpack.c.b16 %v5935, %v5933
    %v5968 = vpack.c.b16 %v5936, %v5934
    %6001 = vmatprep.subr.bf16.mxu0 %v5938
    %6002 = vmatpush1.bf16.msra.mxu0 %v5937
    %6003 = vmatprep.subr.bf16.mxu0 %v5940
    %6004 = vmatpush1.bf16.msra.mxu0 %v5939
    %6005 = vmatprep.subr.bf16.mxu0 %v5942
    %6006 = vmatpush1.bf16.msra.mxu0 %v5941
    %6007 = vmatprep.subr.bf16.mxu0 %v5944
    %6008 = vmatpush1.bf16.msra.mxu0 %v5943
    %6009 = vmatprep.subr.bf16.mxu0 %v5946
    %6010 = vmatpush1.bf16.msra.mxu0 %v5945
    %6011 = vmatprep.subr.bf16.mxu0 %v5948
    %6012 = vmatpush1.bf16.msra.mxu0 %v5947
    %6013 = vmatprep.subr.bf16.mxu0 %v5950
    %6014 = vmatpush1.bf16.msra.mxu0 %v5949
    %6015 = vmatprep.subr.bf16.mxu0 %v5952
    %6016 = vmatpush1.bf16.msra.mxu0 %v5951
    %6017 = vmatprep.subr.bf16.mxu0 %v5954
    %6018 = vmatpush1.bf16.msra.mxu0 %v5953
    %6019 = vmatprep.subr.bf16.mxu0 %v5956
    %6020 = vmatpush1.bf16.msra.mxu0 %v5955
    %6021 = vmatprep.subr.bf16.mxu0 %v5958
    %6022 = vmatpush1.bf16.msra.mxu0 %v5957
    %6023 = vmatprep.subr.bf16.mxu0 %v5960
    %6024 = vmatpush1.bf16.msra.mxu0 %v5959
    %6025 = vmatprep.subr.bf16.mxu0 %v5962
    %6026 = vmatpush1.bf16.msra.mxu0 %v5961
    %6027 = vmatprep.subr.bf16.mxu0 %v5964
    %6028 = vmatpush1.bf16.msra.mxu0 %v5963
    %6029 = vmatprep.subr.bf16.mxu0 %v5966
    %6030 = vmatpush1.bf16.msra.mxu0 %v5965
    %6031 = vmatprep.subr.bf16.mxu0 %v5968
    %6032 = vmatpush1.bf16.msra.mxu0 %v5967
    %6033 = vmatprep.mubr.bf16.mxu0 %v5796
    %6034 = vmatmul.mubr.bf16.gmra.mrb[0].mxu0 %v5795
    %v6035 = vpop.f32.mrb[0].mxu0
    %v6036 = vadd.f32 %v5834, %v6035
    %v6037 = vpop.f32.mrb[0].mxu0
    %v6038 = vadd.f32 %v5838, %v6037
    %v6039 = vpop.f32.mrb[0].mxu0
    %v6040 = vadd.f32 %v5834, %v6039
    %v6041 = vpop.f32.mrb[0].mxu0
    %v6042 = vadd.f32 %v5838, %v6041
    %6043 = vdwg.mxu0
    %v6044 = vadd.f32 %v6036, %v3696
    %v6045 = vadd.f32 %v6038, %v3698
    %v6046 = vadd.f32 %v6040, %v3700
    %v6047 = vadd.f32 %v6042, %v3702
    %v6048 = vmax.f32 %v6044, 0.0
    %v6049 = vmax.f32 %v6045, 0.0
    %v6050 = vmax.f32 %v6046, 0.0
    %v6051 = vmax.f32 %v6047, 0.0
    %6052 = vmatprep.subr.mxu0 0.0
    %6053 = vmatpush1.msra.mxu0 %v5383
    %6054 = vmatprep.subr.mxu0 0.0
    %6055 = vmatpush1.msra.mxu0 %v5384
    %6056 = vmatprep.subr.mxu0 0.0
    %6057 = vmatpush1.msra.mxu0 %v5385
    %6058 = vmatprep.subr.mxu0 0.0
    %6059 = vmatpush1.msra.mxu0 %v5386
    %6060 = vmatprep.subr.mxu0 0.0
    %6061 = vmatpush1.msra.mxu0 %v5387
    %6062 = vmatprep.subr.mxu0 0.0
    %6063 = vmatpush1.msra.mxu0 %v5388
    %6064 = vmatprep.subr.mxu0 0.0
    %6065 = vmatpush1.msra.mxu0 %v5389
    %6066 = vmatprep.subr.mxu0 0.0
    %6067 = vmatpush1.msra.mxu0 %v5390
    %6068 = vmatprep.subr.mxu0 0.0
    %6069 = vmatpush1.msra.mxu0 %v5391
    %6070 = vmatprep.subr.mxu0 0.0
    %6071 = vmatpush1.msra.mxu0 %v5392
    %6072 = vmatprep.subr.mxu0 0.0
    %6073 = vmatpush1.msra.mxu0 %v5393
    %6074 = vmatprep.subr.mxu0 0.0
    %6075 = vmatpush1.msra.mxu0 %v5394
    %6076 = vmatprep.subr.mxu0 0.0
    %6077 = vmatpush1.msra.mxu0 %v5395
    %6078 = vmatprep.subr.mxu0 0.0
    %6079 = vmatpush1.msra.mxu0 %v5396
    %6080 = vmatprep.subr.mxu0 0.0
    %6081 = vmatpush1.msra.mxu0 %v5397
    %6082 = vmatprep.subr.mxu0 0.0
    %6083 = vmatpush1.msra.mxu0 %v5398
    %6084 = vmatprep.subr.mxu0 0.0
    %6085 = vmatpush1.msra.mxu0 %v5399
    %6086 = vmatprep.subr.mxu0 0.0
    %6087 = vmatpush1.msra.mxu0 %v5400
    %6088 = vmatprep.subr.mxu0 0.0
    %6089 = vmatpush1.msra.mxu0 %v5401
    %6090 = vmatprep.subr.mxu0 0.0
    %6091 = vmatpush1.msra.mxu0 %v5402
    %6092 = vmatprep.subr.mxu0 0.0
    %6093 = vmatpush1.msra.mxu0 %v5403
    %6094 = vmatprep.subr.mxu0 0.0
    %6095 = vmatpush1.msra.mxu0 %v5404
    %6096 = vmatprep.subr.mxu0 0.0
    %6097 = vmatpush1.msra.mxu0 %v5405
    %6098 = vmatprep.subr.mxu0 0.0
    %6099 = vmatpush1.msra.mxu0 %v5406
    %6100 = vmatprep.subr.mxu0 0.0
    %6101 = vmatpush1.msra.mxu0 %v5407
    %6102 = vmatprep.subr.mxu0 0.0
    %6103 = vmatpush1.msra.mxu0 %v5408
    %6104 = vmatprep.subr.mxu0 0.0
    %6105 = vmatpush1.msra.mxu0 %v5409
    %6106 = vmatprep.subr.mxu0 0.0
    %6107 = vmatpush1.msra.mxu0 %v5410
    %6108 = vmatprep.subr.mxu0 0.0
    %6109 = vmatpush1.msra.mxu0 %v5411
    %6110 = vmatprep.subr.mxu0 0.0
    %6111 = vmatpush1.msra.mxu0 %v5412
    %6112 = vmatprep.subr.mxu0 0.0
    %6113 = vmatpush1.msra.mxu0 %v5413
    %6114 = vmatprep.subr.mxu0 0.0
    %6115 = vmatpush1.msra.mxu0 %v5414
    %6116 = vmatprep.mubr.f32.mxu0 %v6049
    %6117 = vmatmul.mubr.f32.gmra.mrb[0].mxu0 %v6048
    %v6118 = vpop.f32.mrb[0].mxu0
    %v6119 = vadd.f32 0.0, %v6118
    %v6120 = vpop.f32.mrb[0].mxu0
    %6121 = vmatprep.mubr.f32.mxu0 %v6051
    %6122 = vmatmul.mubr.f32.gmra.mrb[0].mxu0 %v6050
    %v6123 = vpop.f32.mrb[0].mxu0
    %v6124 = vadd.f32 0.0, %v6123
    %v6125 = vpop.f32.mrb[0].mxu0
    %6126 = vdwg.mxu0
    %v6127 = vsel %vm5490, %v6119, 0.0
    %v6128 = vrot.slane %v6127, 4
    %v6129 = vadd.f32 %v6127, %v6128
    %v6130 = vrot.slane %v6129, 2
    %v6131 = vadd.f32 %v6129, %v6130
    %v6132 = vrot.slane %v6131, 1
    %v6133 = vadd.f32 %v6131, %v6132
    %v6134 = vmul.f32 %v6133, %v2029
    %v6137 = vrot.slane %v6119, 7
    %v6138 = vrot.slane %v6124, 7
    %v6139 = vsel %vm2033, %v6137, %v6138
    %v6141 = vsel %vm5490, %v6139, 0.0
    %v6142 = vrot.slane %v6141, 4
    %v6143 = vadd.f32 %v6141, %v6142
    %v6144 = vrot.slane %v6143, 2
    %v6145 = vadd.f32 %v6143, %v6144
    %v6146 = vrot.slane %v6145, 1
    %v6147 = vadd.f32 %v6145, %v6146
    %v6148 = vmul.f32 %v6147, %v2029
    %v6149 = vsel %vm2033, %v6134, %v6148
    %vm6150 = vcmask 254976
    %6151 = vst.msk [vmem:[#allocation7] sm:$0x3] %vm6150, %v6149
    %v6152 = vld [vmem:[%s67] sm:$0xff]
    %v6153 = vld [vmem:[%s67 + $0x8] sm:$0xff]
    %v6154 = vld [vmem:[%s67 + $0x10] sm:$0xff]
    %v6155 = vld [vmem:[%s67 + $0x18] sm:$0xff]
    %v6156 = vld [vmem:[%s67 + $0x20] sm:$0xff]
    %v6157 = vld [vmem:[%s67 + $0x28] sm:$0xff]
    %v6158 = vld [vmem:[%s67 + $0x30] sm:$0xff]
    %v6159 = vld [vmem:[%s67 + $0x38] sm:$0xff]
    %v6160 = vld [vmem:[%s67 + $0x40] sm:$0xff]
    %v6161 = vld [vmem:[%s67 + $0x48] sm:$0xff]
    %v6162 = vld [vmem:[%s67 + $0x50] sm:$0xff]
    %v6163 = vld [vmem:[%s67 + $0x58] sm:$0xff]
    %v6164 = vld [vmem:[%s67 + $0x60] sm:$0xff]
    %v6165 = vld [vmem:[%s67 + $0x68] sm:$0xff]
    %v6166 = vld [vmem:[%s67 + $0x70] sm:$0xff]
    %v6167 = vld [vmem:[%s67 + $0x78] sm:$0xff]
    %v6168 = vld [vmem:[%s67 + $0x80] sm:$0xff]
    %v6169 = vld [vmem:[%s67 + $0x88] sm:$0xff]
    %v6170 = vld [vmem:[%s67 + $0x90] sm:$0xff]
    %v6171 = vld [vmem:[%s67 + $0x98] sm:$0xff]
    %v6172 = vld [vmem:[%s67 + $0xa0] sm:$0xff]
    %v6173 = vld [vmem:[%s67 + $0xa8] sm:$0xff]
    %v6174 = vld [vmem:[%s67 + $0xb0] sm:$0xff]
    %v6175 = vld [vmem:[%s67 + $0xb8] sm:$0xff]
    %v6176 = vld [vmem:[%s67 + $0xc0] sm:$0xff]
    %v6177 = vld [vmem:[%s67 + $0xc8] sm:$0xff]
    %v6178 = vld [vmem:[%s67 + $0xd0] sm:$0xff]
    %v6179 = vld [vmem:[%s67 + $0xd8] sm:$0xff]
    %v6180 = vld [vmem:[%s67 + $0xe0] sm:$0xff]
    %v6181 = vld [vmem:[%s67 + $0xe8] sm:$0xff]
    %v6182 = vld [vmem:[%s67 + $0xf0] sm:$0xff]
    %v6183 = vld [vmem:[%s67 + $0xf8] sm:$0xff]
    %6184 = vmatprep.subr.mxu0 0.0
    %6185 = vmatpush1.msra.mxu0 %v6152
    %6186 = vmatprep.subr.mxu0 0.0
    %6187 = vmatpush1.msra.mxu0 %v6153
    %6188 = vmatprep.subr.mxu0 0.0
    %6189 = vmatpush1.msra.mxu0 %v6154
    %6190 = vmatprep.subr.mxu0 0.0
    %6191 = vmatpush1.msra.mxu0 %v6155
    %6192 = vmatprep.subr.mxu0 0.0
    %6193 = vmatpush1.msra.mxu0 %v6156
    %6194 = vmatprep.subr.mxu0 0.0
    %6195 = vmatpush1.msra.mxu0 %v6157
    %6196 = vmatprep.subr.mxu0 0.0
    %6197 = vmatpush1.msra.mxu0 %v6158
    %6198 = vmatprep.subr.mxu0 0.0
    %6199 = vmatpush1.msra.mxu0 %v6159
    %6200 = vmatprep.subr.mxu0 0.0
    %6201 = vmatpush1.msra.mxu0 %v6160
    %6202 = vmatprep.subr.mxu0 0.0
    %6203 = vmatpush1.msra.mxu0 %v6161
    %6204 = vmatprep.subr.mxu0 0.0
    %6205 = vmatpush1.msra.mxu0 %v6162
    %6206 = vmatprep.subr.mxu0 0.0
    %6207 = vmatpush1.msra.mxu0 %v6163
    %6208 = vmatprep.subr.mxu0 0.0
    %6209 = vmatpush1.msra.mxu0 %v6164
    %6210 = vmatprep.subr.mxu0 0.0
    %6211 = vmatpush1.msra.mxu0 %v6165
    %6212 = vmatprep.subr.mxu0 0.0
    %6213 = vmatpush1.msra.mxu0 %v6166
    %6214 = vmatprep.subr.mxu0 0.0
    %6215 = vmatpush1.msra.mxu0 %v6167
    %6216 = vmatprep.subr.mxu0 0.0
    %6217 = vmatpush1.msra.mxu0 %v6168
    %6218 = vmatprep.subr.mxu0 0.0
    %6219 = vmatpush1.msra.mxu0 %v6169
    %6220 = vmatprep.subr.mxu0 0.0
    %6221 = vmatpush1.msra.mxu0 %v6170
    %6222 = vmatprep.subr.mxu0 0.0
    %6223 = vmatpush1.msra.mxu0 %v6171
    %6224 = vmatprep.subr.mxu0 0.0
    %6225 = vmatpush1.msra.mxu0 %v6172
    %6226 = vmatprep.subr.mxu0 0.0
    %6227 = vmatpush1.msra.mxu0 %v6173
    %6228 = vmatprep.subr.mxu0 0.0
    %6229 = vmatpush1.msra.mxu0 %v6174
    %6230 = vmatprep.subr.mxu0 0.0
    %6231 = vmatpush1.msra.mxu0 %v6175
    %6232 = vmatprep.subr.mxu0 0.0
    %6233 = vmatpush1.msra.mxu0 %v6176
    %6234 = vmatprep.subr.mxu0 0.0
    %6235 = vmatpush1.msra.mxu0 %v6177
    %6236 = vmatprep.subr.mxu0 0.0
    %6237 = vmatpush1.msra.mxu0 %v6178
    %6238 = vmatprep.subr.mxu0 0.0
    %6239 = vmatpush1.msra.mxu0 %v6179
    %6240 = vmatprep.subr.mxu0 0.0
    %6241 = vmatpush1.msra.mxu0 %v6180
    %6242 = vmatprep.subr.mxu0 0.0
    %6243 = vmatpush1.msra.mxu0 %v6181
    %6244 = vmatprep.subr.mxu0 0.0
    %6245 = vmatpush1.msra.mxu0 %v6182
    %6246 = vmatprep.subr.mxu0 0.0
    %6247 = vmatpush1.msra.mxu0 %v6183
    %6248 = vmatprep.mubr.f32.mxu0 %v6049
    %6249 = vmatmul.mubr.f32.gmra.mrb[0].mxu0 %v6048
    %v6250 = vpop.f32.mrb[0].mxu0
    %v6251 = vadd.f32 0.0, %v6250
    %v6252 = vpop.f32.mrb[0].mxu0
    %6253 = vmatprep.mubr.f32.mxu0 %v6051
    %6254 = vmatmul.mubr.f32.gmra.mrb[0].mxu0 %v6050
    %v6255 = vpop.f32.mrb[0].mxu0
    %v6256 = vadd.f32 0.0, %v6255
    %v6257 = vpop.f32.mrb[0].mxu0
    %6258 = vdwg.mxu0
    %6259 = vst.msk [vmem:[%s71] sm:$0x7f] %vm2021, %v6251
    %s6260 = scalar_lea.vmem %s71, 8
    %vm6261 = vcmask 64519
    %6262 = vst.msk [vmem:[%s6260 - $0x7] sm:$0x80] %vm6261, %v6251
    %vm6263 = vcmask 62464
    %6264 = vst.msk [vmem:[%s6260 + $0x1] sm:$0x3f] %vm6263, %v6256
    // Predicated region
    $region146: #{_lambda_.1} parent=1 // pred_check
      _
    $region147: #{_lambda_.1} parent=1 // pred_check_branch
      %6266 = sbr.rel (0) target = $region149
    $region148: #{_lambda_.1} parent=1 // pred_region
      %s6268 = ssub.s32 32, 32
      %6269 = vsyncadd [#allocation3], %s6268
      %s6271 = sshll.u32 [#allocation7], 4
      %s6272 = int_to_ptr.vmem [resolvable:$true] %s6271
      %6274 = dma.vmem_to_hbm [thread:$0]  %s6272, 32, %s69, [#allocation3]
    $region149: #{_lambda_.1} parent=1 // pred_fallthru
      _
    // Predicated region
    $region150: #{_lambda_.1} parent=1 // pred_check
      _
    $region151: #{_lambda_.1} parent=1 // pred_check_branch
      %6276 = sbr.rel (0) target = $region153
    $region152: #{_lambda_.1} parent=1 // pred_region
      _
    $region153: #{_lambda_.1} parent=1 // pred_fallthru
      _
    // Predicated region
    $region154: #{_lambda_.1} parent=1 // pred_check
      _
    $region155: #{_lambda_.1} parent=1 // pred_check_branch
      %6278 = sbr.rel (0) target = $region157
    $region156: #{_lambda_.1} parent=1 // pred_region
      %6279 = dma.done [#allocation3], 32
    $region157: #{_lambda_.1} parent=1 // pred_fallthru
      _
    // Predicated region
    $region158: #{_lambda_.1} parent=1 // pred_check
      _
    $region159: #{_lambda_.1} parent=1 // pred_check_branch
      %6281 = sbr.rel (0) target = $region161
    $region160: #{_lambda_.1} parent=1 // pred_region
      _
    $region161: #{_lambda_.1} parent=1 // pred_fallthru
      _
    %6282 = vsyncpa [#allocation3], 1
    %6283 = vsyncpa [#allocation4], 1
    %6284 = vsyncpa [#allocation6], 1

</llo_original>
